<compile_context>
chip_gen: v6e
topology: v6e:2x2x1
jax: 0.10.0
libtpu: 0.0.40
codegen_flags: <defaults>
</compile_context>

<pallas_src>
import functools
import math

import jax
import jax.numpy as jnp
from jax.experimental import pallas as pl
from jax.experimental.pallas import tpu as pltpu

_MXU_DTYPE = jnp.bfloat16  # operand dtype at MXU boundaries; accumulation is f32


# ------------------------------ small shared helpers -------------------------------------

def _mm(a, b):
    """Matmul with bf16 operands and f32 accumulation (MXU-boundary cast)."""
    return jnp.dot(a.astype(_MXU_DTYPE), b.astype(_MXU_DTYPE),
                   preferred_element_type=jnp.float32)


def _ln_channels(x, eps):
    # x: [C, T]; LayerNorm over the channel axis (f32).
    mean = jnp.mean(x, axis=0, keepdims=True)
    var = jnp.mean((x - mean) ** 2, axis=0, keepdims=True)
    return (x - mean) * jax.lax.rsqrt(var + eps)


def _silu(x):
    # numerically-safe sigmoid via tanh (supported on VPU/EUP everywhere)
    return x * (0.5 * (jnp.tanh(0.5 * x) + 1.0))


# ------------------------------------ Pallas kernel ---------------------------------------

def _decoder_block_kernel(len_ref, hlen_ref,                 # scalar-prefetch (SMEM)
                          x_ref, h_ref, utt_ref,             # per-batch activations
                          mod_w1t_ref, mod_w2t_ref,
                          sa_wqkv_ref, sa_wo_ref,
                          ca_wqkv_ref, ca_wo_ref,
                          ff_w1_ref, ff_w2_ref,
                          bias_ref,                          # packed f32 bias slab
                          out_ref,
                          *, hidden, n_heads, t_pad, tc_pad, bias_slices,
                          q_tile, k_tile, exp_dtype, fuse_conv_taps):
    b = pl.program_id(0)
    H = hidden
    inner = sa_wo_ref.shape[1]
    k_ch = inner // n_heads

    bias_all = bias_ref[...]                                  # [NB, 1] f32

    def bias(name):
        off, size = bias_slices[name]
        return bias_all[off:off + size, :]                    # static sublane slice

    # ---- masks built in-kernel from prefetched lengths (no dense-mask DMA) ----
    L = len_ref[b]
    Lc = hlen_ref[b]
    lane_t = jax.lax.broadcasted_iota(jnp.int32, (1, t_pad), 1)
    xmask = (lane_t < L).astype(jnp.float32)                  # [1, T] valid columns
    not_first = (lane_t > 0).astype(jnp.float32)              # conv roll edge masks
    not_last = (lane_t < (t_pad - 1)).astype(jnp.float32)
    # key-validity masks in [1, Tk, 1] (sublane) layout for the [h, k, q] score blocks
    kmask3_self = jax.lax.broadcasted_iota(jnp.int32, (1, t_pad, 1), 1) < L
    kmask3_cross = jax.lax.broadcasted_iota(jnp.int32, (1, tc_pad, 1), 1) < Lc
    # NOTE: key-only masking is correct ONLY because (a) padded key columns are
    # masked here, (b) ff_in/y are multiplied by xmask before each conv, and
    # (c) the final output is multiplied by xmask — do not remove those.

    x = x_ref[0]        # [H, T]  f32 (residual stream stays f32)
    hcond = h_ref[0]    # [H, Tc] f32
    utt = utt_ref[0]    # [U, 1]  f32

    # ---- modulation MLP as a column pipeline (f32, zero transposes) ----
    m1 = jnp.dot(mod_w1t_ref[...], utt,
                 preferred_element_type=jnp.float32) + bias("mod_b1")        # [H, 1]
    m1 = _silu(m1)
    m2 = jnp.dot(mod_w2t_ref[...], m1,
                 preferred_element_type=jnp.float32) + bias("mod_b2")        # [6H, 1]
    shift_msa = m2[0 * H:1 * H]      # [H, 1] broadcasts over T
    scale_msa = m2[1 * H:2 * H]
    gate_msa = m2[2 * H:3 * H]
    shift_mlp = m2[3 * H:4 * H]
    scale_mlp = m2[4 * H:5 * H]
    gate_mlp = m2[5 * H:6 * H]

    # ---- flash-style batched multi-head attention (no [nh, T, T] materialization) ----
    def mha(xq, xc, kmask3, wqkv, bqkv, wo, bo, fused_qkv):
        tq = xq.shape[1]
        tk = xc.shape[1]
        if fused_qkv:                                   # self-attention: one slab matmul
            qkv = _mm(wqkv, xq) + bqkv                  # [3I, Tq]
            q, k, v = qkv[:inner], qkv[inner:2 * inner], qkv[2 * inner:]
        else:                                           # cross-attention: q slab + kv slab
            q = _mm(wqkv[:inner], xq) + bqkv[:inner]    # [I, Tq]
            kv = _mm(wqkv[inner:], xc) + bqkv[inner:]   # [2I, Tk]
            k, v = kv[:inner], kv[inner:]
        # scale 1/sqrt(k_ch) already folded into wq/bq host-side
        qh = q.reshape(n_heads, k_ch, tq).astype(_MXU_DTYPE)   # [nh, d, Tq]
        kh = k.reshape(n_heads, k_ch, tk).astype(_MXU_DTYPE)   # [nh, d, Tk]
        vh = v.reshape(n_heads, k_ch, tk).astype(_MXU_DTYPE)   # [nh, d, Tk]

        qt = min(q_tile, tq)
        kt = min(k_tile, tk)
        o_parts = []
        for qs in range(0, tq, qt):                     # static query-tile loop
            cq = min(qt, tq - qs)
            q_blk = qh[:, :, qs:qs + cq]
            m = jnp.full((n_heads, 1, cq), -1e30, jnp.float32)
            l = jnp.zeros((n_heads, 1, cq), jnp.float32)
            acc = jnp.zeros((n_heads, k_ch, cq), jnp.float32)
            for ks in range(0, tk, kt):                 # static key-tile loop (online softmax)
                ck = min(kt, tk - ks)
                k_blk = kh[:, :, ks:ks + ck]
                v_blk = vh[:, :, ks:ks + ck]
                msk = kmask3[:, ks:ks + ck, :]                              # [1, ck, 1]
                s = jnp.einsum("hdk,hdq->hkq", k_blk, q_blk,
                               preferred_element_type=jnp.float32)          # [nh, ck, cq]
                s = jnp.where(msk, s, -1e4)             # masked_fill(mask==0, -1e4)
                m_new = jnp.maximum(m, jnp.max(s, axis=1, keepdims=True))   # [nh, 1, cq]
                alpha = jnp.exp(m - m_new)
                p = jnp.exp((s - m_new).astype(exp_dtype))                  # bf16 on v6e/v7x
                l = alpha * l + jnp.sum(p, axis=1, keepdims=True, dtype=jnp.float32)
                acc = alpha * acc + jnp.einsum(
                    "hdk,hkq->hdq", v_blk, p.astype(_MXU_DTYPE),
                    preferred_element_type=jnp.float32)                     # [nh, d, cq]
                m = m_new
            o_parts.append(acc * pl.reciprocal(l, approx=True))
        o = o_parts[0] if len(o_parts) == 1 else jnp.concatenate(o_parts, axis=2)
        return _mm(wo, o.reshape(inner, tq)) + bo                 # [H, Tq]

    # ---- self-attention branch (norm_1: eps=1e-6, no affine) ----
    attn_in = _ln_channels(x, 1e-6) * (1.0 + scale_msa) + shift_msa
    sa = mha(attn_in, attn_in, kmask3_self,
             sa_wqkv_ref[...], bias("sa_bqkv"), sa_wo_ref[...], bias("sa_bo"),
             fused_qkv=True)
    x = gate_msa * sa + x

    # ---- cross-attention branch (norm_2: VITS channel LayerNorm, eps=1e-5, affine) ----
    cross_in = _ln_channels(x, 1e-5) * bias("n2_gamma") + bias("n2_beta")
    ca = mha(cross_in, hcond, kmask3_cross,
             ca_wqkv_ref[...], bias("ca_bqkv"), ca_wo_ref[...], bias("ca_bo"),
             fused_qkv=False)
    x = ca + x

    # ---- FFN branch: K=3 "same" conv ----
    def conv3(xm, w_ref, bcol):
        # xm: [Cin, T] (already masked); taps ordered (t-1, t, t+1)
        left = pltpu.roll(xm, shift=1, axis=1) * not_first            # x[t-1]
        right = pltpu.roll(xm, shift=t_pad - 1, axis=1) * not_last    # x[t+1]
        if fuse_conv_taps:
            # v6e/v7x: single [Cout, 3Cin] x [3Cin, T] matmul (fills the 256-deep MXU)
            stack = jnp.concatenate([left, xm, right], axis=0)        # [3*Cin, T]
            return _mm(w_ref[...], stack) + bcol
        # v5e: three accumulating [Cout, Cin] matmuls, no [3Cin, T] materialization
        w = w_ref[...]                                                # [3, Cout, Cin]
        return _mm(w[0], left) + _mm(w[1], xm) + _mm(w[2], right) + bcol

    ff_in = _ln_channels(x, 1e-6) * (1.0 + scale_mlp) + shift_mlp
    y = conv3(ff_in * xmask, ff_w1_ref, bias("ff_b1"))
    y = jnp.maximum(y, 0.0)
    y = conv3(y * xmask, ff_w2_ref, bias("ff_b2"))
    x = gate_mlp * (y * xmask) + x

    out_ref[0] = (x * xmask).astype(out_ref.dtype)


# ------------------------------ parameter packing (host side) -----------------------------
# Call ONCE at model load (not per forward) — weight fusion / im2col / casts are hoisted.

_WEIGHT_NAMES = ("mod_w1t", "mod_w2t", "sa_wqkv", "sa_wo", "ca_wqkv", "ca_wo",
                 "ff_w1", "ff_w2")


def prepare_params(params, *, n_heads, fuse_conv_taps=True):
    inner = params["sa_wq"].shape[0]
    k_ch = inner // n_heads
    scale = 1.0 / math.sqrt(k_ch)

    def qkv_slab(prefix):
        w = jnp.concatenate([params[f"{prefix}_wq"] * scale,     # fold attention scale
                             params[f"{prefix}_wk"],
                             params[f"{prefix}_wv"]], axis=0)
        b = jnp.concatenate([params[f"{prefix}_bq"] * scale,
                             params[f"{prefix}_bk"],
                             params[f"{prefix}_bv"]], axis=0)
        return w, b

    sa_wqkv, sa_bqkv = qkv_slab("sa")
    ca_wqkv, ca_bqkv = qkv_slab("ca")

    def conv_w(w):  # [K, Cout, Cin]
        if fuse_conv_taps:
            K, cout, cin = w.shape
            return jnp.transpose(w, (1, 0, 2)).reshape(cout, K * cin).astype(_MXU_DTYPE)
        return w.astype(_MXU_DTYPE)     # per-tap layout, indexed in-kernel

    weights = {
        "mod_w1t": params["mod_w1"].T.astype(jnp.float32),    # modulation stays f32
        "mod_w2t": params["mod_w2"].T.astype(jnp.float32),
        "sa_wqkv": sa_wqkv.astype(_MXU_DTYPE),
        "sa_wo": params["sa_wo"].astype(_MXU_DTYPE),
        "ca_wqkv": ca_wqkv.astype(_MXU_DTYPE),
        "ca_wo": params["ca_wo"].astype(_MXU_DTYPE),
        "ff_w1": conv_w(params["ff_w1"]),
        "ff_w2": conv_w(params["ff_w2"]),
    }

    # all small [*, 1] f32 biases / affine vectors packed into ONE slab
    bias_items = [
        ("mod_b1", params["mod_b1"].T),
        ("mod_b2", params["mod_b2"].T),
        ("sa_bqkv", sa_bqkv),
        ("sa_bo", params["sa_bo"]),
        ("n2_gamma", params["n2_gamma"]),
        ("n2_beta", params["n2_beta"]),
        ("ca_bqkv", ca_bqkv),
        ("ca_bo", params["ca_bo"]),
        ("ff_b1", params["ff_b1"]),
        ("ff_b2", params["ff_b2"]),
    ]
    chunks, slices, off = [], {}, 0
    for name, col in bias_items:
        n = int(col.shape[0])
        pad = (-n) % 8                                   # keep sublane-aligned offsets
        chunks.append(jnp.pad(col.astype(jnp.float32), ((0, pad), (0, 0))))
        slices[name] = (off, n)
        off += n + pad
    bias_slab = jnp.concatenate(chunks, axis=0)
    return {"weights": weights, "bias_slab": bias_slab, "bias_slices": slices,
            "fuse_conv_taps": fuse_conv_taps}


# ------------------------------ chip-specific static choices ------------------------------

def tpu_flags():
    """Static per-generation choices; every path is numerically safe on every chip."""
    kind = ""
    try:
        kind = jax.devices()[0].device_kind.lower()
    except Exception:
        pass
    is_v5 = "v5" in kind
    try:
        vmem_cap = int(pltpu.get_tpu_info().vmem_capacity_bytes)
    except Exception:
        vmem_cap = 64 * 1024 * 1024                       # conservative (v7x per-TC)
    vmem_limit = max(32 * 1024 * 1024, vmem_cap - 16 * 1024 * 1024)  # compiler headroom
    return {
        "fuse_conv_taps": not is_v5,                      # 3Cin fused matmul only pays on 256-deep MXU
        "softmax_exp_dtype": jnp.float32 if is_v5 else jnp.bfloat16,  # v5e EUP has no bf16 path
        "vmem_limit_bytes": vmem_limit,
    }


# ------------------------------------ Pallas wrapper ---------------------------------------

def decoder_block_pallas(x, lengths, h, h_lengths, utt_emb, prepared, *, hidden, n_heads,
                         q_tile=512, k_tile=512,
                         softmax_exp_dtype=jnp.bfloat16,
                         vmem_limit_bytes=96 * 1024 * 1024,
                         single_buffer_weights=True):
    B, C, T = x.shape
    Tc = h.shape[-1]
    U = utt_emb.shape[-1]

    # lane-dense padding of the time axes (multiple of 128); padded cols are masked in-kernel
    t_pad = max(128, ((T + 127) // 128) * 128)
    tc_pad = max(128, ((Tc + 127) // 128) * 128)
    x_p = jnp.pad(x, ((0, 0), (0, 0), (0, t_pad - T)))
    h_p = jnp.pad(h, ((0, 0), (0, 0), (0, tc_pad - Tc)))
    utt_col = utt_emb[:, :, None]                        # [B, U, 1] column layout

    weights = prepared["weights"]
    bias_slab = prepared["bias_slab"]
    w_list = [weights[n] for n in _WEIGHT_NAMES]

    kernel = functools.partial(
        _decoder_block_kernel, hidden=hidden, n_heads=n_heads,
        t_pad=t_pad, tc_pad=tc_pad, bias_slices=prepared["bias_slices"],
        q_tile=q_tile, k_tile=k_tile, exp_dtype=softmax_exp_dtype,
        fuse_conv_taps=prepared["fuse_conv_taps"])

    def bspec(shape):  # per-batch activation block (full trailing dims), double-buffered
        return pl.BlockSpec((1,) + shape, lambda b, *_: (b,) + (0,) * len(shape))

    def run(single_buf):
        def wspec(shape):  # constant weight slab: identical across the grid
            idx = lambda b, *_: (0,) * len(shape)
            if single_buf:  # single-buffer (no re-fetch ever happens -> halve its VMEM)
                return pl.BlockSpec(shape, idx, pipeline_mode=pl.Buffered(1))
            return pl.BlockSpec(shape, idx)

        in_specs = ([bspec((C, t_pad)), bspec((C, tc_pad)), bspec((U, 1))]
                    + [wspec(w.shape) for w in w_list]
                    + [wspec(bias_slab.shape)])

        return pl.pallas_call(
            kernel,
            out_shape=jax.ShapeDtypeStruct((B, C, t_pad), x.dtype),
            grid_spec=pltpu.PrefetchScalarGridSpec(
                num_scalar_prefetch=2,                    # lengths, h_lengths -> SMEM
                grid=(B,),
                in_specs=in_specs,
                out_specs=bspec((C, t_pad)),
            ),
            compiler_params=pltpu.CompilerParams(
                dimension_semantics=("parallel",),        # batch splits across TCs on v7x
                vmem_limit_bytes=int(vmem_limit_bytes)),
        )(lengths.astype(jnp.int32), h_lengths.astype(jnp.int32),
          x_p, h_p, utt_col, *w_list, bias_slab)

    if single_buffer_weights:
        try:
            out = jax.block_until_ready(run(True))
            return out[:, :, :T]
        except Exception:
            pass  # fall back to default double-buffered weight specs
    return run(False)[:, :, :T]


# --------------------- XLA reference (natural layout, same precision policy) ----------------

def _ref_mha(xq, xc, mask, wq, bq, wk, bk, wv, bv, wo, bo, n_heads):
    inner = wq.shape[0]
    k_ch = inner // n_heads
    q = _mm(wq, xq) + bq
    k = _mm(wk, xc) + bk
    v = _mm(wv, xc) + bv
    scale = 1.0 / math.sqrt(k_ch)
    outs = []
    for hh in range(n_heads):
        sl = slice(hh * k_ch, (hh + 1) * k_ch)
        qh, kh, vh = q[sl], k[sl], v[sl]
        s = _mm(qh.T * scale, kh)                        # [Tq, Tk]
        s = jnp.where(mask == 0.0, -1e4, s)
        smax = jnp.max(s, axis=-1, keepdims=True)
        p = jnp.exp(s - smax)
        p = p / jnp.sum(p, axis=-1, keepdims=True)
        outs.append(_mm(p, vh.T).T)                      # [k_ch, Tq]
    o = jnp.concatenate(outs, axis=0)
    return _mm(wo, o) + bo


def _ref_conv1d_same(x, w, b):
    K = w.shape[0]
    pad = K // 2
    cin, t = x.shape
    acc = None
    for tap in range(K):
        off = tap - pad
        if off < 0:
            shifted = jnp.concatenate([jnp.zeros((cin, -off), x.dtype), x[:, :t + off]], axis=1)
        elif off > 0:
            shifted = jnp.concatenate([x[:, off:], jnp.zeros((cin, off), x.dtype)], axis=1)
        else:
            shifted = x
        term = _mm(w[tap], shifted)
        acc = term if acc is None else acc + term
    return acc + b


def decoder_block_ref(x, lengths, h, h_lengths, utt_emb, params, *, hidden, n_heads):
    B, C, T = x.shape
    Tc = h.shape[-1]
    H = hidden
    x_mask = (jnp.arange(T)[None] < lengths[:, None]).astype(jnp.float32)[:, None, :]
    h_mask = (jnp.arange(Tc)[None] < h_lengths[:, None]).astype(jnp.float32)[:, None, :]
    attn_mask = x_mask[:, :, :, None] * x_mask[:, :, None, :]        # [B,1,T,T]
    cond_attn_mask = x_mask[:, :, :, None] * h_mask[:, :, None, :]   # [B,1,T,Tc]
    outs = []
    for bi in range(B):
        xb, xm, hb = x[bi], x_mask[bi], h[bi]
        am, cam = attn_mask[bi, 0], cond_attn_mask[bi, 0]
        utt = utt_emb[bi:bi + 1]                                     # [1, U]

        m1 = jnp.dot(utt, params["mod_w1"], preferred_element_type=jnp.float32) + params["mod_b1"]
        m1 = _silu(m1)
        m2 = jnp.dot(m1, params["mod_w2"], preferred_element_type=jnp.float32) + params["mod_b2"]
        shift_msa = m2[:, 0 * H:1 * H].T
        scale_msa = m2[:, 1 * H:2 * H].T
        gate_msa = m2[:, 2 * H:3 * H].T
        shift_mlp = m2[:, 3 * H:4 * H].T
        scale_mlp = m2[:, 4 * H:5 * H].T
        gate_mlp = m2[:, 5 * H:6 * H].T

        attn_in = _ln_channels(xb, 1e-6) * (1.0 + scale_msa) + shift_msa
        sa = _ref_mha(attn_in, attn_in, am,
                      params["sa_wq"], params["sa_bq"], params["sa_wk"], params["sa_bk"],
                      params["sa_wv"], params["sa_bv"], params["sa_wo"], params["sa_bo"],
                      n_heads)
        xb = gate_msa * sa + xb

        cross_in = _ln_channels(xb, 1e-5) * params["n2_gamma"] + params["n2_beta"]
        ca = _ref_mha(cross_in, hb, cam,
                      params["ca_wq"], params["ca_bq"], params["ca_wk"], params["ca_bk"],
                      params["ca_wv"], params["ca_bv"], params["ca_wo"], params["ca_bo"],
                      n_heads)
        xb = ca + xb

        ff_in = _ln_channels(xb, 1e-6) * (1.0 + scale_mlp) + shift_mlp
        y = _ref_conv1d_same(ff_in * xm, params["ff_w1"], params["ff_b1"])
        y = jnp.maximum(y, 0.0)
        y = _ref_conv1d_same(y * xm, params["ff_w2"], params["ff_b2"])
        xb = gate_mlp * (y * xm) + xb
        outs.append(xb * xm)
    return jnp.stack(outs, axis=0)


# ------------------------------- deterministic parameter init ------------------------------

def init_params(key, hidden, filter_channels, n_heads, utt_emb_dim, kernel_size):
    H, F_, U, K = hidden, filter_channels, utt_emb_dim, kernel_size
    inner = H  # dim_head=None -> k_channels = H // n_heads, inner dim = H
    keys = iter(jax.random.split(key, 32))

    def w(shape, fan_in):
        return jax.random.normal(next(keys), shape, jnp.float32) / math.sqrt(fan_in)

    def b(shape):
        return 0.1 * jax.random.normal(next(keys), shape, jnp.float32)

    def attn_params(prefix):
        return {
            f"{prefix}_wq": w((inner, H), H), f"{prefix}_bq": b((inner, 1)),
            f"{prefix}_wk": w((inner, H), H), f"{prefix}_bk": b((inner, 1)),
            f"{prefix}_wv": w((inner, H), H), f"{prefix}_bv": b((inner, 1)),
            f"{prefix}_wo": w((H, inner), inner), f"{prefix}_bo": b((H, 1)),
        }

    p = {
        "mod_w1": w((U, H), U), "mod_b1": b((1, H)),
        "mod_w2": w((H, 6 * H), H), "mod_b2": b((1, 6 * H)),
        "n2_gamma": jnp.ones((H, 1), jnp.float32),
        "n2_beta": jnp.zeros((H, 1), jnp.float32),
        "ff_w1": w((K, F_, H), H * K), "ff_b1": b((F_, 1)),
        "ff_w2": w((K, H, F_), F_ * K), "ff_b2": b((H, 1)),
    }
    p.update(attn_params("sa"))
    p.update(attn_params("ca"))
    return p


# ----------------------------------------- main --------------------------------------------

if __name__ == "__main__":
    B, H, FILT, NH, K, U = 2, 32, 64, 4, 3, 16
    T, Tc = 16, 8

    key = jax.random.PRNGKey(0)
    k_x, k_h, k_u, k_p = jax.random.split(key, 4)
    x = jax.random.normal(k_x, (B, H, T), jnp.float32)
    h = jax.random.normal(k_h, (B, H, Tc), jnp.float32)
    utt = jax.random.normal(k_u, (B, U), jnp.float32)

    lengths = jnp.array([T, T - 4], jnp.int32)      # padding masks, as in typical usage
    h_lengths = jnp.array([Tc, Tc - 3], jnp.int32)

    params = init_params(k_p, H, FILT, NH, U, K)

    flags = tpu_flags()
    prepared = prepare_params(params, n_heads=NH,
                              fuse_conv_taps=flags["fuse_conv_taps"])  # once, at "model load"

    out = decoder_block_pallas(x, lengths, h, h_lengths, utt, prepared,
                               hidden=H, n_heads=NH,
                               softmax_exp_dtype=flags["softmax_exp_dtype"],
                               vmem_limit_bytes=flags["vmem_limit_bytes"])
    out = jax.block_until_ready(out)

    ref = decoder_block_ref(x, lengths, h, h_lengths, utt, params,
                            hidden=H, n_heads=NH)
    ref = jax.block_until_ready(ref)

    assert out.shape == (B, H, T)
    max_err = float(jnp.max(jnp.abs(out - ref)))
    assert bool(jnp.allclose(out, ref, atol=3e-2, rtol=3e-2)), f"max_err={max_err}"
    print("KERNEL_OK")
</pallas_src>

<mosaic_0001>
module attributes {stable_mosaic.version = 11 : i64} {
  func.func @_decoder_block_kernel(%arg0: i32, %arg1: memref<2xi32, #tpu.memory_space<smem>>, %arg2: memref<2xi32, #tpu.memory_space<smem>>, %arg3: memref<1x32x128xf32, #tpu.memory_space<vmem>>, %arg4: memref<1x32x128xf32, #tpu.memory_space<vmem>>, %arg5: memref<1x16x1xf32, #tpu.memory_space<vmem>>, %arg6: memref<32x16xf32, #tpu.memory_space<vmem>>, %arg7: memref<192x32xf32, #tpu.memory_space<vmem>>, %arg8: memref<96x32xbf16, #tpu.memory_space<vmem>>, %arg9: memref<32x32xbf16, #tpu.memory_space<vmem>>, %arg10: memref<96x32xbf16, #tpu.memory_space<vmem>>, %arg11: memref<32x32xbf16, #tpu.memory_space<vmem>>, %arg12: memref<64x96xbf16, #tpu.memory_space<vmem>>, %arg13: memref<32x192xbf16, #tpu.memory_space<vmem>>, %arg14: memref<640x1xf32, #tpu.memory_space<vmem>>, %arg15: memref<1x32x128xf32, #tpu.memory_space<vmem>>) attributes {dimension_semantics = [#tpu.dimension_semantics<parallel>], iteration_bounds = array<i64: 2>, scalar_prefetch = 2 : i64, scratch_operands = 0 : i64, tpu.core_type = #tpu.core_type<tc>, window_params = [{transform_indices = @transform_0, window_bounds = array<i64: 1, 32, 128>}, {transform_indices = @transform_1, window_bounds = array<i64: 1, 32, 128>}, {transform_indices = @transform_2, window_bounds = array<i64: 1, 16, 1>}, {pipeline_mode = #tpu.pipeline_mode<synchronous>, transform_indices = @transform_3, window_bounds = array<i64: 32, 16>}, {pipeline_mode = #tpu.pipeline_mode<synchronous>, transform_indices = @transform_4, window_bounds = array<i64: 192, 32>}, {pipeline_mode = #tpu.pipeline_mode<synchronous>, transform_indices = @transform_5, window_bounds = array<i64: 96, 32>}, {pipeline_mode = #tpu.pipeline_mode<synchronous>, transform_indices = @transform_6, window_bounds = array<i64: 32, 32>}, {pipeline_mode = #tpu.pipeline_mode<synchronous>, transform_indices = @transform_7, window_bounds = array<i64: 96, 32>}, {pipeline_mode = #tpu.pipeline_mode<synchronous>, transform_indices = @transform_8, window_bounds = array<i64: 32, 32>}, {pipeline_mode = #tpu.pipeline_mode<synchronous>, transform_indices = @transform_9, window_bounds = array<i64: 64, 96>}, {pipeline_mode = #tpu.pipeline_mode<synchronous>, transform_indices = @transform_10, window_bounds = array<i64: 32, 192>}, {pipeline_mode = #tpu.pipeline_mode<synchronous>, transform_indices = @transform_11, window_bounds = array<i64: 640, 1>}, {transform_indices = @transform_12, window_bounds = array<i64: 1, 32, 128>}]} {
    %c0 = arith.constant 0 : index
    %c0_0 = arith.constant 0 : index
    %0 = vector.load %arg14[%c0, %c0_0] : memref<640x1xf32, #tpu.memory_space<vmem>>, vector<640x1xf32>
    %1 = arith.index_cast %arg0 : i32 to index
    %2 = memref.load %arg1[%1] : memref<2xi32, #tpu.memory_space<smem>>
    %3 = arith.index_cast %arg0 : i32 to index
    %4 = memref.load %arg2[%3] : memref<2xi32, #tpu.memory_space<smem>>
    %5 = tpu.iota {dimensions = array<i32: 1>} : vector<1x128xi32>
    %6 = vector.broadcast %2 : i32 to vector<1x128xi32>
    %7 = arith.cmpi slt, %5, %6 : vector<1x128xi32>
    %8 = arith.extui %7 : vector<1x128xi1> to vector<1x128xi32>
    %9 = arith.sitofp %8 : vector<1x128xi32> to vector<1x128xf32>
    %c0_i32 = arith.constant 0 : i32
    %10 = vector.broadcast %c0_i32 : i32 to vector<1x128xi32>
    %11 = arith.cmpi sgt, %5, %10 : vector<1x128xi32>
    %12 = arith.extui %11 : vector<1x128xi1> to vector<1x128xi32>
    %13 = arith.sitofp %12 : vector<1x128xi32> to vector<1x128xf32>
    %c127_i32 = arith.constant 127 : i32
    %14 = vector.broadcast %c127_i32 : i32 to vector<1x128xi32>
    %15 = arith.cmpi slt, %5, %14 : vector<1x128xi32>
    %16 = arith.extui %15 : vector<1x128xi1> to vector<1x128xi32>
    %17 = arith.sitofp %16 : vector<1x128xi32> to vector<1x128xf32>
    %18 = tpu.iota {dimensions = array<i32: 1>} : vector<1x128x1xi32>
    %19 = vector.broadcast %2 : i32 to vector<1x128x1xi32>
    %20 = arith.cmpi slt, %18, %19 : vector<1x128x1xi32>
    %21 = tpu.iota {dimensions = array<i32: 1>} : vector<1x128x1xi32>
    %22 = vector.broadcast %4 : i32 to vector<1x128x1xi32>
    %23 = arith.cmpi slt, %21, %22 : vector<1x128x1xi32>
    %c0_1 = arith.constant 0 : index
    %c0_2 = arith.constant 0 : index
    %c0_3 = arith.constant 0 : index
    %24 = vector.load %arg3[%c0_1, %c0_2, %c0_3] : memref<1x32x128xf32, #tpu.memory_space<vmem>>, vector<1x32x128xf32>
    %25 = vector.shape_cast %24 : vector<1x32x128xf32> to vector<32x128xf32>
    %c0_4 = arith.constant 0 : index
    %c0_5 = arith.constant 0 : index
    %c0_6 = arith.constant 0 : index
    %26 = vector.load %arg4[%c0_4, %c0_5, %c0_6] : memref<1x32x128xf32, #tpu.memory_space<vmem>>, vector<1x32x128xf32>
    %27 = vector.shape_cast %26 : vector<1x32x128xf32> to vector<32x128xf32>
    %c0_7 = arith.constant 0 : index
    %c0_8 = arith.constant 0 : index
    %c0_9 = arith.constant 0 : index
    %28 = vector.load %arg5[%c0_7, %c0_8, %c0_9] : memref<1x16x1xf32, #tpu.memory_space<vmem>>, vector<1x16x1xf32>
    %29 = vector.shape_cast %28 : vector<1x16x1xf32> to vector<16x1xf32>
    %c0_10 = arith.constant 0 : index
    %c0_11 = arith.constant 0 : index
    %30 = vector.load %arg6[%c0_10, %c0_11] : memref<32x16xf32, #tpu.memory_space<vmem>>, vector<32x16xf32>
    %cst = arith.constant dense<0.000000e+00> : vector<32x1xf32>
    %31 = tpu.matmul %30, %29, %cst {dimension_numbers = #tpu.dot_dimension_numbers<[1], [0], [0], [1], [0, 0, 1, 1], [], []>} : vector<32x16xf32>, vector<16x1xf32>, vector<32x1xf32> -> vector<32x1xf32>
    %32 = vector.extract_strided_slice %0 {offsets = [0, 0], sizes = [32, 1], strides = [1, 1]} : vector<640x1xf32> to vector<32x1xf32>
    %33 = arith.addf %31, %32 : vector<32x1xf32>
    %cst_12 = arith.constant 5.000000e-01 : f32
    %34 = vector.broadcast %cst_12 : f32 to vector<32x1xf32>
    %35 = arith.mulf %34, %33 : vector<32x1xf32>
    %36 = math.tanh %35 : vector<32x1xf32>
    %cst_13 = arith.constant 1.000000e+00 : f32
    %37 = vector.broadcast %cst_13 : f32 to vector<32x1xf32>
    %38 = arith.addf %36, %37 : vector<32x1xf32>
    %cst_14 = arith.constant 5.000000e-01 : f32
    %39 = vector.broadcast %cst_14 : f32 to vector<32x1xf32>
    %40 = arith.mulf %39, %38 : vector<32x1xf32>
    %41 = arith.mulf %33, %40 : vector<32x1xf32>
    %c0_15 = arith.constant 0 : index
    %c0_16 = arith.constant 0 : index
    %42 = vector.load %arg7[%c0_15, %c0_16] : memref<192x32xf32, #tpu.memory_space<vmem>>, vector<192x32xf32>
    %cst_17 = arith.constant dense<0.000000e+00> : vector<192x1xf32>
    %43 = tpu.matmul %42, %41, %cst_17 {dimension_numbers = #tpu.dot_dimension_numbers<[1], [0], [0], [1], [0, 0, 1, 1], [], []>} : vector<192x32xf32>, vector<32x1xf32>, vector<192x1xf32> -> vector<192x1xf32>
    %44 = vector.extract_strided_slice %0 {offsets = [32, 0], sizes = [192, 1], strides = [1, 1]} : vector<640x1xf32> to vector<192x1xf32>
    %45 = arith.addf %43, %44 : vector<192x1xf32>
    %46 = vector.extract_strided_slice %45 {offsets = [0, 0], sizes = [32, 1], strides = [1, 1]} : vector<192x1xf32> to vector<32x1xf32>
    %47 = vector.extract_strided_slice %45 {offsets = [32, 0], sizes = [32, 1], strides = [1, 1]} : vector<192x1xf32> to vector<32x1xf32>
    %48 = vector.extract_strided_slice %45 {offsets = [64, 0], sizes = [32, 1], strides = [1, 1]} : vector<192x1xf32> to vector<32x1xf32>
    %49 = vector.extract_strided_slice %45 {offsets = [96, 0], sizes = [32, 1], strides = [1, 1]} : vector<192x1xf32> to vector<32x1xf32>
    %50 = vector.extract_strided_slice %45 {offsets = [128, 0], sizes = [32, 1], strides = [1, 1]} : vector<192x1xf32> to vector<32x1xf32>
    %51 = vector.extract_strided_slice %45 {offsets = [160, 0], sizes = [32, 1], strides = [1, 1]} : vector<192x1xf32> to vector<32x1xf32>
    %cst_18 = arith.constant dense<0.000000e+00> : vector<128xf32>
    %52 = vector.multi_reduction <add>, %25, %cst_18 [0] : vector<32x128xf32> to vector<128xf32>
    %53 = vector.shape_cast %52 : vector<128xf32> to vector<1x128xf32>
    %cst_19 = arith.constant 3.200000e+01 : f32
    %54 = vector.broadcast %cst_19 : f32 to vector<1x128xf32>
    %55 = arith.divf %53, %54 : vector<1x128xf32>
    %56 = vector.broadcast %55 : vector<1x128xf32> to vector<32x128xf32>
    %57 = arith.subf %25, %56 : vector<32x128xf32>
    %58 = arith.mulf %57, %57 : vector<32x128xf32>
    %cst_20 = arith.constant dense<0.000000e+00> : vector<128xf32>
    %59 = vector.multi_reduction <add>, %58, %cst_20 [0] : vector<32x128xf32> to vector<128xf32>
    %60 = vector.shape_cast %59 : vector<128xf32> to vector<1x128xf32>
    %cst_21 = arith.constant 3.200000e+01 : f32
    %61 = vector.broadcast %cst_21 : f32 to vector<1x128xf32>
    %62 = arith.divf %60, %61 : vector<1x128xf32>
    %63 = vector.broadcast %55 : vector<1x128xf32> to vector<32x128xf32>
    %64 = arith.subf %25, %63 : vector<32x128xf32>
    %cst_22 = arith.constant 9.99999997E-7 : f32
    %65 = vector.broadcast %cst_22 : f32 to vector<1x128xf32>
    %66 = arith.addf %62, %65 : vector<1x128xf32>
    %67 = math.rsqrt %66 : vector<1x128xf32>
    %68 = vector.broadcast %67 : vector<1x128xf32> to vector<32x128xf32>
    %69 = arith.mulf %64, %68 : vector<32x128xf32>
    %cst_23 = arith.constant 1.000000e+00 : f32
    %70 = vector.broadcast %cst_23 : f32 to vector<32x1xf32>
    %71 = arith.addf %70, %47 : vector<32x1xf32>
    %72 = vector.broadcast %71 : vector<32x1xf32> to vector<32x128xf32>
    %73 = arith.mulf %69, %72 : vector<32x128xf32>
    %74 = vector.broadcast %46 : vector<32x1xf32> to vector<32x128xf32>
    %75 = arith.addf %73, %74 : vector<32x128xf32>
    %c0_24 = arith.constant 0 : index
    %c0_25 = arith.constant 0 : index
    %76 = vector.load %arg8[%c0_24, %c0_25] : memref<96x32xbf16, #tpu.memory_space<vmem>>, vector<96x32xbf16>
    %77 = vector.extract_strided_slice %0 {offsets = [224, 0], sizes = [96, 1], strides = [1, 1]} : vector<640x1xf32> to vector<96x1xf32>
    %c0_26 = arith.constant 0 : index
    %c0_27 = arith.constant 0 : index
    %78 = vector.load %arg9[%c0_26, %c0_27] : memref<32x32xbf16, #tpu.memory_space<vmem>>, vector<32x32xbf16>
    %79 = vector.extract_strided_slice %0 {offsets = [320, 0], sizes = [32, 1], strides = [1, 1]} : vector<640x1xf32> to vector<32x1xf32>
    %80 = arith.truncf %75 : vector<32x128xf32> to vector<32x128xbf16>
    %cst_28 = arith.constant dense<0.000000e+00> : vector<96x128xf32>
    %81 = tpu.matmul %76, %80, %cst_28 {dimension_numbers = #tpu.dot_dimension_numbers<[1], [0], [0], [1], [0, 0, 1, 1], [], []>} : vector<96x32xbf16>, vector<32x128xbf16>, vector<96x128xf32> -> vector<96x128xf32>
    %82 = vector.broadcast %77 : vector<96x1xf32> to vector<96x128xf32>
    %83 = arith.addf %81, %82 : vector<96x128xf32>
    %84 = vector.extract_strided_slice %83 {offsets = [0, 0], sizes = [32, 128], strides = [1, 1]} : vector<96x128xf32> to vector<32x128xf32>
    %85 = vector.extract_strided_slice %83 {offsets = [32, 0], sizes = [32, 128], strides = [1, 1]} : vector<96x128xf32> to vector<32x128xf32>
    %86 = vector.extract_strided_slice %83 {offsets = [64, 0], sizes = [32, 128], strides = [1, 1]} : vector<96x128xf32> to vector<32x128xf32>
    %87 = vector.shape_cast %84 : vector<32x128xf32> to vector<4x8x128xf32>
    %88 = arith.truncf %87 : vector<4x8x128xf32> to vector<4x8x128xbf16>
    %89 = vector.shape_cast %85 : vector<32x128xf32> to vector<4x8x128xf32>
    %90 = arith.truncf %89 : vector<4x8x128xf32> to vector<4x8x128xbf16>
    %91 = vector.shape_cast %86 : vector<32x128xf32> to vector<4x8x128xf32>
    %92 = arith.truncf %91 : vector<4x8x128xf32> to vector<4x8x128xbf16>
    %cst_29 = arith.constant -1.000000e+30 : f32
    %93 = vector.broadcast %cst_29 : f32 to vector<4x1x128xf32>
    %cst_30 = arith.constant 0.000000e+00 : f32
    %94 = vector.broadcast %cst_30 : f32 to vector<4x1x128xf32>
    %cst_31 = arith.constant 0.000000e+00 : f32
    %95 = vector.broadcast %cst_31 : f32 to vector<4x8x128xf32>
    "tpu.trace_start"() <{level = 10 : i32, message = "hdk,hdq->hkq"}> : () -> ()
    %cst_32 = arith.constant dense<0.000000e+00> : vector<4x128x128xf32>
    %96 = tpu.matmul %90, %88, %cst_32 {dimension_numbers = #tpu.dot_dimension_numbers<[1], [1], [2], [2], [0, 0, 0, 2, 1, 2], [0], [0]>} : vector<4x8x128xbf16>, vector<4x8x128xbf16>, vector<4x128x128xf32> -> vector<4x128x128xf32>
    %cst_33 = arith.constant -1.000000e+04 : f32
    "tpu.trace_stop"() : () -> ()
    %97 = vector.shape_cast %20 : vector<1x128x1xi1> to vector<1x128x1xi1>
    %98 = vector.broadcast %97 : vector<1x128x1xi1> to vector<4x128x128xi1>
    %99 = vector.broadcast %cst_33 : f32 to vector<4x128x128xf32>
    %100 = arith.select %98, %96, %99 : vector<4x128x128xi1>, vector<4x128x128xf32>
    %cst_34 = arith.constant dense<0xFF800000> : vector<4x128xf32>
    %101 = vector.multi_reduction <maximumf>, %100, %cst_34 [1] : vector<4x128x128xf32> to vector<4x128xf32>
    %102 = vector.shape_cast %101 : vector<4x128xf32> to vector<4x1x128xf32>
    %103 = arith.maximumf %93, %102 : vector<4x1x128xf32>
    %104 = arith.subf %93, %103 : vector<4x1x128xf32>
    %105 = math.exp %104 : vector<4x1x128xf32>
    %106 = vector.broadcast %103 : vector<4x1x128xf32> to vector<4x128x128xf32>
    %107 = arith.subf %100, %106 : vector<4x128x128xf32>
    %108 = arith.truncf %107 : vector<4x128x128xf32> to vector<4x128x128xbf16>
    %109 = math.exp %108 : vector<4x128x128xbf16>
    %110 = arith.mulf %105, %94 : vector<4x1x128xf32>
    %111 = arith.extf %109 : vector<4x128x128xbf16> to vector<4x128x128xf32>
    %cst_35 = arith.constant dense<0.000000e+00> : vector<4x128xf32>
    %112 = vector.multi_reduction <add>, %111, %cst_35 [1] : vector<4x128x128xf32> to vector<4x128xf32>
    %113 = vector.shape_cast %112 : vector<4x128xf32> to vector<4x1x128xf32>
    %114 = arith.addf %110, %113 : vector<4x1x128xf32>
    %115 = vector.broadcast %105 : vector<4x1x128xf32> to vector<4x8x128xf32>
    %116 = arith.mulf %115, %95 : vector<4x8x128xf32>
    "tpu.trace_start"() <{level = 10 : i32, message = "hdk,hkq->hdq"}> : () -> ()
    %cst_36 = arith.constant dense<0.000000e+00> : vector<4x8x128xf32>
    %117 = tpu.matmul %92, %109, %cst_36 {dimension_numbers = #tpu.dot_dimension_numbers<[2], [1], [1], [2], [0, 0, 0, 1, 1, 2], [0], [0]>} : vector<4x8x128xbf16>, vector<4x128x128xbf16>, vector<4x8x128xf32> -> vector<4x8x128xf32>
    "tpu.trace_stop"() : () -> ()
    %118 = arith.addf %116, %117 : vector<4x8x128xf32>
    %119 = tpu.reciprocal %114 {approx = true} : vector<4x1x128xf32> -> vector<4x1x128xf32>
    %120 = vector.broadcast %119 : vector<4x1x128xf32> to vector<4x8x128xf32>
    %121 = arith.mulf %118, %120 : vector<4x8x128xf32>
    %122 = vector.shape_cast %121 : vector<4x8x128xf32> to vector<32x128xf32>
    %123 = arith.truncf %122 : vector<32x128xf32> to vector<32x128xbf16>
    %cst_37 = arith.constant dense<0.000000e+00> : vector<32x128xf32>
    %124 = tpu.matmul %78, %123, %cst_37 {dimension_numbers = #tpu.dot_dimension_numbers<[1], [0], [0], [1], [0, 0, 1, 1], [], []>} : vector<32x32xbf16>, vector<32x128xbf16>, vector<32x128xf32> -> vector<32x128xf32>
    %125 = vector.broadcast %79 : vector<32x1xf32> to vector<32x128xf32>
    %126 = arith.addf %124, %125 : vector<32x128xf32>
    %127 = vector.broadcast %48 : vector<32x1xf32> to vector<32x128xf32>
    %128 = arith.mulf %127, %126 : vector<32x128xf32>
    %129 = arith.addf %128, %25 : vector<32x128xf32>
    %cst_38 = arith.constant dense<0.000000e+00> : vector<128xf32>
    %130 = vector.multi_reduction <add>, %129, %cst_38 [0] : vector<32x128xf32> to vector<128xf32>
    %131 = vector.shape_cast %130 : vector<128xf32> to vector<1x128xf32>
    %cst_39 = arith.constant 3.200000e+01 : f32
    %132 = vector.broadcast %cst_39 : f32 to vector<1x128xf32>
    %133 = arith.divf %131, %132 : vector<1x128xf32>
    %134 = vector.broadcast %133 : vector<1x128xf32> to vector<32x128xf32>
    %135 = arith.subf %129, %134 : vector<32x128xf32>
    %136 = arith.mulf %135, %135 : vector<32x128xf32>
    %cst_40 = arith.constant dense<0.000000e+00> : vector<128xf32>
    %137 = vector.multi_reduction <add>, %136, %cst_40 [0] : vector<32x128xf32> to vector<128xf32>
    %138 = vector.shape_cast %137 : vector<128xf32> to vector<1x128xf32>
    %cst_41 = arith.constant 3.200000e+01 : f32
    %139 = vector.broadcast %cst_41 : f32 to vector<1x128xf32>
    %140 = arith.divf %138, %139 : vector<1x128xf32>
    %141 = vector.broadcast %133 : vector<1x128xf32> to vector<32x128xf32>
    %142 = arith.subf %129, %141 : vector<32x128xf32>
    %cst_42 = arith.constant 9.99999974E-6 : f32
    %143 = vector.broadcast %cst_42 : f32 to vector<1x128xf32>
    %144 = arith.addf %140, %143 : vector<1x128xf32>
    %145 = math.rsqrt %144 : vector<1x128xf32>
    %146 = vector.broadcast %145 : vector<1x128xf32> to vector<32x128xf32>
    %147 = arith.mulf %142, %146 : vector<32x128xf32>
    %148 = vector.extract_strided_slice %0 {offsets = [352, 0], sizes = [32, 1], strides = [1, 1]} : vector<640x1xf32> to vector<32x1xf32>
    %149 = vector.broadcast %148 : vector<32x1xf32> to vector<32x128xf32>
    %150 = arith.mulf %147, %149 : vector<32x128xf32>
    %151 = vector.extract_strided_slice %0 {offsets = [384, 0], sizes = [32, 1], strides = [1, 1]} : vector<640x1xf32> to vector<32x1xf32>
    %152 = vector.broadcast %151 : vector<32x1xf32> to vector<32x128xf32>
    %153 = arith.addf %150, %152 : vector<32x128xf32>
    %c0_43 = arith.constant 0 : index
    %c0_44 = arith.constant 0 : index
    %154 = vector.load %arg10[%c0_43, %c0_44] : memref<96x32xbf16, #tpu.memory_space<vmem>>, vector<96x32xbf16>
    %155 = vector.extract_strided_slice %0 {offsets = [416, 0], sizes = [96, 1], strides = [1, 1]} : vector<640x1xf32> to vector<96x1xf32>
    %c0_45 = arith.constant 0 : index
    %c0_46 = arith.constant 0 : index
    %156 = vector.load %arg11[%c0_45, %c0_46] : memref<32x32xbf16, #tpu.memory_space<vmem>>, vector<32x32xbf16>
    %157 = vector.extract_strided_slice %0 {offsets = [512, 0], sizes = [32, 1], strides = [1, 1]} : vector<640x1xf32> to vector<32x1xf32>
    %158 = vector.extract_strided_slice %154 {offsets = [0, 0], sizes = [32, 32], strides = [1, 1]} : vector<96x32xbf16> to vector<32x32xbf16>
    %159 = arith.truncf %153 : vector<32x128xf32> to vector<32x128xbf16>
    %cst_47 = arith.constant dense<0.000000e+00> : vector<32x128xf32>
    %160 = tpu.matmul %158, %159, %cst_47 {dimension_numbers = #tpu.dot_dimension_numbers<[1], [0], [0], [1], [0, 0, 1, 1], [], []>} : vector<32x32xbf16>, vector<32x128xbf16>, vector<32x128xf32> -> vector<32x128xf32>
    %161 = vector.extract_strided_slice %155 {offsets = [0, 0], sizes = [32, 1], strides = [1, 1]} : vector<96x1xf32> to vector<32x1xf32>
    %162 = vector.broadcast %161 : vector<32x1xf32> to vector<32x128xf32>
    %163 = arith.addf %160, %162 : vector<32x128xf32>
    %164 = vector.extract_strided_slice %154 {offsets = [32, 0], sizes = [64, 32], strides = [1, 1]} : vector<96x32xbf16> to vector<64x32xbf16>
    %165 = arith.truncf %27 : vector<32x128xf32> to vector<32x128xbf16>
    %cst_48 = arith.constant dense<0.000000e+00> : vector<64x128xf32>
    %166 = tpu.matmul %164, %165, %cst_48 {dimension_numbers = #tpu.dot_dimension_numbers<[1], [0], [0], [1], [0, 0, 1, 1], [], []>} : vector<64x32xbf16>, vector<32x128xbf16>, vector<64x128xf32> -> vector<64x128xf32>
    %167 = vector.extract_strided_slice %155 {offsets = [32, 0], sizes = [64, 1], strides = [1, 1]} : vector<96x1xf32> to vector<64x1xf32>
    %168 = vector.broadcast %167 : vector<64x1xf32> to vector<64x128xf32>
    %169 = arith.addf %166, %168 : vector<64x128xf32>
    %170 = vector.extract_strided_slice %169 {offsets = [0, 0], sizes = [32, 128], strides = [1, 1]} : vector<64x128xf32> to vector<32x128xf32>
    %171 = vector.extract_strided_slice %169 {offsets = [32, 0], sizes = [32, 128], strides = [1, 1]} : vector<64x128xf32> to vector<32x128xf32>
    %172 = vector.shape_cast %163 : vector<32x128xf32> to vector<4x8x128xf32>
    %173 = arith.truncf %172 : vector<4x8x128xf32> to vector<4x8x128xbf16>
    %174 = vector.shape_cast %170 : vector<32x128xf32> to vector<4x8x128xf32>
    %175 = arith.truncf %174 : vector<4x8x128xf32> to vector<4x8x128xbf16>
    %176 = vector.shape_cast %171 : vector<32x128xf32> to vector<4x8x128xf32>
    %177 = arith.truncf %176 : vector<4x8x128xf32> to vector<4x8x128xbf16>
    %cst_49 = arith.constant -1.000000e+30 : f32
    %178 = vector.broadcast %cst_49 : f32 to vector<4x1x128xf32>
    %cst_50 = arith.constant 0.000000e+00 : f32
    %179 = vector.broadcast %cst_50 : f32 to vector<4x1x128xf32>
    %cst_51 = arith.constant 0.000000e+00 : f32
    %180 = vector.broadcast %cst_51 : f32 to vector<4x8x128xf32>
    "tpu.trace_start"() <{level = 10 : i32, message = "hdk,hdq->hkq"}> : () -> ()
    %cst_52 = arith.constant dense<0.000000e+00> : vector<4x128x128xf32>
    %181 = tpu.matmul %175, %173, %cst_52 {dimension_numbers = #tpu.dot_dimension_numbers<[1], [1], [2], [2], [0, 0, 0, 2, 1, 2], [0], [0]>} : vector<4x8x128xbf16>, vector<4x8x128xbf16>, vector<4x128x128xf32> -> vector<4x128x128xf32>
    %cst_53 = arith.constant -1.000000e+04 : f32
    "tpu.trace_stop"() : () -> ()
    %182 = vector.shape_cast %23 : vector<1x128x1xi1> to vector<1x128x1xi1>
    %183 = vector.broadcast %182 : vector<1x128x1xi1> to vector<4x128x128xi1>
    %184 = vector.broadcast %cst_53 : f32 to vector<4x128x128xf32>
    %185 = arith.select %183, %181, %184 : vector<4x128x128xi1>, vector<4x128x128xf32>
    %cst_54 = arith.constant dense<0xFF800000> : vector<4x128xf32>
    %186 = vector.multi_reduction <maximumf>, %185, %cst_54 [1] : vector<4x128x128xf32> to vector<4x128xf32>
    %187 = vector.shape_cast %186 : vector<4x128xf32> to vector<4x1x128xf32>
    %188 = arith.maximumf %178, %187 : vector<4x1x128xf32>
    %189 = arith.subf %178, %188 : vector<4x1x128xf32>
    %190 = math.exp %189 : vector<4x1x128xf32>
    %191 = vector.broadcast %188 : vector<4x1x128xf32> to vector<4x128x128xf32>
    %192 = arith.subf %185, %191 : vector<4x128x128xf32>
    %193 = arith.truncf %192 : vector<4x128x128xf32> to vector<4x128x128xbf16>
    %194 = math.exp %193 : vector<4x128x128xbf16>
    %195 = arith.mulf %190, %179 : vector<4x1x128xf32>
    %196 = arith.extf %194 : vector<4x128x128xbf16> to vector<4x128x128xf32>
    %cst_55 = arith.constant dense<0.000000e+00> : vector<4x128xf32>
    %197 = vector.multi_reduction <add>, %196, %cst_55 [1] : vector<4x128x128xf32> to vector<4x128xf32>
    %198 = vector.shape_cast %197 : vector<4x128xf32> to vector<4x1x128xf32>
    %199 = arith.addf %195, %198 : vector<4x1x128xf32>
    %200 = vector.broadcast %190 : vector<4x1x128xf32> to vector<4x8x128xf32>
    %201 = arith.mulf %200, %180 : vector<4x8x128xf32>
    "tpu.trace_start"() <{level = 10 : i32, message = "hdk,hkq->hdq"}> : () -> ()
    %cst_56 = arith.constant dense<0.000000e+00> : vector<4x8x128xf32>
    %202 = tpu.matmul %177, %194, %cst_56 {dimension_numbers = #tpu.dot_dimension_numbers<[2], [1], [1], [2], [0, 0, 0, 1, 1, 2], [0], [0]>} : vector<4x8x128xbf16>, vector<4x128x128xbf16>, vector<4x8x128xf32> -> vector<4x8x128xf32>
    "tpu.trace_stop"() : () -> ()
    %203 = arith.addf %201, %202 : vector<4x8x128xf32>
    %204 = tpu.reciprocal %199 {approx = true} : vector<4x1x128xf32> -> vector<4x1x128xf32>
    %205 = vector.broadcast %204 : vector<4x1x128xf32> to vector<4x8x128xf32>
    %206 = arith.mulf %203, %205 : vector<4x8x128xf32>
    %207 = vector.shape_cast %206 : vector<4x8x128xf32> to vector<32x128xf32>
    %208 = arith.truncf %207 : vector<32x128xf32> to vector<32x128xbf16>
    %cst_57 = arith.constant dense<0.000000e+00> : vector<32x128xf32>
    %209 = tpu.matmul %156, %208, %cst_57 {dimension_numbers = #tpu.dot_dimension_numbers<[1], [0], [0], [1], [0, 0, 1, 1], [], []>} : vector<32x32xbf16>, vector<32x128xbf16>, vector<32x128xf32> -> vector<32x128xf32>
    %210 = vector.broadcast %157 : vector<32x1xf32> to vector<32x128xf32>
    %211 = arith.addf %209, %210 : vector<32x128xf32>
    %212 = arith.addf %211, %129 : vector<32x128xf32>
    %cst_58 = arith.constant dense<0.000000e+00> : vector<128xf32>
    %213 = vector.multi_reduction <add>, %212, %cst_58 [0] : vector<32x128xf32> to vector<128xf32>
    %214 = vector.shape_cast %213 : vector<128xf32> to vector<1x128xf32>
    %cst_59 = arith.constant 3.200000e+01 : f32
    %215 = vector.broadcast %cst_59 : f32 to vector<1x128xf32>
    %216 = arith.divf %214, %215 : vector<1x128xf32>
    %217 = vector.broadcast %216 : vector<1x128xf32> to vector<32x128xf32>
    %218 = arith.subf %212, %217 : vector<32x128xf32>
    %219 = arith.mulf %218, %218 : vector<32x128xf32>
    %cst_60 = arith.constant dense<0.000000e+00> : vector<128xf32>
    %220 = vector.multi_reduction <add>, %219, %cst_60 [0] : vector<32x128xf32> to vector<128xf32>
    %221 = vector.shape_cast %220 : vector<128xf32> to vector<1x128xf32>
    %cst_61 = arith.constant 3.200000e+01 : f32
    %222 = vector.broadcast %cst_61 : f32 to vector<1x128xf32>
    %223 = arith.divf %221, %222 : vector<1x128xf32>
    %224 = vector.broadcast %216 : vector<1x128xf32> to vector<32x128xf32>
    %225 = arith.subf %212, %224 : vector<32x128xf32>
    %cst_62 = arith.constant 9.99999997E-7 : f32
    %226 = vector.broadcast %cst_62 : f32 to vector<1x128xf32>
    %227 = arith.addf %223, %226 : vector<1x128xf32>
    %228 = math.rsqrt %227 : vector<1x128xf32>
    %229 = vector.broadcast %228 : vector<1x128xf32> to vector<32x128xf32>
    %230 = arith.mulf %225, %229 : vector<32x128xf32>
    %cst_63 = arith.constant 1.000000e+00 : f32
    %231 = vector.broadcast %cst_63 : f32 to vector<32x1xf32>
    %232 = arith.addf %231, %50 : vector<32x1xf32>
    %233 = vector.broadcast %232 : vector<32x1xf32> to vector<32x128xf32>
    %234 = arith.mulf %230, %233 : vector<32x128xf32>
    %235 = vector.broadcast %49 : vector<32x1xf32> to vector<32x128xf32>
    %236 = arith.addf %234, %235 : vector<32x128xf32>
    %237 = vector.broadcast %9 : vector<1x128xf32> to vector<32x128xf32>
    %238 = arith.mulf %236, %237 : vector<32x128xf32>
    %239 = vector.extract_strided_slice %0 {offsets = [544, 0], sizes = [64, 1], strides = [1, 1]} : vector<640x1xf32> to vector<64x1xf32>
    %c1_i32 = arith.constant 1 : i32
    %240 = tpu.dynamic_rotate %238 by %c1_i32 dim 1 : vector<32x128xf32>, i32 -> vector<32x128xf32>
    %241 = vector.broadcast %13 : vector<1x128xf32> to vector<32x128xf32>
    %242 = arith.mulf %240, %241 : vector<32x128xf32>
    %c127_i32_64 = arith.constant 127 : i32
    %243 = tpu.dynamic_rotate %238 by %c127_i32_64 dim 1 : vector<32x128xf32>, i32 -> vector<32x128xf32>
    %244 = vector.broadcast %17 : vector<1x128xf32> to vector<32x128xf32>
    %245 = arith.mulf %243, %244 : vector<32x128xf32>
    %246 = tpu.concatenate %242, %238, %245 in 0 : vector<32x128xf32>, vector<32x128xf32>, vector<32x128xf32> -> vector<96x128xf32>
    %c0_65 = arith.constant 0 : index
    %c0_66 = arith.constant 0 : index
    %247 = vector.load %arg12[%c0_65, %c0_66] : memref<64x96xbf16, #tpu.memory_space<vmem>>, vector<64x96xbf16>
    %248 = arith.truncf %246 : vector<96x128xf32> to vector<96x128xbf16>
    %cst_67 = arith.constant dense<0.000000e+00> : vector<64x128xf32>
    %249 = tpu.matmul %247, %248, %cst_67 {dimension_numbers = #tpu.dot_dimension_numbers<[1], [0], [0], [1], [0, 0, 1, 1], [], []>} : vector<64x96xbf16>, vector<96x128xbf16>, vector<64x128xf32> -> vector<64x128xf32>
    %250 = vector.broadcast %239 : vector<64x1xf32> to vector<64x128xf32>
    %251 = arith.addf %249, %250 : vector<64x128xf32>
    %cst_68 = arith.constant 0.000000e+00 : f32
    %252 = vector.broadcast %cst_68 : f32 to vector<64x128xf32>
    %253 = arith.maximumf %251, %252 : vector<64x128xf32>
    %254 = vector.broadcast %9 : vector<1x128xf32> to vector<64x128xf32>
    %255 = arith.mulf %253, %254 : vector<64x128xf32>
    %256 = vector.extract_strided_slice %0 {offsets = [608, 0], sizes = [32, 1], strides = [1, 1]} : vector<640x1xf32> to vector<32x1xf32>
    %c1_i32_69 = arith.constant 1 : i32
    %257 = tpu.dynamic_rotate %255 by %c1_i32_69 dim 1 : vector<64x128xf32>, i32 -> vector<64x128xf32>
    %258 = vector.broadcast %13 : vector<1x128xf32> to vector<64x128xf32>
    %259 = arith.mulf %257, %258 : vector<64x128xf32>
    %c127_i32_70 = arith.constant 127 : i32
    %260 = tpu.dynamic_rotate %255 by %c127_i32_70 dim 1 : vector<64x128xf32>, i32 -> vector<64x128xf32>
    %261 = vector.broadcast %17 : vector<1x128xf32> to vector<64x128xf32>
    %262 = arith.mulf %260, %261 : vector<64x128xf32>
    %263 = tpu.concatenate %259, %255, %262 in 0 : vector<64x128xf32>, vector<64x128xf32>, vector<64x128xf32> -> vector<192x128xf32>
    %c0_71 = arith.constant 0 : index
    %c0_72 = arith.constant 0 : index
    %264 = vector.load %arg13[%c0_71, %c0_72] : memref<32x192xbf16, #tpu.memory_space<vmem>>, vector<32x192xbf16>
    %265 = arith.truncf %263 : vector<192x128xf32> to vector<192x128xbf16>
    %cst_73 = arith.constant dense<0.000000e+00> : vector<32x128xf32>
    %266 = tpu.matmul %264, %265, %cst_73 {dimension_numbers = #tpu.dot_dimension_numbers<[1], [0], [0], [1], [0, 0, 1, 1], [], []>} : vector<32x192xbf16>, vector<192x128xbf16>, vector<32x128xf32> -> vector<32x128xf32>
    %267 = vector.broadcast %256 : vector<32x1xf32> to vector<32x128xf32>
    %268 = arith.addf %266, %267 : vector<32x128xf32>
    %269 = vector.broadcast %9 : vector<1x128xf32> to vector<32x128xf32>
    %270 = arith.mulf %268, %269 : vector<32x128xf32>
    %271 = vector.broadcast %51 : vector<32x1xf32> to vector<32x128xf32>
    %272 = arith.mulf %271, %270 : vector<32x128xf32>
    %273 = arith.addf %272, %212 : vector<32x128xf32>
    %274 = vector.broadcast %9 : vector<1x128xf32> to vector<32x128xf32>
    %275 = arith.mulf %273, %274 : vector<32x128xf32>
    %c0_74 = arith.constant 0 : index
    %c0_75 = arith.constant 0 : index
    %c0_76 = arith.constant 0 : index
    %276 = vector.load %arg15[%c0_74, %c0_75, %c0_76] : memref<1x32x128xf32, #tpu.memory_space<vmem>>, vector<1x32x128xf32>
    %277 = vector.shape_cast %276 : vector<1x32x128xf32> to vector<32x128xf32>
    %278 = vector.shape_cast %275 : vector<32x128xf32> to vector<1x32x128xf32>
    tpu.vector_store %arg15[%c0_74, %c0_75, %c0_76], %278 {strides = array<i32>} : memref<1x32x128xf32, #tpu.memory_space<vmem>>, vector<1x32x128xf32>,
    return
  }
  func.func @transform_0(%arg0: i32, %arg1: memref<2xi32, #tpu.memory_space<smem>>, %arg2: memref<2xi32, #tpu.memory_space<smem>>) -> (i32, i32, i32) {
    %c0_i32 = arith.constant 0 : i32
    %c0_i32_0 = arith.constant 0 : i32
    %c0_i32_1 = arith.constant 0 : i32
    return %arg0, %c0_i32, %c0_i32_0 : i32, i32, i32
  }
  func.func @transform_1(%arg0: i32, %arg1: memref<2xi32, #tpu.memory_space<smem>>, %arg2: memref<2xi32, #tpu.memory_space<smem>>) -> (i32, i32, i32) {
    %c0_i32 = arith.constant 0 : i32
    %c0_i32_0 = arith.constant 0 : i32
    %c0_i32_1 = arith.constant 0 : i32
    return %arg0, %c0_i32, %c0_i32_0 : i32, i32, i32
  }
  func.func @transform_2(%arg0: i32, %arg1: memref<2xi32, #tpu.memory_space<smem>>, %arg2: memref<2xi32, #tpu.memory_space<smem>>) -> (i32, i32, i32) {
    %c0_i32 = arith.constant 0 : i32
    %c0_i32_0 = arith.constant 0 : i32
    %c0_i32_1 = arith.constant 0 : i32
    return %arg0, %c0_i32, %c0_i32_0 : i32, i32, i32
  }
  func.func @transform_3(%arg0: i32, %arg1: memref<2xi32, #tpu.memory_space<smem>>, %arg2: memref<2xi32, #tpu.memory_space<smem>>) -> (i32, i32) {
    %c0_i32 = arith.constant 0 : i32
    %c0_i32_0 = arith.constant 0 : i32
    %c0_i32_1 = arith.constant 0 : i32
    return %c0_i32, %c0_i32_0 : i32, i32
  }
  func.func @transform_4(%arg0: i32, %arg1: memref<2xi32, #tpu.memory_space<smem>>, %arg2: memref<2xi32, #tpu.memory_space<smem>>) -> (i32, i32) {
    %c0_i32 = arith.constant 0 : i32
    %c0_i32_0 = arith.constant 0 : i32
    %c0_i32_1 = arith.constant 0 : i32
    return %c0_i32, %c0_i32_0 : i32, i32
  }
  func.func @transform_5(%arg0: i32, %arg1: memref<2xi32, #tpu.memory_space<smem>>, %arg2: memref<2xi32, #tpu.memory_space<smem>>) -> (i32, i32) {
    %c0_i32 = arith.constant 0 : i32
    %c0_i32_0 = arith.constant 0 : i32
    %c0_i32_1 = arith.constant 0 : i32
    return %c0_i32, %c0_i32_0 : i32, i32
  }
  func.func @transform_6(%arg0: i32, %arg1: memref<2xi32, #tpu.memory_space<smem>>, %arg2: memref<2xi32, #tpu.memory_space<smem>>) -> (i32, i32) {
    %c0_i32 = arith.constant 0 : i32
    %c0_i32_0 = arith.constant 0 : i32
    %c0_i32_1 = arith.constant 0 : i32
    return %c0_i32, %c0_i32_0 : i32, i32
  }
  func.func @transform_7(%arg0: i32, %arg1: memref<2xi32, #tpu.memory_space<smem>>, %arg2: memref<2xi32, #tpu.memory_space<smem>>) -> (i32, i32) {
    %c0_i32 = arith.constant 0 : i32
    %c0_i32_0 = arith.constant 0 : i32
    %c0_i32_1 = arith.constant 0 : i32
    return %c0_i32, %c0_i32_0 : i32, i32
  }
  func.func @transform_8(%arg0: i32, %arg1: memref<2xi32, #tpu.memory_space<smem>>, %arg2: memref<2xi32, #tpu.memory_space<smem>>) -> (i32, i32) {
    %c0_i32 = arith.constant 0 : i32
    %c0_i32_0 = arith.constant 0 : i32
    %c0_i32_1 = arith.constant 0 : i32
    return %c0_i32, %c0_i32_0 : i32, i32
  }
  func.func @transform_9(%arg0: i32, %arg1: memref<2xi32, #tpu.memory_space<smem>>, %arg2: memref<2xi32, #tpu.memory_space<smem>>) -> (i32, i32) {
    %c0_i32 = arith.constant 0 : i32
    %c0_i32_0 = arith.constant 0 : i32
    %c0_i32_1 = arith.constant 0 : i32
    return %c0_i32, %c0_i32_0 : i32, i32
  }
  func.func @transform_10(%arg0: i32, %arg1: memref<2xi32, #tpu.memory_space<smem>>, %arg2: memref<2xi32, #tpu.memory_space<smem>>) -> (i32, i32) {
    %c0_i32 = arith.constant 0 : i32
    %c0_i32_0 = arith.constant 0 : i32
    %c0_i32_1 = arith.constant 0 : i32
    return %c0_i32, %c0_i32_0 : i32, i32
  }
  func.func @transform_11(%arg0: i32, %arg1: memref<2xi32, #tpu.memory_space<smem>>, %arg2: memref<2xi32, #tpu.memory_space<smem>>) -> (i32, i32) {
    %c0_i32 = arith.constant 0 : i32
    %c0_i32_0 = arith.constant 0 : i32
    %c0_i32_1 = arith.constant 0 : i32
    return %c0_i32, %c0_i32_0 : i32, i32
  }
  func.func @transform_12(%arg0: i32, %arg1: memref<2xi32, #tpu.memory_space<smem>>, %arg2: memref<2xi32, #tpu.memory_space<smem>>) -> (i32, i32, i32) {
    %c0_i32 = arith.constant 0 : i32
    %c0_i32_0 = arith.constant 0 : i32
    %c0_i32_1 = arith.constant 0 : i32
    return %arg0, %c0_i32, %c0_i32_0 : i32, i32, i32
  }
}

module attributes {stable_mosaic.version = 11 : i64} {
  func.func @_decoder_block_kernel(%arg0: i32, %arg1: memref<2xi32, #tpu.memory_space<smem>>, %arg2: memref<2xi32, #tpu.memory_space<smem>>, %arg3: memref<1x32x128xf32, #tpu.memory_space<vmem>>, %arg4: memref<1x32x128xf32, #tpu.memory_space<vmem>>, %arg5: memref<1x16x1xf32, #tpu.memory_space<vmem>>, %arg6: memref<32x16xf32, #tpu.memory_space<vmem>>, %arg7: memref<192x32xf32, #tpu.memory_space<vmem>>, %arg8: memref<96x32xbf16, #tpu.memory_space<vmem>>, %arg9: memref<32x32xbf16, #tpu.memory_space<vmem>>, %arg10: memref<96x32xbf16, #tpu.memory_space<vmem>>, %arg11: memref<32x32xbf16, #tpu.memory_space<vmem>>, %arg12: memref<64x96xbf16, #tpu.memory_space<vmem>>, %arg13: memref<32x192xbf16, #tpu.memory_space<vmem>>, %arg14: memref<640x1xf32, #tpu.memory_space<vmem>>, %arg15: memref<1x32x128xf32, #tpu.memory_space<vmem>>) attributes {dimension_semantics = [#tpu.dimension_semantics<parallel>], iteration_bounds = array<i64: 2>, scalar_prefetch = 2 : i64, scratch_operands = 0 : i64, tpu.core_type = #tpu.core_type<tc>, window_params = [{transform_indices = @transform_0, window_bounds = array<i64: 1, 32, 128>}, {transform_indices = @transform_1, window_bounds = array<i64: 1, 32, 128>}, {transform_indices = @transform_2, window_bounds = array<i64: 1, 16, 1>}, {pipeline_mode = #tpu.pipeline_mode<synchronous>, transform_indices = @transform_3, window_bounds = array<i64: 32, 16>}, {pipeline_mode = #tpu.pipeline_mode<synchronous>, transform_indices = @transform_4, window_bounds = array<i64: 192, 32>}, {pipeline_mode = #tpu.pipeline_mode<synchronous>, transform_indices = @transform_5, window_bounds = array<i64: 96, 32>}, {pipeline_mode = #tpu.pipeline_mode<synchronous>, transform_indices = @transform_6, window_bounds = array<i64: 32, 32>}, {pipeline_mode = #tpu.pipeline_mode<synchronous>, transform_indices = @transform_7, window_bounds = array<i64: 96, 32>}, {pipeline_mode = #tpu.pipeline_mode<synchronous>, transform_indices = @transform_8, window_bounds = array<i64: 32, 32>}, {pipeline_mode = #tpu.pipeline_mode<synchronous>, transform_indices = @transform_9, window_bounds = array<i64: 64, 96>}, {pipeline_mode = #tpu.pipeline_mode<synchronous>, transform_indices = @transform_10, window_bounds = array<i64: 32, 192>}, {pipeline_mode = #tpu.pipeline_mode<synchronous>, transform_indices = @transform_11, window_bounds = array<i64: 640, 1>}, {transform_indices = @transform_12, window_bounds = array<i64: 1, 32, 128>}]} {
    %c0 = arith.constant 0 : index
    %c0_0 = arith.constant 0 : index
    %0 = vector.load %arg14[%c0, %c0_0] : memref<640x1xf32, #tpu.memory_space<vmem>>, vector<640x1xf32>
    %1 = arith.index_cast %arg0 : i32 to index
    %2 = memref.load %arg1[%1] : memref<2xi32, #tpu.memory_space<smem>>
    %3 = arith.index_cast %arg0 : i32 to index
    %4 = memref.load %arg2[%3] : memref<2xi32, #tpu.memory_space<smem>>
    %5 = tpu.iota {dimensions = array<i32: 1>} : vector<1x128xi32>
    %6 = vector.broadcast %2 : i32 to vector<1x128xi32>
    %7 = arith.cmpi slt, %5, %6 : vector<1x128xi32>
    %8 = arith.extui %7 : vector<1x128xi1> to vector<1x128xi32>
    %9 = arith.sitofp %8 : vector<1x128xi32> to vector<1x128xf32>
    %c0_i32 = arith.constant 0 : i32
    %10 = vector.broadcast %c0_i32 : i32 to vector<1x128xi32>
    %11 = arith.cmpi sgt, %5, %10 : vector<1x128xi32>
    %12 = arith.extui %11 : vector<1x128xi1> to vector<1x128xi32>
    %13 = arith.sitofp %12 : vector<1x128xi32> to vector<1x128xf32>
    %c127_i32 = arith.constant 127 : i32
    %14 = vector.broadcast %c127_i32 : i32 to vector<1x128xi32>
    %15 = arith.cmpi slt, %5, %14 : vector<1x128xi32>
    %16 = arith.extui %15 : vector<1x128xi1> to vector<1x128xi32>
    %17 = arith.sitofp %16 : vector<1x128xi32> to vector<1x128xf32>
    %18 = tpu.iota {dimensions = array<i32: 1>} : vector<1x128x1xi32>
    %19 = vector.broadcast %2 : i32 to vector<1x128x1xi32>
    %20 = arith.cmpi slt, %18, %19 : vector<1x128x1xi32>
    %21 = tpu.iota {dimensions = array<i32: 1>} : vector<1x128x1xi32>
    %22 = vector.broadcast %4 : i32 to vector<1x128x1xi32>
    %23 = arith.cmpi slt, %21, %22 : vector<1x128x1xi32>
    %c0_1 = arith.constant 0 : index
    %c0_2 = arith.constant 0 : index
    %c0_3 = arith.constant 0 : index
    %24 = vector.load %arg3[%c0_1, %c0_2, %c0_3] : memref<1x32x128xf32, #tpu.memory_space<vmem>>, vector<1x32x128xf32>
    %25 = vector.shape_cast %24 : vector<1x32x128xf32> to vector<32x128xf32>
    %c0_4 = arith.constant 0 : index
    %c0_5 = arith.constant 0 : index
    %c0_6 = arith.constant 0 : index
    %26 = vector.load %arg4[%c0_4, %c0_5, %c0_6] : memref<1x32x128xf32, #tpu.memory_space<vmem>>, vector<1x32x128xf32>
    %27 = vector.shape_cast %26 : vector<1x32x128xf32> to vector<32x128xf32>
    %c0_7 = arith.constant 0 : index
    %c0_8 = arith.constant 0 : index
    %c0_9 = arith.constant 0 : index
    %28 = vector.load %arg5[%c0_7, %c0_8, %c0_9] : memref<1x16x1xf32, #tpu.memory_space<vmem>>, vector<1x16x1xf32>
    %29 = vector.shape_cast %28 : vector<1x16x1xf32> to vector<16x1xf32>
    %c0_10 = arith.constant 0 : index
    %c0_11 = arith.constant 0 : index
    %30 = vector.load %arg6[%c0_10, %c0_11] : memref<32x16xf32, #tpu.memory_space<vmem>>, vector<32x16xf32>
    %cst = arith.constant dense<0.000000e+00> : vector<32x1xf32>
    %31 = tpu.matmul %30, %29, %cst {dimension_numbers = #tpu.dot_dimension_numbers<[1], [0], [0], [1], [0, 0, 1, 1], [], []>} : vector<32x16xf32>, vector<16x1xf32>, vector<32x1xf32> -> vector<32x1xf32>
    %32 = vector.extract_strided_slice %0 {offsets = [0, 0], sizes = [32, 1], strides = [1, 1]} : vector<640x1xf32> to vector<32x1xf32>
    %33 = arith.addf %31, %32 : vector<32x1xf32>
    %cst_12 = arith.constant 5.000000e-01 : f32
    %34 = vector.broadcast %cst_12 : f32 to vector<32x1xf32>
    %35 = arith.mulf %34, %33 : vector<32x1xf32>
    %36 = math.tanh %35 : vector<32x1xf32>
    %cst_13 = arith.constant 1.000000e+00 : f32
    %37 = vector.broadcast %cst_13 : f32 to vector<32x1xf32>
    %38 = arith.addf %36, %37 : vector<32x1xf32>
    %cst_14 = arith.constant 5.000000e-01 : f32
    %39 = vector.broadcast %cst_14 : f32 to vector<32x1xf32>
    %40 = arith.mulf %39, %38 : vector<32x1xf32>
    %41 = arith.mulf %33, %40 : vector<32x1xf32>
    %c0_15 = arith.constant 0 : index
    %c0_16 = arith.constant 0 : index
    %42 = vector.load %arg7[%c0_15, %c0_16] : memref<192x32xf32, #tpu.memory_space<vmem>>, vector<192x32xf32>
    %cst_17 = arith.constant dense<0.000000e+00> : vector<192x1xf32>
    %43 = tpu.matmul %42, %41, %cst_17 {dimension_numbers = #tpu.dot_dimension_numbers<[1], [0], [0], [1], [0, 0, 1, 1], [], []>} : vector<192x32xf32>, vector<32x1xf32>, vector<192x1xf32> -> vector<192x1xf32>
    %44 = vector.extract_strided_slice %0 {offsets = [32, 0], sizes = [192, 1], strides = [1, 1]} : vector<640x1xf32> to vector<192x1xf32>
    %45 = arith.addf %43, %44 : vector<192x1xf32>
    %46 = vector.extract_strided_slice %45 {offsets = [0, 0], sizes = [32, 1], strides = [1, 1]} : vector<192x1xf32> to vector<32x1xf32>
    %47 = vector.extract_strided_slice %45 {offsets = [32, 0], sizes = [32, 1], strides = [1, 1]} : vector<192x1xf32> to vector<32x1xf32>
    %48 = vector.extract_strided_slice %45 {offsets = [64, 0], sizes = [32, 1], strides = [1, 1]} : vector<192x1xf32> to vector<32x1xf32>
    %49 = vector.extract_strided_slice %45 {offsets = [96, 0], sizes = [32, 1], strides = [1, 1]} : vector<192x1xf32> to vector<32x1xf32>
    %50 = vector.extract_strided_slice %45 {offsets = [128, 0], sizes = [32, 1], strides = [1, 1]} : vector<192x1xf32> to vector<32x1xf32>
    %51 = vector.extract_strided_slice %45 {offsets = [160, 0], sizes = [32, 1], strides = [1, 1]} : vector<192x1xf32> to vector<32x1xf32>
    %cst_18 = arith.constant dense<0.000000e+00> : vector<128xf32>
    %52 = vector.multi_reduction <add>, %25, %cst_18 [0] : vector<32x128xf32> to vector<128xf32>
    %53 = vector.shape_cast %52 : vector<128xf32> to vector<1x128xf32>
    %cst_19 = arith.constant 3.200000e+01 : f32
    %54 = vector.broadcast %cst_19 : f32 to vector<1x128xf32>
    %55 = arith.divf %53, %54 : vector<1x128xf32>
    %56 = vector.broadcast %55 : vector<1x128xf32> to vector<32x128xf32>
    %57 = arith.subf %25, %56 : vector<32x128xf32>
    %58 = arith.mulf %57, %57 : vector<32x128xf32>
    %cst_20 = arith.constant dense<0.000000e+00> : vector<128xf32>
    %59 = vector.multi_reduction <add>, %58, %cst_20 [0] : vector<32x128xf32> to vector<128xf32>
    %60 = vector.shape_cast %59 : vector<128xf32> to vector<1x128xf32>
    %cst_21 = arith.constant 3.200000e+01 : f32
    %61 = vector.broadcast %cst_21 : f32 to vector<1x128xf32>
    %62 = arith.divf %60, %61 : vector<1x128xf32>
    %63 = vector.broadcast %55 : vector<1x128xf32> to vector<32x128xf32>
    %64 = arith.subf %25, %63 : vector<32x128xf32>
    %cst_22 = arith.constant 9.99999997E-7 : f32
    %65 = vector.broadcast %cst_22 : f32 to vector<1x128xf32>
    %66 = arith.addf %62, %65 : vector<1x128xf32>
    %67 = math.rsqrt %66 : vector<1x128xf32>
    %68 = vector.broadcast %67 : vector<1x128xf32> to vector<32x128xf32>
    %69 = arith.mulf %64, %68 : vector<32x128xf32>
    %cst_23 = arith.constant 1.000000e+00 : f32
    %70 = vector.broadcast %cst_23 : f32 to vector<32x1xf32>
    %71 = arith.addf %70, %47 : vector<32x1xf32>
    %72 = vector.broadcast %71 : vector<32x1xf32> to vector<32x128xf32>
    %73 = arith.mulf %69, %72 : vector<32x128xf32>
    %74 = vector.broadcast %46 : vector<32x1xf32> to vector<32x128xf32>
    %75 = arith.addf %73, %74 : vector<32x128xf32>
    %c0_24 = arith.constant 0 : index
    %c0_25 = arith.constant 0 : index
    %76 = vector.load %arg8[%c0_24, %c0_25] : memref<96x32xbf16, #tpu.memory_space<vmem>>, vector<96x32xbf16>
    %77 = vector.extract_strided_slice %0 {offsets = [224, 0], sizes = [96, 1], strides = [1, 1]} : vector<640x1xf32> to vector<96x1xf32>
    %c0_26 = arith.constant 0 : index
    %c0_27 = arith.constant 0 : index
    %78 = vector.load %arg9[%c0_26, %c0_27] : memref<32x32xbf16, #tpu.memory_space<vmem>>, vector<32x32xbf16>
    %79 = vector.extract_strided_slice %0 {offsets = [320, 0], sizes = [32, 1], strides = [1, 1]} : vector<640x1xf32> to vector<32x1xf32>
    %80 = arith.truncf %75 : vector<32x128xf32> to vector<32x128xbf16>
    %cst_28 = arith.constant dense<0.000000e+00> : vector<96x128xf32>
    %81 = tpu.matmul %76, %80, %cst_28 {dimension_numbers = #tpu.dot_dimension_numbers<[1], [0], [0], [1], [0, 0, 1, 1], [], []>} : vector<96x32xbf16>, vector<32x128xbf16>, vector<96x128xf32> -> vector<96x128xf32>
    %82 = vector.broadcast %77 : vector<96x1xf32> to vector<96x128xf32>
    %83 = arith.addf %81, %82 : vector<96x128xf32>
    %84 = vector.extract_strided_slice %83 {offsets = [0, 0], sizes = [32, 128], strides = [1, 1]} : vector<96x128xf32> to vector<32x128xf32>
    %85 = vector.extract_strided_slice %83 {offsets = [32, 0], sizes = [32, 128], strides = [1, 1]} : vector<96x128xf32> to vector<32x128xf32>
    %86 = vector.extract_strided_slice %83 {offsets = [64, 0], sizes = [32, 128], strides = [1, 1]} : vector<96x128xf32> to vector<32x128xf32>
    %87 = vector.shape_cast %84 : vector<32x128xf32> to vector<4x8x128xf32>
    %88 = arith.truncf %87 : vector<4x8x128xf32> to vector<4x8x128xbf16>
    %89 = vector.shape_cast %85 : vector<32x128xf32> to vector<4x8x128xf32>
    %90 = arith.truncf %89 : vector<4x8x128xf32> to vector<4x8x128xbf16>
    %91 = vector.shape_cast %86 : vector<32x128xf32> to vector<4x8x128xf32>
    %92 = arith.truncf %91 : vector<4x8x128xf32> to vector<4x8x128xbf16>
    %cst_29 = arith.constant -1.000000e+30 : f32
    %93 = vector.broadcast %cst_29 : f32 to vector<4x1x128xf32>
    %cst_30 = arith.constant 0.000000e+00 : f32
    %94 = vector.broadcast %cst_30 : f32 to vector<4x1x128xf32>
    %cst_31 = arith.constant 0.000000e+00 : f32
    %95 = vector.broadcast %cst_31 : f32 to vector<4x8x128xf32>
    "tpu.trace_start"() <{level = 10 : i32, message = "hdk,hdq->hkq"}> : () -> ()
    %cst_32 = arith.constant dense<0.000000e+00> : vector<4x128x128xf32>
    %96 = tpu.matmul %90, %88, %cst_32 {dimension_numbers = #tpu.dot_dimension_numbers<[1], [1], [2], [2], [0, 0, 0, 2, 1, 2], [0], [0]>} : vector<4x8x128xbf16>, vector<4x8x128xbf16>, vector<4x128x128xf32> -> vector<4x128x128xf32>
    %cst_33 = arith.constant -1.000000e+04 : f32
    "tpu.trace_stop"() : () -> ()
    %97 = vector.shape_cast %20 : vector<1x128x1xi1> to vector<1x128x1xi1>
    %98 = vector.broadcast %97 : vector<1x128x1xi1> to vector<4x128x128xi1>
    %99 = vector.broadcast %cst_33 : f32 to vector<4x128x128xf32>
    %100 = arith.select %98, %96, %99 : vector<4x128x128xi1>, vector<4x128x128xf32>
    %cst_34 = arith.constant dense<0xFF800000> : vector<4x128xf32>
    %101 = vector.multi_reduction <maximumf>, %100, %cst_34 [1] : vector<4x128x128xf32> to vector<4x128xf32>
    %102 = vector.shape_cast %101 : vector<4x128xf32> to vector<4x1x128xf32>
    %103 = arith.maximumf %93, %102 : vector<4x1x128xf32>
    %104 = arith.subf %93, %103 : vector<4x1x128xf32>
    %105 = math.exp %104 : vector<4x1x128xf32>
    %106 = vector.broadcast %103 : vector<4x1x128xf32> to vector<4x128x128xf32>
    %107 = arith.subf %100, %106 : vector<4x128x128xf32>
    %108 = arith.truncf %107 : vector<4x128x128xf32> to vector<4x128x128xbf16>
    %109 = math.exp %108 : vector<4x128x128xbf16>
    %110 = arith.mulf %105, %94 : vector<4x1x128xf32>
    %111 = arith.extf %109 : vector<4x128x128xbf16> to vector<4x128x128xf32>
    %cst_35 = arith.constant dense<0.000000e+00> : vector<4x128xf32>
    %112 = vector.multi_reduction <add>, %111, %cst_35 [1] : vector<4x128x128xf32> to vector<4x128xf32>
    %113 = vector.shape_cast %112 : vector<4x128xf32> to vector<4x1x128xf32>
    %114 = arith.addf %110, %113 : vector<4x1x128xf32>
    %115 = vector.broadcast %105 : vector<4x1x128xf32> to vector<4x8x128xf32>
    %116 = arith.mulf %115, %95 : vector<4x8x128xf32>
    "tpu.trace_start"() <{level = 10 : i32, message = "hdk,hkq->hdq"}> : () -> ()
    %cst_36 = arith.constant dense<0.000000e+00> : vector<4x8x128xf32>
    %117 = tpu.matmul %92, %109, %cst_36 {dimension_numbers = #tpu.dot_dimension_numbers<[2], [1], [1], [2], [0, 0, 0, 1, 1, 2], [0], [0]>} : vector<4x8x128xbf16>, vector<4x128x128xbf16>, vector<4x8x128xf32> -> vector<4x8x128xf32>
    "tpu.trace_stop"() : () -> ()
    %118 = arith.addf %116, %117 : vector<4x8x128xf32>
    %119 = tpu.reciprocal %114 {approx = true} : vector<4x1x128xf32> -> vector<4x1x128xf32>
    %120 = vector.broadcast %119 : vector<4x1x128xf32> to vector<4x8x128xf32>
    %121 = arith.mulf %118, %120 : vector<4x8x128xf32>
    %122 = vector.shape_cast %121 : vector<4x8x128xf32> to vector<32x128xf32>
    %123 = arith.truncf %122 : vector<32x128xf32> to vector<32x128xbf16>
    %cst_37 = arith.constant dense<0.000000e+00> : vector<32x128xf32>
    %124 = tpu.matmul %78, %123, %cst_37 {dimension_numbers = #tpu.dot_dimension_numbers<[1], [0], [0], [1], [0, 0, 1, 1], [], []>} : vector<32x32xbf16>, vector<32x128xbf16>, vector<32x128xf32> -> vector<32x128xf32>
    %125 = vector.broadcast %79 : vector<32x1xf32> to vector<32x128xf32>
    %126 = arith.addf %124, %125 : vector<32x128xf32>
    %127 = vector.broadcast %48 : vector<32x1xf32> to vector<32x128xf32>
    %128 = arith.mulf %127, %126 : vector<32x128xf32>
    %129 = arith.addf %128, %25 : vector<32x128xf32>
    %cst_38 = arith.constant dense<0.000000e+00> : vector<128xf32>
    %130 = vector.multi_reduction <add>, %129, %cst_38 [0] : vector<32x128xf32> to vector<128xf32>
    %131 = vector.shape_cast %130 : vector<128xf32> to vector<1x128xf32>
    %cst_39 = arith.constant 3.200000e+01 : f32
    %132 = vector.broadcast %cst_39 : f32 to vector<1x128xf32>
    %133 = arith.divf %131, %132 : vector<1x128xf32>
    %134 = vector.broadcast %133 : vector<1x128xf32> to vector<32x128xf32>
    %135 = arith.subf %129, %134 : vector<32x128xf32>
    %136 = arith.mulf %135, %135 : vector<32x128xf32>
    %cst_40 = arith.constant dense<0.000000e+00> : vector<128xf32>
    %137 = vector.multi_reduction <add>, %136, %cst_40 [0] : vector<32x128xf32> to vector<128xf32>
    %138 = vector.shape_cast %137 : vector<128xf32> to vector<1x128xf32>
    %cst_41 = arith.constant 3.200000e+01 : f32
    %139 = vector.broadcast %cst_41 : f32 to vector<1x128xf32>
    %140 = arith.divf %138, %139 : vector<1x128xf32>
    %141 = vector.broadcast %133 : vector<1x128xf32> to vector<32x128xf32>
    %142 = arith.subf %129, %141 : vector<32x128xf32>
    %cst_42 = arith.constant 9.99999974E-6 : f32
    %143 = vector.broadcast %cst_42 : f32 to vector<1x128xf32>
    %144 = arith.addf %140, %143 : vector<1x128xf32>
    %145 = math.rsqrt %144 : vector<1x128xf32>
    %146 = vector.broadcast %145 : vector<1x128xf32> to vector<32x128xf32>
    %147 = arith.mulf %142, %146 : vector<32x128xf32>
    %148 = vector.extract_strided_slice %0 {offsets = [352, 0], sizes = [32, 1], strides = [1, 1]} : vector<640x1xf32> to vector<32x1xf32>
    %149 = vector.broadcast %148 : vector<32x1xf32> to vector<32x128xf32>
    %150 = arith.mulf %147, %149 : vector<32x128xf32>
    %151 = vector.extract_strided_slice %0 {offsets = [384, 0], sizes = [32, 1], strides = [1, 1]} : vector<640x1xf32> to vector<32x1xf32>
    %152 = vector.broadcast %151 : vector<32x1xf32> to vector<32x128xf32>
    %153 = arith.addf %150, %152 : vector<32x128xf32>
    %c0_43 = arith.constant 0 : index
    %c0_44 = arith.constant 0 : index
    %154 = vector.load %arg10[%c0_43, %c0_44] : memref<96x32xbf16, #tpu.memory_space<vmem>>, vector<96x32xbf16>
    %155 = vector.extract_strided_slice %0 {offsets = [416, 0], sizes = [96, 1], strides = [1, 1]} : vector<640x1xf32> to vector<96x1xf32>
    %c0_45 = arith.constant 0 : index
    %c0_46 = arith.constant 0 : index
    %156 = vector.load %arg11[%c0_45, %c0_46] : memref<32x32xbf16, #tpu.memory_space<vmem>>, vector<32x32xbf16>
    %157 = vector.extract_strided_slice %0 {offsets = [512, 0], sizes = [32, 1], strides = [1, 1]} : vector<640x1xf32> to vector<32x1xf32>
    %158 = vector.extract_strided_slice %154 {offsets = [0, 0], sizes = [32, 32], strides = [1, 1]} : vector<96x32xbf16> to vector<32x32xbf16>
    %159 = arith.truncf %153 : vector<32x128xf32> to vector<32x128xbf16>
    %cst_47 = arith.constant dense<0.000000e+00> : vector<32x128xf32>
    %160 = tpu.matmul %158, %159, %cst_47 {dimension_numbers = #tpu.dot_dimension_numbers<[1], [0], [0], [1], [0, 0, 1, 1], [], []>} : vector<32x32xbf16>, vector<32x128xbf16>, vector<32x128xf32> -> vector<32x128xf32>
    %161 = vector.extract_strided_slice %155 {offsets = [0, 0], sizes = [32, 1], strides = [1, 1]} : vector<96x1xf32> to vector<32x1xf32>
    %162 = vector.broadcast %161 : vector<32x1xf32> to vector<32x128xf32>
    %163 = arith.addf %160, %162 : vector<32x128xf32>
    %164 = vector.extract_strided_slice %154 {offsets = [32, 0], sizes = [64, 32], strides = [1, 1]} : vector<96x32xbf16> to vector<64x32xbf16>
    %165 = arith.truncf %27 : vector<32x128xf32> to vector<32x128xbf16>
    %cst_48 = arith.constant dense<0.000000e+00> : vector<64x128xf32>
    %166 = tpu.matmul %164, %165, %cst_48 {dimension_numbers = #tpu.dot_dimension_numbers<[1], [0], [0], [1], [0, 0, 1, 1], [], []>} : vector<64x32xbf16>, vector<32x128xbf16>, vector<64x128xf32> -> vector<64x128xf32>
    %167 = vector.extract_strided_slice %155 {offsets = [32, 0], sizes = [64, 1], strides = [1, 1]} : vector<96x1xf32> to vector<64x1xf32>
    %168 = vector.broadcast %167 : vector<64x1xf32> to vector<64x128xf32>
    %169 = arith.addf %166, %168 : vector<64x128xf32>
    %170 = vector.extract_strided_slice %169 {offsets = [0, 0], sizes = [32, 128], strides = [1, 1]} : vector<64x128xf32> to vector<32x128xf32>
    %171 = vector.extract_strided_slice %169 {offsets = [32, 0], sizes = [32, 128], strides = [1, 1]} : vector<64x128xf32> to vector<32x128xf32>
    %172 = vector.shape_cast %163 : vector<32x128xf32> to vector<4x8x128xf32>
    %173 = arith.truncf %172 : vector<4x8x128xf32> to vector<4x8x128xbf16>
    %174 = vector.shape_cast %170 : vector<32x128xf32> to vector<4x8x128xf32>
    %175 = arith.truncf %174 : vector<4x8x128xf32> to vector<4x8x128xbf16>
    %176 = vector.shape_cast %171 : vector<32x128xf32> to vector<4x8x128xf32>
    %177 = arith.truncf %176 : vector<4x8x128xf32> to vector<4x8x128xbf16>
    %cst_49 = arith.constant -1.000000e+30 : f32
    %178 = vector.broadcast %cst_49 : f32 to vector<4x1x128xf32>
    %cst_50 = arith.constant 0.000000e+00 : f32
    %179 = vector.broadcast %cst_50 : f32 to vector<4x1x128xf32>
    %cst_51 = arith.constant 0.000000e+00 : f32
    %180 = vector.broadcast %cst_51 : f32 to vector<4x8x128xf32>
    "tpu.trace_start"() <{level = 10 : i32, message = "hdk,hdq->hkq"}> : () -> ()
    %cst_52 = arith.constant dense<0.000000e+00> : vector<4x128x128xf32>
    %181 = tpu.matmul %175, %173, %cst_52 {dimension_numbers = #tpu.dot_dimension_numbers<[1], [1], [2], [2], [0, 0, 0, 2, 1, 2], [0], [0]>} : vector<4x8x128xbf16>, vector<4x8x128xbf16>, vector<4x128x128xf32> -> vector<4x128x128xf32>
    %cst_53 = arith.constant -1.000000e+04 : f32
    "tpu.trace_stop"() : () -> ()
    %182 = vector.shape_cast %23 : vector<1x128x1xi1> to vector<1x128x1xi1>
    %183 = vector.broadcast %182 : vector<1x128x1xi1> to vector<4x128x128xi1>
    %184 = vector.broadcast %cst_53 : f32 to vector<4x128x128xf32>
    %185 = arith.select %183, %181, %184 : vector<4x128x128xi1>, vector<4x128x128xf32>
    %cst_54 = arith.constant dense<0xFF800000> : vector<4x128xf32>
    %186 = vector.multi_reduction <maximumf>, %185, %cst_54 [1] : vector<4x128x128xf32> to vector<4x128xf32>
    %187 = vector.shape_cast %186 : vector<4x128xf32> to vector<4x1x128xf32>
    %188 = arith.maximumf %178, %187 : vector<4x1x128xf32>
    %189 = arith.subf %178, %188 : vector<4x1x128xf32>
    %190 = math.exp %189 : vector<4x1x128xf32>
    %191 = vector.broadcast %188 : vector<4x1x128xf32> to vector<4x128x128xf32>
    %192 = arith.subf %185, %191 : vector<4x128x128xf32>
    %193 = arith.truncf %192 : vector<4x128x128xf32> to vector<4x128x128xbf16>
    %194 = math.exp %193 : vector<4x128x128xbf16>
    %195 = arith.mulf %190, %179 : vector<4x1x128xf32>
    %196 = arith.extf %194 : vector<4x128x128xbf16> to vector<4x128x128xf32>
    %cst_55 = arith.constant dense<0.000000e+00> : vector<4x128xf32>
    %197 = vector.multi_reduction <add>, %196, %cst_55 [1] : vector<4x128x128xf32> to vector<4x128xf32>
    %198 = vector.shape_cast %197 : vector<4x128xf32> to vector<4x1x128xf32>
    %199 = arith.addf %195, %198 : vector<4x1x128xf32>
    %200 = vector.broadcast %190 : vector<4x1x128xf32> to vector<4x8x128xf32>
    %201 = arith.mulf %200, %180 : vector<4x8x128xf32>
    "tpu.trace_start"() <{level = 10 : i32, message = "hdk,hkq->hdq"}> : () -> ()
    %cst_56 = arith.constant dense<0.000000e+00> : vector<4x8x128xf32>
    %202 = tpu.matmul %177, %194, %cst_56 {dimension_numbers = #tpu.dot_dimension_numbers<[2], [1], [1], [2], [0, 0, 0, 1, 1, 2], [0], [0]>} : vector<4x8x128xbf16>, vector<4x128x128xbf16>, vector<4x8x128xf32> -> vector<4x8x128xf32>
    "tpu.trace_stop"() : () -> ()
    %203 = arith.addf %201, %202 : vector<4x8x128xf32>
    %204 = tpu.reciprocal %199 {approx = true} : vector<4x1x128xf32> -> vector<4x1x128xf32>
    %205 = vector.broadcast %204 : vector<4x1x128xf32> to vector<4x8x128xf32>
    %206 = arith.mulf %203, %205 : vector<4x8x128xf32>
    %207 = vector.shape_cast %206 : vector<4x8x128xf32> to vector<32x128xf32>
    %208 = arith.truncf %207 : vector<32x128xf32> to vector<32x128xbf16>
    %cst_57 = arith.constant dense<0.000000e+00> : vector<32x128xf32>
    %209 = tpu.matmul %156, %208, %cst_57 {dimension_numbers = #tpu.dot_dimension_numbers<[1], [0], [0], [1], [0, 0, 1, 1], [], []>} : vector<32x32xbf16>, vector<32x128xbf16>, vector<32x128xf32> -> vector<32x128xf32>
    %210 = vector.broadcast %157 : vector<32x1xf32> to vector<32x128xf32>
    %211 = arith.addf %209, %210 : vector<32x128xf32>
    %212 = arith.addf %211, %129 : vector<32x128xf32>
    %cst_58 = arith.constant dense<0.000000e+00> : vector<128xf32>
    %213 = vector.multi_reduction <add>, %212, %cst_58 [0] : vector<32x128xf32> to vector<128xf32>
    %214 = vector.shape_cast %213 : vector<128xf32> to vector<1x128xf32>
    %cst_59 = arith.constant 3.200000e+01 : f32
    %215 = vector.broadcast %cst_59 : f32 to vector<1x128xf32>
    %216 = arith.divf %214, %215 : vector<1x128xf32>
    %217 = vector.broadcast %216 : vector<1x128xf32> to vector<32x128xf32>
    %218 = arith.subf %212, %217 : vector<32x128xf32>
    %219 = arith.mulf %218, %218 : vector<32x128xf32>
    %cst_60 = arith.constant dense<0.000000e+00> : vector<128xf32>
    %220 = vector.multi_reduction <add>, %219, %cst_60 [0] : vector<32x128xf32> to vector<128xf32>
    %221 = vector.shape_cast %220 : vector<128xf32> to vector<1x128xf32>
    %cst_61 = arith.constant 3.200000e+01 : f32
    %222 = vector.broadcast %cst_61 : f32 to vector<1x128xf32>
    %223 = arith.divf %221, %222 : vector<1x128xf32>
    %224 = vector.broadcast %216 : vector<1x128xf32> to vector<32x128xf32>
    %225 = arith.subf %212, %224 : vector<32x128xf32>
    %cst_62 = arith.constant 9.99999997E-7 : f32
    %226 = vector.broadcast %cst_62 : f32 to vector<1x128xf32>
    %227 = arith.addf %223, %226 : vector<1x128xf32>
    %228 = math.rsqrt %227 : vector<1x128xf32>
    %229 = vector.broadcast %228 : vector<1x128xf32> to vector<32x128xf32>
    %230 = arith.mulf %225, %229 : vector<32x128xf32>
    %cst_63 = arith.constant 1.000000e+00 : f32
    %231 = vector.broadcast %cst_63 : f32 to vector<32x1xf32>
    %232 = arith.addf %231, %50 : vector<32x1xf32>
    %233 = vector.broadcast %232 : vector<32x1xf32> to vector<32x128xf32>
    %234 = arith.mulf %230, %233 : vector<32x128xf32>
    %235 = vector.broadcast %49 : vector<32x1xf32> to vector<32x128xf32>
    %236 = arith.addf %234, %235 : vector<32x128xf32>
    %237 = vector.broadcast %9 : vector<1x128xf32> to vector<32x128xf32>
    %238 = arith.mulf %236, %237 : vector<32x128xf32>
    %239 = vector.extract_strided_slice %0 {offsets = [544, 0], sizes = [64, 1], strides = [1, 1]} : vector<640x1xf32> to vector<64x1xf32>
    %c1_i32 = arith.constant 1 : i32
    %240 = tpu.dynamic_rotate %238 by %c1_i32 dim 1 : vector<32x128xf32>, i32 -> vector<32x128xf32>
    %241 = vector.broadcast %13 : vector<1x128xf32> to vector<32x128xf32>
    %242 = arith.mulf %240, %241 : vector<32x128xf32>
    %c127_i32_64 = arith.constant 127 : i32
    %243 = tpu.dynamic_rotate %238 by %c127_i32_64 dim 1 : vector<32x128xf32>, i32 -> vector<32x128xf32>
    %244 = vector.broadcast %17 : vector<1x128xf32> to vector<32x128xf32>
    %245 = arith.mulf %243, %244 : vector<32x128xf32>
    %246 = tpu.concatenate %242, %238, %245 in 0 : vector<32x128xf32>, vector<32x128xf32>, vector<32x128xf32> -> vector<96x128xf32>
    %c0_65 = arith.constant 0 : index
    %c0_66 = arith.constant 0 : index
    %247 = vector.load %arg12[%c0_65, %c0_66] : memref<64x96xbf16, #tpu.memory_space<vmem>>, vector<64x96xbf16>
    %248 = arith.truncf %246 : vector<96x128xf32> to vector<96x128xbf16>
    %cst_67 = arith.constant dense<0.000000e+00> : vector<64x128xf32>
    %249 = tpu.matmul %247, %248, %cst_67 {dimension_numbers = #tpu.dot_dimension_numbers<[1], [0], [0], [1], [0, 0, 1, 1], [], []>} : vector<64x96xbf16>, vector<96x128xbf16>, vector<64x128xf32> -> vector<64x128xf32>
    %250 = vector.broadcast %239 : vector<64x1xf32> to vector<64x128xf32>
    %251 = arith.addf %249, %250 : vector<64x128xf32>
    %cst_68 = arith.constant 0.000000e+00 : f32
    %252 = vector.broadcast %cst_68 : f32 to vector<64x128xf32>
    %253 = arith.maximumf %251, %252 : vector<64x128xf32>
    %254 = vector.broadcast %9 : vector<1x128xf32> to vector<64x128xf32>
    %255 = arith.mulf %253, %254 : vector<64x128xf32>
    %256 = vector.extract_strided_slice %0 {offsets = [608, 0], sizes = [32, 1], strides = [1, 1]} : vector<640x1xf32> to vector<32x1xf32>
    %c1_i32_69 = arith.constant 1 : i32
    %257 = tpu.dynamic_rotate %255 by %c1_i32_69 dim 1 : vector<64x128xf32>, i32 -> vector<64x128xf32>
    %258 = vector.broadcast %13 : vector<1x128xf32> to vector<64x128xf32>
    %259 = arith.mulf %257, %258 : vector<64x128xf32>
    %c127_i32_70 = arith.constant 127 : i32
    %260 = tpu.dynamic_rotate %255 by %c127_i32_70 dim 1 : vector<64x128xf32>, i32 -> vector<64x128xf32>
    %261 = vector.broadcast %17 : vector<1x128xf32> to vector<64x128xf32>
    %262 = arith.mulf %260, %261 : vector<64x128xf32>
    %263 = tpu.concatenate %259, %255, %262 in 0 : vector<64x128xf32>, vector<64x128xf32>, vector<64x128xf32> -> vector<192x128xf32>
    %c0_71 = arith.constant 0 : index
    %c0_72 = arith.constant 0 : index
    %264 = vector.load %arg13[%c0_71, %c0_72] : memref<32x192xbf16, #tpu.memory_space<vmem>>, vector<32x192xbf16>
    %265 = arith.truncf %263 : vector<192x128xf32> to vector<192x128xbf16>
    %cst_73 = arith.constant dense<0.000000e+00> : vector<32x128xf32>
    %266 = tpu.matmul %264, %265, %cst_73 {dimension_numbers = #tpu.dot_dimension_numbers<[1], [0], [0], [1], [0, 0, 1, 1], [], []>} : vector<32x192xbf16>, vector<192x128xbf16>, vector<32x128xf32> -> vector<32x128xf32>
    %267 = vector.broadcast %256 : vector<32x1xf32> to vector<32x128xf32>
    %268 = arith.addf %266, %267 : vector<32x128xf32>
    %269 = vector.broadcast %9 : vector<1x128xf32> to vector<32x128xf32>
    %270 = arith.mulf %268, %269 : vector<32x128xf32>
    %271 = vector.broadcast %51 : vector<32x1xf32> to vector<32x128xf32>
    %272 = arith.mulf %271, %270 : vector<32x128xf32>
    %273 = arith.addf %272, %212 : vector<32x128xf32>
    %274 = vector.broadcast %9 : vector<1x128xf32> to vector<32x128xf32>
    %275 = arith.mulf %273, %274 : vector<32x128xf32>
    %c0_74 = arith.constant 0 : index
    %c0_75 = arith.constant 0 : index
    %c0_76 = arith.constant 0 : index
    %276 = vector.load %arg15[%c0_74, %c0_75, %c0_76] : memref<1x32x128xf32, #tpu.memory_space<vmem>>, vector<1x32x128xf32>
    %277 = vector.shape_cast %276 : vector<1x32x128xf32> to vector<32x128xf32>
    %278 = vector.shape_cast %275 : vector<32x128xf32> to vector<1x32x128xf32>
    tpu.vector_store %arg15[%c0_74, %c0_75, %c0_76], %278 {strides = array<i32>} : memref<1x32x128xf32, #tpu.memory_space<vmem>>, vector<1x32x128xf32>,
    return
  }
  func.func @transform_0(%arg0: i32, %arg1: memref<2xi32, #tpu.memory_space<smem>>, %arg2: memref<2xi32, #tpu.memory_space<smem>>) -> (i32, i32, i32) {
    %c0_i32 = arith.constant 0 : i32
    %c0_i32_0 = arith.constant 0 : i32
    %c0_i32_1 = arith.constant 0 : i32
    return %arg0, %c0_i32, %c0_i32_0 : i32, i32, i32
  }
  func.func @transform_1(%arg0: i32, %arg1: memref<2xi32, #tpu.memory_space<smem>>, %arg2: memref<2xi32, #tpu.memory_space<smem>>) -> (i32, i32, i32) {
    %c0_i32 = arith.constant 0 : i32
    %c0_i32_0 = arith.constant 0 : i32
    %c0_i32_1 = arith.constant 0 : i32
    return %arg0, %c0_i32, %c0_i32_0 : i32, i32, i32
  }
  func.func @transform_2(%arg0: i32, %arg1: memref<2xi32, #tpu.memory_space<smem>>, %arg2: memref<2xi32, #tpu.memory_space<smem>>) -> (i32, i32, i32) {
    %c0_i32 = arith.constant 0 : i32
    %c0_i32_0 = arith.constant 0 : i32
    %c0_i32_1 = arith.constant 0 : i32
    return %arg0, %c0_i32, %c0_i32_0 : i32, i32, i32
  }
  func.func @transform_3(%arg0: i32, %arg1: memref<2xi32, #tpu.memory_space<smem>>, %arg2: memref<2xi32, #tpu.memory_space<smem>>) -> (i32, i32) {
    %c0_i32 = arith.constant 0 : i32
    %c0_i32_0 = arith.constant 0 : i32
    %c0_i32_1 = arith.constant 0 : i32
    return %c0_i32, %c0_i32_0 : i32, i32
  }
  func.func @transform_4(%arg0: i32, %arg1: memref<2xi32, #tpu.memory_space<smem>>, %arg2: memref<2xi32, #tpu.memory_space<smem>>) -> (i32, i32) {
    %c0_i32 = arith.constant 0 : i32
    %c0_i32_0 = arith.constant 0 : i32
    %c0_i32_1 = arith.constant 0 : i32
    return %c0_i32, %c0_i32_0 : i32, i32
  }
  func.func @transform_5(%arg0: i32, %arg1: memref<2xi32, #tpu.memory_space<smem>>, %arg2: memref<2xi32, #tpu.memory_space<smem>>) -> (i32, i32) {
    %c0_i32 = arith.constant 0 : i32
    %c0_i32_0 = arith.constant 0 : i32
    %c0_i32_1 = arith.constant 0 : i32
    return %c0_i32, %c0_i32_0 : i32, i32
  }
  func.func @transform_6(%arg0: i32, %arg1: memref<2xi32, #tpu.memory_space<smem>>, %arg2: memref<2xi32, #tpu.memory_space<smem>>) -> (i32, i32) {
    %c0_i32 = arith.constant 0 : i32
    %c0_i32_0 = arith.constant 0 : i32
    %c0_i32_1 = arith.constant 0 : i32
    return %c0_i32, %c0_i32_0 : i32, i32
  }
  func.func @transform_7(%arg0: i32, %arg1: memref<2xi32, #tpu.memory_space<smem>>, %arg2: memref<2xi32, #tpu.memory_space<smem>>) -> (i32, i32) {
    %c0_i32 = arith.constant 0 : i32
    %c0_i32_0 = arith.constant 0 : i32
    %c0_i32_1 = arith.constant 0 : i32
    return %c0_i32, %c0_i32_0 : i32, i32
  }
  func.func @transform_8(%arg0: i32, %arg1: memref<2xi32, #tpu.memory_space<smem>>, %arg2: memref<2xi32, #tpu.memory_space<smem>>) -> (i32, i32) {
    %c0_i32 = arith.constant 0 : i32
    %c0_i32_0 = arith.constant 0 : i32
    %c0_i32_1 = arith.constant 0 : i32
    return %c0_i32, %c0_i32_0 : i32, i32
  }
  func.func @transform_9(%arg0: i32, %arg1: memref<2xi32, #tpu.memory_space<smem>>, %arg2: memref<2xi32, #tpu.memory_space<smem>>) -> (i32, i32) {
    %c0_i32 = arith.constant 0 : i32
    %c0_i32_0 = arith.constant 0 : i32
    %c0_i32_1 = arith.constant 0 : i32
    return %c0_i32, %c0_i32_0 : i32, i32
  }
  func.func @transform_10(%arg0: i32, %arg1: memref<2xi32, #tpu.memory_space<smem>>, %arg2: memref<2xi32, #tpu.memory_space<smem>>) -> (i32, i32) {
    %c0_i32 = arith.constant 0 : i32
    %c0_i32_0 = arith.constant 0 : i32
    %c0_i32_1 = arith.constant 0 : i32
    return %c0_i32, %c0_i32_0 : i32, i32
  }
  func.func @transform_11(%arg0: i32, %arg1: memref<2xi32, #tpu.memory_space<smem>>, %arg2: memref<2xi32, #tpu.memory_space<smem>>) -> (i32, i32) {
    %c0_i32 = arith.constant 0 : i32
    %c0_i32_0 = arith.constant 0 : i32
    %c0_i32_1 = arith.constant 0 : i32
    return %c0_i32, %c0_i32_0 : i32, i32
  }
  func.func @transform_12(%arg0: i32, %arg1: memref<2xi32, #tpu.memory_space<smem>>, %arg2: memref<2xi32, #tpu.memory_space<smem>>) -> (i32, i32, i32) {
    %c0_i32 = arith.constant 0 : i32
    %c0_i32_0 = arith.constant 0 : i32
    %c0_i32_1 = arith.constant 0 : i32
    return %arg0, %c0_i32, %c0_i32_0 : i32, i32, i32
  }
}

</mosaic_0001>

<llo_original>
// kernel: tpu_custom_call.1
$region0: #{tpu_custom_call.1}
  #allocation0 [shape = 'u32[]', space=smem, size = 0x4, offset = 0x4, fixed_abs, tag = 'smem constant byte address 0x4 - core index']
  #allocation1 [shape = 'u32[144,128]{1,0:T(1,128)}', space=vmem, size = 0x12000, scoped, tag = 'internal scratch']
  #allocation2 [shape = 's32[1]{0}', space=sflag, size = 0x4, scoped, tag = 'scoped memory for tpu_custom_call.1']
  #allocation3 [shape = 'u8[512]{0}', space=smem, size = 0x200, scoped, tag = 'prefetched SMEM operand 0']
  #allocation4 [shape = 'u8[512]{0}', space=smem, size = 0x200, scoped, tag = 'prefetched SMEM operand 1']
  %s0 = inlined_call_operand.vmem [shape: s32[2], index: 0, kind: input, shape index: {}]
  %s1 = inlined_call_operand.vmem [shape: s32[2], index: 1, kind: input, shape index: {}]
  %s2 = inlined_call_operand.vmem [shape: f32[2,32,128], index: 2, kind: input, shape index: {}]
  %s3 = inlined_call_operand.vmem [shape: f32[2,32,128], index: 3, kind: input, shape index: {}]
  %s4 = inlined_call_operand.vmem [shape: f32[2,16,1], index: 4, kind: input, shape index: {}]
  %s5 = inlined_call_operand.vmem [shape: f32[32,16], index: 5, kind: input, shape index: {}]
  %s6 = inlined_call_operand.vmem [shape: f32[192,32], index: 6, kind: input, shape index: {}]
  %s7 = inlined_call_operand.vmem [shape: bf16[96,32], index: 7, kind: input, shape index: {}]
  %s8 = inlined_call_operand.vmem [shape: bf16[32,32], index: 8, kind: input, shape index: {}]
  %s9 = inlined_call_operand.vmem [shape: bf16[96,32], index: 9, kind: input, shape index: {}]
  %s10 = inlined_call_operand.vmem [shape: bf16[32,32], index: 10, kind: input, shape index: {}]
  %s11 = inlined_call_operand.vmem [shape: bf16[64,96], index: 11, kind: input, shape index: {}]
  %s12 = inlined_call_operand.vmem [shape: bf16[32,192], index: 12, kind: input, shape index: {}]
  %s13 = inlined_call_operand.vmem [shape: f32[640,1], index: 13, kind: input, shape index: {}]
  %s14 = inlined_call_operand.hbm [shape: f32[2,32,128], index: 14, kind: output, shape index: {}]
  %s15 = sld [smem:[#allocation0]]
  $region81: #{tpu_custom_call.1} parent=0
    _
  %s17 = ssub.s32 1, %s15
  %s18 = scalar_select 0, %s17, %s15
  %s19 = sshll.u32 %s0, 4
  %s20 = int_to_ptr.vmem [resolvable:$true] %s19
  %22 = dma.vmem_to_smem %s20, 16, [#allocation3], [#allocation2]
  %s23 = sshll.u32 %s1, 4
  %s24 = int_to_ptr.vmem [resolvable:$true] %s23
  %26 = dma.vmem_to_smem %s24, 16, [#allocation4], [#allocation2]
  %27 = dma.done [#allocation2], 32
  %28 = sfence
  $region1: #{tpu_custom_call.1} parent=0
    #allocation5 [shape = 'u8[32768]{0}', space=vmem, size = 0x8000, scoped, tag = 'output window, operand 0']
    #allocation6 [shape = 's32[2]{0}', space=sflag, size = 0x8, scoped, tag = 'scoped memory for tpu_custom_call.1']
    %29 = vsyncpa [#allocation6], 0
    %s30 = scalar_lea.sflag [#allocation6], 1
    %31 = vsyncpa %s30, 0
    loop: start=0, step=1, limit=4
    $region2: #{tpu_custom_call.1} parent=1 // loop_pre_header
      _
    $region3: #{tpu_custom_call.1} parent=1 // loop_header
      %s33 = sphi 0, %s37
      %p34 = scmp.ge.s32.totalorder %s33, 4
      %s43 = sphi 0, %s45
      %s46 = sphi 0, %s43
      %s47 = sphi 0, %s46
      %s63 = sphi 0, %s47
      %s69 = sphi 0, %s71
      %s72 = sphi 0, %s69
      %s73 = sphi 0, %s72
      %s89 = sphi 0, %s73
      %s95 = sphi 0, %s97
      %s98 = sphi 0, %s95
      %s99 = sphi 0, %s98
      %s115 = sphi 0, %s99
      %s119 = sphi 0, %s119
      %s121 = sphi 0, %s119
      %s122 = sphi 0, %s121
      %s136 = sphi 0, %s122
      %s140 = sphi 0, %s140
      %s142 = sphi 0, %s140
      %s143 = sphi 0, %s142
      %s157 = sphi 0, %s143
      %s161 = sphi 0, %s161
      %s163 = sphi 0, %s161
      %s164 = sphi 0, %s163
      %s178 = sphi 0, %s164
      %s182 = sphi 0, %s182
      %s184 = sphi 0, %s182
      %s185 = sphi 0, %s184
      %s199 = sphi 0, %s185
      %s203 = sphi 0, %s203
      %s205 = sphi 0, %s203
      %s206 = sphi 0, %s205
      %s220 = sphi 0, %s206
      %s224 = sphi 0, %s224
      %s226 = sphi 0, %s224
      %s227 = sphi 0, %s226
      %s241 = sphi 0, %s227
      %s245 = sphi 0, %s245
      %s247 = sphi 0, %s245
      %s248 = sphi 0, %s247
      %s262 = sphi 0, %s248
      %s266 = sphi 0, %s266
      %s268 = sphi 0, %s266
      %s269 = sphi 0, %s268
      %s283 = sphi 0, %s269
      %s287 = sphi 0, %s287
      %s289 = sphi 0, %s287
      %s290 = sphi 0, %s289
      %s304 = sphi 0, %s290
      %s310 = sphi 0, %s312
      %s313 = sphi 0, %s310
      %s314 = sphi 0, %s313
      %s330 = sphi 0, %s314
    $region4: #{tpu_custom_call.1} parent=1 // loop_header_branch
      %36 = sbr.rel (%p34) target = $region8
    $region5: #{tpu_custom_call.1} parent=1 // loop_body
      %s38 = ssub.s32 %s33, 1
      %s39 = ssub.s32 %s33, 2
      %s40 = sadd.s32 %s33, 1
      %s41 = ssub.s32 %s33, %s40
      %p42 = scmp.eq.s32.totalorder %s41, 0
      %s44 = sadd.s32 %s43, 1
      %s45 = scalar_select %p42, %s43, %s44
      %p48 = pneg %p42
      %p49 = scmp.eq.s32.totalorder %s33, 1
      %p50 = por %p48, %p49
      %p51 = scmp.ne.s32.totalorder %s43, %s46
      %p52 = scmp.eq.s32.totalorder %s33, 0
      %p53 = por %p51, %p52
      %p54 = scmp.ne.s32.totalorder %s43, %s46
      %p55 = scmp.eq.s32.totalorder %s38, 1
      %p56 = por %p54, %p55
      %p57 = scmp.ne.s32.totalorder %s46, %s47
      %p58 = scmp.eq.s32.totalorder %s38, 0
      %p59 = por %p57, %p58
      %p60 = scmp.ne.s32.totalorder %s46, %s47
      %p61 = scmp.eq.s32.totalorder %s39, 1
      %p62 = por %p60, %p61
      %p64 = scmp.ne.s32.totalorder %s47, %s63
      %p65 = scmp.eq.s32.totalorder %s39, 0
      %p66 = por %p64, %p65
      %s67 = ssub.s32 %s33, %s40
      %p68 = scmp.eq.s32.totalorder %s67, 0
      %s70 = sadd.s32 %s69, 1
      %s71 = scalar_select %p68, %s69, %s70
      %p74 = pneg %p68
      %p75 = scmp.eq.s32.totalorder %s33, 1
      %p76 = por %p74, %p75
      %p77 = scmp.ne.s32.totalorder %s69, %s72
      %p78 = scmp.eq.s32.totalorder %s33, 0
      %p79 = por %p77, %p78
      %p80 = scmp.ne.s32.totalorder %s69, %s72
      %p81 = scmp.eq.s32.totalorder %s38, 1
      %p82 = por %p80, %p81
      %p83 = scmp.ne.s32.totalorder %s72, %s73
      %p84 = scmp.eq.s32.totalorder %s38, 0
      %p85 = por %p83, %p84
      %p86 = scmp.ne.s32.totalorder %s72, %s73
      %p87 = scmp.eq.s32.totalorder %s39, 1
      %p88 = por %p86, %p87
      %p90 = scmp.ne.s32.totalorder %s73, %s89
      %p91 = scmp.eq.s32.totalorder %s39, 0
      %p92 = por %p90, %p91
      %s93 = ssub.s32 %s33, %s40
      %p94 = scmp.eq.s32.totalorder %s93, 0
      %s96 = sadd.s32 %s95, 1
      %s97 = scalar_select %p94, %s95, %s96
      %p100 = pneg %p94
      %p101 = scmp.eq.s32.totalorder %s33, 1
      %p102 = por %p100, %p101
      %p103 = scmp.ne.s32.totalorder %s95, %s98
      %p104 = scmp.eq.s32.totalorder %s33, 0
      %p105 = por %p103, %p104
      %p106 = scmp.ne.s32.totalorder %s95, %s98
      %p107 = scmp.eq.s32.totalorder %s38, 1
      %p108 = por %p106, %p107
      %p109 = scmp.ne.s32.totalorder %s98, %s99
      %p110 = scmp.eq.s32.totalorder %s38, 0
      %p111 = por %p109, %p110
      %p112 = scmp.ne.s32.totalorder %s98, %s99
      %p113 = scmp.eq.s32.totalorder %s39, 1
      %p114 = por %p112, %p113
      %p116 = scmp.ne.s32.totalorder %s99, %s115
      %p117 = scmp.eq.s32.totalorder %s39, 0
      %p118 = por %p116, %p117
      %s120 = sadd.s32 %s119, 1
      %p123 = scmp.eq.s32.totalorder %s33, 1
      %p124 = scmp.ne.s32.totalorder %s119, %s121
      %p125 = scmp.eq.s32.totalorder %s33, 0
      %p126 = por %p124, %p125
      %p127 = scmp.ne.s32.totalorder %s119, %s121
      %p128 = scmp.eq.s32.totalorder %s38, 1
      %p129 = por %p127, %p128
      %p130 = scmp.ne.s32.totalorder %s121, %s122
      %p131 = scmp.eq.s32.totalorder %s38, 0
      %p132 = por %p130, %p131
      %p133 = scmp.ne.s32.totalorder %s121, %s122
      %p134 = scmp.eq.s32.totalorder %s39, 1
      %p135 = por %p133, %p134
      %p137 = scmp.ne.s32.totalorder %s122, %s136
      %p138 = scmp.eq.s32.totalorder %s39, 0
      %p139 = por %p137, %p138
      %s141 = sadd.s32 %s140, 1
      %p144 = scmp.eq.s32.totalorder %s33, 1
      %p145 = scmp.ne.s32.totalorder %s140, %s142
      %p146 = scmp.eq.s32.totalorder %s33, 0
      %p147 = por %p145, %p146
      %p148 = scmp.ne.s32.totalorder %s140, %s142
      %p149 = scmp.eq.s32.totalorder %s38, 1
      %p150 = por %p148, %p149
      %p151 = scmp.ne.s32.totalorder %s142, %s143
      %p152 = scmp.eq.s32.totalorder %s38, 0
      %p153 = por %p151, %p152
      %p154 = scmp.ne.s32.totalorder %s142, %s143
      %p155 = scmp.eq.s32.totalorder %s39, 1
      %p156 = por %p154, %p155
      %p158 = scmp.ne.s32.totalorder %s143, %s157
      %p159 = scmp.eq.s32.totalorder %s39, 0
      %p160 = por %p158, %p159
      %s162 = sadd.s32 %s161, 1
      %p165 = scmp.eq.s32.totalorder %s33, 1
      %p166 = scmp.ne.s32.totalorder %s161, %s163
      %p167 = scmp.eq.s32.totalorder %s33, 0
      %p168 = por %p166, %p167
      %p169 = scmp.ne.s32.totalorder %s161, %s163
      %p170 = scmp.eq.s32.totalorder %s38, 1
      %p171 = por %p169, %p170
      %p172 = scmp.ne.s32.totalorder %s163, %s164
      %p173 = scmp.eq.s32.totalorder %s38, 0
      %p174 = por %p172, %p173
      %p175 = scmp.ne.s32.totalorder %s163, %s164
      %p176 = scmp.eq.s32.totalorder %s39, 1
      %p177 = por %p175, %p176
      %p179 = scmp.ne.s32.totalorder %s164, %s178
      %p180 = scmp.eq.s32.totalorder %s39, 0
      %p181 = por %p179, %p180
      %s183 = sadd.s32 %s182, 1
      %p186 = scmp.eq.s32.totalorder %s33, 1
      %p187 = scmp.ne.s32.totalorder %s182, %s184
      %p188 = scmp.eq.s32.totalorder %s33, 0
      %p189 = por %p187, %p188
      %p190 = scmp.ne.s32.totalorder %s182, %s184
      %p191 = scmp.eq.s32.totalorder %s38, 1
      %p192 = por %p190, %p191
      %p193 = scmp.ne.s32.totalorder %s184, %s185
      %p194 = scmp.eq.s32.totalorder %s38, 0
      %p195 = por %p193, %p194
      %p196 = scmp.ne.s32.totalorder %s184, %s185
      %p197 = scmp.eq.s32.totalorder %s39, 1
      %p198 = por %p196, %p197
      %p200 = scmp.ne.s32.totalorder %s185, %s199
      %p201 = scmp.eq.s32.totalorder %s39, 0
      %p202 = por %p200, %p201
      %s204 = sadd.s32 %s203, 1
      %p207 = scmp.eq.s32.totalorder %s33, 1
      %p208 = scmp.ne.s32.totalorder %s203, %s205
      %p209 = scmp.eq.s32.totalorder %s33, 0
      %p210 = por %p208, %p209
      %p211 = scmp.ne.s32.totalorder %s203, %s205
      %p212 = scmp.eq.s32.totalorder %s38, 1
      %p213 = por %p211, %p212
      %p214 = scmp.ne.s32.totalorder %s205, %s206
      %p215 = scmp.eq.s32.totalorder %s38, 0
      %p216 = por %p214, %p215
      %p217 = scmp.ne.s32.totalorder %s205, %s206
      %p218 = scmp.eq.s32.totalorder %s39, 1
      %p219 = por %p217, %p218
      %p221 = scmp.ne.s32.totalorder %s206, %s220
      %p222 = scmp.eq.s32.totalorder %s39, 0
      %p223 = por %p221, %p222
      %s225 = sadd.s32 %s224, 1
      %p228 = scmp.eq.s32.totalorder %s33, 1
      %p229 = scmp.ne.s32.totalorder %s224, %s226
      %p230 = scmp.eq.s32.totalorder %s33, 0
      %p231 = por %p229, %p230
      %p232 = scmp.ne.s32.totalorder %s224, %s226
      %p233 = scmp.eq.s32.totalorder %s38, 1
      %p234 = por %p232, %p233
      %p235 = scmp.ne.s32.totalorder %s226, %s227
      %p236 = scmp.eq.s32.totalorder %s38, 0
      %p237 = por %p235, %p236
      %p238 = scmp.ne.s32.totalorder %s226, %s227
      %p239 = scmp.eq.s32.totalorder %s39, 1
      %p240 = por %p238, %p239
      %p242 = scmp.ne.s32.totalorder %s227, %s241
      %p243 = scmp.eq.s32.totalorder %s39, 0
      %p244 = por %p242, %p243
      %s246 = sadd.s32 %s245, 1
      %p249 = scmp.eq.s32.totalorder %s33, 1
      %p250 = scmp.ne.s32.totalorder %s245, %s247
      %p251 = scmp.eq.s32.totalorder %s33, 0
      %p252 = por %p250, %p251
      %p253 = scmp.ne.s32.totalorder %s245, %s247
      %p254 = scmp.eq.s32.totalorder %s38, 1
      %p255 = por %p253, %p254
      %p256 = scmp.ne.s32.totalorder %s247, %s248
      %p257 = scmp.eq.s32.totalorder %s38, 0
      %p258 = por %p256, %p257
      %p259 = scmp.ne.s32.totalorder %s247, %s248
      %p260 = scmp.eq.s32.totalorder %s39, 1
      %p261 = por %p259, %p260
      %p263 = scmp.ne.s32.totalorder %s248, %s262
      %p264 = scmp.eq.s32.totalorder %s39, 0
      %p265 = por %p263, %p264
      %s267 = sadd.s32 %s266, 1
      %p270 = scmp.eq.s32.totalorder %s33, 1
      %p271 = scmp.ne.s32.totalorder %s266, %s268
      %p272 = scmp.eq.s32.totalorder %s33, 0
      %p273 = por %p271, %p272
      %p274 = scmp.ne.s32.totalorder %s266, %s268
      %p275 = scmp.eq.s32.totalorder %s38, 1
      %p276 = por %p274, %p275
      %p277 = scmp.ne.s32.totalorder %s268, %s269
      %p278 = scmp.eq.s32.totalorder %s38, 0
      %p279 = por %p277, %p278
      %p280 = scmp.ne.s32.totalorder %s268, %s269
      %p281 = scmp.eq.s32.totalorder %s39, 1
      %p282 = por %p280, %p281
      %p284 = scmp.ne.s32.totalorder %s269, %s283
      %p285 = scmp.eq.s32.totalorder %s39, 0
      %p286 = por %p284, %p285
      %s288 = sadd.s32 %s287, 1
      %p291 = scmp.eq.s32.totalorder %s33, 1
      %p292 = scmp.ne.s32.totalorder %s287, %s289
      %p293 = scmp.eq.s32.totalorder %s33, 0
      %p294 = por %p292, %p293
      %p295 = scmp.ne.s32.totalorder %s287, %s289
      %p296 = scmp.eq.s32.totalorder %s38, 1
      %p297 = por %p295, %p296
      %p298 = scmp.ne.s32.totalorder %s289, %s290
      %p299 = scmp.eq.s32.totalorder %s38, 0
      %p300 = por %p298, %p299
      %p301 = scmp.ne.s32.totalorder %s289, %s290
      %p302 = scmp.eq.s32.totalorder %s39, 1
      %p303 = por %p301, %p302
      %p305 = scmp.ne.s32.totalorder %s290, %s304
      %p306 = scmp.eq.s32.totalorder %s39, 0
      %p307 = por %p305, %p306
      %s308 = ssub.s32 %s33, %s40
      %p309 = scmp.eq.s32.totalorder %s308, 0
      %s311 = sadd.s32 %s310, 1
      %s312 = scalar_select %p309, %s310, %s311
      %p315 = pneg %p309
      %p316 = scmp.eq.s32.totalorder %s33, 1
      %p317 = por %p315, %p316
      %p318 = scmp.ne.s32.totalorder %s310, %s313
      %p319 = scmp.eq.s32.totalorder %s33, 0
      %p320 = por %p318, %p319
      %p321 = scmp.ne.s32.totalorder %s310, %s313
      %p322 = scmp.eq.s32.totalorder %s38, 1
      %p323 = por %p321, %p322
      %p324 = scmp.ne.s32.totalorder %s313, %s314
      %p325 = scmp.eq.s32.totalorder %s38, 0
      %p326 = por %p324, %p325
      %p327 = scmp.ne.s32.totalorder %s313, %s314
      %p328 = scmp.eq.s32.totalorder %s39, 1
      %p329 = por %p327, %p328
      %p331 = scmp.ne.s32.totalorder %s314, %s330
      %p332 = scmp.eq.s32.totalorder %s39, 0
      %p333 = por %p331, %p332
      %p334 = scmp.le.s32.totalorder 1, %s33
      %p335 = scmp.lt.s32.totalorder %s33, 3
      %p336 = pnand %p334, %p335
      %p337 = pneg %p336
      // Predicated region
      $region9: #{tpu_custom_call.1} parent=5 // pred_check
        _
      $region10: #{tpu_custom_call.1} parent=5 // pred_check_branch
        %339 = sbr.rel (%p336) target = $region12
      $region11: #{tpu_custom_call.1} parent=5 // pred_region
        %s340 = ssub.s32 %s33, 1
        // Predicated region
        $region13: #{tpu_custom_call.1} parent=11 // pred_check
          %p341 = pneg %p132
        $region14: #{tpu_custom_call.1} parent=11 // pred_check_branch
          %343 = sbr.rel (%p341) target = $region16
        $region15: #{tpu_custom_call.1} parent=11 // pred_region
          _
        $region16: #{tpu_custom_call.1} parent=11 // pred_fallthru
          _
        // Predicated region
        $region17: #{tpu_custom_call.1} parent=11 // pred_check
          %p344 = pneg %p153
        $region18: #{tpu_custom_call.1} parent=11 // pred_check_branch
          %346 = sbr.rel (%p344) target = $region20
        $region19: #{tpu_custom_call.1} parent=11 // pred_region
          _
        $region20: #{tpu_custom_call.1} parent=11 // pred_fallthru
          _
        // Predicated region
        $region21: #{tpu_custom_call.1} parent=11 // pred_check
          %p347 = pneg %p174
        $region22: #{tpu_custom_call.1} parent=11 // pred_check_branch
          %349 = sbr.rel (%p347) target = $region24
        $region23: #{tpu_custom_call.1} parent=11 // pred_region
          _
        $region24: #{tpu_custom_call.1} parent=11 // pred_fallthru
          _
        // Predicated region
        $region25: #{tpu_custom_call.1} parent=11 // pred_check
          %p350 = pneg %p195
        $region26: #{tpu_custom_call.1} parent=11 // pred_check_branch
          %352 = sbr.rel (%p350) target = $region28
        $region27: #{tpu_custom_call.1} parent=11 // pred_region
          _
        $region28: #{tpu_custom_call.1} parent=11 // pred_fallthru
          _
        // Predicated region
        $region29: #{tpu_custom_call.1} parent=11 // pred_check
          %p353 = pneg %p216
        $region30: #{tpu_custom_call.1} parent=11 // pred_check_branch
          %355 = sbr.rel (%p353) target = $region32
        $region31: #{tpu_custom_call.1} parent=11 // pred_region
          _
        $region32: #{tpu_custom_call.1} parent=11 // pred_fallthru
          _
        // Predicated region
        $region33: #{tpu_custom_call.1} parent=11 // pred_check
          %p356 = pneg %p237
        $region34: #{tpu_custom_call.1} parent=11 // pred_check_branch
          %358 = sbr.rel (%p356) target = $region36
        $region35: #{tpu_custom_call.1} parent=11 // pred_region
          _
        $region36: #{tpu_custom_call.1} parent=11 // pred_fallthru
          _
        // Predicated region
        $region37: #{tpu_custom_call.1} parent=11 // pred_check
          %p359 = pneg %p258
        $region38: #{tpu_custom_call.1} parent=11 // pred_check_branch
          %361 = sbr.rel (%p359) target = $region40
        $region39: #{tpu_custom_call.1} parent=11 // pred_region
          _
        $region40: #{tpu_custom_call.1} parent=11 // pred_fallthru
          _
        // Predicated region
        $region41: #{tpu_custom_call.1} parent=11 // pred_check
          %p362 = pneg %p279
        $region42: #{tpu_custom_call.1} parent=11 // pred_check_branch
          %364 = sbr.rel (%p362) target = $region44
        $region43: #{tpu_custom_call.1} parent=11 // pred_region
          _
        $region44: #{tpu_custom_call.1} parent=11 // pred_fallthru
          _
        // Predicated region
        $region45: #{tpu_custom_call.1} parent=11 // pred_check
          %p365 = pneg %p300
        $region46: #{tpu_custom_call.1} parent=11 // pred_check_branch
          %367 = sbr.rel (%p365) target = $region48
        $region47: #{tpu_custom_call.1} parent=11 // pred_region
          _
        $region48: #{tpu_custom_call.1} parent=11 // pred_fallthru
          _
      $region12: #{tpu_custom_call.1} parent=5 // pred_fallthru
        _
      %p368 = scmp.lt.s32.totalorder %s33, 2
      // Predicated region
      $region49: #{tpu_custom_call.1} parent=5 // pred_check
        %p369 = pneg %p368
      $region50: #{tpu_custom_call.1} parent=5 // pred_check_branch
        %371 = sbr.rel (%p369) target = $region52
      $region51: #{tpu_custom_call.1} parent=5 // pred_region
        // Predicated region
        $region53: #{tpu_custom_call.1} parent=51 // pred_check
          %p372 = pneg %p53
        $region54: #{tpu_custom_call.1} parent=51 // pred_check_branch
          %374 = sbr.rel (%p372) target = $region56
        $region55: #{tpu_custom_call.1} parent=51 // pred_region
          %p375 = scmp.lt.s32.totalorder %s33, 1
          %s376 = scalar_select %p375, %s33, 1
          %s377 = smul.addr %s376, 4
          %s378 = smul.addr %s377, 8
          %s379 = scalar_lea.vmem %s2, %s378
        $region56: #{tpu_custom_call.1} parent=51 // pred_fallthru
          _
        // Predicated region
        $region57: #{tpu_custom_call.1} parent=51 // pred_check
          %p380 = pneg %p79
        $region58: #{tpu_custom_call.1} parent=51 // pred_check_branch
          %382 = sbr.rel (%p380) target = $region60
        $region59: #{tpu_custom_call.1} parent=51 // pred_region
          %p383 = scmp.lt.s32.totalorder %s33, 1
          %s384 = scalar_select %p383, %s33, 1
          %s385 = smul.addr %s384, 4
          %s386 = smul.addr %s385, 8
          %s387 = scalar_lea.vmem %s3, %s386
        $region60: #{tpu_custom_call.1} parent=51 // pred_fallthru
          _
        // Predicated region
        $region61: #{tpu_custom_call.1} parent=51 // pred_check
          %p388 = pneg %p105
        $region62: #{tpu_custom_call.1} parent=51 // pred_check_branch
          %390 = sbr.rel (%p388) target = $region64
        $region63: #{tpu_custom_call.1} parent=51 // pred_region
          %p391 = scmp.lt.s32.totalorder %s33, 1
          %s392 = scalar_select %p391, %s33, 1
          %s393 = smul.addr %s392, 2
          %s394 = smul.addr %s393, 8
          %s395 = scalar_lea.vmem %s4, %s394
        $region64: #{tpu_custom_call.1} parent=51 // pred_fallthru
          _
      $region52: #{tpu_custom_call.1} parent=5 // pred_fallthru
        _
      %p396 = scmp.le.s32.totalorder 1, %s33
      %p397 = scmp.lt.s32.totalorder %s33, 3
      %p398 = pnand %p396, %p397
      %p399 = pneg %p398
      // Predicated region
      $region65: #{tpu_custom_call.1} parent=5 // pred_check
        _
      $region66: #{tpu_custom_call.1} parent=5 // pred_check_branch
        %401 = sbr.rel (%p398) target = $region68
      $region67: #{tpu_custom_call.1} parent=5 // pred_region
        %s402 = ssub.s32 %s33, 1
        %p403 = scmp.lt.s32.totalorder %s38, 1
        %s404 = scalar_select %p403, %s38, 1
        %s405 = smul.addr %s404, 4
        %s406 = smul.addr %s405, 8
        %s407 = scalar_lea.vmem %s2, %s406
        %p408 = pneg %p59
        %p409 = pneg %p56
        %p410 = scmp.lt.s32.totalorder %s38, 1
        %s411 = scalar_select %p410, %s38, 1
        %s412 = smul.addr %s411, 4
        %s413 = smul.addr %s412, 8
        %s414 = scalar_lea.vmem %s3, %s413
        %p415 = pneg %p85
        %p416 = pneg %p82
        %p417 = scmp.lt.s32.totalorder %s38, 1
        %s418 = scalar_select %p417, %s38, 1
        %s419 = smul.addr %s418, 2
        %s420 = smul.addr %s419, 8
        %s421 = scalar_lea.vmem %s4, %s420
        %p422 = pneg %p111
        %p423 = pneg %p108
        %p424 = pneg %p132
        %p425 = pneg %p129
        %p426 = pneg %p153
        %p427 = pneg %p150
        %p428 = pneg %p174
        %p429 = pneg %p171
        %p430 = pneg %p195
        %p431 = pneg %p192
        %p432 = pneg %p216
        %p433 = pneg %p213
        %p434 = pneg %p237
        %p435 = pneg %p234
        %p436 = pneg %p258
        %p437 = pneg %p255
        %p438 = pneg %p279
        %p439 = pneg %p276
        %p440 = pneg %p300
        %p441 = pneg %p297
        %p442 = pneg %p326
        %p443 = pneg %p323
        %s444 = sand.u32 %s313, 1
        %s445 = scalar_lea.sflag [#allocation6], %s444
        %s446 = sand.u32 %s313, 1
        %s447 = smul.addr %s446, 32
        %s448 = scalar_lea.vmem [#allocation5], %s447
        %p449 = scmp.lt.s32.totalorder %s38, 1
        %s450 = scalar_select %p449, %s38, 1
        %s451 = smul.addr %s450, 4
        %s452 = smul.addr %s451, 8
        %s453 = scalar_lea.vmem %s2, %s452
        %p454 = scmp.lt.s32.totalorder %s38, 1
        %s455 = scalar_select %p454, %s38, 1
        %s456 = smul.addr %s455, 4
        %s457 = smul.addr %s456, 8
        %s458 = scalar_lea.vmem %s3, %s457
        %p459 = scmp.lt.s32.totalorder %s38, 1
        %s460 = scalar_select %p459, %s38, 1
        %s461 = smul.addr %s460, 2
        %s462 = smul.addr %s461, 8
        %s463 = scalar_lea.vmem %s4, %s462
        %v465 = vld [vmem:[%s13] sm:$0xff]
        %v466 = vld [vmem:[%s13 + $0x8] sm:$0xff]
        %v467 = vld [vmem:[%s13 + $0x10] sm:$0xff]
        %v468 = vld [vmem:[%s13 + $0x18] sm:$0xff]
        %v469 = vld [vmem:[%s13 + $0x20] sm:$0xff]
        %v470 = vld [vmem:[%s13 + $0x28] sm:$0xff]
        %v471 = vld [vmem:[%s13 + $0x30] sm:$0xff]
        %v472 = vld [vmem:[%s13 + $0x38] sm:$0xff]
        %v473 = vld [vmem:[%s13 + $0x40] sm:$0xff]
        %v474 = vld [vmem:[%s13 + $0x48] sm:$0xff]
        %v475 = vld [vmem:[%s13 + $0x50] sm:$0xff]
        %v476 = vld [vmem:[%s13 + $0x58] sm:$0xff]
        %v477 = vld [vmem:[%s13 + $0x60] sm:$0xff]
        %v478 = vld [vmem:[%s13 + $0x68] sm:$0xff]
        %v479 = vld [vmem:[%s13 + $0x70] sm:$0xff]
        %v480 = vld [vmem:[%s13 + $0x78] sm:$0xff]
        %v481 = vld [vmem:[%s13 + $0x80] sm:$0xff]
        %v482 = vld [vmem:[%s13 + $0x88] sm:$0xff]
        %v483 = vld [vmem:[%s13 + $0x90] sm:$0xff]
        %v484 = vld [vmem:[%s13 + $0x98] sm:$0xff]
        %v485 = vld [vmem:[%s13 + $0xa0] sm:$0xff]
        %v486 = vld [vmem:[%s13 + $0xa8] sm:$0xff]
        %v487 = vld [vmem:[%s13 + $0xb0] sm:$0xff]
        %v488 = vld [vmem:[%s13 + $0xb8] sm:$0xff]
        %v489 = vld [vmem:[%s13 + $0xc0] sm:$0xff]
        %v490 = vld [vmem:[%s13 + $0xc8] sm:$0xff]
        %v491 = vld [vmem:[%s13 + $0xd0] sm:$0xff]
        %v492 = vld [vmem:[%s13 + $0xd8] sm:$0xff]
        %v493 = vld [vmem:[%s13 + $0xe0] sm:$0xff]
        %v494 = vld [vmem:[%s13 + $0xe8] sm:$0xff]
        %v495 = vld [vmem:[%s13 + $0xf0] sm:$0xff]
        %v496 = vld [vmem:[%s13 + $0xf8] sm:$0xff]
        %v497 = vld [vmem:[%s13 + $0x100] sm:$0xff]
        %v498 = vld [vmem:[%s13 + $0x108] sm:$0xff]
        %v499 = vld [vmem:[%s13 + $0x110] sm:$0xff]
        %v500 = vld [vmem:[%s13 + $0x118] sm:$0xff]
        %v501 = vld [vmem:[%s13 + $0x120] sm:$0xff]
        %v502 = vld [vmem:[%s13 + $0x128] sm:$0xff]
        %v503 = vld [vmem:[%s13 + $0x130] sm:$0xff]
        %v504 = vld [vmem:[%s13 + $0x138] sm:$0xff]
        %v505 = vld [vmem:[%s13 + $0x140] sm:$0xff]
        %v506 = vld [vmem:[%s13 + $0x148] sm:$0xff]
        %v507 = vld [vmem:[%s13 + $0x150] sm:$0xff]
        %v508 = vld [vmem:[%s13 + $0x158] sm:$0xff]
        %v509 = vld [vmem:[%s13 + $0x160] sm:$0xff]
        %v510 = vld [vmem:[%s13 + $0x168] sm:$0xff]
        %v511 = vld [vmem:[%s13 + $0x170] sm:$0xff]
        %v512 = vld [vmem:[%s13 + $0x178] sm:$0xff]
        %v513 = vld [vmem:[%s13 + $0x180] sm:$0xff]
        %v514 = vld [vmem:[%s13 + $0x188] sm:$0xff]
        %v515 = vld [vmem:[%s13 + $0x190] sm:$0xff]
        %v516 = vld [vmem:[%s13 + $0x198] sm:$0xff]
        %v517 = vld [vmem:[%s13 + $0x1a0] sm:$0xff]
        %v518 = vld [vmem:[%s13 + $0x1a8] sm:$0xff]
        %v519 = vld [vmem:[%s13 + $0x1b0] sm:$0xff]
        %v520 = vld [vmem:[%s13 + $0x1b8] sm:$0xff]
        %v521 = vld [vmem:[%s13 + $0x1c0] sm:$0xff]
        %v522 = vld [vmem:[%s13 + $0x1c8] sm:$0xff]
        %v523 = vld [vmem:[%s13 + $0x1d0] sm:$0xff]
        %v524 = vld [vmem:[%s13 + $0x1d8] sm:$0xff]
        %v525 = vld [vmem:[%s13 + $0x1e0] sm:$0xff]
        %v526 = vld [vmem:[%s13 + $0x1e8] sm:$0xff]
        %v527 = vld [vmem:[%s13 + $0x1f0] sm:$0xff]
        %v528 = vld [vmem:[%s13 + $0x1f8] sm:$0xff]
        %v529 = vld [vmem:[%s13 + $0x200] sm:$0xff]
        %v530 = vld [vmem:[%s13 + $0x208] sm:$0xff]
        %v531 = vld [vmem:[%s13 + $0x210] sm:$0xff]
        %v532 = vld [vmem:[%s13 + $0x218] sm:$0xff]
        %v533 = vld [vmem:[%s13 + $0x220] sm:$0xff]
        %v534 = vld [vmem:[%s13 + $0x228] sm:$0xff]
        %v535 = vld [vmem:[%s13 + $0x230] sm:$0xff]
        %v536 = vld [vmem:[%s13 + $0x238] sm:$0xff]
        %v537 = vld [vmem:[%s13 + $0x240] sm:$0xff]
        %v538 = vld [vmem:[%s13 + $0x248] sm:$0xff]
        %v539 = vld [vmem:[%s13 + $0x250] sm:$0xff]
        %v540 = vld [vmem:[%s13 + $0x258] sm:$0xff]
        %v541 = vld [vmem:[%s13 + $0x260] sm:$0xff]
        %v542 = vld [vmem:[%s13 + $0x268] sm:$0xff]
        %v543 = vld [vmem:[%s13 + $0x270] sm:$0xff]
        %v544 = vld [vmem:[%s13 + $0x278] sm:$0xff]
        %s545 = sld [smem:[#allocation3 + %s38]]
        %s546 = sld [smem:[#allocation4 + %s38]]
        %v547 = vlaneseq
        %v548 = vand.u32 %v547, 127
        %v549 = vstv %s545
        %vm550 = vcmp.lt.s32.totalorder %v548, %v549
        %v551 = vsel %vm550, 1, 0
        %v552 = vcvt.s32.f32 %v551
        %vm553 = vcmp.gt.s32.totalorder %v548, 0
        %v554 = vsel %vm553, 1, 0
        %v555 = vcvt.s32.f32 %v554
        %vm556 = vcmp.lt.s32.totalorder %v548, 127
        %v557 = vsel %vm556, 1, 0
        %v558 = vcvt.s32.f32 %v557
        %v559 = vlaneseq
        %v560 = vshrl.u32 %v559, 7
        %v561 = vadd.s32 %v560, 8
        %v562 = vadd.s32 %v560, 16
        %v563 = vadd.s32 %v560, 24
        %v564 = vadd.s32 %v560, 32
        %v565 = vadd.s32 %v560, 40
        %v566 = vadd.s32 %v560, 48
        %v567 = vadd.s32 %v560, 56
        %v568 = vadd.s32 %v560, 64
        %v569 = vadd.s32 %v560, 72
        %v570 = vadd.s32 %v560, 80
        %v571 = vadd.s32 %v560, 88
        %v572 = vadd.s32 %v560, 96
        %v573 = vadd.s32 %v560, 104
        %v574 = vadd.s32 %v560, 112
        %v575 = vadd.s32 %v560, 120
        %vm576 = vcmp.lt.s32.totalorder %v560, %v549
        %vm577 = vcmp.lt.s32.totalorder %v561, %v549
        %vm578 = vcmp.lt.s32.totalorder %v562, %v549
        %vm579 = vcmp.lt.s32.totalorder %v563, %v549
        %vm580 = vcmp.lt.s32.totalorder %v564, %v549
        %vm581 = vcmp.lt.s32.totalorder %v565, %v549
        %vm582 = vcmp.lt.s32.totalorder %v566, %v549
        %vm583 = vcmp.lt.s32.totalorder %v567, %v549
        %vm584 = vcmp.lt.s32.totalorder %v568, %v549
        %vm585 = vcmp.lt.s32.totalorder %v569, %v549
        %vm586 = vcmp.lt.s32.totalorder %v570, %v549
        %vm587 = vcmp.lt.s32.totalorder %v571, %v549
        %vm588 = vcmp.lt.s32.totalorder %v572, %v549
        %vm589 = vcmp.lt.s32.totalorder %v573, %v549
        %vm590 = vcmp.lt.s32.totalorder %v574, %v549
        %vm591 = vcmp.lt.s32.totalorder %v575, %v549
        %v592 = vstv %s546
        %vm593 = vcmp.lt.s32.totalorder %v560, %v592
        %vm594 = vcmp.lt.s32.totalorder %v561, %v592
        %vm595 = vcmp.lt.s32.totalorder %v562, %v592
        %vm596 = vcmp.lt.s32.totalorder %v563, %v592
        %vm597 = vcmp.lt.s32.totalorder %v564, %v592
        %vm598 = vcmp.lt.s32.totalorder %v565, %v592
        %vm599 = vcmp.lt.s32.totalorder %v566, %v592
        %vm600 = vcmp.lt.s32.totalorder %v567, %v592
        %vm601 = vcmp.lt.s32.totalorder %v568, %v592
        %vm602 = vcmp.lt.s32.totalorder %v569, %v592
        %vm603 = vcmp.lt.s32.totalorder %v570, %v592
        %vm604 = vcmp.lt.s32.totalorder %v571, %v592
        %vm605 = vcmp.lt.s32.totalorder %v572, %v592
        %vm606 = vcmp.lt.s32.totalorder %v573, %v592
        %vm607 = vcmp.lt.s32.totalorder %v574, %v592
        %vm608 = vcmp.lt.s32.totalorder %v575, %v592
        %v609 = vld [vmem:[%s453] sm:$0xff]
        %v610 = vld [vmem:[%s453 + $0x8] sm:$0xff]
        %v611 = vld [vmem:[%s453 + $0x10] sm:$0xff]
        %v612 = vld [vmem:[%s453 + $0x18] sm:$0xff]
        %v613 = vld [vmem:[%s458] sm:$0xff]
        %v614 = vld [vmem:[%s458 + $0x8] sm:$0xff]
        %v615 = vld [vmem:[%s458 + $0x10] sm:$0xff]
        %v616 = vld [vmem:[%s458 + $0x18] sm:$0xff]
        %v617 = vld [vmem:[%s463] sm:$0xff]
        %v618 = vld [vmem:[%s463 + $0x8] sm:$0xff]
        %v619 = vld [vmem:[%s5] sm:$0xff]
        %v620 = vld [vmem:[%s5 + $0x8] sm:$0xff]
        %v621 = vld [vmem:[%s5 + $0x10] sm:$0xff]
        %v622 = vld [vmem:[%s5 + $0x18] sm:$0xff]
        %vm623 = vcmask 130048
        %v625 = vsel %vm623, %v619, 0
        %v628 = vsel %vm623, %v620, 0
        %v631 = vsel %vm623, %v621, 0
        %v634 = vsel %vm623, %v622, 0
        %636 = vmatprep.subr.mxu0 0.0
        %637 = vmatpush1.msra.mxu0 0.0
        %638 = vmatprep.subr.mxu0 0.0
        %639 = vmatpush1.msra.mxu0 0.0
        %640 = vmatprep.subr.mxu0 0.0
        %641 = vmatpush1.msra.mxu0 0.0
        %642 = vmatprep.subr.mxu0 0.0
        %643 = vmatpush1.msra.mxu0 0.0
        %644 = vmatprep.subr.mxu0 0.0
        %645 = vmatpush1.msra.mxu0 0.0
        %646 = vmatprep.subr.mxu0 0.0
        %647 = vmatpush1.msra.mxu0 0.0
        %648 = vmatprep.subr.mxu0 0.0
        %649 = vmatpush1.msra.mxu0 0.0
        %650 = vmatprep.subr.mxu0 0.0
        %651 = vmatpush1.msra.mxu0 0.0
        %652 = vmatprep.subr.mxu0 0.0
        %653 = vmatpush1.msra.mxu0 0.0
        %654 = vmatprep.subr.mxu0 0.0
        %655 = vmatpush1.msra.mxu0 0.0
        %656 = vmatprep.subr.mxu0 0.0
        %657 = vmatpush1.msra.mxu0 0.0
        %658 = vmatprep.subr.mxu0 0.0
        %659 = vmatpush1.msra.mxu0 0.0
        %660 = vmatprep.subr.mxu0 0.0
        %661 = vmatpush1.msra.mxu0 0.0
        %662 = vmatprep.subr.mxu0 0.0
        %663 = vmatpush1.msra.mxu0 0.0
        %664 = vmatprep.subr.mxu0 0.0
        %665 = vmatpush1.msra.mxu0 %v618
        %666 = vmatprep.subr.mxu0 0.0
        %667 = vmatpush1.msra.mxu0 %v617
        %668 = vmatprep.subr.mxu0 0.0
        %669 = vmatpush2.msra.mxu0 0.0
        %670 = vmatprep.subr.mxu0 0.0
        %671 = vmatpush2.msra.mxu0 0.0
        %672 = vmatprep.subr.mxu0 0.0
        %673 = vmatpush2.msra.mxu0 0.0
        %674 = vmatprep.subr.mxu0 0.0
        %675 = vmatpush2.msra.mxu0 0.0
        %676 = vmatprep.subr.mxu0 0.0
        %677 = vmatpush2.msra.mxu0 0.0
        %678 = vmatprep.subr.mxu0 0.0
        %679 = vmatpush2.msra.mxu0 0.0
        %680 = vmatprep.subr.mxu0 0.0
        %681 = vmatpush2.msra.mxu0 0.0
        %682 = vmatprep.subr.mxu0 0.0
        %683 = vmatpush2.msra.mxu0 0.0
        %684 = vmatprep.subr.mxu0 0.0
        %685 = vmatpush2.msra.mxu0 0.0
        %686 = vmatprep.subr.mxu0 0.0
        %687 = vmatpush2.msra.mxu0 0.0
        %688 = vmatprep.subr.mxu0 0.0
        %689 = vmatpush2.msra.mxu0 0.0
        %690 = vmatprep.subr.mxu0 0.0
        %691 = vmatpush2.msra.mxu0 0.0
        %692 = vmatprep.subr.mxu0 0.0
        %693 = vmatpush2.msra.mxu0 0.0
        %694 = vmatprep.subr.mxu0 0.0
        %695 = vmatpush2.msra.mxu0 0.0
        %696 = vmatprep.subr.mxu0 0.0
        %697 = vmatpush2.msra.mxu0 0.0
        %698 = vmatprep.subr.mxu0 0.0
        %699 = vmatpush2.msra.mxu0 0.0
        %700 = vmatprep.mubr.f32.mxu0 0.0
        %701 = vmatmul.mubr.f32.gmra.mxu0 %v625
        %v702 = vpop.f32.mrf.mxu0
        %v703 = vadd.f32 %v465, %v702
        %v704 = vpop.f32.mrf.mxu0
        %705 = vmatprep.mubr.f32.mxu0 0.0
        %706 = vmatmul.mubr.f32.gmra.mxu0 %v628
        %v707 = vpop.f32.mrf.mxu0
        %v708 = vadd.f32 %v466, %v707
        %v709 = vpop.f32.mrf.mxu0
        %710 = vmatprep.mubr.f32.mxu0 0.0
        %711 = vmatmul.mubr.f32.gmra.mxu0 %v631
        %v712 = vpop.f32.mrf.mxu0
        %v713 = vadd.f32 %v467, %v712
        %v714 = vpop.f32.mrf.mxu0
        %715 = vmatprep.mubr.f32.mxu0 0.0
        %716 = vmatmul.mubr.f32.gmra.mxu0 %v634
        %v717 = vpop.f32.mrf.mxu0
        %v718 = vadd.f32 %v468, %v717
        %v719 = vpop.f32.mrf.mxu0
        %720 = vdwg.mxu0
        %v721 = vmul.f32 %v703, 0.5
        %v722 = vmul.f32 %v708, 0.5
        %v723 = vmul.f32 %v713, 0.5
        %v724 = vmul.f32 %v718, 0.5
        %v725 = vtanh.pop %v721
        %v726 = vtanh.pop %v722
        %v727 = vtanh.pop %v723
        %v728 = vtanh.pop %v724
        %v729 = vadd.f32 %v725, 1.0
        %v730 = vadd.f32 %v726, 1.0
        %v731 = vadd.f32 %v727, 1.0
        %v732 = vadd.f32 %v728, 1.0
        %v733 = vmul.f32 %v729, 0.5
        %v734 = vmul.f32 %v730, 0.5
        %v735 = vmul.f32 %v731, 0.5
        %v736 = vmul.f32 %v732, 0.5
        %v737 = vmul.f32 %v703, %v733
        %v738 = vmul.f32 %v708, %v734
        %v739 = vmul.f32 %v713, %v735
        %v740 = vmul.f32 %v718, %v736
        %v741 = vld [vmem:[%s6] sm:$0xff]
        %v742 = vld [vmem:[%s6 + $0x8] sm:$0xff]
        %v743 = vld [vmem:[%s6 + $0x10] sm:$0xff]
        %v744 = vld [vmem:[%s6 + $0x18] sm:$0xff]
        %v745 = vld [vmem:[%s6 + $0x20] sm:$0xff]
        %v746 = vld [vmem:[%s6 + $0x28] sm:$0xff]
        %v747 = vld [vmem:[%s6 + $0x30] sm:$0xff]
        %v748 = vld [vmem:[%s6 + $0x38] sm:$0xff]
        %v749 = vld [vmem:[%s6 + $0x40] sm:$0xff]
        %v750 = vld [vmem:[%s6 + $0x48] sm:$0xff]
        %v751 = vld [vmem:[%s6 + $0x50] sm:$0xff]
        %v752 = vld [vmem:[%s6 + $0x58] sm:$0xff]
        %v753 = vld [vmem:[%s6 + $0x60] sm:$0xff]
        %v754 = vld [vmem:[%s6 + $0x68] sm:$0xff]
        %v755 = vld [vmem:[%s6 + $0x70] sm:$0xff]
        %v756 = vld [vmem:[%s6 + $0x78] sm:$0xff]
        %v757 = vld [vmem:[%s6 + $0x80] sm:$0xff]
        %v758 = vld [vmem:[%s6 + $0x88] sm:$0xff]
        %v759 = vld [vmem:[%s6 + $0x90] sm:$0xff]
        %v760 = vld [vmem:[%s6 + $0x98] sm:$0xff]
        %v761 = vld [vmem:[%s6 + $0xa0] sm:$0xff]
        %v762 = vld [vmem:[%s6 + $0xa8] sm:$0xff]
        %v763 = vld [vmem:[%s6 + $0xb0] sm:$0xff]
        %v764 = vld [vmem:[%s6 + $0xb8] sm:$0xff]
        %vm765 = vcmask 261120
        %v767 = vsel %vm765, %v741, 0
        %v770 = vsel %vm765, %v742, 0
        %v773 = vsel %vm765, %v743, 0
        %v776 = vsel %vm765, %v744, 0
        %v779 = vsel %vm765, %v745, 0
        %v782 = vsel %vm765, %v746, 0
        %v785 = vsel %vm765, %v747, 0
        %v788 = vsel %vm765, %v748, 0
        %v791 = vsel %vm765, %v749, 0
        %v794 = vsel %vm765, %v750, 0
        %v797 = vsel %vm765, %v751, 0
        %v800 = vsel %vm765, %v752, 0
        %v803 = vsel %vm765, %v753, 0
        %v806 = vsel %vm765, %v754, 0
        %v809 = vsel %vm765, %v755, 0
        %v812 = vsel %vm765, %v756, 0
        %v815 = vsel %vm765, %v757, 0
        %v818 = vsel %vm765, %v758, 0
        %v821 = vsel %vm765, %v759, 0
        %v824 = vsel %vm765, %v760, 0
        %v827 = vsel %vm765, %v761, 0
        %v830 = vsel %vm765, %v762, 0
        %v833 = vsel %vm765, %v763, 0
        %v836 = vsel %vm765, %v764, 0
        %838 = vmatprep.subr.mxu0 0.0
        %839 = vmatpush1.msra.mxu0 0.0
        %840 = vmatprep.subr.mxu0 0.0
        %841 = vmatpush1.msra.mxu0 0.0
        %842 = vmatprep.subr.mxu0 0.0
        %843 = vmatpush1.msra.mxu0 0.0
        %844 = vmatprep.subr.mxu0 0.0
        %845 = vmatpush1.msra.mxu0 0.0
        %846 = vmatprep.subr.mxu0 0.0
        %847 = vmatpush1.msra.mxu0 0.0
        %848 = vmatprep.subr.mxu0 0.0
        %849 = vmatpush1.msra.mxu0 0.0
        %850 = vmatprep.subr.mxu0 0.0
        %851 = vmatpush1.msra.mxu0 0.0
        %852 = vmatprep.subr.mxu0 0.0
        %853 = vmatpush1.msra.mxu0 0.0
        %854 = vmatprep.subr.mxu0 0.0
        %855 = vmatpush1.msra.mxu0 0.0
        %856 = vmatprep.subr.mxu0 0.0
        %857 = vmatpush1.msra.mxu0 0.0
        %858 = vmatprep.subr.mxu0 0.0
        %859 = vmatpush1.msra.mxu0 0.0
        %860 = vmatprep.subr.mxu0 0.0
        %861 = vmatpush1.msra.mxu0 0.0
        %862 = vmatprep.subr.mxu0 0.0
        %863 = vmatpush1.msra.mxu0 %v740
        %864 = vmatprep.subr.mxu0 0.0
        %865 = vmatpush1.msra.mxu0 %v739
        %866 = vmatprep.subr.mxu0 0.0
        %867 = vmatpush1.msra.mxu0 %v738
        %868 = vmatprep.subr.mxu0 0.0
        %869 = vmatpush1.msra.mxu0 %v737
        %870 = vmatprep.subr.mxu0 0.0
        %871 = vmatpush2.msra.mxu0 0.0
        %872 = vmatprep.subr.mxu0 0.0
        %873 = vmatpush2.msra.mxu0 0.0
        %874 = vmatprep.subr.mxu0 0.0
        %875 = vmatpush2.msra.mxu0 0.0
        %876 = vmatprep.subr.mxu0 0.0
        %877 = vmatpush2.msra.mxu0 0.0
        %878 = vmatprep.subr.mxu0 0.0
        %879 = vmatpush2.msra.mxu0 0.0
        %880 = vmatprep.subr.mxu0 0.0
        %881 = vmatpush2.msra.mxu0 0.0
        %882 = vmatprep.subr.mxu0 0.0
        %883 = vmatpush2.msra.mxu0 0.0
        %884 = vmatprep.subr.mxu0 0.0
        %885 = vmatpush2.msra.mxu0 0.0
        %886 = vmatprep.subr.mxu0 0.0
        %887 = vmatpush2.msra.mxu0 0.0
        %888 = vmatprep.subr.mxu0 0.0
        %889 = vmatpush2.msra.mxu0 0.0
        %890 = vmatprep.subr.mxu0 0.0
        %891 = vmatpush2.msra.mxu0 0.0
        %892 = vmatprep.subr.mxu0 0.0
        %893 = vmatpush2.msra.mxu0 0.0
        %894 = vmatprep.subr.mxu0 0.0
        %895 = vmatpush2.msra.mxu0 0.0
        %896 = vmatprep.subr.mxu0 0.0
        %897 = vmatpush2.msra.mxu0 0.0
        %898 = vmatprep.subr.mxu0 0.0
        %899 = vmatpush2.msra.mxu0 0.0
        %900 = vmatprep.subr.mxu0 0.0
        %901 = vmatpush2.msra.mxu0 0.0
        %902 = vmatprep.mubr.f32.mxu0 0.0
        %903 = vmatmul.mubr.f32.gmra.mxu0 %v767
        %v904 = vpop.f32.mrf.mxu0
        %v905 = vadd.f32 %v469, %v904
        %v906 = vpop.f32.mrf.mxu0
        %907 = vmatprep.mubr.f32.mxu0 0.0
        %908 = vmatmul.mubr.f32.gmra.mxu0 %v770
        %v909 = vpop.f32.mrf.mxu0
        %v910 = vadd.f32 %v470, %v909
        %v911 = vpop.f32.mrf.mxu0
        %912 = vmatprep.mubr.f32.mxu0 0.0
        %913 = vmatmul.mubr.f32.gmra.mxu0 %v773
        %v914 = vpop.f32.mrf.mxu0
        %v915 = vadd.f32 %v471, %v914
        %v916 = vpop.f32.mrf.mxu0
        %917 = vmatprep.mubr.f32.mxu0 0.0
        %918 = vmatmul.mubr.f32.gmra.mxu0 %v776
        %v919 = vpop.f32.mrf.mxu0
        %v920 = vadd.f32 %v472, %v919
        %v921 = vpop.f32.mrf.mxu0
        %922 = vmatprep.mubr.f32.mxu0 0.0
        %923 = vmatmul.mubr.f32.gmra.mxu0 %v779
        %v924 = vpop.f32.mrf.mxu0
        %v925 = vadd.f32 %v473, %v924
        %v926 = vpop.f32.mrf.mxu0
        %927 = vmatprep.mubr.f32.mxu0 0.0
        %928 = vmatmul.mubr.f32.gmra.mxu0 %v782
        %v929 = vpop.f32.mrf.mxu0
        %v930 = vadd.f32 %v474, %v929
        %v931 = vpop.f32.mrf.mxu0
        %932 = vmatprep.mubr.f32.mxu0 0.0
        %933 = vmatmul.mubr.f32.gmra.mxu0 %v785
        %v934 = vpop.f32.mrf.mxu0
        %v935 = vadd.f32 %v475, %v934
        %v936 = vpop.f32.mrf.mxu0
        %937 = vmatprep.mubr.f32.mxu0 0.0
        %938 = vmatmul.mubr.f32.gmra.mxu0 %v788
        %v939 = vpop.f32.mrf.mxu0
        %v940 = vadd.f32 %v476, %v939
        %v941 = vpop.f32.mrf.mxu0
        %942 = vmatprep.mubr.f32.mxu0 0.0
        %943 = vmatmul.mubr.f32.gmra.mxu0 %v791
        %v944 = vpop.f32.mrf.mxu0
        %v945 = vadd.f32 %v477, %v944
        %v946 = vpop.f32.mrf.mxu0
        %947 = vmatprep.mubr.f32.mxu0 0.0
        %948 = vmatmul.mubr.f32.gmra.mxu0 %v794
        %v949 = vpop.f32.mrf.mxu0
        %v950 = vadd.f32 %v478, %v949
        %v951 = vpop.f32.mrf.mxu0
        %952 = vmatprep.mubr.f32.mxu0 0.0
        %953 = vmatmul.mubr.f32.gmra.mxu0 %v797
        %v954 = vpop.f32.mrf.mxu0
        %v955 = vadd.f32 %v479, %v954
        %v956 = vpop.f32.mrf.mxu0
        %957 = vmatprep.mubr.f32.mxu0 0.0
        %958 = vmatmul.mubr.f32.gmra.mxu0 %v800
        %v959 = vpop.f32.mrf.mxu0
        %v960 = vadd.f32 %v480, %v959
        %v961 = vpop.f32.mrf.mxu0
        %962 = vmatprep.mubr.f32.mxu0 0.0
        %963 = vmatmul.mubr.f32.gmra.mxu0 %v803
        %v964 = vpop.f32.mrf.mxu0
        %v965 = vadd.f32 %v481, %v964
        %v966 = vpop.f32.mrf.mxu0
        %967 = vmatprep.mubr.f32.mxu0 0.0
        %968 = vmatmul.mubr.f32.gmra.mxu0 %v806
        %v969 = vpop.f32.mrf.mxu0
        %v970 = vadd.f32 %v482, %v969
        %v971 = vpop.f32.mrf.mxu0
        %972 = vmatprep.mubr.f32.mxu0 0.0
        %973 = vmatmul.mubr.f32.gmra.mxu0 %v809
        %v974 = vpop.f32.mrf.mxu0
        %v975 = vadd.f32 %v483, %v974
        %v976 = vpop.f32.mrf.mxu0
        %977 = vmatprep.mubr.f32.mxu0 0.0
        %978 = vmatmul.mubr.f32.gmra.mxu0 %v812
        %v979 = vpop.f32.mrf.mxu0
        %v980 = vadd.f32 %v484, %v979
        %v981 = vpop.f32.mrf.mxu0
        %982 = vmatprep.mubr.f32.mxu0 0.0
        %983 = vmatmul.mubr.f32.gmra.mxu0 %v815
        %v984 = vpop.f32.mrf.mxu0
        %v985 = vadd.f32 %v485, %v984
        %v986 = vpop.f32.mrf.mxu0
        %987 = vmatprep.mubr.f32.mxu0 0.0
        %988 = vmatmul.mubr.f32.gmra.mxu0 %v818
        %v989 = vpop.f32.mrf.mxu0
        %v990 = vadd.f32 %v486, %v989
        %v991 = vpop.f32.mrf.mxu0
        %992 = vmatprep.mubr.f32.mxu0 0.0
        %993 = vmatmul.mubr.f32.gmra.mxu0 %v821
        %v994 = vpop.f32.mrf.mxu0
        %v995 = vadd.f32 %v487, %v994
        %v996 = vpop.f32.mrf.mxu0
        %997 = vmatprep.mubr.f32.mxu0 0.0
        %998 = vmatmul.mubr.f32.gmra.mxu0 %v824
        %v999 = vpop.f32.mrf.mxu0
        %v1000 = vadd.f32 %v488, %v999
        %v1001 = vpop.f32.mrf.mxu0
        %1002 = vmatprep.mubr.f32.mxu0 0.0
        %1003 = vmatmul.mubr.f32.gmra.mxu0 %v827
        %v1004 = vpop.f32.mrf.mxu0
        %v1005 = vadd.f32 %v489, %v1004
        %v1006 = vpop.f32.mrf.mxu0
        %1007 = vmatprep.mubr.f32.mxu0 0.0
        %1008 = vmatmul.mubr.f32.gmra.mxu0 %v830
        %v1009 = vpop.f32.mrf.mxu0
        %v1010 = vadd.f32 %v490, %v1009
        %v1011 = vpop.f32.mrf.mxu0
        %1012 = vmatprep.mubr.f32.mxu0 0.0
        %1013 = vmatmul.mubr.f32.gmra.mxu0 %v833
        %v1014 = vpop.f32.mrf.mxu0
        %v1015 = vadd.f32 %v491, %v1014
        %v1016 = vpop.f32.mrf.mxu0
        %1017 = vmatprep.mubr.f32.mxu0 0.0
        %1018 = vmatmul.mubr.f32.gmra.mxu0 %v836
        %v1019 = vpop.f32.mrf.mxu0
        %v1020 = vadd.f32 %v492, %v1019
        %v1021 = vpop.f32.mrf.mxu0
        %1022 = vdwg.mxu0
        %v1023 = vadd.f32 %v609, %v610
        %v1024 = vadd.f32 %v1023, %v611
        %v1025 = vadd.f32 %v1024, %v612
        %v1026 = vrot.slane %v1025, 4
        %v1027 = vadd.f32 %v1025, %v1026
        %v1028 = vrot.slane %v1027, 2
        %v1029 = vadd.f32 %v1027, %v1028
        %v1030 = vrot.slane %v1029, 1
        %v1031 = vadd.f32 %v1029, %v1030
        %v1032 = vrcp.pop 32.0
        %v1033 = vmul.f32 %v1031, %v1032
        %v1034 = vsub.f32 %v609, %v1033
        %v1035 = vsub.f32 %v610, %v1033
        %v1036 = vsub.f32 %v611, %v1033
        %v1037 = vsub.f32 %v612, %v1033
        %v1038 = vmul.f32 %v1034, %v1034
        %v1039 = vmul.f32 %v1035, %v1035
        %v1040 = vmul.f32 %v1036, %v1036
        %v1041 = vmul.f32 %v1037, %v1037
        %v1042 = vadd.f32 %v1038, %v1039
        %v1043 = vadd.f32 %v1042, %v1040
        %v1044 = vadd.f32 %v1043, %v1041
        %v1045 = vrot.slane %v1044, 4
        %v1046 = vadd.f32 %v1044, %v1045
        %v1047 = vrot.slane %v1046, 2
        %v1048 = vadd.f32 %v1046, %v1047
        %v1049 = vrot.slane %v1048, 1
        %v1050 = vadd.f32 %v1048, %v1049
        %v1051 = vmul.f32 %v1050, %v1032
        %v1052 = vadd.f32 %v1051, 1e-06
        %v1053 = vrsqrt.pop %v1052
        %v1054 = vmul.f32 %v1034, %v1053
        %v1055 = vmul.f32 %v1035, %v1053
        %v1056 = vmul.f32 %v1036, %v1053
        %v1057 = vmul.f32 %v1037, %v1053
        %v1058 = vadd.f32 %v925, 1.0
        %v1059 = vadd.f32 %v930, 1.0
        %v1060 = vadd.f32 %v935, 1.0
        %v1061 = vadd.f32 %v940, 1.0
        %1063 = vset.pattern.permute.xlu0 0
        %1064 = vperm.xlu0 %1063, %v1058
        %v1065 = vpop.permute.xlu0 %1064
        %1068 = vset.pattern.permute.xlu0 0
        %1069 = vperm.xlu0 %1068, %v1059
        %v1070 = vpop.permute.xlu0 %1069
        %1073 = vset.pattern.permute.xlu0 0
        %1074 = vperm.xlu0 %1073, %v1060
        %v1075 = vpop.permute.xlu0 %1074
        %1078 = vset.pattern.permute.xlu0 0
        %1079 = vperm.xlu0 %1078, %v1061
        %v1080 = vpop.permute.xlu0 %1079
        %v1082 = vmul.f32 %v1054, %v1065
        %v1083 = vmul.f32 %v1055, %v1070
        %v1084 = vmul.f32 %v1056, %v1075
        %v1085 = vmul.f32 %v1057, %v1080
        %1087 = vset.pattern.permute.xlu0 0
        %1088 = vperm.xlu0 %1087, %v905
        %v1089 = vpop.permute.xlu0 %1088
        %1092 = vset.pattern.permute.xlu0 0
        %1093 = vperm.xlu0 %1092, %v910
        %v1094 = vpop.permute.xlu0 %1093
        %1097 = vset.pattern.permute.xlu0 0
        %1098 = vperm.xlu0 %1097, %v915
        %v1099 = vpop.permute.xlu0 %1098
        %1102 = vset.pattern.permute.xlu0 0
        %1103 = vperm.xlu0 %1102, %v920
        %v1104 = vpop.permute.xlu0 %1103
        %v1106 = vadd.f32 %v1082, %v1089
        %v1107 = vadd.f32 %v1083, %v1094
        %v1108 = vadd.f32 %v1084, %v1099
        %v1109 = vadd.f32 %v1085, %v1104
        %v1110 = vld [vmem:[%s7] sm:$0xf]
        %v1111 = vld [vmem:[%s7 + $0x4] sm:$0xf]
        %v1112 = vld [vmem:[%s7 + $0x8] sm:$0xf]
        %v1113 = vld [vmem:[%s7 + $0xc] sm:$0xf]
        %v1114 = vld [vmem:[%s7 + $0x10] sm:$0xf]
        %v1115 = vld [vmem:[%s7 + $0x14] sm:$0xf]
        %v1116 = vld [vmem:[%s7 + $0x18] sm:$0xf]
        %v1117 = vld [vmem:[%s7 + $0x1c] sm:$0xf]
        %v1118 = vld [vmem:[%s7 + $0x20] sm:$0xf]
        %v1119 = vld [vmem:[%s7 + $0x24] sm:$0xf]
        %v1120 = vld [vmem:[%s7 + $0x28] sm:$0xf]
        %v1121 = vld [vmem:[%s7 + $0x2c] sm:$0xf]
        %v1122 = vld [vmem:[%s8] sm:$0xf]
        %v1123 = vld [vmem:[%s8 + $0x4] sm:$0xf]
        %v1124 = vld [vmem:[%s8 + $0x8] sm:$0xf]
        %v1125 = vld [vmem:[%s8 + $0xc] sm:$0xf]
        %v1126 = vpack.c.bf16 %v1107, %v1106
        %v1127 = vpack.c.bf16 %v1109, %v1108
        %1129 = vset.pattern.permute.xlu0 0
        %1130 = vperm.xlu0 %1129, %v493
        %v1131 = vpop.permute.xlu0 %1130
        %1134 = vset.pattern.permute.xlu0 0
        %1135 = vperm.xlu0 %1134, %v494
        %v1136 = vpop.permute.xlu0 %1135
        %1139 = vset.pattern.permute.xlu0 0
        %1140 = vperm.xlu0 %1139, %v495
        %v1141 = vpop.permute.xlu0 %1140
        %1144 = vset.pattern.permute.xlu0 0
        %1145 = vperm.xlu0 %1144, %v496
        %v1146 = vpop.permute.xlu0 %1145
        %1149 = vset.pattern.permute.xlu0 0
        %1150 = vperm.xlu0 %1149, %v497
        %v1151 = vpop.permute.xlu0 %1150
        %1154 = vset.pattern.permute.xlu0 0
        %1155 = vperm.xlu0 %1154, %v498
        %v1156 = vpop.permute.xlu0 %1155
        %1159 = vset.pattern.permute.xlu0 0
        %1160 = vperm.xlu0 %1159, %v499
        %v1161 = vpop.permute.xlu0 %1160
        %1164 = vset.pattern.permute.xlu0 0
        %1165 = vperm.xlu0 %1164, %v500
        %v1166 = vpop.permute.xlu0 %1165
        %1169 = vset.pattern.permute.xlu0 0
        %1170 = vperm.xlu0 %1169, %v501
        %v1171 = vpop.permute.xlu0 %1170
        %1174 = vset.pattern.permute.xlu0 0
        %1175 = vperm.xlu0 %1174, %v502
        %v1176 = vpop.permute.xlu0 %1175
        %1179 = vset.pattern.permute.xlu0 0
        %1180 = vperm.xlu0 %1179, %v503
        %v1181 = vpop.permute.xlu0 %1180
        %1184 = vset.pattern.permute.xlu0 0
        %1185 = vperm.xlu0 %1184, %v504
        %v1186 = vpop.permute.xlu0 %1185
        %v1200 = vunpack.c.l.b16 %v1110
        %v1201 = vunpack.c.l.b16 %v1111
        %v1202 = vunpack.c.l.b16 %v1112
        %v1203 = vunpack.c.l.b16 %v1113
        %v1204 = vunpack.c.l.b16 %v1114
        %v1205 = vunpack.c.l.b16 %v1115
        %v1206 = vunpack.c.l.b16 %v1116
        %v1207 = vunpack.c.l.b16 %v1117
        %v1208 = vunpack.c.l.b16 %v1118
        %v1209 = vunpack.c.l.b16 %v1119
        %v1210 = vunpack.c.l.b16 %v1120
        %v1211 = vunpack.c.l.b16 %v1121
        %v1212 = vpack.c.b16 %v1201, %v1200
        %v1213 = vpack.c.b16 %v1203, %v1202
        %v1214 = vpack.c.b16 %v1205, %v1204
        %v1215 = vpack.c.b16 %v1207, %v1206
        %v1216 = vpack.c.b16 %v1209, %v1208
        %v1217 = vpack.c.b16 %v1211, %v1210
        %v1219 = vsel %vm765, %v1212, 0
        %v1222 = vsel %vm765, %v1213, 0
        %v1225 = vsel %vm765, %v1214, 0
        %v1228 = vsel %vm765, %v1215, 0
        %v1231 = vsel %vm765, %v1216, 0
        %v1234 = vsel %vm765, %v1217, 0
        %1236 = vmatprep.subr.bf16.mxu0 0
        %1237 = vmatpush1.bf16.msra.mxu0 0
        %1238 = vmatprep.subr.bf16.mxu0 0
        %1239 = vmatpush1.bf16.msra.mxu0 0
        %1240 = vmatprep.subr.bf16.mxu0 0
        %1241 = vmatpush1.bf16.msra.mxu0 0
        %1242 = vmatprep.subr.bf16.mxu0 0
        %1243 = vmatpush1.bf16.msra.mxu0 0
        %1244 = vmatprep.subr.bf16.mxu0 0
        %1245 = vmatpush1.bf16.msra.mxu0 0
        %1246 = vmatprep.subr.bf16.mxu0 0
        %1247 = vmatpush1.bf16.msra.mxu0 0
        %1248 = vmatprep.subr.bf16.mxu0 0
        %1249 = vmatpush1.bf16.msra.mxu0 %v1127
        %1250 = vmatprep.subr.bf16.mxu0 0
        %1251 = vmatpush1.bf16.msra.mxu0 %v1126
        %1252 = vmatprep.subr.bf16.mxu0 0
        %1253 = vmatpush2.bf16.msra.mxu0 0
        %1254 = vmatprep.subr.bf16.mxu0 0
        %1255 = vmatpush2.bf16.msra.mxu0 0
        %1256 = vmatprep.subr.bf16.mxu0 0
        %1257 = vmatpush2.bf16.msra.mxu0 0
        %1258 = vmatprep.subr.bf16.mxu0 0
        %1259 = vmatpush2.bf16.msra.mxu0 0
        %1260 = vmatprep.subr.bf16.mxu0 0
        %1261 = vmatpush2.bf16.msra.mxu0 0
        %1262 = vmatprep.subr.bf16.mxu0 0
        %1263 = vmatpush2.bf16.msra.mxu0 0
        %1264 = vmatprep.subr.bf16.mxu0 0
        %1265 = vmatpush2.bf16.msra.mxu0 0
        %1266 = vmatprep.subr.bf16.mxu0 0
        %1267 = vmatpush2.bf16.msra.mxu0 0
        %1268 = vmatprep.mubr.bf16.mxu0 0
        %1269 = vmatmul.mubr.bf16.gmra.mxu0 %v1219
        %v1270 = vpop.f32.mrf.mxu0
        %v1271 = vadd.f32 %v1131, %v1270
        %v1272 = vpop.f32.mrf.mxu0
        %v1273 = vpop.f32.mrf.mxu0
        %v1274 = vadd.f32 %v1136, %v1273
        %v1275 = vpop.f32.mrf.mxu0
        %1276 = vmatprep.mubr.bf16.mxu0 0
        %1277 = vmatmul.mubr.bf16.gmra.mxu0 %v1222
        %v1278 = vpop.f32.mrf.mxu0
        %v1279 = vadd.f32 %v1141, %v1278
        %v1280 = vpop.f32.mrf.mxu0
        %v1281 = vpop.f32.mrf.mxu0
        %v1282 = vadd.f32 %v1146, %v1281
        %v1283 = vpop.f32.mrf.mxu0
        %1284 = vmatprep.mubr.bf16.mxu0 0
        %1285 = vmatmul.mubr.bf16.gmra.mxu0 %v1225
        %v1286 = vpop.f32.mrf.mxu0
        %v1287 = vadd.f32 %v1151, %v1286
        %v1288 = vpop.f32.mrf.mxu0
        %v1289 = vpop.f32.mrf.mxu0
        %v1290 = vadd.f32 %v1156, %v1289
        %v1291 = vpop.f32.mrf.mxu0
        %1292 = vmatprep.mubr.bf16.mxu0 0
        %1293 = vmatmul.mubr.bf16.gmra.mxu0 %v1228
        %v1294 = vpop.f32.mrf.mxu0
        %v1295 = vadd.f32 %v1161, %v1294
        %v1296 = vpop.f32.mrf.mxu0
        %v1297 = vpop.f32.mrf.mxu0
        %v1298 = vadd.f32 %v1166, %v1297
        %v1299 = vpop.f32.mrf.mxu0
        %1300 = vmatprep.mubr.bf16.mxu0 0
        %1301 = vmatmul.mubr.bf16.gmra.mxu0 %v1231
        %v1302 = vpop.f32.mrf.mxu0
        %v1303 = vadd.f32 %v1171, %v1302
        %v1304 = vpop.f32.mrf.mxu0
        %v1305 = vpop.f32.mrf.mxu0
        %v1306 = vadd.f32 %v1176, %v1305
        %v1307 = vpop.f32.mrf.mxu0
        %1308 = vmatprep.mubr.bf16.mxu0 0
        %1309 = vmatmul.mubr.bf16.gmra.mxu0 %v1234
        %v1310 = vpop.f32.mrf.mxu0
        %v1311 = vadd.f32 %v1181, %v1310
        %v1312 = vpop.f32.mrf.mxu0
        %v1313 = vpop.f32.mrf.mxu0
        %v1314 = vadd.f32 %v1186, %v1313
        %v1315 = vpop.f32.mrf.mxu0
        %1316 = vdwg.mxu0
        %v1317 = vpack.c.bf16 %v1271, %v1271
        %v1318 = vpack.c.bf16 %v1274, %v1274
        %v1319 = vpack.c.bf16 %v1279, %v1279
        %v1320 = vpack.c.bf16 %v1282, %v1282
        %v1321 = vpack.c.bf16 %v1287, %v1287
        %v1322 = vpack.c.bf16 %v1290, %v1290
        %v1323 = vpack.c.bf16 %v1295, %v1295
        %v1324 = vpack.c.bf16 %v1298, %v1298
        %v1325 = vpack.c.bf16 %v1303, %v1303
        %v1326 = vpack.c.bf16 %v1306, %v1306
        %v1327 = vpack.c.bf16 %v1311, %v1311
        %v1328 = vpack.c.bf16 %v1314, %v1314
        %1329 = vxpose.xlu0.c.b16.start [1/8] %v1321, 128
        %1330 = vxpose.xlu0.c.b16.cont [2/8] 0, 128
        %1331 = vxpose.xlu0.c.b16.cont [3/8] 0, 128
        %1332 = vxpose.xlu0.c.b16.cont [4/8] 0, 128
        %1333 = vxpose.xlu0.c.b16.cont [5/8] 0, 128
        %1334 = vxpose.xlu0.c.b16.cont [6/8] 0, 128
        %1335 = vxpose.xlu0.c.b16.cont [7/8] 0, 128
        %1336 = vxpose.xlu0.c.b16.end [8/8] 0, 128
        %v1337 = vpop.trf.xlu0
        %v1338 = vpop.trf.xlu0
        %v1339 = vpop.trf.xlu0
        %v1340 = vpop.trf.xlu0
        %v1341 = vpop.trf.xlu0
        %v1342 = vpop.trf.xlu0
        %v1343 = vpop.trf.xlu0
        %v1344 = vpop.trf.xlu0
        %vm1345 = vcmask 64512
        %v1347 = vsel %vm1345, %v1337, 0
        %v1350 = vsel %vm1345, %v1338, 0
        %v1353 = vsel %vm1345, %v1339, 0
        %v1356 = vsel %vm1345, %v1340, 0
        %v1359 = vsel %vm1345, %v1341, 0
        %v1362 = vsel %vm1345, %v1342, 0
        %v1365 = vsel %vm1345, %v1343, 0
        %v1368 = vsel %vm1345, %v1344, 0
        %vm1370 = vcmask 1043456
        %v1372 = vsel %vm1370, %v1317, 0
        %1374 = vmatprep.subr.bf16.mxu0 0
        %1375 = vmatpush1.bf16.msra.mxu0 0
        %1376 = vmatprep.subr.bf16.mxu0 0
        %1377 = vmatpush1.bf16.msra.mxu0 0
        %1378 = vmatprep.subr.bf16.mxu0 0
        %1379 = vmatpush1.bf16.msra.mxu0 0
        %1380 = vmatprep.subr.bf16.mxu0 0
        %1381 = vmatpush1.bf16.msra.mxu0 0
        %1382 = vmatprep.subr.bf16.mxu0 0
        %1383 = vmatpush1.bf16.msra.mxu0 0
        %1384 = vmatprep.subr.bf16.mxu0 0
        %1385 = vmatpush1.bf16.msra.mxu0 0
        %1386 = vmatprep.subr.bf16.mxu0 0
        %1387 = vmatpush1.bf16.msra.mxu0 0
        %1388 = vmatprep.subr.bf16.mxu0 0
        %1389 = vmatpush1.bf16.msra.mxu0 %v1372
        %1390 = vmatprep.subr.bf16.mxu0 0
        %1391 = vmatpush2.bf16.msra.mxu0 0
        %1392 = vmatprep.subr.bf16.mxu0 0
        %1393 = vmatpush2.bf16.msra.mxu0 0
        %1394 = vmatprep.subr.bf16.mxu0 0
        %1395 = vmatpush2.bf16.msra.mxu0 0
        %1396 = vmatprep.subr.bf16.mxu0 0
        %1397 = vmatpush2.bf16.msra.mxu0 0
        %1398 = vmatprep.subr.bf16.mxu0 0
        %1399 = vmatpush2.bf16.msra.mxu0 0
        %1400 = vmatprep.subr.bf16.mxu0 0
        %1401 = vmatpush2.bf16.msra.mxu0 0
        %1402 = vmatprep.subr.bf16.mxu0 0
        %1403 = vmatpush2.bf16.msra.mxu0 0
        %1404 = vmatprep.subr.bf16.mxu0 0
        %1405 = vmatpush2.bf16.msra.mxu0 0
        %1406 = vmatprep.mubr.bf16.mxu0 0
        %1407 = vmatmul.mubr.bf16.gmra.mxu0 %v1347
        %v1408 = vpop.f32.mrf.mxu0
        %v1409 = vadd.f32 0.0, %v1408
        %v1410 = vpop.f32.mrf.mxu0
        %v1411 = vpop.f32.mrf.mxu0
        %v1412 = vadd.f32 0.0, %v1411
        %v1413 = vpop.f32.mrf.mxu0
        %1414 = vmatprep.mubr.bf16.mxu0 0
        %1415 = vmatmul.mubr.bf16.gmra.mxu0 %v1350
        %v1416 = vpop.f32.mrf.mxu0
        %v1417 = vadd.f32 0.0, %v1416
        %v1418 = vpop.f32.mrf.mxu0
        %v1419 = vpop.f32.mrf.mxu0
        %v1420 = vadd.f32 0.0, %v1419
        %v1421 = vpop.f32.mrf.mxu0
        %1422 = vmatprep.mubr.bf16.mxu0 0
        %1423 = vmatmul.mubr.bf16.gmra.mxu0 %v1353
        %v1424 = vpop.f32.mrf.mxu0
        %v1425 = vadd.f32 0.0, %v1424
        %v1426 = vpop.f32.mrf.mxu0
        %v1427 = vpop.f32.mrf.mxu0
        %v1428 = vadd.f32 0.0, %v1427
        %v1429 = vpop.f32.mrf.mxu0
        %1430 = vmatprep.mubr.bf16.mxu0 0
        %1431 = vmatmul.mubr.bf16.gmra.mxu0 %v1356
        %v1432 = vpop.f32.mrf.mxu0
        %v1433 = vadd.f32 0.0, %v1432
        %v1434 = vpop.f32.mrf.mxu0
        %v1435 = vpop.f32.mrf.mxu0
        %v1436 = vadd.f32 0.0, %v1435
        %v1437 = vpop.f32.mrf.mxu0
        %1438 = vmatprep.mubr.bf16.mxu0 0
        %1439 = vmatmul.mubr.bf16.gmra.mxu0 %v1359
        %v1440 = vpop.f32.mrf.mxu0
        %v1441 = vadd.f32 0.0, %v1440
        %v1442 = vpop.f32.mrf.mxu0
        %v1443 = vpop.f32.mrf.mxu0
        %v1444 = vadd.f32 0.0, %v1443
        %v1445 = vpop.f32.mrf.mxu0
        %1446 = vmatprep.mubr.bf16.mxu0 0
        %1447 = vmatmul.mubr.bf16.gmra.mxu0 %v1362
        %v1448 = vpop.f32.mrf.mxu0
        %v1449 = vadd.f32 0.0, %v1448
        %v1450 = vpop.f32.mrf.mxu0
        %v1451 = vpop.f32.mrf.mxu0
        %v1452 = vadd.f32 0.0, %v1451
        %v1453 = vpop.f32.mrf.mxu0
        %1454 = vmatprep.mubr.bf16.mxu0 0
        %1455 = vmatmul.mubr.bf16.gmra.mxu0 %v1365
        %v1456 = vpop.f32.mrf.mxu0
        %v1457 = vadd.f32 0.0, %v1456
        %v1458 = vpop.f32.mrf.mxu0
        %v1459 = vpop.f32.mrf.mxu0
        %v1460 = vadd.f32 0.0, %v1459
        %v1461 = vpop.f32.mrf.mxu0
        %1462 = vmatprep.mubr.bf16.mxu0 0
        %1463 = vmatmul.mubr.bf16.gmra.mxu0 %v1368
        %v1464 = vpop.f32.mrf.mxu0
        %v1465 = vadd.f32 0.0, %v1464
        %v1466 = vpop.f32.mrf.mxu0
        %v1467 = vpop.f32.mrf.mxu0
        %v1468 = vadd.f32 0.0, %v1467
        %v1469 = vpop.f32.mrf.mxu0
        %1470 = vdwg.mxu0
        %1471 = vxpose.xlu0.c.b16.start [1/8] %v1322, 128
        %1472 = vxpose.xlu0.c.b16.cont [2/8] 0, 128
        %1473 = vxpose.xlu0.c.b16.cont [3/8] 0, 128
        %1474 = vxpose.xlu0.c.b16.cont [4/8] 0, 128
        %1475 = vxpose.xlu0.c.b16.cont [5/8] 0, 128
        %1476 = vxpose.xlu0.c.b16.cont [6/8] 0, 128
        %1477 = vxpose.xlu0.c.b16.cont [7/8] 0, 128
        %1478 = vxpose.xlu0.c.b16.end [8/8] 0, 128
        %v1479 = vpop.trf.xlu0
        %v1480 = vpop.trf.xlu0
        %v1481 = vpop.trf.xlu0
        %v1482 = vpop.trf.xlu0
        %v1483 = vpop.trf.xlu0
        %v1484 = vpop.trf.xlu0
        %v1485 = vpop.trf.xlu0
        %v1486 = vpop.trf.xlu0
        %v1488 = vsel %vm1345, %v1479, 0
        %v1491 = vsel %vm1345, %v1480, 0
        %v1494 = vsel %vm1345, %v1481, 0
        %v1497 = vsel %vm1345, %v1482, 0
        %v1500 = vsel %vm1345, %v1483, 0
        %v1503 = vsel %vm1345, %v1484, 0
        %v1506 = vsel %vm1345, %v1485, 0
        %v1509 = vsel %vm1345, %v1486, 0
        %v1512 = vsel %vm1370, %v1318, 0
        %1514 = vmatprep.subr.bf16.mxu0 0
        %1515 = vmatpush1.bf16.msra.mxu0 0
        %1516 = vmatprep.subr.bf16.mxu0 0
        %1517 = vmatpush1.bf16.msra.mxu0 0
        %1518 = vmatprep.subr.bf16.mxu0 0
        %1519 = vmatpush1.bf16.msra.mxu0 0
        %1520 = vmatprep.subr.bf16.mxu0 0
        %1521 = vmatpush1.bf16.msra.mxu0 0
        %1522 = vmatprep.subr.bf16.mxu0 0
        %1523 = vmatpush1.bf16.msra.mxu0 0
        %1524 = vmatprep.subr.bf16.mxu0 0
        %1525 = vmatpush1.bf16.msra.mxu0 0
        %1526 = vmatprep.subr.bf16.mxu0 0
        %1527 = vmatpush1.bf16.msra.mxu0 0
        %1528 = vmatprep.subr.bf16.mxu0 0
        %1529 = vmatpush1.bf16.msra.mxu0 %v1512
        %1530 = vmatprep.subr.bf16.mxu0 0
        %1531 = vmatpush2.bf16.msra.mxu0 0
        %1532 = vmatprep.subr.bf16.mxu0 0
        %1533 = vmatpush2.bf16.msra.mxu0 0
        %1534 = vmatprep.subr.bf16.mxu0 0
        %1535 = vmatpush2.bf16.msra.mxu0 0
        %1536 = vmatprep.subr.bf16.mxu0 0
        %1537 = vmatpush2.bf16.msra.mxu0 0
        %1538 = vmatprep.subr.bf16.mxu0 0
        %1539 = vmatpush2.bf16.msra.mxu0 0
        %1540 = vmatprep.subr.bf16.mxu0 0
        %1541 = vmatpush2.bf16.msra.mxu0 0
        %1542 = vmatprep.subr.bf16.mxu0 0
        %1543 = vmatpush2.bf16.msra.mxu0 0
        %1544 = vmatprep.subr.bf16.mxu0 0
        %1545 = vmatpush2.bf16.msra.mxu0 0
        %1546 = vmatprep.mubr.bf16.mxu0 0
        %1547 = vmatmul.mubr.bf16.gmra.mxu0 %v1488
        %v1548 = vpop.f32.mrf.mxu0
        %v1549 = vadd.f32 0.0, %v1548
        %v1550 = vpop.f32.mrf.mxu0
        %v1551 = vpop.f32.mrf.mxu0
        %v1552 = vadd.f32 0.0, %v1551
        %v1553 = vpop.f32.mrf.mxu0
        %1554 = vmatprep.mubr.bf16.mxu0 0
        %1555 = vmatmul.mubr.bf16.gmra.mxu0 %v1491
        %v1556 = vpop.f32.mrf.mxu0
        %v1557 = vadd.f32 0.0, %v1556
        %v1558 = vpop.f32.mrf.mxu0
        %v1559 = vpop.f32.mrf.mxu0
        %v1560 = vadd.f32 0.0, %v1559
        %v1561 = vpop.f32.mrf.mxu0
        %1562 = vmatprep.mubr.bf16.mxu0 0
        %1563 = vmatmul.mubr.bf16.gmra.mxu0 %v1494
        %v1564 = vpop.f32.mrf.mxu0
        %v1565 = vadd.f32 0.0, %v1564
        %v1566 = vpop.f32.mrf.mxu0
        %v1567 = vpop.f32.mrf.mxu0
        %v1568 = vadd.f32 0.0, %v1567
        %v1569 = vpop.f32.mrf.mxu0
        %1570 = vmatprep.mubr.bf16.mxu0 0
        %1571 = vmatmul.mubr.bf16.gmra.mxu0 %v1497
        %v1572 = vpop.f32.mrf.mxu0
        %v1573 = vadd.f32 0.0, %v1572
        %v1574 = vpop.f32.mrf.mxu0
        %v1575 = vpop.f32.mrf.mxu0
        %v1576 = vadd.f32 0.0, %v1575
        %v1577 = vpop.f32.mrf.mxu0
        %1578 = vmatprep.mubr.bf16.mxu0 0
        %1579 = vmatmul.mubr.bf16.gmra.mxu0 %v1500
        %v1580 = vpop.f32.mrf.mxu0
        %v1581 = vadd.f32 0.0, %v1580
        %v1582 = vpop.f32.mrf.mxu0
        %v1583 = vpop.f32.mrf.mxu0
        %v1584 = vadd.f32 0.0, %v1583
        %v1585 = vpop.f32.mrf.mxu0
        %1586 = vmatprep.mubr.bf16.mxu0 0
        %1587 = vmatmul.mubr.bf16.gmra.mxu0 %v1503
        %v1588 = vpop.f32.mrf.mxu0
        %v1589 = vadd.f32 0.0, %v1588
        %v1590 = vpop.f32.mrf.mxu0
        %v1591 = vpop.f32.mrf.mxu0
        %v1592 = vadd.f32 0.0, %v1591
        %v1593 = vpop.f32.mrf.mxu0
        %1594 = vmatprep.mubr.bf16.mxu0 0
        %1595 = vmatmul.mubr.bf16.gmra.mxu0 %v1506
        %v1596 = vpop.f32.mrf.mxu0
        %v1597 = vadd.f32 0.0, %v1596
        %v1598 = vpop.f32.mrf.mxu0
        %v1599 = vpop.f32.mrf.mxu0
        %v1600 = vadd.f32 0.0, %v1599
        %v1601 = vpop.f32.mrf.mxu0
        %1602 = vmatprep.mubr.bf16.mxu0 0
        %1603 = vmatmul.mubr.bf16.gmra.mxu0 %v1509
        %v1604 = vpop.f32.mrf.mxu0
        %v1605 = vadd.f32 0.0, %v1604
        %v1606 = vpop.f32.mrf.mxu0
        %v1607 = vpop.f32.mrf.mxu0
        %v1608 = vadd.f32 0.0, %v1607
        %v1609 = vpop.f32.mrf.mxu0
        %1610 = vdwg.mxu0
        %1611 = vxpose.xlu0.c.b16.start [1/8] %v1323, 128
        %1612 = vxpose.xlu0.c.b16.cont [2/8] 0, 128
        %1613 = vxpose.xlu0.c.b16.cont [3/8] 0, 128
        %1614 = vxpose.xlu0.c.b16.cont [4/8] 0, 128
        %1615 = vxpose.xlu0.c.b16.cont [5/8] 0, 128
        %1616 = vxpose.xlu0.c.b16.cont [6/8] 0, 128
        %1617 = vxpose.xlu0.c.b16.cont [7/8] 0, 128
        %1618 = vxpose.xlu0.c.b16.end [8/8] 0, 128
        %v1619 = vpop.trf.xlu0
        %v1620 = vpop.trf.xlu0
        %v1621 = vpop.trf.xlu0
        %v1622 = vpop.trf.xlu0
        %v1623 = vpop.trf.xlu0
        %v1624 = vpop.trf.xlu0
        %v1625 = vpop.trf.xlu0
        %v1626 = vpop.trf.xlu0
        %v1628 = vsel %vm1345, %v1619, 0
        %v1631 = vsel %vm1345, %v1620, 0
        %v1634 = vsel %vm1345, %v1621, 0
        %v1637 = vsel %vm1345, %v1622, 0
        %v1640 = vsel %vm1345, %v1623, 0
        %v1643 = vsel %vm1345, %v1624, 0
        %v1646 = vsel %vm1345, %v1625, 0
        %v1649 = vsel %vm1345, %v1626, 0
        %v1652 = vsel %vm1370, %v1319, 0
        %1654 = vmatprep.subr.bf16.mxu0 0
        %1655 = vmatpush1.bf16.msra.mxu0 0
        %1656 = vmatprep.subr.bf16.mxu0 0
        %1657 = vmatpush1.bf16.msra.mxu0 0
        %1658 = vmatprep.subr.bf16.mxu0 0
        %1659 = vmatpush1.bf16.msra.mxu0 0
        %1660 = vmatprep.subr.bf16.mxu0 0
        %1661 = vmatpush1.bf16.msra.mxu0 0
        %1662 = vmatprep.subr.bf16.mxu0 0
        %1663 = vmatpush1.bf16.msra.mxu0 0
        %1664 = vmatprep.subr.bf16.mxu0 0
        %1665 = vmatpush1.bf16.msra.mxu0 0
        %1666 = vmatprep.subr.bf16.mxu0 0
        %1667 = vmatpush1.bf16.msra.mxu0 0
        %1668 = vmatprep.subr.bf16.mxu0 0
        %1669 = vmatpush1.bf16.msra.mxu0 %v1652
        %1670 = vmatprep.subr.bf16.mxu0 0
        %1671 = vmatpush2.bf16.msra.mxu0 0
        %1672 = vmatprep.subr.bf16.mxu0 0
        %1673 = vmatpush2.bf16.msra.mxu0 0
        %1674 = vmatprep.subr.bf16.mxu0 0
        %1675 = vmatpush2.bf16.msra.mxu0 0
        %1676 = vmatprep.subr.bf16.mxu0 0
        %1677 = vmatpush2.bf16.msra.mxu0 0
        %1678 = vmatprep.subr.bf16.mxu0 0
        %1679 = vmatpush2.bf16.msra.mxu0 0
        %1680 = vmatprep.subr.bf16.mxu0 0
        %1681 = vmatpush2.bf16.msra.mxu0 0
        %1682 = vmatprep.subr.bf16.mxu0 0
        %1683 = vmatpush2.bf16.msra.mxu0 0
        %1684 = vmatprep.subr.bf16.mxu0 0
        %1685 = vmatpush2.bf16.msra.mxu0 0
        %1686 = vmatprep.mubr.bf16.mxu0 0
        %1687 = vmatmul.mubr.bf16.gmra.mxu0 %v1628
        %v1688 = vpop.f32.mrf.mxu0
        %v1689 = vadd.f32 0.0, %v1688
        %v1690 = vpop.f32.mrf.mxu0
        %v1691 = vpop.f32.mrf.mxu0
        %v1692 = vadd.f32 0.0, %v1691
        %v1693 = vpop.f32.mrf.mxu0
        %1694 = vmatprep.mubr.bf16.mxu0 0
        %1695 = vmatmul.mubr.bf16.gmra.mxu0 %v1631
        %v1696 = vpop.f32.mrf.mxu0
        %v1697 = vadd.f32 0.0, %v1696
        %v1698 = vpop.f32.mrf.mxu0
        %v1699 = vpop.f32.mrf.mxu0
        %v1700 = vadd.f32 0.0, %v1699
        %v1701 = vpop.f32.mrf.mxu0
        %1702 = vmatprep.mubr.bf16.mxu0 0
        %1703 = vmatmul.mubr.bf16.gmra.mxu0 %v1634
        %v1704 = vpop.f32.mrf.mxu0
        %v1705 = vadd.f32 0.0, %v1704
        %v1706 = vpop.f32.mrf.mxu0
        %v1707 = vpop.f32.mrf.mxu0
        %v1708 = vadd.f32 0.0, %v1707
        %v1709 = vpop.f32.mrf.mxu0
        %1710 = vmatprep.mubr.bf16.mxu0 0
        %1711 = vmatmul.mubr.bf16.gmra.mxu0 %v1637
        %v1712 = vpop.f32.mrf.mxu0
        %v1713 = vadd.f32 0.0, %v1712
        %v1714 = vpop.f32.mrf.mxu0
        %v1715 = vpop.f32.mrf.mxu0
        %v1716 = vadd.f32 0.0, %v1715
        %v1717 = vpop.f32.mrf.mxu0
        %1718 = vmatprep.mubr.bf16.mxu0 0
        %1719 = vmatmul.mubr.bf16.gmra.mxu0 %v1640
        %v1720 = vpop.f32.mrf.mxu0
        %v1721 = vadd.f32 0.0, %v1720
        %v1722 = vpop.f32.mrf.mxu0
        %v1723 = vpop.f32.mrf.mxu0
        %v1724 = vadd.f32 0.0, %v1723
        %v1725 = vpop.f32.mrf.mxu0
        %1726 = vmatprep.mubr.bf16.mxu0 0
        %1727 = vmatmul.mubr.bf16.gmra.mxu0 %v1643
        %v1728 = vpop.f32.mrf.mxu0
        %v1729 = vadd.f32 0.0, %v1728
        %v1730 = vpop.f32.mrf.mxu0
        %v1731 = vpop.f32.mrf.mxu0
        %v1732 = vadd.f32 0.0, %v1731
        %v1733 = vpop.f32.mrf.mxu0
        %1734 = vmatprep.mubr.bf16.mxu0 0
        %1735 = vmatmul.mubr.bf16.gmra.mxu0 %v1646
        %v1736 = vpop.f32.mrf.mxu0
        %v1737 = vadd.f32 0.0, %v1736
        %v1738 = vpop.f32.mrf.mxu0
        %v1739 = vpop.f32.mrf.mxu0
        %v1740 = vadd.f32 0.0, %v1739
        %v1741 = vpop.f32.mrf.mxu0
        %1742 = vmatprep.mubr.bf16.mxu0 0
        %1743 = vmatmul.mubr.bf16.gmra.mxu0 %v1649
        %v1744 = vpop.f32.mrf.mxu0
        %v1745 = vadd.f32 0.0, %v1744
        %v1746 = vpop.f32.mrf.mxu0
        %v1747 = vpop.f32.mrf.mxu0
        %v1748 = vadd.f32 0.0, %v1747
        %v1749 = vpop.f32.mrf.mxu0
        %1750 = vdwg.mxu0
        %1751 = vxpose.xlu0.c.b16.start [1/8] %v1324, 128
        %1752 = vxpose.xlu0.c.b16.cont [2/8] 0, 128
        %1753 = vxpose.xlu0.c.b16.cont [3/8] 0, 128
        %1754 = vxpose.xlu0.c.b16.cont [4/8] 0, 128
        %1755 = vxpose.xlu0.c.b16.cont [5/8] 0, 128
        %1756 = vxpose.xlu0.c.b16.cont [6/8] 0, 128
        %1757 = vxpose.xlu0.c.b16.cont [7/8] 0, 128
        %1758 = vxpose.xlu0.c.b16.end [8/8] 0, 128
        %v1759 = vpop.trf.xlu0
        %v1760 = vpop.trf.xlu0
        %v1761 = vpop.trf.xlu0
        %v1762 = vpop.trf.xlu0
        %v1763 = vpop.trf.xlu0
        %v1764 = vpop.trf.xlu0
        %v1765 = vpop.trf.xlu0
        %v1766 = vpop.trf.xlu0
        %v1768 = vsel %vm1345, %v1759, 0
        %v1771 = vsel %vm1345, %v1760, 0
        %v1774 = vsel %vm1345, %v1761, 0
        %v1777 = vsel %vm1345, %v1762, 0
        %v1780 = vsel %vm1345, %v1763, 0
        %v1783 = vsel %vm1345, %v1764, 0
        %v1786 = vsel %vm1345, %v1765, 0
        %v1789 = vsel %vm1345, %v1766, 0
        %v1792 = vsel %vm1370, %v1320, 0
        %1794 = vmatprep.subr.bf16.mxu0 0
        %1795 = vmatpush1.bf16.msra.mxu0 0
        %1796 = vmatprep.subr.bf16.mxu0 0
        %1797 = vmatpush1.bf16.msra.mxu0 0
        %1798 = vmatprep.subr.bf16.mxu0 0
        %1799 = vmatpush1.bf16.msra.mxu0 0
        %1800 = vmatprep.subr.bf16.mxu0 0
        %1801 = vmatpush1.bf16.msra.mxu0 0
        %1802 = vmatprep.subr.bf16.mxu0 0
        %1803 = vmatpush1.bf16.msra.mxu0 0
        %1804 = vmatprep.subr.bf16.mxu0 0
        %1805 = vmatpush1.bf16.msra.mxu0 0
        %1806 = vmatprep.subr.bf16.mxu0 0
        %1807 = vmatpush1.bf16.msra.mxu0 0
        %1808 = vmatprep.subr.bf16.mxu0 0
        %1809 = vmatpush1.bf16.msra.mxu0 %v1792
        %1810 = vmatprep.subr.bf16.mxu0 0
        %1811 = vmatpush2.bf16.msra.mxu0 0
        %1812 = vmatprep.subr.bf16.mxu0 0
        %1813 = vmatpush2.bf16.msra.mxu0 0
        %1814 = vmatprep.subr.bf16.mxu0 0
        %1815 = vmatpush2.bf16.msra.mxu0 0
        %1816 = vmatprep.subr.bf16.mxu0 0
        %1817 = vmatpush2.bf16.msra.mxu0 0
        %1818 = vmatprep.subr.bf16.mxu0 0
        %1819 = vmatpush2.bf16.msra.mxu0 0
        %1820 = vmatprep.subr.bf16.mxu0 0
        %1821 = vmatpush2.bf16.msra.mxu0 0
        %1822 = vmatprep.subr.bf16.mxu0 0
        %1823 = vmatpush2.bf16.msra.mxu0 0
        %1824 = vmatprep.subr.bf16.mxu0 0
        %1825 = vmatpush2.bf16.msra.mxu0 0
        %1826 = vmatprep.mubr.bf16.mxu0 0
        %1827 = vmatmul.mubr.bf16.gmra.mxu0 %v1768
        %v1828 = vpop.f32.mrf.mxu0
        %v1829 = vadd.f32 0.0, %v1828
        %v1830 = vpop.f32.mrf.mxu0
        %v1831 = vpop.f32.mrf.mxu0
        %v1832 = vadd.f32 0.0, %v1831
        %v1833 = vpop.f32.mrf.mxu0
        %1834 = vmatprep.mubr.bf16.mxu0 0
        %1835 = vmatmul.mubr.bf16.gmra.mxu0 %v1771
        %v1836 = vpop.f32.mrf.mxu0
        %v1837 = vadd.f32 0.0, %v1836
        %v1838 = vpop.f32.mrf.mxu0
        %v1839 = vpop.f32.mrf.mxu0
        %v1840 = vadd.f32 0.0, %v1839
        %v1841 = vpop.f32.mrf.mxu0
        %1842 = vmatprep.mubr.bf16.mxu0 0
        %1843 = vmatmul.mubr.bf16.gmra.mxu0 %v1774
        %v1844 = vpop.f32.mrf.mxu0
        %v1845 = vadd.f32 0.0, %v1844
        %v1846 = vpop.f32.mrf.mxu0
        %v1847 = vpop.f32.mrf.mxu0
        %v1848 = vadd.f32 0.0, %v1847
        %v1849 = vpop.f32.mrf.mxu0
        %1850 = vmatprep.mubr.bf16.mxu0 0
        %1851 = vmatmul.mubr.bf16.gmra.mxu0 %v1777
        %v1852 = vpop.f32.mrf.mxu0
        %v1853 = vadd.f32 0.0, %v1852
        %v1854 = vpop.f32.mrf.mxu0
        %v1855 = vpop.f32.mrf.mxu0
        %v1856 = vadd.f32 0.0, %v1855
        %v1857 = vpop.f32.mrf.mxu0
        %1858 = vmatprep.mubr.bf16.mxu0 0
        %1859 = vmatmul.mubr.bf16.gmra.mxu0 %v1780
        %v1860 = vpop.f32.mrf.mxu0
        %v1861 = vadd.f32 0.0, %v1860
        %v1862 = vpop.f32.mrf.mxu0
        %v1863 = vpop.f32.mrf.mxu0
        %v1864 = vadd.f32 0.0, %v1863
        %v1865 = vpop.f32.mrf.mxu0
        %1866 = vmatprep.mubr.bf16.mxu0 0
        %1867 = vmatmul.mubr.bf16.gmra.mxu0 %v1783
        %v1868 = vpop.f32.mrf.mxu0
        %v1869 = vadd.f32 0.0, %v1868
        %v1870 = vpop.f32.mrf.mxu0
        %v1871 = vpop.f32.mrf.mxu0
        %v1872 = vadd.f32 0.0, %v1871
        %v1873 = vpop.f32.mrf.mxu0
        %1874 = vmatprep.mubr.bf16.mxu0 0
        %1875 = vmatmul.mubr.bf16.gmra.mxu0 %v1786
        %v1876 = vpop.f32.mrf.mxu0
        %v1877 = vadd.f32 0.0, %v1876
        %v1878 = vpop.f32.mrf.mxu0
        %v1879 = vpop.f32.mrf.mxu0
        %v1880 = vadd.f32 0.0, %v1879
        %v1881 = vpop.f32.mrf.mxu0
        %1882 = vmatprep.mubr.bf16.mxu0 0
        %1883 = vmatmul.mubr.bf16.gmra.mxu0 %v1789
        %v1884 = vpop.f32.mrf.mxu0
        %v1885 = vadd.f32 0.0, %v1884
        %v1886 = vpop.f32.mrf.mxu0
        %v1887 = vpop.f32.mrf.mxu0
        %v1888 = vadd.f32 0.0, %v1887
        %v1889 = vpop.f32.mrf.mxu0
        %1890 = vdwg.mxu0
        %v1891 = vsel %vm576, 1, 0
        %v1892 = vsel %vm577, 1, 0
        %v1893 = vsel %vm578, 1, 0
        %v1894 = vsel %vm579, 1, 0
        %v1895 = vsel %vm580, 1, 0
        %v1896 = vsel %vm581, 1, 0
        %v1897 = vsel %vm582, 1, 0
        %v1898 = vsel %vm583, 1, 0
        %v1899 = vsel %vm584, 1, 0
        %v1900 = vsel %vm585, 1, 0
        %v1901 = vsel %vm586, 1, 0
        %v1902 = vsel %vm587, 1, 0
        %v1903 = vsel %vm588, 1, 0
        %v1904 = vsel %vm589, 1, 0
        %v1905 = vsel %vm590, 1, 0
        %v1906 = vsel %vm591, 1, 0
        %vm1907 = vcmp.eq.s32.totalorder %v1891, 1
        %vm1908 = vcmp.eq.s32.totalorder %v1892, 1
        %vm1909 = vcmp.eq.s32.totalorder %v1893, 1
        %vm1910 = vcmp.eq.s32.totalorder %v1894, 1
        %vm1911 = vcmp.eq.s32.totalorder %v1895, 1
        %vm1912 = vcmp.eq.s32.totalorder %v1896, 1
        %vm1913 = vcmp.eq.s32.totalorder %v1897, 1
        %vm1914 = vcmp.eq.s32.totalorder %v1898, 1
        %vm1915 = vcmp.eq.s32.totalorder %v1899, 1
        %vm1916 = vcmp.eq.s32.totalorder %v1900, 1
        %vm1917 = vcmp.eq.s32.totalorder %v1901, 1
        %vm1918 = vcmp.eq.s32.totalorder %v1902, 1
        %vm1919 = vcmp.eq.s32.totalorder %v1903, 1
        %vm1920 = vcmp.eq.s32.totalorder %v1904, 1
        %vm1921 = vcmp.eq.s32.totalorder %v1905, 1
        %vm1922 = vcmp.eq.s32.totalorder %v1906, 1
        %v1923 = vsel %vm1907, %v1409, -10000.0
        %v1924 = vsel %vm1908, %v1412, -10000.0
        %v1925 = vsel %vm1909, %v1417, -10000.0
        %v1926 = vsel %vm1910, %v1420, -10000.0
        %v1927 = vsel %vm1911, %v1425, -10000.0
        %v1928 = vsel %vm1912, %v1428, -10000.0
        %v1929 = vsel %vm1913, %v1433, -10000.0
        %v1930 = vsel %vm1914, %v1436, -10000.0
        %v1931 = vsel %vm1915, %v1441, -10000.0
        %v1932 = vsel %vm1916, %v1444, -10000.0
        %v1933 = vsel %vm1917, %v1449, -10000.0
        %v1934 = vsel %vm1918, %v1452, -10000.0
        %v1935 = vsel %vm1919, %v1457, -10000.0
        %v1936 = vsel %vm1920, %v1460, -10000.0
        %v1937 = vsel %vm1921, %v1465, -10000.0
        %v1938 = vsel %vm1922, %v1468, -10000.0
        %v1939 = vsel %vm1907, %v1549, -10000.0
        %v1940 = vsel %vm1908, %v1552, -10000.0
        %v1941 = vsel %vm1909, %v1557, -10000.0
        %v1942 = vsel %vm1910, %v1560, -10000.0
        %v1943 = vsel %vm1911, %v1565, -10000.0
        %v1944 = vsel %vm1912, %v1568, -10000.0
        %v1945 = vsel %vm1913, %v1573, -10000.0
        %v1946 = vsel %vm1914, %v1576, -10000.0
        %v1947 = vsel %vm1915, %v1581, -10000.0
        %v1948 = vsel %vm1916, %v1584, -10000.0
        %v1949 = vsel %vm1917, %v1589, -10000.0
        %v1950 = vsel %vm1918, %v1592, -10000.0
        %v1951 = vsel %vm1919, %v1597, -10000.0
        %v1952 = vsel %vm1920, %v1600, -10000.0
        %v1953 = vsel %vm1921, %v1605, -10000.0
        %v1954 = vsel %vm1922, %v1608, -10000.0
        %v1955 = vsel %vm1907, %v1689, -10000.0
        %v1956 = vsel %vm1908, %v1692, -10000.0
        %v1957 = vsel %vm1909, %v1697, -10000.0
        %v1958 = vsel %vm1910, %v1700, -10000.0
        %v1959 = vsel %vm1911, %v1705, -10000.0
        %v1960 = vsel %vm1912, %v1708, -10000.0
        %v1961 = vsel %vm1913, %v1713, -10000.0
        %v1962 = vsel %vm1914, %v1716, -10000.0
        %v1963 = vsel %vm1915, %v1721, -10000.0
        %v1964 = vsel %vm1916, %v1724, -10000.0
        %v1965 = vsel %vm1917, %v1729, -10000.0
        %v1966 = vsel %vm1918, %v1732, -10000.0
        %v1967 = vsel %vm1919, %v1737, -10000.0
        %v1968 = vsel %vm1920, %v1740, -10000.0
        %v1969 = vsel %vm1921, %v1745, -10000.0
        %v1970 = vsel %vm1922, %v1748, -10000.0
        %v1971 = vsel %vm1907, %v1829, -10000.0
        %v1972 = vsel %vm1908, %v1832, -10000.0
        %v1973 = vsel %vm1909, %v1837, -10000.0
        %v1974 = vsel %vm1910, %v1840, -10000.0
        %v1975 = vsel %vm1911, %v1845, -10000.0
        %v1976 = vsel %vm1912, %v1848, -10000.0
        %v1977 = vsel %vm1913, %v1853, -10000.0
        %v1978 = vsel %vm1914, %v1856, -10000.0
        %v1979 = vsel %vm1915, %v1861, -10000.0
        %v1980 = vsel %vm1916, %v1864, -10000.0
        %v1981 = vsel %vm1917, %v1869, -10000.0
        %v1982 = vsel %vm1918, %v1872, -10000.0
        %v1983 = vsel %vm1919, %v1877, -10000.0
        %v1984 = vsel %vm1920, %v1880, -10000.0
        %v1985 = vsel %vm1921, %v1885, -10000.0
        %v1986 = vsel %vm1922, %v1888, -10000.0
        %v1987 = vmax.f32 %v1923, %v1924
        %v1988 = vmax.f32 %v1987, %v1925
        %v1989 = vmax.f32 %v1988, %v1926
        %v1990 = vmax.f32 %v1989, %v1927
        %v1991 = vmax.f32 %v1990, %v1928
        %v1992 = vmax.f32 %v1991, %v1929
        %v1993 = vmax.f32 %v1992, %v1930
        %v1994 = vmax.f32 %v1993, %v1931
        %v1995 = vmax.f32 %v1994, %v1932
        %v1996 = vmax.f32 %v1995, %v1933
        %v1997 = vmax.f32 %v1996, %v1934
        %v1998 = vmax.f32 %v1997, %v1935
        %v1999 = vmax.f32 %v1998, %v1936
        %v2000 = vmax.f32 %v1999, %v1937
        %v2001 = vmax.f32 %v2000, %v1938
        %v2002 = vrot.slane %v2001, 4
        %v2003 = vmax.f32 %v2001, %v2002
        %v2004 = vrot.slane %v2003, 2
        %v2005 = vmax.f32 %v2003, %v2004
        %v2006 = vrot.slane %v2005, 1
        %v2007 = vmax.f32 %v2005, %v2006
        %v2008 = vmax.f32 %v1939, %v1940
        %v2009 = vmax.f32 %v2008, %v1941
        %v2010 = vmax.f32 %v2009, %v1942
        %v2011 = vmax.f32 %v2010, %v1943
        %v2012 = vmax.f32 %v2011, %v1944
        %v2013 = vmax.f32 %v2012, %v1945
        %v2014 = vmax.f32 %v2013, %v1946
        %v2015 = vmax.f32 %v2014, %v1947
        %v2016 = vmax.f32 %v2015, %v1948
        %v2017 = vmax.f32 %v2016, %v1949
        %v2018 = vmax.f32 %v2017, %v1950
        %v2019 = vmax.f32 %v2018, %v1951
        %v2020 = vmax.f32 %v2019, %v1952
        %v2021 = vmax.f32 %v2020, %v1953
        %v2022 = vmax.f32 %v2021, %v1954
        %v2023 = vrot.slane %v2022, 4
        %v2024 = vmax.f32 %v2022, %v2023
        %v2025 = vrot.slane %v2024, 2
        %v2026 = vmax.f32 %v2024, %v2025
        %v2027 = vrot.slane %v2026, 1
        %v2028 = vmax.f32 %v2026, %v2027
        %v2029 = vmax.f32 %v1955, %v1956
        %v2030 = vmax.f32 %v2029, %v1957
        %v2031 = vmax.f32 %v2030, %v1958
        %v2032 = vmax.f32 %v2031, %v1959
        %v2033 = vmax.f32 %v2032, %v1960
        %v2034 = vmax.f32 %v2033, %v1961
        %v2035 = vmax.f32 %v2034, %v1962
        %v2036 = vmax.f32 %v2035, %v1963
        %v2037 = vmax.f32 %v2036, %v1964
        %v2038 = vmax.f32 %v2037, %v1965
        %v2039 = vmax.f32 %v2038, %v1966
        %v2040 = vmax.f32 %v2039, %v1967
        %v2041 = vmax.f32 %v2040, %v1968
        %v2042 = vmax.f32 %v2041, %v1969
        %v2043 = vmax.f32 %v2042, %v1970
        %v2044 = vrot.slane %v2043, 4
        %v2045 = vmax.f32 %v2043, %v2044
        %v2046 = vrot.slane %v2045, 2
        %v2047 = vmax.f32 %v2045, %v2046
        %v2048 = vrot.slane %v2047, 1
        %v2049 = vmax.f32 %v2047, %v2048
        %v2050 = vmax.f32 %v1971, %v1972
        %v2051 = vmax.f32 %v2050, %v1973
        %v2052 = vmax.f32 %v2051, %v1974
        %v2053 = vmax.f32 %v2052, %v1975
        %v2054 = vmax.f32 %v2053, %v1976
        %v2055 = vmax.f32 %v2054, %v1977
        %v2056 = vmax.f32 %v2055, %v1978
        %v2057 = vmax.f32 %v2056, %v1979
        %v2058 = vmax.f32 %v2057, %v1980
        %v2059 = vmax.f32 %v2058, %v1981
        %v2060 = vmax.f32 %v2059, %v1982
        %v2061 = vmax.f32 %v2060, %v1983
        %v2062 = vmax.f32 %v2061, %v1984
        %v2063 = vmax.f32 %v2062, %v1985
        %v2064 = vmax.f32 %v2063, %v1986
        %v2065 = vrot.slane %v2064, 4
        %v2066 = vmax.f32 %v2064, %v2065
        %v2067 = vrot.slane %v2066, 2
        %v2068 = vmax.f32 %v2066, %v2067
        %v2069 = vrot.slane %v2068, 1
        %v2070 = vmax.f32 %v2068, %v2069
        %v2071 = vmax.f32 %v2007, -1e+30
        %v2072 = vmax.f32 %v2028, -1e+30
        %v2073 = vmax.f32 %v2049, -1e+30
        %v2074 = vmax.f32 %v2070, -1e+30
        %v2075 = vsub.f32 -1e+30, %v2071
        %v2076 = vsub.f32 -1e+30, %v2072
        %v2077 = vsub.f32 -1e+30, %v2073
        %v2078 = vsub.f32 -1e+30, %v2074
        %v2079 = vmul.f32 %v2075, 1.442695
        %v2080 = vpow.pop %v2079
        %v2081 = vmul.f32 %v2076, 1.442695
        %v2082 = vpow.pop %v2081
        %v2083 = vmul.f32 %v2077, 1.442695
        %v2084 = vpow.pop %v2083
        %v2085 = vmul.f32 %v2078, 1.442695
        %v2086 = vpow.pop %v2085
        %v2087 = vsub.f32 %v1923, %v2071
        %v2088 = vsub.f32 %v1924, %v2071
        %v2089 = vsub.f32 %v1925, %v2071
        %v2090 = vsub.f32 %v1926, %v2071
        %v2091 = vsub.f32 %v1927, %v2071
        %v2092 = vsub.f32 %v1928, %v2071
        %v2093 = vsub.f32 %v1929, %v2071
        %v2094 = vsub.f32 %v1930, %v2071
        %v2095 = vsub.f32 %v1931, %v2071
        %v2096 = vsub.f32 %v1932, %v2071
        %v2097 = vsub.f32 %v1933, %v2071
        %v2098 = vsub.f32 %v1934, %v2071
        %v2099 = vsub.f32 %v1935, %v2071
        %v2100 = vsub.f32 %v1936, %v2071
        %v2101 = vsub.f32 %v1937, %v2071
        %v2102 = vsub.f32 %v1938, %v2071
        %v2103 = vsub.f32 %v1939, %v2072
        %v2104 = vsub.f32 %v1940, %v2072
        %v2105 = vsub.f32 %v1941, %v2072
        %v2106 = vsub.f32 %v1942, %v2072
        %v2107 = vsub.f32 %v1943, %v2072
        %v2108 = vsub.f32 %v1944, %v2072
        %v2109 = vsub.f32 %v1945, %v2072
        %v2110 = vsub.f32 %v1946, %v2072
        %v2111 = vsub.f32 %v1947, %v2072
        %v2112 = vsub.f32 %v1948, %v2072
        %v2113 = vsub.f32 %v1949, %v2072
        %v2114 = vsub.f32 %v1950, %v2072
        %v2115 = vsub.f32 %v1951, %v2072
        %v2116 = vsub.f32 %v1952, %v2072
        %v2117 = vsub.f32 %v1953, %v2072
        %v2118 = vsub.f32 %v1954, %v2072
        %v2119 = vsub.f32 %v1955, %v2073
        %v2120 = vsub.f32 %v1956, %v2073
        %v2121 = vsub.f32 %v1957, %v2073
        %v2122 = vsub.f32 %v1958, %v2073
        %v2123 = vsub.f32 %v1959, %v2073
        %v2124 = vsub.f32 %v1960, %v2073
        %v2125 = vsub.f32 %v1961, %v2073
        %v2126 = vsub.f32 %v1962, %v2073
        %v2127 = vsub.f32 %v1963, %v2073
        %v2128 = vsub.f32 %v1964, %v2073
        %v2129 = vsub.f32 %v1965, %v2073
        %v2130 = vsub.f32 %v1966, %v2073
        %v2131 = vsub.f32 %v1967, %v2073
        %v2132 = vsub.f32 %v1968, %v2073
        %v2133 = vsub.f32 %v1969, %v2073
        %v2134 = vsub.f32 %v1970, %v2073
        %v2135 = vsub.f32 %v1971, %v2074
        %v2136 = vsub.f32 %v1972, %v2074
        %v2137 = vsub.f32 %v1973, %v2074
        %v2138 = vsub.f32 %v1974, %v2074
        %v2139 = vsub.f32 %v1975, %v2074
        %v2140 = vsub.f32 %v1976, %v2074
        %v2141 = vsub.f32 %v1977, %v2074
        %v2142 = vsub.f32 %v1978, %v2074
        %v2143 = vsub.f32 %v1979, %v2074
        %v2144 = vsub.f32 %v1980, %v2074
        %v2145 = vsub.f32 %v1981, %v2074
        %v2146 = vsub.f32 %v1982, %v2074
        %v2147 = vsub.f32 %v1983, %v2074
        %v2148 = vsub.f32 %v1984, %v2074
        %v2149 = vsub.f32 %v1985, %v2074
        %v2150 = vsub.f32 %v1986, %v2074
        %v2151 = vpack.c.bf16 %v2088, %v2087
        %v2152 = vpack.c.bf16 %v2090, %v2089
        %v2153 = vpack.c.bf16 %v2092, %v2091
        %v2154 = vpack.c.bf16 %v2094, %v2093
        %v2155 = vpack.c.bf16 %v2096, %v2095
        %v2156 = vpack.c.bf16 %v2098, %v2097
        %v2157 = vpack.c.bf16 %v2100, %v2099
        %v2158 = vpack.c.bf16 %v2102, %v2101
        %v2159 = vpack.c.bf16 %v2104, %v2103
        %v2160 = vpack.c.bf16 %v2106, %v2105
        %v2161 = vpack.c.bf16 %v2108, %v2107
        %v2162 = vpack.c.bf16 %v2110, %v2109
        %v2163 = vpack.c.bf16 %v2112, %v2111
        %v2164 = vpack.c.bf16 %v2114, %v2113
        %v2165 = vpack.c.bf16 %v2116, %v2115
        %v2166 = vpack.c.bf16 %v2118, %v2117
        %v2167 = vpack.c.bf16 %v2120, %v2119
        %v2168 = vpack.c.bf16 %v2122, %v2121
        %v2169 = vpack.c.bf16 %v2124, %v2123
        %v2170 = vpack.c.bf16 %v2126, %v2125
        %v2171 = vpack.c.bf16 %v2128, %v2127
        %v2172 = vpack.c.bf16 %v2130, %v2129
        %v2173 = vpack.c.bf16 %v2132, %v2131
        %v2174 = vpack.c.bf16 %v2134, %v2133
        %v2175 = vpack.c.bf16 %v2136, %v2135
        %v2176 = vpack.c.bf16 %v2138, %v2137
        %v2177 = vpack.c.bf16 %v2140, %v2139
        %v2178 = vpack.c.bf16 %v2142, %v2141
        %v2179 = vpack.c.bf16 %v2144, %v2143
        %v2180 = vpack.c.bf16 %v2146, %v2145
        %v2181 = vpack.c.bf16 %v2148, %v2147
        %v2182 = vpack.c.bf16 %v2150, %v2149
        %v2184 = vmul.bf16 %v2151, 1069105081
        %v2185 = vpow.bf16.pop %v2184
        %v2187 = vmul.bf16 %v2152, 1069105081
        %v2188 = vpow.bf16.pop %v2187
        %v2190 = vmul.bf16 %v2153, 1069105081
        %v2191 = vpow.bf16.pop %v2190
        %v2193 = vmul.bf16 %v2154, 1069105081
        %v2194 = vpow.bf16.pop %v2193
        %v2196 = vmul.bf16 %v2155, 1069105081
        %v2197 = vpow.bf16.pop %v2196
        %v2199 = vmul.bf16 %v2156, 1069105081
        %v2200 = vpow.bf16.pop %v2199
        %v2202 = vmul.bf16 %v2157, 1069105081
        %v2203 = vpow.bf16.pop %v2202
        %v2205 = vmul.bf16 %v2158, 1069105081
        %v2206 = vpow.bf16.pop %v2205
        %v2208 = vmul.bf16 %v2159, 1069105081
        %v2209 = vpow.bf16.pop %v2208
        %v2211 = vmul.bf16 %v2160, 1069105081
        %v2212 = vpow.bf16.pop %v2211
        %v2214 = vmul.bf16 %v2161, 1069105081
        %v2215 = vpow.bf16.pop %v2214
        %v2217 = vmul.bf16 %v2162, 1069105081
        %v2218 = vpow.bf16.pop %v2217
        %v2220 = vmul.bf16 %v2163, 1069105081
        %v2221 = vpow.bf16.pop %v2220
        %v2223 = vmul.bf16 %v2164, 1069105081
        %v2224 = vpow.bf16.pop %v2223
        %v2226 = vmul.bf16 %v2165, 1069105081
        %v2227 = vpow.bf16.pop %v2226
        %v2229 = vmul.bf16 %v2166, 1069105081
        %v2230 = vpow.bf16.pop %v2229
        %v2232 = vmul.bf16 %v2167, 1069105081
        %v2233 = vpow.bf16.pop %v2232
        %v2235 = vmul.bf16 %v2168, 1069105081
        %v2236 = vpow.bf16.pop %v2235
        %v2238 = vmul.bf16 %v2169, 1069105081
        %v2239 = vpow.bf16.pop %v2238
        %v2241 = vmul.bf16 %v2170, 1069105081
        %v2242 = vpow.bf16.pop %v2241
        %v2244 = vmul.bf16 %v2171, 1069105081
        %v2245 = vpow.bf16.pop %v2244
        %v2247 = vmul.bf16 %v2172, 1069105081
        %v2248 = vpow.bf16.pop %v2247
        %v2250 = vmul.bf16 %v2173, 1069105081
        %v2251 = vpow.bf16.pop %v2250
        %v2253 = vmul.bf16 %v2174, 1069105081
        %v2254 = vpow.bf16.pop %v2253
        %v2256 = vmul.bf16 %v2175, 1069105081
        %v2257 = vpow.bf16.pop %v2256
        %v2259 = vmul.bf16 %v2176, 1069105081
        %v2260 = vpow.bf16.pop %v2259
        %v2262 = vmul.bf16 %v2177, 1069105081
        %v2263 = vpow.bf16.pop %v2262
        %v2265 = vmul.bf16 %v2178, 1069105081
        %v2266 = vpow.bf16.pop %v2265
        %v2268 = vmul.bf16 %v2179, 1069105081
        %v2269 = vpow.bf16.pop %v2268
        %v2271 = vmul.bf16 %v2180, 1069105081
        %v2272 = vpow.bf16.pop %v2271
        %v2274 = vmul.bf16 %v2181, 1069105081
        %v2275 = vpow.bf16.pop %v2274
        %v2277 = vmul.bf16 %v2182, 1069105081
        %v2278 = vpow.bf16.pop %v2277
        %v2279 = vmul.f32 %v2080, 0.0
        %v2280 = vmul.f32 %v2082, 0.0
        %v2281 = vmul.f32 %v2084, 0.0
        %v2282 = vmul.f32 %v2086, 0.0
        %v2283 = vunpack.c.l.bf16 %v2185
        %v2284 = vunpack.c.h.bf16 %v2185
        %v2285 = vunpack.c.l.bf16 %v2188
        %v2286 = vunpack.c.h.bf16 %v2188
        %v2287 = vunpack.c.l.bf16 %v2191
        %v2288 = vunpack.c.h.bf16 %v2191
        %v2289 = vunpack.c.l.bf16 %v2194
        %v2290 = vunpack.c.h.bf16 %v2194
        %v2291 = vunpack.c.l.bf16 %v2197
        %v2292 = vunpack.c.h.bf16 %v2197
        %v2293 = vunpack.c.l.bf16 %v2200
        %v2294 = vunpack.c.h.bf16 %v2200
        %v2295 = vunpack.c.l.bf16 %v2203
        %v2296 = vunpack.c.h.bf16 %v2203
        %v2297 = vunpack.c.l.bf16 %v2206
        %v2298 = vunpack.c.h.bf16 %v2206
        %v2299 = vunpack.c.l.bf16 %v2209
        %v2300 = vunpack.c.h.bf16 %v2209
        %v2301 = vunpack.c.l.bf16 %v2212
        %v2302 = vunpack.c.h.bf16 %v2212
        %v2303 = vunpack.c.l.bf16 %v2215
        %v2304 = vunpack.c.h.bf16 %v2215
        %v2305 = vunpack.c.l.bf16 %v2218
        %v2306 = vunpack.c.h.bf16 %v2218
        %v2307 = vunpack.c.l.bf16 %v2221
        %v2308 = vunpack.c.h.bf16 %v2221
        %v2309 = vunpack.c.l.bf16 %v2224
        %v2310 = vunpack.c.h.bf16 %v2224
        %v2311 = vunpack.c.l.bf16 %v2227
        %v2312 = vunpack.c.h.bf16 %v2227
        %v2313 = vunpack.c.l.bf16 %v2230
        %v2314 = vunpack.c.h.bf16 %v2230
        %v2315 = vunpack.c.l.bf16 %v2233
        %v2316 = vunpack.c.h.bf16 %v2233
        %v2317 = vunpack.c.l.bf16 %v2236
        %v2318 = vunpack.c.h.bf16 %v2236
        %v2319 = vunpack.c.l.bf16 %v2239
        %v2320 = vunpack.c.h.bf16 %v2239
        %v2321 = vunpack.c.l.bf16 %v2242
        %v2322 = vunpack.c.h.bf16 %v2242
        %v2323 = vunpack.c.l.bf16 %v2245
        %v2324 = vunpack.c.h.bf16 %v2245
        %v2325 = vunpack.c.l.bf16 %v2248
        %v2326 = vunpack.c.h.bf16 %v2248
        %v2327 = vunpack.c.l.bf16 %v2251
        %v2328 = vunpack.c.h.bf16 %v2251
        %v2329 = vunpack.c.l.bf16 %v2254
        %v2330 = vunpack.c.h.bf16 %v2254
        %v2331 = vunpack.c.l.bf16 %v2257
        %v2332 = vunpack.c.h.bf16 %v2257
        %v2333 = vunpack.c.l.bf16 %v2260
        %v2334 = vunpack.c.h.bf16 %v2260
        %v2335 = vunpack.c.l.bf16 %v2263
        %v2336 = vunpack.c.h.bf16 %v2263
        %v2337 = vunpack.c.l.bf16 %v2266
        %v2338 = vunpack.c.h.bf16 %v2266
        %v2339 = vunpack.c.l.bf16 %v2269
        %v2340 = vunpack.c.h.bf16 %v2269
        %v2341 = vunpack.c.l.bf16 %v2272
        %v2342 = vunpack.c.h.bf16 %v2272
        %v2343 = vunpack.c.l.bf16 %v2275
        %v2344 = vunpack.c.h.bf16 %v2275
        %v2345 = vunpack.c.l.bf16 %v2278
        %v2346 = vunpack.c.h.bf16 %v2278
        %v2347 = vadd.f32 %v2283, %v2284
        %v2348 = vadd.f32 %v2347, %v2285
        %v2349 = vadd.f32 %v2348, %v2286
        %v2350 = vadd.f32 %v2349, %v2287
        %v2351 = vadd.f32 %v2350, %v2288
        %v2352 = vadd.f32 %v2351, %v2289
        %v2353 = vadd.f32 %v2352, %v2290
        %v2354 = vadd.f32 %v2353, %v2291
        %v2355 = vadd.f32 %v2354, %v2292
        %v2356 = vadd.f32 %v2355, %v2293
        %v2357 = vadd.f32 %v2356, %v2294
        %v2358 = vadd.f32 %v2357, %v2295
        %v2359 = vadd.f32 %v2358, %v2296
        %v2360 = vadd.f32 %v2359, %v2297
        %v2361 = vadd.f32 %v2360, %v2298
        %v2362 = vrot.slane %v2361, 4
        %v2363 = vadd.f32 %v2361, %v2362
        %v2364 = vrot.slane %v2363, 2
        %v2365 = vadd.f32 %v2363, %v2364
        %v2366 = vrot.slane %v2365, 1
        %v2367 = vadd.f32 %v2365, %v2366
        %v2368 = vadd.f32 %v2299, %v2300
        %v2369 = vadd.f32 %v2368, %v2301
        %v2370 = vadd.f32 %v2369, %v2302
        %v2371 = vadd.f32 %v2370, %v2303
        %v2372 = vadd.f32 %v2371, %v2304
        %v2373 = vadd.f32 %v2372, %v2305
        %v2374 = vadd.f32 %v2373, %v2306
        %v2375 = vadd.f32 %v2374, %v2307
        %v2376 = vadd.f32 %v2375, %v2308
        %v2377 = vadd.f32 %v2376, %v2309
        %v2378 = vadd.f32 %v2377, %v2310
        %v2379 = vadd.f32 %v2378, %v2311
        %v2380 = vadd.f32 %v2379, %v2312
        %v2381 = vadd.f32 %v2380, %v2313
        %v2382 = vadd.f32 %v2381, %v2314
        %v2383 = vrot.slane %v2382, 4
        %v2384 = vadd.f32 %v2382, %v2383
        %v2385 = vrot.slane %v2384, 2
        %v2386 = vadd.f32 %v2384, %v2385
        %v2387 = vrot.slane %v2386, 1
        %v2388 = vadd.f32 %v2386, %v2387
        %v2389 = vadd.f32 %v2315, %v2316
        %v2390 = vadd.f32 %v2389, %v2317
        %v2391 = vadd.f32 %v2390, %v2318
        %v2392 = vadd.f32 %v2391, %v2319
        %v2393 = vadd.f32 %v2392, %v2320
        %v2394 = vadd.f32 %v2393, %v2321
        %v2395 = vadd.f32 %v2394, %v2322
        %v2396 = vadd.f32 %v2395, %v2323
        %v2397 = vadd.f32 %v2396, %v2324
        %v2398 = vadd.f32 %v2397, %v2325
        %v2399 = vadd.f32 %v2398, %v2326
        %v2400 = vadd.f32 %v2399, %v2327
        %v2401 = vadd.f32 %v2400, %v2328
        %v2402 = vadd.f32 %v2401, %v2329
        %v2403 = vadd.f32 %v2402, %v2330
        %v2404 = vrot.slane %v2403, 4
        %v2405 = vadd.f32 %v2403, %v2404
        %v2406 = vrot.slane %v2405, 2
        %v2407 = vadd.f32 %v2405, %v2406
        %v2408 = vrot.slane %v2407, 1
        %v2409 = vadd.f32 %v2407, %v2408
        %v2410 = vadd.f32 %v2331, %v2332
        %v2411 = vadd.f32 %v2410, %v2333
        %v2412 = vadd.f32 %v2411, %v2334
        %v2413 = vadd.f32 %v2412, %v2335
        %v2414 = vadd.f32 %v2413, %v2336
        %v2415 = vadd.f32 %v2414, %v2337
        %v2416 = vadd.f32 %v2415, %v2338
        %v2417 = vadd.f32 %v2416, %v2339
        %v2418 = vadd.f32 %v2417, %v2340
        %v2419 = vadd.f32 %v2418, %v2341
        %v2420 = vadd.f32 %v2419, %v2342
        %v2421 = vadd.f32 %v2420, %v2343
        %v2422 = vadd.f32 %v2421, %v2344
        %v2423 = vadd.f32 %v2422, %v2345
        %v2424 = vadd.f32 %v2423, %v2346
        %v2425 = vrot.slane %v2424, 4
        %v2426 = vadd.f32 %v2424, %v2425
        %v2427 = vrot.slane %v2426, 2
        %v2428 = vadd.f32 %v2426, %v2427
        %v2429 = vrot.slane %v2428, 1
        %v2430 = vadd.f32 %v2428, %v2429
        %v2431 = vadd.f32 %v2279, %v2367
        %v2432 = vadd.f32 %v2280, %v2388
        %v2433 = vadd.f32 %v2281, %v2409
        %v2434 = vadd.f32 %v2282, %v2430
        %2435 = vmatprep.subr.bf16.mxu0 0
        %2436 = vmatpush1.bf16.msra.mxu0 %v2206
        %2437 = vmatprep.subr.bf16.mxu0 0
        %2438 = vmatpush1.bf16.msra.mxu0 %v2203
        %2439 = vmatprep.subr.bf16.mxu0 0
        %2440 = vmatpush1.bf16.msra.mxu0 %v2200
        %2441 = vmatprep.subr.bf16.mxu0 0
        %2442 = vmatpush1.bf16.msra.mxu0 %v2197
        %2443 = vmatprep.subr.bf16.mxu0 0
        %2444 = vmatpush1.bf16.msra.mxu0 %v2194
        %2445 = vmatprep.subr.bf16.mxu0 0
        %2446 = vmatpush1.bf16.msra.mxu0 %v2191
        %2447 = vmatprep.subr.bf16.mxu0 0
        %2448 = vmatpush1.bf16.msra.mxu0 %v2188
        %2449 = vmatprep.subr.bf16.mxu0 0
        %2450 = vmatpush1.bf16.msra.mxu0 %v2185
        %2451 = vmatprep.subr.bf16.mxu0 0
        %2452 = vmatpush2.bf16.msra.mxu0 0
        %2453 = vmatprep.subr.bf16.mxu0 0
        %2454 = vmatpush2.bf16.msra.mxu0 0
        %2455 = vmatprep.subr.bf16.mxu0 0
        %2456 = vmatpush2.bf16.msra.mxu0 0
        %2457 = vmatprep.subr.bf16.mxu0 0
        %2458 = vmatpush2.bf16.msra.mxu0 0
        %2459 = vmatprep.subr.bf16.mxu0 0
        %2460 = vmatpush2.bf16.msra.mxu0 0
        %2461 = vmatprep.subr.bf16.mxu0 0
        %2462 = vmatpush2.bf16.msra.mxu0 0
        %2463 = vmatprep.subr.bf16.mxu0 0
        %2464 = vmatpush2.bf16.msra.mxu0 0
        %2465 = vmatprep.subr.bf16.mxu0 0
        %2466 = vmatpush2.bf16.msra.mxu0 0
        %2467 = vmatprep.mubr.bf16.mxu0 0
        %2468 = vmatmul.mubr.bf16.gmra.mxu0 %v1325
        %v2469 = vpop.f32.mrf.mxu0
        %v2470 = vadd.f32 0.0, %v2469
        %v2471 = vpop.f32.mrf.mxu0
        %v2472 = vpop.f32.mrf.mxu0
        %v2473 = vpop.f32.mrf.mxu0
        %2474 = vdwg.mxu0
        %2475 = vmatprep.subr.bf16.mxu0 0
        %2476 = vmatpush1.bf16.msra.mxu0 %v2230
        %2477 = vmatprep.subr.bf16.mxu0 0
        %2478 = vmatpush1.bf16.msra.mxu0 %v2227
        %2479 = vmatprep.subr.bf16.mxu0 0
        %2480 = vmatpush1.bf16.msra.mxu0 %v2224
        %2481 = vmatprep.subr.bf16.mxu0 0
        %2482 = vmatpush1.bf16.msra.mxu0 %v2221
        %2483 = vmatprep.subr.bf16.mxu0 0
        %2484 = vmatpush1.bf16.msra.mxu0 %v2218
        %2485 = vmatprep.subr.bf16.mxu0 0
        %2486 = vmatpush1.bf16.msra.mxu0 %v2215
        %2487 = vmatprep.subr.bf16.mxu0 0
        %2488 = vmatpush1.bf16.msra.mxu0 %v2212
        %2489 = vmatprep.subr.bf16.mxu0 0
        %2490 = vmatpush1.bf16.msra.mxu0 %v2209
        %2491 = vmatprep.subr.bf16.mxu0 0
        %2492 = vmatpush2.bf16.msra.mxu0 0
        %2493 = vmatprep.subr.bf16.mxu0 0
        %2494 = vmatpush2.bf16.msra.mxu0 0
        %2495 = vmatprep.subr.bf16.mxu0 0
        %2496 = vmatpush2.bf16.msra.mxu0 0
        %2497 = vmatprep.subr.bf16.mxu0 0
        %2498 = vmatpush2.bf16.msra.mxu0 0
        %2499 = vmatprep.subr.bf16.mxu0 0
        %2500 = vmatpush2.bf16.msra.mxu0 0
        %2501 = vmatprep.subr.bf16.mxu0 0
        %2502 = vmatpush2.bf16.msra.mxu0 0
        %2503 = vmatprep.subr.bf16.mxu0 0
        %2504 = vmatpush2.bf16.msra.mxu0 0
        %2505 = vmatprep.subr.bf16.mxu0 0
        %2506 = vmatpush2.bf16.msra.mxu0 0
        %2507 = vmatprep.mubr.bf16.mxu0 0
        %2508 = vmatmul.mubr.bf16.gmra.mxu0 %v1326
        %v2509 = vpop.f32.mrf.mxu0
        %v2510 = vadd.f32 0.0, %v2509
        %v2511 = vpop.f32.mrf.mxu0
        %v2512 = vpop.f32.mrf.mxu0
        %v2513 = vpop.f32.mrf.mxu0
        %2514 = vdwg.mxu0
        %2515 = vmatprep.subr.bf16.mxu0 0
        %2516 = vmatpush1.bf16.msra.mxu0 %v2254
        %2517 = vmatprep.subr.bf16.mxu0 0
        %2518 = vmatpush1.bf16.msra.mxu0 %v2251
        %2519 = vmatprep.subr.bf16.mxu0 0
        %2520 = vmatpush1.bf16.msra.mxu0 %v2248
        %2521 = vmatprep.subr.bf16.mxu0 0
        %2522 = vmatpush1.bf16.msra.mxu0 %v2245
        %2523 = vmatprep.subr.bf16.mxu0 0
        %2524 = vmatpush1.bf16.msra.mxu0 %v2242
        %2525 = vmatprep.subr.bf16.mxu0 0
        %2526 = vmatpush1.bf16.msra.mxu0 %v2239
        %2527 = vmatprep.subr.bf16.mxu0 0
        %2528 = vmatpush1.bf16.msra.mxu0 %v2236
        %2529 = vmatprep.subr.bf16.mxu0 0
        %2530 = vmatpush1.bf16.msra.mxu0 %v2233
        %2531 = vmatprep.subr.bf16.mxu0 0
        %2532 = vmatpush2.bf16.msra.mxu0 0
        %2533 = vmatprep.subr.bf16.mxu0 0
        %2534 = vmatpush2.bf16.msra.mxu0 0
        %2535 = vmatprep.subr.bf16.mxu0 0
        %2536 = vmatpush2.bf16.msra.mxu0 0
        %2537 = vmatprep.subr.bf16.mxu0 0
        %2538 = vmatpush2.bf16.msra.mxu0 0
        %2539 = vmatprep.subr.bf16.mxu0 0
        %2540 = vmatpush2.bf16.msra.mxu0 0
        %2541 = vmatprep.subr.bf16.mxu0 0
        %2542 = vmatpush2.bf16.msra.mxu0 0
        %2543 = vmatprep.subr.bf16.mxu0 0
        %2544 = vmatpush2.bf16.msra.mxu0 0
        %2545 = vmatprep.subr.bf16.mxu0 0
        %2546 = vmatpush2.bf16.msra.mxu0 0
        %2547 = vmatprep.mubr.bf16.mxu0 0
        %2548 = vmatmul.mubr.bf16.gmra.mxu0 %v1327
        %v2549 = vpop.f32.mrf.mxu0
        %v2550 = vadd.f32 0.0, %v2549
        %v2551 = vpop.f32.mrf.mxu0
        %v2552 = vpop.f32.mrf.mxu0
        %v2553 = vpop.f32.mrf.mxu0
        %2554 = vdwg.mxu0
        %2555 = vmatprep.subr.bf16.mxu0 0
        %2556 = vmatpush1.bf16.msra.mxu0 %v2278
        %2557 = vmatprep.subr.bf16.mxu0 0
        %2558 = vmatpush1.bf16.msra.mxu0 %v2275
        %2559 = vmatprep.subr.bf16.mxu0 0
        %2560 = vmatpush1.bf16.msra.mxu0 %v2272
        %2561 = vmatprep.subr.bf16.mxu0 0
        %2562 = vmatpush1.bf16.msra.mxu0 %v2269
        %2563 = vmatprep.subr.bf16.mxu0 0
        %2564 = vmatpush1.bf16.msra.mxu0 %v2266
        %2565 = vmatprep.subr.bf16.mxu0 0
        %2566 = vmatpush1.bf16.msra.mxu0 %v2263
        %2567 = vmatprep.subr.bf16.mxu0 0
        %2568 = vmatpush1.bf16.msra.mxu0 %v2260
        %2569 = vmatprep.subr.bf16.mxu0 0
        %2570 = vmatpush1.bf16.msra.mxu0 %v2257
        %2571 = vmatprep.subr.bf16.mxu0 0
        %2572 = vmatpush2.bf16.msra.mxu0 0
        %2573 = vmatprep.subr.bf16.mxu0 0
        %2574 = vmatpush2.bf16.msra.mxu0 0
        %2575 = vmatprep.subr.bf16.mxu0 0
        %2576 = vmatpush2.bf16.msra.mxu0 0
        %2577 = vmatprep.subr.bf16.mxu0 0
        %2578 = vmatpush2.bf16.msra.mxu0 0
        %2579 = vmatprep.subr.bf16.mxu0 0
        %2580 = vmatpush2.bf16.msra.mxu0 0
        %2581 = vmatprep.subr.bf16.mxu0 0
        %2582 = vmatpush2.bf16.msra.mxu0 0
        %2583 = vmatprep.subr.bf16.mxu0 0
        %2584 = vmatpush2.bf16.msra.mxu0 0
        %2585 = vmatprep.subr.bf16.mxu0 0
        %2586 = vmatpush2.bf16.msra.mxu0 0
        %2587 = vmatprep.mubr.bf16.mxu0 0
        %2588 = vmatmul.mubr.bf16.gmra.mxu0 %v1328
        %v2589 = vpop.f32.mrf.mxu0
        %v2590 = vadd.f32 0.0, %v2589
        %v2591 = vpop.f32.mrf.mxu0
        %v2592 = vpop.f32.mrf.mxu0
        %v2593 = vpop.f32.mrf.mxu0
        %2594 = vdwg.mxu0
        %v2595 = vadd.f32 %v2279, %v2470
        %v2596 = vadd.f32 %v2280, %v2510
        %v2597 = vadd.f32 %v2281, %v2550
        %v2598 = vadd.f32 %v2282, %v2590
        %v2599 = vrcp.pop %v2431
        %v2600 = vrcp.pop %v2432
        %v2601 = vrcp.pop %v2433
        %v2602 = vrcp.pop %v2434
        %v2603 = vmul.f32 %v2595, %v2599
        %v2604 = vmul.f32 %v2596, %v2600
        %v2605 = vmul.f32 %v2597, %v2601
        %v2606 = vmul.f32 %v2598, %v2602
        %v2607 = vpack.c.bf16 %v2604, %v2603
        %v2608 = vpack.c.bf16 %v2606, %v2605
        %2610 = vset.pattern.permute.xlu0 0
        %2611 = vperm.xlu0 %2610, %v505
        %v2612 = vpop.permute.xlu0 %2611
        %2615 = vset.pattern.permute.xlu0 0
        %2616 = vperm.xlu0 %2615, %v506
        %v2617 = vpop.permute.xlu0 %2616
        %2620 = vset.pattern.permute.xlu0 0
        %2621 = vperm.xlu0 %2620, %v507
        %v2622 = vpop.permute.xlu0 %2621
        %2625 = vset.pattern.permute.xlu0 0
        %2626 = vperm.xlu0 %2625, %v508
        %v2627 = vpop.permute.xlu0 %2626
        %v2633 = vunpack.c.l.b16 %v1122
        %v2634 = vunpack.c.l.b16 %v1123
        %v2635 = vunpack.c.l.b16 %v1124
        %v2636 = vunpack.c.l.b16 %v1125
        %v2637 = vpack.c.b16 %v2634, %v2633
        %v2638 = vpack.c.b16 %v2636, %v2635
        %v2640 = vsel %vm765, %v2637, 0
        %v2643 = vsel %vm765, %v2638, 0
        %2645 = vmatprep.subr.bf16.mxu0 0
        %2646 = vmatpush1.bf16.msra.mxu0 0
        %2647 = vmatprep.subr.bf16.mxu0 0
        %2648 = vmatpush1.bf16.msra.mxu0 0
        %2649 = vmatprep.subr.bf16.mxu0 0
        %2650 = vmatpush1.bf16.msra.mxu0 0
        %2651 = vmatprep.subr.bf16.mxu0 0
        %2652 = vmatpush1.bf16.msra.mxu0 0
        %2653 = vmatprep.subr.bf16.mxu0 0
        %2654 = vmatpush1.bf16.msra.mxu0 0
        %2655 = vmatprep.subr.bf16.mxu0 0
        %2656 = vmatpush1.bf16.msra.mxu0 0
        %2657 = vmatprep.subr.bf16.mxu0 0
        %2658 = vmatpush1.bf16.msra.mxu0 %v2608
        %2659 = vmatprep.subr.bf16.mxu0 0
        %2660 = vmatpush1.bf16.msra.mxu0 %v2607
        %2661 = vmatprep.subr.bf16.mxu0 0
        %2662 = vmatpush2.bf16.msra.mxu0 0
        %2663 = vmatprep.subr.bf16.mxu0 0
        %2664 = vmatpush2.bf16.msra.mxu0 0
        %2665 = vmatprep.subr.bf16.mxu0 0
        %2666 = vmatpush2.bf16.msra.mxu0 0
        %2667 = vmatprep.subr.bf16.mxu0 0
        %2668 = vmatpush2.bf16.msra.mxu0 0
        %2669 = vmatprep.subr.bf16.mxu0 0
        %2670 = vmatpush2.bf16.msra.mxu0 0
        %2671 = vmatprep.subr.bf16.mxu0 0
        %2672 = vmatpush2.bf16.msra.mxu0 0
        %2673 = vmatprep.subr.bf16.mxu0 0
        %2674 = vmatpush2.bf16.msra.mxu0 0
        %2675 = vmatprep.subr.bf16.mxu0 0
        %2676 = vmatpush2.bf16.msra.mxu0 0
        %2677 = vmatprep.mubr.bf16.mxu0 0
        %2678 = vmatmul.mubr.bf16.gmra.mxu0 %v2640
        %v2679 = vpop.f32.mrf.mxu0
        %v2680 = vadd.f32 %v2612, %v2679
        %v2681 = vpop.f32.mrf.mxu0
        %v2682 = vpop.f32.mrf.mxu0
        %v2683 = vadd.f32 %v2617, %v2682
        %v2684 = vpop.f32.mrf.mxu0
        %2685 = vmatprep.mubr.bf16.mxu0 0
        %2686 = vmatmul.mubr.bf16.gmra.mxu0 %v2643
        %v2687 = vpop.f32.mrf.mxu0
        %v2688 = vadd.f32 %v2622, %v2687
        %v2689 = vpop.f32.mrf.mxu0
        %v2690 = vpop.f32.mrf.mxu0
        %v2691 = vadd.f32 %v2627, %v2690
        %v2692 = vpop.f32.mrf.mxu0
        %2693 = vdwg.mxu0
        %2695 = vset.pattern.permute.xlu0 0
        %2696 = vperm.xlu0 %2695, %v945
        %v2697 = vpop.permute.xlu0 %2696
        %2700 = vset.pattern.permute.xlu0 0
        %2701 = vperm.xlu0 %2700, %v950
        %v2702 = vpop.permute.xlu0 %2701
        %2705 = vset.pattern.permute.xlu0 0
        %2706 = vperm.xlu0 %2705, %v955
        %v2707 = vpop.permute.xlu0 %2706
        %2710 = vset.pattern.permute.xlu0 0
        %2711 = vperm.xlu0 %2710, %v960
        %v2712 = vpop.permute.xlu0 %2711
        %v2714 = vmul.f32 %v2697, %v2680
        %v2715 = vmul.f32 %v2702, %v2683
        %v2716 = vmul.f32 %v2707, %v2688
        %v2717 = vmul.f32 %v2712, %v2691
        %v2718 = vadd.f32 %v2714, %v609
        %v2719 = vadd.f32 %v2715, %v610
        %v2720 = vadd.f32 %v2716, %v611
        %v2721 = vadd.f32 %v2717, %v612
        %v2722 = vadd.f32 %v2718, %v2719
        %v2723 = vadd.f32 %v2722, %v2720
        %v2724 = vadd.f32 %v2723, %v2721
        %v2725 = vrot.slane %v2724, 4
        %v2726 = vadd.f32 %v2724, %v2725
        %v2727 = vrot.slane %v2726, 2
        %v2728 = vadd.f32 %v2726, %v2727
        %v2729 = vrot.slane %v2728, 1
        %v2730 = vadd.f32 %v2728, %v2729
        %v2731 = vmul.f32 %v2730, %v1032
        %v2732 = vsub.f32 %v2718, %v2731
        %v2733 = vsub.f32 %v2719, %v2731
        %v2734 = vsub.f32 %v2720, %v2731
        %v2735 = vsub.f32 %v2721, %v2731
        %v2736 = vmul.f32 %v2732, %v2732
        %v2737 = vmul.f32 %v2733, %v2733
        %v2738 = vmul.f32 %v2734, %v2734
        %v2739 = vmul.f32 %v2735, %v2735
        %v2740 = vadd.f32 %v2736, %v2737
        %v2741 = vadd.f32 %v2740, %v2738
        %v2742 = vadd.f32 %v2741, %v2739
        %v2743 = vrot.slane %v2742, 4
        %v2744 = vadd.f32 %v2742, %v2743
        %v2745 = vrot.slane %v2744, 2
        %v2746 = vadd.f32 %v2744, %v2745
        %v2747 = vrot.slane %v2746, 1
        %v2748 = vadd.f32 %v2746, %v2747
        %v2749 = vmul.f32 %v2748, %v1032
        %v2750 = vadd.f32 %v2749, 1e-05
        %v2751 = vrsqrt.pop %v2750
        %v2752 = vmul.f32 %v2732, %v2751
        %v2753 = vmul.f32 %v2733, %v2751
        %v2754 = vmul.f32 %v2734, %v2751
        %v2755 = vmul.f32 %v2735, %v2751
        %2757 = vset.pattern.permute.xlu0 0
        %2758 = vperm.xlu0 %2757, %v509
        %v2759 = vpop.permute.xlu0 %2758
        %2762 = vset.pattern.permute.xlu0 0
        %2763 = vperm.xlu0 %2762, %v510
        %v2764 = vpop.permute.xlu0 %2763
        %2767 = vset.pattern.permute.xlu0 0
        %2768 = vperm.xlu0 %2767, %v511
        %v2769 = vpop.permute.xlu0 %2768
        %2772 = vset.pattern.permute.xlu0 0
        %2773 = vperm.xlu0 %2772, %v512
        %v2774 = vpop.permute.xlu0 %2773
        %v2776 = vmul.f32 %v2752, %v2759
        %v2777 = vmul.f32 %v2753, %v2764
        %v2778 = vmul.f32 %v2754, %v2769
        %v2779 = vmul.f32 %v2755, %v2774
        %2781 = vset.pattern.permute.xlu0 0
        %2782 = vperm.xlu0 %2781, %v513
        %v2783 = vpop.permute.xlu0 %2782
        %2786 = vset.pattern.permute.xlu0 0
        %2787 = vperm.xlu0 %2786, %v514
        %v2788 = vpop.permute.xlu0 %2787
        %2791 = vset.pattern.permute.xlu0 0
        %2792 = vperm.xlu0 %2791, %v515
        %v2793 = vpop.permute.xlu0 %2792
        %2796 = vset.pattern.permute.xlu0 0
        %2797 = vperm.xlu0 %2796, %v516
        %v2798 = vpop.permute.xlu0 %2797
        %v2800 = vadd.f32 %v2776, %v2783
        %v2801 = vadd.f32 %v2777, %v2788
        %v2802 = vadd.f32 %v2778, %v2793
        %v2803 = vadd.f32 %v2779, %v2798
        %v2804 = vld [vmem:[%s9] sm:$0xf]
        %v2805 = vld [vmem:[%s9 + $0x4] sm:$0xf]
        %v2806 = vld [vmem:[%s9 + $0x8] sm:$0xf]
        %v2807 = vld [vmem:[%s9 + $0xc] sm:$0xf]
        %v2808 = vld [vmem:[%s9 + $0x10] sm:$0xf]
        %v2809 = vld [vmem:[%s9 + $0x14] sm:$0xf]
        %v2810 = vld [vmem:[%s9 + $0x18] sm:$0xf]
        %v2811 = vld [vmem:[%s9 + $0x1c] sm:$0xf]
        %v2812 = vld [vmem:[%s9 + $0x20] sm:$0xf]
        %v2813 = vld [vmem:[%s9 + $0x24] sm:$0xf]
        %v2814 = vld [vmem:[%s9 + $0x28] sm:$0xf]
        %v2815 = vld [vmem:[%s9 + $0x2c] sm:$0xf]
        %v2816 = vld [vmem:[%s10] sm:$0xf]
        %v2817 = vld [vmem:[%s10 + $0x4] sm:$0xf]
        %v2818 = vld [vmem:[%s10 + $0x8] sm:$0xf]
        %v2819 = vld [vmem:[%s10 + $0xc] sm:$0xf]
        %v2820 = vpack.c.bf16 %v2801, %v2800
        %v2821 = vpack.c.bf16 %v2803, %v2802
        %2823 = vset.pattern.permute.xlu0 0
        %2824 = vperm.xlu0 %2823, %v517
        %v2825 = vpop.permute.xlu0 %2824
        %2828 = vset.pattern.permute.xlu0 0
        %2829 = vperm.xlu0 %2828, %v518
        %v2830 = vpop.permute.xlu0 %2829
        %2833 = vset.pattern.permute.xlu0 0
        %2834 = vperm.xlu0 %2833, %v519
        %v2835 = vpop.permute.xlu0 %2834
        %2838 = vset.pattern.permute.xlu0 0
        %2839 = vperm.xlu0 %2838, %v520
        %v2840 = vpop.permute.xlu0 %2839
        %v2846 = vunpack.c.l.b16 %v2804
        %v2847 = vunpack.c.l.b16 %v2805
        %v2848 = vunpack.c.l.b16 %v2806
        %v2849 = vunpack.c.l.b16 %v2807
        %v2850 = vpack.c.b16 %v2847, %v2846
        %v2851 = vpack.c.b16 %v2849, %v2848
        %v2853 = vsel %vm765, %v2850, 0
        %v2856 = vsel %vm765, %v2851, 0
        %2858 = vmatprep.subr.bf16.mxu0 0
        %2859 = vmatpush1.bf16.msra.mxu0 0
        %2860 = vmatprep.subr.bf16.mxu0 0
        %2861 = vmatpush1.bf16.msra.mxu0 0
        %2862 = vmatprep.subr.bf16.mxu0 0
        %2863 = vmatpush1.bf16.msra.mxu0 0
        %2864 = vmatprep.subr.bf16.mxu0 0
        %2865 = vmatpush1.bf16.msra.mxu0 0
        %2866 = vmatprep.subr.bf16.mxu0 0
        %2867 = vmatpush1.bf16.msra.mxu0 0
        %2868 = vmatprep.subr.bf16.mxu0 0
        %2869 = vmatpush1.bf16.msra.mxu0 0
        %2870 = vmatprep.subr.bf16.mxu0 0
        %2871 = vmatpush1.bf16.msra.mxu0 %v2821
        %2872 = vmatprep.subr.bf16.mxu0 0
        %2873 = vmatpush1.bf16.msra.mxu0 %v2820
        %2874 = vmatprep.subr.bf16.mxu0 0
        %2875 = vmatpush2.bf16.msra.mxu0 0
        %2876 = vmatprep.subr.bf16.mxu0 0
        %2877 = vmatpush2.bf16.msra.mxu0 0
        %2878 = vmatprep.subr.bf16.mxu0 0
        %2879 = vmatpush2.bf16.msra.mxu0 0
        %2880 = vmatprep.subr.bf16.mxu0 0
        %2881 = vmatpush2.bf16.msra.mxu0 0
        %2882 = vmatprep.subr.bf16.mxu0 0
        %2883 = vmatpush2.bf16.msra.mxu0 0
        %2884 = vmatprep.subr.bf16.mxu0 0
        %2885 = vmatpush2.bf16.msra.mxu0 0
        %2886 = vmatprep.subr.bf16.mxu0 0
        %2887 = vmatpush2.bf16.msra.mxu0 0
        %2888 = vmatprep.subr.bf16.mxu0 0
        %2889 = vmatpush2.bf16.msra.mxu0 0
        %2890 = vmatprep.mubr.bf16.mxu0 0
        %2891 = vmatmul.mubr.bf16.gmra.mxu0 %v2853
        %v2892 = vpop.f32.mrf.mxu0
        %v2893 = vadd.f32 %v2825, %v2892
        %v2894 = vpop.f32.mrf.mxu0
        %v2895 = vpop.f32.mrf.mxu0
        %v2896 = vadd.f32 %v2830, %v2895
        %v2897 = vpop.f32.mrf.mxu0
        %2898 = vmatprep.mubr.bf16.mxu0 0
        %2899 = vmatmul.mubr.bf16.gmra.mxu0 %v2856
        %v2900 = vpop.f32.mrf.mxu0
        %v2901 = vadd.f32 %v2835, %v2900
        %v2902 = vpop.f32.mrf.mxu0
        %v2903 = vpop.f32.mrf.mxu0
        %v2904 = vadd.f32 %v2840, %v2903
        %v2905 = vpop.f32.mrf.mxu0
        %2906 = vdwg.mxu0
        %v2907 = vpack.c.bf16 %v614, %v613
        %v2908 = vpack.c.bf16 %v616, %v615
        %2910 = vset.pattern.permute.xlu0 0
        %2911 = vperm.xlu0 %2910, %v521
        %v2912 = vpop.permute.xlu0 %2911
        %2915 = vset.pattern.permute.xlu0 0
        %2916 = vperm.xlu0 %2915, %v522
        %v2917 = vpop.permute.xlu0 %2916
        %2920 = vset.pattern.permute.xlu0 0
        %2921 = vperm.xlu0 %2920, %v523
        %v2922 = vpop.permute.xlu0 %2921
        %2925 = vset.pattern.permute.xlu0 0
        %2926 = vperm.xlu0 %2925, %v524
        %v2927 = vpop.permute.xlu0 %2926
        %2930 = vset.pattern.permute.xlu0 0
        %2931 = vperm.xlu0 %2930, %v525
        %v2932 = vpop.permute.xlu0 %2931
        %2935 = vset.pattern.permute.xlu0 0
        %2936 = vperm.xlu0 %2935, %v526
        %v2937 = vpop.permute.xlu0 %2936
        %2940 = vset.pattern.permute.xlu0 0
        %2941 = vperm.xlu0 %2940, %v527
        %v2942 = vpop.permute.xlu0 %2941
        %2945 = vset.pattern.permute.xlu0 0
        %2946 = vperm.xlu0 %2945, %v528
        %v2947 = vpop.permute.xlu0 %2946
        %v2957 = vunpack.c.l.b16 %v2808
        %v2958 = vunpack.c.l.b16 %v2809
        %v2959 = vunpack.c.l.b16 %v2810
        %v2960 = vunpack.c.l.b16 %v2811
        %v2961 = vunpack.c.l.b16 %v2812
        %v2962 = vunpack.c.l.b16 %v2813
        %v2963 = vunpack.c.l.b16 %v2814
        %v2964 = vunpack.c.l.b16 %v2815
        %v2965 = vpack.c.b16 %v2958, %v2957
        %v2966 = vpack.c.b16 %v2960, %v2959
        %v2967 = vpack.c.b16 %v2962, %v2961
        %v2968 = vpack.c.b16 %v2964, %v2963
        %v2970 = vsel %vm765, %v2965, 0
        %v2973 = vsel %vm765, %v2966, 0
        %v2976 = vsel %vm765, %v2967, 0
        %v2979 = vsel %vm765, %v2968, 0
        %2981 = vmatprep.subr.bf16.mxu0 0
        %2982 = vmatpush1.bf16.msra.mxu0 0
        %2983 = vmatprep.subr.bf16.mxu0 0
        %2984 = vmatpush1.bf16.msra.mxu0 0
        %2985 = vmatprep.subr.bf16.mxu0 0
        %2986 = vmatpush1.bf16.msra.mxu0 0
        %2987 = vmatprep.subr.bf16.mxu0 0
        %2988 = vmatpush1.bf16.msra.mxu0 0
        %2989 = vmatprep.subr.bf16.mxu0 0
        %2990 = vmatpush1.bf16.msra.mxu0 0
        %2991 = vmatprep.subr.bf16.mxu0 0
        %2992 = vmatpush1.bf16.msra.mxu0 0
        %2993 = vmatprep.subr.bf16.mxu0 0
        %2994 = vmatpush1.bf16.msra.mxu0 %v2908
        %2995 = vmatprep.subr.bf16.mxu0 0
        %2996 = vmatpush1.bf16.msra.mxu0 %v2907
        %2997 = vmatprep.subr.bf16.mxu0 0
        %2998 = vmatpush2.bf16.msra.mxu0 0
        %2999 = vmatprep.subr.bf16.mxu0 0
        %3000 = vmatpush2.bf16.msra.mxu0 0
        %3001 = vmatprep.subr.bf16.mxu0 0
        %3002 = vmatpush2.bf16.msra.mxu0 0
        %3003 = vmatprep.subr.bf16.mxu0 0
        %3004 = vmatpush2.bf16.msra.mxu0 0
        %3005 = vmatprep.subr.bf16.mxu0 0
        %3006 = vmatpush2.bf16.msra.mxu0 0
        %3007 = vmatprep.subr.bf16.mxu0 0
        %3008 = vmatpush2.bf16.msra.mxu0 0
        %3009 = vmatprep.subr.bf16.mxu0 0
        %3010 = vmatpush2.bf16.msra.mxu0 0
        %3011 = vmatprep.subr.bf16.mxu0 0
        %3012 = vmatpush2.bf16.msra.mxu0 0
        %3013 = vmatprep.mubr.bf16.mxu0 0
        %3014 = vmatmul.mubr.bf16.gmra.mxu0 %v2970
        %v3015 = vpop.f32.mrf.mxu0
        %v3016 = vadd.f32 %v2912, %v3015
        %v3017 = vpop.f32.mrf.mxu0
        %v3018 = vpop.f32.mrf.mxu0
        %v3019 = vadd.f32 %v2917, %v3018
        %v3020 = vpop.f32.mrf.mxu0
        %3021 = vmatprep.mubr.bf16.mxu0 0
        %3022 = vmatmul.mubr.bf16.gmra.mxu0 %v2973
        %v3023 = vpop.f32.mrf.mxu0
        %v3024 = vadd.f32 %v2922, %v3023
        %v3025 = vpop.f32.mrf.mxu0
        %v3026 = vpop.f32.mrf.mxu0
        %v3027 = vadd.f32 %v2927, %v3026
        %v3028 = vpop.f32.mrf.mxu0
        %3029 = vmatprep.mubr.bf16.mxu0 0
        %3030 = vmatmul.mubr.bf16.gmra.mxu0 %v2976
        %v3031 = vpop.f32.mrf.mxu0
        %v3032 = vadd.f32 %v2932, %v3031
        %v3033 = vpop.f32.mrf.mxu0
        %v3034 = vpop.f32.mrf.mxu0
        %v3035 = vadd.f32 %v2937, %v3034
        %v3036 = vpop.f32.mrf.mxu0
        %3037 = vmatprep.mubr.bf16.mxu0 0
        %3038 = vmatmul.mubr.bf16.gmra.mxu0 %v2979
        %v3039 = vpop.f32.mrf.mxu0
        %v3040 = vadd.f32 %v2942, %v3039
        %v3041 = vpop.f32.mrf.mxu0
        %v3042 = vpop.f32.mrf.mxu0
        %v3043 = vadd.f32 %v2947, %v3042
        %v3044 = vpop.f32.mrf.mxu0
        %3045 = vdwg.mxu0
        %v3046 = vpack.c.bf16 %v2893, %v2893
        %v3047 = vpack.c.bf16 %v2896, %v2896
        %v3048 = vpack.c.bf16 %v2901, %v2901
        %v3049 = vpack.c.bf16 %v2904, %v2904
        %v3050 = vpack.c.bf16 %v3016, %v3016
        %v3051 = vpack.c.bf16 %v3019, %v3019
        %v3052 = vpack.c.bf16 %v3024, %v3024
        %v3053 = vpack.c.bf16 %v3027, %v3027
        %v3054 = vpack.c.bf16 %v3032, %v3032
        %v3055 = vpack.c.bf16 %v3035, %v3035
        %v3056 = vpack.c.bf16 %v3040, %v3040
        %v3057 = vpack.c.bf16 %v3043, %v3043
        %3058 = vxpose.xlu0.c.b16.start [1/8] %v3050, 128
        %3059 = vxpose.xlu0.c.b16.cont [2/8] 0, 128
        %3060 = vxpose.xlu0.c.b16.cont [3/8] 0, 128
        %3061 = vxpose.xlu0.c.b16.cont [4/8] 0, 128
        %3062 = vxpose.xlu0.c.b16.cont [5/8] 0, 128
        %3063 = vxpose.xlu0.c.b16.cont [6/8] 0, 128
        %3064 = vxpose.xlu0.c.b16.cont [7/8] 0, 128
        %3065 = vxpose.xlu0.c.b16.end [8/8] 0, 128
        %v3066 = vpop.trf.xlu0
        %v3067 = vpop.trf.xlu0
        %v3068 = vpop.trf.xlu0
        %v3069 = vpop.trf.xlu0
        %v3070 = vpop.trf.xlu0
        %v3071 = vpop.trf.xlu0
        %v3072 = vpop.trf.xlu0
        %v3073 = vpop.trf.xlu0
        %v3075 = vsel %vm1345, %v3066, 0
        %v3078 = vsel %vm1345, %v3067, 0
        %v3081 = vsel %vm1345, %v3068, 0
        %v3084 = vsel %vm1345, %v3069, 0
        %v3087 = vsel %vm1345, %v3070, 0
        %v3090 = vsel %vm1345, %v3071, 0
        %v3093 = vsel %vm1345, %v3072, 0
        %v3096 = vsel %vm1345, %v3073, 0
        %v3099 = vsel %vm1370, %v3046, 0
        %3101 = vmatprep.subr.bf16.mxu0 0
        %3102 = vmatpush1.bf16.msra.mxu0 0
        %3103 = vmatprep.subr.bf16.mxu0 0
        %3104 = vmatpush1.bf16.msra.mxu0 0
        %3105 = vmatprep.subr.bf16.mxu0 0
        %3106 = vmatpush1.bf16.msra.mxu0 0
        %3107 = vmatprep.subr.bf16.mxu0 0
        %3108 = vmatpush1.bf16.msra.mxu0 0
        %3109 = vmatprep.subr.bf16.mxu0 0
        %3110 = vmatpush1.bf16.msra.mxu0 0
        %3111 = vmatprep.subr.bf16.mxu0 0
        %3112 = vmatpush1.bf16.msra.mxu0 0
        %3113 = vmatprep.subr.bf16.mxu0 0
        %3114 = vmatpush1.bf16.msra.mxu0 0
        %3115 = vmatprep.subr.bf16.mxu0 0
        %3116 = vmatpush1.bf16.msra.mxu0 %v3099
        %3117 = vmatprep.subr.bf16.mxu0 0
        %3118 = vmatpush2.bf16.msra.mxu0 0
        %3119 = vmatprep.subr.bf16.mxu0 0
        %3120 = vmatpush2.bf16.msra.mxu0 0
        %3121 = vmatprep.subr.bf16.mxu0 0
        %3122 = vmatpush2.bf16.msra.mxu0 0
        %3123 = vmatprep.subr.bf16.mxu0 0
        %3124 = vmatpush2.bf16.msra.mxu0 0
        %3125 = vmatprep.subr.bf16.mxu0 0
        %3126 = vmatpush2.bf16.msra.mxu0 0
        %3127 = vmatprep.subr.bf16.mxu0 0
        %3128 = vmatpush2.bf16.msra.mxu0 0
        %3129 = vmatprep.subr.bf16.mxu0 0
        %3130 = vmatpush2.bf16.msra.mxu0 0
        %3131 = vmatprep.subr.bf16.mxu0 0
        %3132 = vmatpush2.bf16.msra.mxu0 0
        %3133 = vmatprep.mubr.bf16.mxu0 0
        %3134 = vmatmul.mubr.bf16.gmra.mxu0 %v3075
        %v3135 = vpop.f32.mrf.mxu0
        %v3136 = vadd.f32 0.0, %v3135
        %v3137 = vpop.f32.mrf.mxu0
        %v3138 = vpop.f32.mrf.mxu0
        %v3139 = vadd.f32 0.0, %v3138
        %v3140 = vpop.f32.mrf.mxu0
        %3141 = vmatprep.mubr.bf16.mxu0 0
        %3142 = vmatmul.mubr.bf16.gmra.mxu0 %v3078
        %v3143 = vpop.f32.mrf.mxu0
        %v3144 = vadd.f32 0.0, %v3143
        %v3145 = vpop.f32.mrf.mxu0
        %v3146 = vpop.f32.mrf.mxu0
        %v3147 = vadd.f32 0.0, %v3146
        %v3148 = vpop.f32.mrf.mxu0
        %3149 = vmatprep.mubr.bf16.mxu0 0
        %3150 = vmatmul.mubr.bf16.gmra.mxu0 %v3081
        %v3151 = vpop.f32.mrf.mxu0
        %v3152 = vadd.f32 0.0, %v3151
        %v3153 = vpop.f32.mrf.mxu0
        %v3154 = vpop.f32.mrf.mxu0
        %v3155 = vadd.f32 0.0, %v3154
        %v3156 = vpop.f32.mrf.mxu0
        %3157 = vmatprep.mubr.bf16.mxu0 0
        %3158 = vmatmul.mubr.bf16.gmra.mxu0 %v3084
        %v3159 = vpop.f32.mrf.mxu0
        %v3160 = vadd.f32 0.0, %v3159
        %v3161 = vpop.f32.mrf.mxu0
        %v3162 = vpop.f32.mrf.mxu0
        %v3163 = vadd.f32 0.0, %v3162
        %v3164 = vpop.f32.mrf.mxu0
        %3165 = vmatprep.mubr.bf16.mxu0 0
        %3166 = vmatmul.mubr.bf16.gmra.mxu0 %v3087
        %v3167 = vpop.f32.mrf.mxu0
        %v3168 = vadd.f32 0.0, %v3167
        %v3169 = vpop.f32.mrf.mxu0
        %v3170 = vpop.f32.mrf.mxu0
        %v3171 = vadd.f32 0.0, %v3170
        %v3172 = vpop.f32.mrf.mxu0
        %3173 = vmatprep.mubr.bf16.mxu0 0
        %3174 = vmatmul.mubr.bf16.gmra.mxu0 %v3090
        %v3175 = vpop.f32.mrf.mxu0
        %v3176 = vadd.f32 0.0, %v3175
        %v3177 = vpop.f32.mrf.mxu0
        %v3178 = vpop.f32.mrf.mxu0
        %v3179 = vadd.f32 0.0, %v3178
        %v3180 = vpop.f32.mrf.mxu0
        %3181 = vmatprep.mubr.bf16.mxu0 0
        %3182 = vmatmul.mubr.bf16.gmra.mxu0 %v3093
        %v3183 = vpop.f32.mrf.mxu0
        %v3184 = vadd.f32 0.0, %v3183
        %v3185 = vpop.f32.mrf.mxu0
        %v3186 = vpop.f32.mrf.mxu0
        %v3187 = vadd.f32 0.0, %v3186
        %v3188 = vpop.f32.mrf.mxu0
        %3189 = vmatprep.mubr.bf16.mxu0 0
        %3190 = vmatmul.mubr.bf16.gmra.mxu0 %v3096
        %v3191 = vpop.f32.mrf.mxu0
        %v3192 = vadd.f32 0.0, %v3191
        %v3193 = vpop.f32.mrf.mxu0
        %v3194 = vpop.f32.mrf.mxu0
        %v3195 = vadd.f32 0.0, %v3194
        %v3196 = vpop.f32.mrf.mxu0
        %3197 = vdwg.mxu0
        %3198 = vxpose.xlu0.c.b16.start [1/8] %v3051, 128
        %3199 = vxpose.xlu0.c.b16.cont [2/8] 0, 128
        %3200 = vxpose.xlu0.c.b16.cont [3/8] 0, 128
        %3201 = vxpose.xlu0.c.b16.cont [4/8] 0, 128
        %3202 = vxpose.xlu0.c.b16.cont [5/8] 0, 128
        %3203 = vxpose.xlu0.c.b16.cont [6/8] 0, 128
        %3204 = vxpose.xlu0.c.b16.cont [7/8] 0, 128
        %3205 = vxpose.xlu0.c.b16.end [8/8] 0, 128
        %v3206 = vpop.trf.xlu0
        %v3207 = vpop.trf.xlu0
        %v3208 = vpop.trf.xlu0
        %v3209 = vpop.trf.xlu0
        %v3210 = vpop.trf.xlu0
        %v3211 = vpop.trf.xlu0
        %v3212 = vpop.trf.xlu0
        %v3213 = vpop.trf.xlu0
        %v3215 = vsel %vm1345, %v3206, 0
        %v3218 = vsel %vm1345, %v3207, 0
        %v3221 = vsel %vm1345, %v3208, 0
        %v3224 = vsel %vm1345, %v3209, 0
        %v3227 = vsel %vm1345, %v3210, 0
        %v3230 = vsel %vm1345, %v3211, 0
        %v3233 = vsel %vm1345, %v3212, 0
        %v3236 = vsel %vm1345, %v3213, 0
        %v3239 = vsel %vm1370, %v3047, 0
        %3241 = vmatprep.subr.bf16.mxu0 0
        %3242 = vmatpush1.bf16.msra.mxu0 0
        %3243 = vmatprep.subr.bf16.mxu0 0
        %3244 = vmatpush1.bf16.msra.mxu0 0
        %3245 = vmatprep.subr.bf16.mxu0 0
        %3246 = vmatpush1.bf16.msra.mxu0 0
        %3247 = vmatprep.subr.bf16.mxu0 0
        %3248 = vmatpush1.bf16.msra.mxu0 0
        %3249 = vmatprep.subr.bf16.mxu0 0
        %3250 = vmatpush1.bf16.msra.mxu0 0
        %3251 = vmatprep.subr.bf16.mxu0 0
        %3252 = vmatpush1.bf16.msra.mxu0 0
        %3253 = vmatprep.subr.bf16.mxu0 0
        %3254 = vmatpush1.bf16.msra.mxu0 0
        %3255 = vmatprep.subr.bf16.mxu0 0
        %3256 = vmatpush1.bf16.msra.mxu0 %v3239
        %3257 = vmatprep.subr.bf16.mxu0 0
        %3258 = vmatpush2.bf16.msra.mxu0 0
        %3259 = vmatprep.subr.bf16.mxu0 0
        %3260 = vmatpush2.bf16.msra.mxu0 0
        %3261 = vmatprep.subr.bf16.mxu0 0
        %3262 = vmatpush2.bf16.msra.mxu0 0
        %3263 = vmatprep.subr.bf16.mxu0 0
        %3264 = vmatpush2.bf16.msra.mxu0 0
        %3265 = vmatprep.subr.bf16.mxu0 0
        %3266 = vmatpush2.bf16.msra.mxu0 0
        %3267 = vmatprep.subr.bf16.mxu0 0
        %3268 = vmatpush2.bf16.msra.mxu0 0
        %3269 = vmatprep.subr.bf16.mxu0 0
        %3270 = vmatpush2.bf16.msra.mxu0 0
        %3271 = vmatprep.subr.bf16.mxu0 0
        %3272 = vmatpush2.bf16.msra.mxu0 0
        %3273 = vmatprep.mubr.bf16.mxu0 0
        %3274 = vmatmul.mubr.bf16.gmra.mxu0 %v3215
        %v3275 = vpop.f32.mrf.mxu0
        %v3276 = vadd.f32 0.0, %v3275
        %v3277 = vpop.f32.mrf.mxu0
        %v3278 = vpop.f32.mrf.mxu0
        %v3279 = vadd.f32 0.0, %v3278
        %v3280 = vpop.f32.mrf.mxu0
        %3281 = vmatprep.mubr.bf16.mxu0 0
        %3282 = vmatmul.mubr.bf16.gmra.mxu0 %v3218
        %v3283 = vpop.f32.mrf.mxu0
        %v3284 = vadd.f32 0.0, %v3283
        %v3285 = vpop.f32.mrf.mxu0
        %v3286 = vpop.f32.mrf.mxu0
        %v3287 = vadd.f32 0.0, %v3286
        %v3288 = vpop.f32.mrf.mxu0
        %3289 = vmatprep.mubr.bf16.mxu0 0
        %3290 = vmatmul.mubr.bf16.gmra.mxu0 %v3221
        %v3291 = vpop.f32.mrf.mxu0
        %v3292 = vadd.f32 0.0, %v3291
        %v3293 = vpop.f32.mrf.mxu0
        %v3294 = vpop.f32.mrf.mxu0
        %v3295 = vadd.f32 0.0, %v3294
        %v3296 = vpop.f32.mrf.mxu0
        %3297 = vmatprep.mubr.bf16.mxu0 0
        %3298 = vmatmul.mubr.bf16.gmra.mxu0 %v3224
        %v3299 = vpop.f32.mrf.mxu0
        %v3300 = vadd.f32 0.0, %v3299
        %v3301 = vpop.f32.mrf.mxu0
        %v3302 = vpop.f32.mrf.mxu0
        %v3303 = vadd.f32 0.0, %v3302
        %v3304 = vpop.f32.mrf.mxu0
        %3305 = vmatprep.mubr.bf16.mxu0 0
        %3306 = vmatmul.mubr.bf16.gmra.mxu0 %v3227
        %v3307 = vpop.f32.mrf.mxu0
        %v3308 = vadd.f32 0.0, %v3307
        %v3309 = vpop.f32.mrf.mxu0
        %v3310 = vpop.f32.mrf.mxu0
        %v3311 = vadd.f32 0.0, %v3310
        %v3312 = vpop.f32.mrf.mxu0
        %3313 = vmatprep.mubr.bf16.mxu0 0
        %3314 = vmatmul.mubr.bf16.gmra.mxu0 %v3230
        %v3315 = vpop.f32.mrf.mxu0
        %v3316 = vadd.f32 0.0, %v3315
        %v3317 = vpop.f32.mrf.mxu0
        %v3318 = vpop.f32.mrf.mxu0
        %v3319 = vadd.f32 0.0, %v3318
        %v3320 = vpop.f32.mrf.mxu0
        %3321 = vmatprep.mubr.bf16.mxu0 0
        %3322 = vmatmul.mubr.bf16.gmra.mxu0 %v3233
        %v3323 = vpop.f32.mrf.mxu0
        %v3324 = vadd.f32 0.0, %v3323
        %v3325 = vpop.f32.mrf.mxu0
        %v3326 = vpop.f32.mrf.mxu0
        %v3327 = vadd.f32 0.0, %v3326
        %v3328 = vpop.f32.mrf.mxu0
        %3329 = vmatprep.mubr.bf16.mxu0 0
        %3330 = vmatmul.mubr.bf16.gmra.mxu0 %v3236
        %v3331 = vpop.f32.mrf.mxu0
        %v3332 = vadd.f32 0.0, %v3331
        %v3333 = vpop.f32.mrf.mxu0
        %v3334 = vpop.f32.mrf.mxu0
        %v3335 = vadd.f32 0.0, %v3334
        %v3336 = vpop.f32.mrf.mxu0
        %3337 = vdwg.mxu0
        %3338 = vxpose.xlu0.c.b16.start [1/8] %v3052, 128
        %3339 = vxpose.xlu0.c.b16.cont [2/8] 0, 128
        %3340 = vxpose.xlu0.c.b16.cont [3/8] 0, 128
        %3341 = vxpose.xlu0.c.b16.cont [4/8] 0, 128
        %3342 = vxpose.xlu0.c.b16.cont [5/8] 0, 128
        %3343 = vxpose.xlu0.c.b16.cont [6/8] 0, 128
        %3344 = vxpose.xlu0.c.b16.cont [7/8] 0, 128
        %3345 = vxpose.xlu0.c.b16.end [8/8] 0, 128
        %v3346 = vpop.trf.xlu0
        %v3347 = vpop.trf.xlu0
        %v3348 = vpop.trf.xlu0
        %v3349 = vpop.trf.xlu0
        %v3350 = vpop.trf.xlu0
        %v3351 = vpop.trf.xlu0
        %v3352 = vpop.trf.xlu0
        %v3353 = vpop.trf.xlu0
        %v3355 = vsel %vm1345, %v3346, 0
        %v3358 = vsel %vm1345, %v3347, 0
        %v3361 = vsel %vm1345, %v3348, 0
        %v3364 = vsel %vm1345, %v3349, 0
        %v3367 = vsel %vm1345, %v3350, 0
        %v3370 = vsel %vm1345, %v3351, 0
        %v3373 = vsel %vm1345, %v3352, 0
        %v3376 = vsel %vm1345, %v3353, 0
        %v3379 = vsel %vm1370, %v3048, 0
        %3381 = vmatprep.subr.bf16.mxu0 0
        %3382 = vmatpush1.bf16.msra.mxu0 0
        %3383 = vmatprep.subr.bf16.mxu0 0
        %3384 = vmatpush1.bf16.msra.mxu0 0
        %3385 = vmatprep.subr.bf16.mxu0 0
        %3386 = vmatpush1.bf16.msra.mxu0 0
        %3387 = vmatprep.subr.bf16.mxu0 0
        %3388 = vmatpush1.bf16.msra.mxu0 0
        %3389 = vmatprep.subr.bf16.mxu0 0
        %3390 = vmatpush1.bf16.msra.mxu0 0
        %3391 = vmatprep.subr.bf16.mxu0 0
        %3392 = vmatpush1.bf16.msra.mxu0 0
        %3393 = vmatprep.subr.bf16.mxu0 0
        %3394 = vmatpush1.bf16.msra.mxu0 0
        %3395 = vmatprep.subr.bf16.mxu0 0
        %3396 = vmatpush1.bf16.msra.mxu0 %v3379
        %3397 = vmatprep.subr.bf16.mxu0 0
        %3398 = vmatpush2.bf16.msra.mxu0 0
        %3399 = vmatprep.subr.bf16.mxu0 0
        %3400 = vmatpush2.bf16.msra.mxu0 0
        %3401 = vmatprep.subr.bf16.mxu0 0
        %3402 = vmatpush2.bf16.msra.mxu0 0
        %3403 = vmatprep.subr.bf16.mxu0 0
        %3404 = vmatpush2.bf16.msra.mxu0 0
        %3405 = vmatprep.subr.bf16.mxu0 0
        %3406 = vmatpush2.bf16.msra.mxu0 0
        %3407 = vmatprep.subr.bf16.mxu0 0
        %3408 = vmatpush2.bf16.msra.mxu0 0
        %3409 = vmatprep.subr.bf16.mxu0 0
        %3410 = vmatpush2.bf16.msra.mxu0 0
        %3411 = vmatprep.subr.bf16.mxu0 0
        %3412 = vmatpush2.bf16.msra.mxu0 0
        %3413 = vmatprep.mubr.bf16.mxu0 0
        %3414 = vmatmul.mubr.bf16.gmra.mxu0 %v3355
        %v3415 = vpop.f32.mrf.mxu0
        %v3416 = vadd.f32 0.0, %v3415
        %v3417 = vpop.f32.mrf.mxu0
        %v3418 = vpop.f32.mrf.mxu0
        %v3419 = vadd.f32 0.0, %v3418
        %v3420 = vpop.f32.mrf.mxu0
        %3421 = vmatprep.mubr.bf16.mxu0 0
        %3422 = vmatmul.mubr.bf16.gmra.mxu0 %v3358
        %v3423 = vpop.f32.mrf.mxu0
        %v3424 = vadd.f32 0.0, %v3423
        %v3425 = vpop.f32.mrf.mxu0
        %v3426 = vpop.f32.mrf.mxu0
        %v3427 = vadd.f32 0.0, %v3426
        %v3428 = vpop.f32.mrf.mxu0
        %3429 = vmatprep.mubr.bf16.mxu0 0
        %3430 = vmatmul.mubr.bf16.gmra.mxu0 %v3361
        %v3431 = vpop.f32.mrf.mxu0
        %v3432 = vadd.f32 0.0, %v3431
        %v3433 = vpop.f32.mrf.mxu0
        %v3434 = vpop.f32.mrf.mxu0
        %v3435 = vadd.f32 0.0, %v3434
        %v3436 = vpop.f32.mrf.mxu0
        %3437 = vmatprep.mubr.bf16.mxu0 0
        %3438 = vmatmul.mubr.bf16.gmra.mxu0 %v3364
        %v3439 = vpop.f32.mrf.mxu0
        %v3440 = vadd.f32 0.0, %v3439
        %v3441 = vpop.f32.mrf.mxu0
        %v3442 = vpop.f32.mrf.mxu0
        %v3443 = vadd.f32 0.0, %v3442
        %v3444 = vpop.f32.mrf.mxu0
        %3445 = vmatprep.mubr.bf16.mxu0 0
        %3446 = vmatmul.mubr.bf16.gmra.mxu0 %v3367
        %v3447 = vpop.f32.mrf.mxu0
        %v3448 = vadd.f32 0.0, %v3447
        %v3449 = vpop.f32.mrf.mxu0
        %v3450 = vpop.f32.mrf.mxu0
        %v3451 = vadd.f32 0.0, %v3450
        %v3452 = vpop.f32.mrf.mxu0
        %3453 = vmatprep.mubr.bf16.mxu0 0
        %3454 = vmatmul.mubr.bf16.gmra.mxu0 %v3370
        %v3455 = vpop.f32.mrf.mxu0
        %v3456 = vadd.f32 0.0, %v3455
        %v3457 = vpop.f32.mrf.mxu0
        %v3458 = vpop.f32.mrf.mxu0
        %v3459 = vadd.f32 0.0, %v3458
        %v3460 = vpop.f32.mrf.mxu0
        %3461 = vmatprep.mubr.bf16.mxu0 0
        %3462 = vmatmul.mubr.bf16.gmra.mxu0 %v3373
        %v3463 = vpop.f32.mrf.mxu0
        %v3464 = vadd.f32 0.0, %v3463
        %v3465 = vpop.f32.mrf.mxu0
        %v3466 = vpop.f32.mrf.mxu0
        %v3467 = vadd.f32 0.0, %v3466
        %v3468 = vpop.f32.mrf.mxu0
        %3469 = vmatprep.mubr.bf16.mxu0 0
        %3470 = vmatmul.mubr.bf16.gmra.mxu0 %v3376
        %v3471 = vpop.f32.mrf.mxu0
        %v3472 = vadd.f32 0.0, %v3471
        %v3473 = vpop.f32.mrf.mxu0
        %v3474 = vpop.f32.mrf.mxu0
        %v3475 = vadd.f32 0.0, %v3474
        %v3476 = vpop.f32.mrf.mxu0
        %3477 = vdwg.mxu0
        %3478 = vxpose.xlu0.c.b16.start [1/8] %v3053, 128
        %3479 = vxpose.xlu0.c.b16.cont [2/8] 0, 128
        %3480 = vxpose.xlu0.c.b16.cont [3/8] 0, 128
        %3481 = vxpose.xlu0.c.b16.cont [4/8] 0, 128
        %3482 = vxpose.xlu0.c.b16.cont [5/8] 0, 128
        %3483 = vxpose.xlu0.c.b16.cont [6/8] 0, 128
        %3484 = vxpose.xlu0.c.b16.cont [7/8] 0, 128
        %3485 = vxpose.xlu0.c.b16.end [8/8] 0, 128
        %v3486 = vpop.trf.xlu0
        %v3487 = vpop.trf.xlu0
        %v3488 = vpop.trf.xlu0
        %v3489 = vpop.trf.xlu0
        %v3490 = vpop.trf.xlu0
        %v3491 = vpop.trf.xlu0
        %v3492 = vpop.trf.xlu0
        %v3493 = vpop.trf.xlu0
        %v3495 = vsel %vm1345, %v3486, 0
        %v3498 = vsel %vm1345, %v3487, 0
        %v3501 = vsel %vm1345, %v3488, 0
        %v3504 = vsel %vm1345, %v3489, 0
        %v3507 = vsel %vm1345, %v3490, 0
        %v3510 = vsel %vm1345, %v3491, 0
        %v3513 = vsel %vm1345, %v3492, 0
        %v3516 = vsel %vm1345, %v3493, 0
        %v3519 = vsel %vm1370, %v3049, 0
        %3521 = vmatprep.subr.bf16.mxu0 0
        %3522 = vmatpush1.bf16.msra.mxu0 0
        %3523 = vmatprep.subr.bf16.mxu0 0
        %3524 = vmatpush1.bf16.msra.mxu0 0
        %3525 = vmatprep.subr.bf16.mxu0 0
        %3526 = vmatpush1.bf16.msra.mxu0 0
        %3527 = vmatprep.subr.bf16.mxu0 0
        %3528 = vmatpush1.bf16.msra.mxu0 0
        %3529 = vmatprep.subr.bf16.mxu0 0
        %3530 = vmatpush1.bf16.msra.mxu0 0
        %3531 = vmatprep.subr.bf16.mxu0 0
        %3532 = vmatpush1.bf16.msra.mxu0 0
        %3533 = vmatprep.subr.bf16.mxu0 0
        %3534 = vmatpush1.bf16.msra.mxu0 0
        %3535 = vmatprep.subr.bf16.mxu0 0
        %3536 = vmatpush1.bf16.msra.mxu0 %v3519
        %3537 = vmatprep.subr.bf16.mxu0 0
        %3538 = vmatpush2.bf16.msra.mxu0 0
        %3539 = vmatprep.subr.bf16.mxu0 0
        %3540 = vmatpush2.bf16.msra.mxu0 0
        %3541 = vmatprep.subr.bf16.mxu0 0
        %3542 = vmatpush2.bf16.msra.mxu0 0
        %3543 = vmatprep.subr.bf16.mxu0 0
        %3544 = vmatpush2.bf16.msra.mxu0 0
        %3545 = vmatprep.subr.bf16.mxu0 0
        %3546 = vmatpush2.bf16.msra.mxu0 0
        %3547 = vmatprep.subr.bf16.mxu0 0
        %3548 = vmatpush2.bf16.msra.mxu0 0
        %3549 = vmatprep.subr.bf16.mxu0 0
        %3550 = vmatpush2.bf16.msra.mxu0 0
        %3551 = vmatprep.subr.bf16.mxu0 0
        %3552 = vmatpush2.bf16.msra.mxu0 0
        %3553 = vmatprep.mubr.bf16.mxu0 0
        %3554 = vmatmul.mubr.bf16.gmra.mxu0 %v3495
        %v3555 = vpop.f32.mrf.mxu0
        %v3556 = vadd.f32 0.0, %v3555
        %v3557 = vpop.f32.mrf.mxu0
        %v3558 = vpop.f32.mrf.mxu0
        %v3559 = vadd.f32 0.0, %v3558
        %v3560 = vpop.f32.mrf.mxu0
        %3561 = vmatprep.mubr.bf16.mxu0 0
        %3562 = vmatmul.mubr.bf16.gmra.mxu0 %v3498
        %v3563 = vpop.f32.mrf.mxu0
        %v3564 = vadd.f32 0.0, %v3563
        %v3565 = vpop.f32.mrf.mxu0
        %v3566 = vpop.f32.mrf.mxu0
        %v3567 = vadd.f32 0.0, %v3566
        %v3568 = vpop.f32.mrf.mxu0
        %3569 = vmatprep.mubr.bf16.mxu0 0
        %3570 = vmatmul.mubr.bf16.gmra.mxu0 %v3501
        %v3571 = vpop.f32.mrf.mxu0
        %v3572 = vadd.f32 0.0, %v3571
        %v3573 = vpop.f32.mrf.mxu0
        %v3574 = vpop.f32.mrf.mxu0
        %v3575 = vadd.f32 0.0, %v3574
        %v3576 = vpop.f32.mrf.mxu0
        %3577 = vmatprep.mubr.bf16.mxu0 0
        %3578 = vmatmul.mubr.bf16.gmra.mxu0 %v3504
        %v3579 = vpop.f32.mrf.mxu0
        %v3580 = vadd.f32 0.0, %v3579
        %v3581 = vpop.f32.mrf.mxu0
        %v3582 = vpop.f32.mrf.mxu0
        %v3583 = vadd.f32 0.0, %v3582
        %v3584 = vpop.f32.mrf.mxu0
        %3585 = vmatprep.mubr.bf16.mxu0 0
        %3586 = vmatmul.mubr.bf16.gmra.mxu0 %v3507
        %v3587 = vpop.f32.mrf.mxu0
        %v3588 = vadd.f32 0.0, %v3587
        %v3589 = vpop.f32.mrf.mxu0
        %v3590 = vpop.f32.mrf.mxu0
        %v3591 = vadd.f32 0.0, %v3590
        %v3592 = vpop.f32.mrf.mxu0
        %3593 = vmatprep.mubr.bf16.mxu0 0
        %3594 = vmatmul.mubr.bf16.gmra.mxu0 %v3510
        %v3595 = vpop.f32.mrf.mxu0
        %v3596 = vadd.f32 0.0, %v3595
        %v3597 = vpop.f32.mrf.mxu0
        %v3598 = vpop.f32.mrf.mxu0
        %v3599 = vadd.f32 0.0, %v3598
        %v3600 = vpop.f32.mrf.mxu0
        %3601 = vmatprep.mubr.bf16.mxu0 0
        %3602 = vmatmul.mubr.bf16.gmra.mxu0 %v3513
        %v3603 = vpop.f32.mrf.mxu0
        %v3604 = vadd.f32 0.0, %v3603
        %v3605 = vpop.f32.mrf.mxu0
        %v3606 = vpop.f32.mrf.mxu0
        %v3607 = vadd.f32 0.0, %v3606
        %v3608 = vpop.f32.mrf.mxu0
        %3609 = vmatprep.mubr.bf16.mxu0 0
        %3610 = vmatmul.mubr.bf16.gmra.mxu0 %v3516
        %v3611 = vpop.f32.mrf.mxu0
        %v3612 = vadd.f32 0.0, %v3611
        %v3613 = vpop.f32.mrf.mxu0
        %v3614 = vpop.f32.mrf.mxu0
        %v3615 = vadd.f32 0.0, %v3614
        %v3616 = vpop.f32.mrf.mxu0
        %3617 = vdwg.mxu0
        %v3618 = vsel %vm593, 1, 0
        %v3619 = vsel %vm594, 1, 0
        %v3620 = vsel %vm595, 1, 0
        %v3621 = vsel %vm596, 1, 0
        %v3622 = vsel %vm597, 1, 0
        %v3623 = vsel %vm598, 1, 0
        %v3624 = vsel %vm599, 1, 0
        %v3625 = vsel %vm600, 1, 0
        %v3626 = vsel %vm601, 1, 0
        %v3627 = vsel %vm602, 1, 0
        %v3628 = vsel %vm603, 1, 0
        %v3629 = vsel %vm604, 1, 0
        %v3630 = vsel %vm605, 1, 0
        %v3631 = vsel %vm606, 1, 0
        %v3632 = vsel %vm607, 1, 0
        %v3633 = vsel %vm608, 1, 0
        %vm3634 = vcmp.eq.s32.totalorder %v3618, 1
        %vm3635 = vcmp.eq.s32.totalorder %v3619, 1
        %vm3636 = vcmp.eq.s32.totalorder %v3620, 1
        %vm3637 = vcmp.eq.s32.totalorder %v3621, 1
        %vm3638 = vcmp.eq.s32.totalorder %v3622, 1
        %vm3639 = vcmp.eq.s32.totalorder %v3623, 1
        %vm3640 = vcmp.eq.s32.totalorder %v3624, 1
        %vm3641 = vcmp.eq.s32.totalorder %v3625, 1
        %vm3642 = vcmp.eq.s32.totalorder %v3626, 1
        %vm3643 = vcmp.eq.s32.totalorder %v3627, 1
        %vm3644 = vcmp.eq.s32.totalorder %v3628, 1
        %vm3645 = vcmp.eq.s32.totalorder %v3629, 1
        %vm3646 = vcmp.eq.s32.totalorder %v3630, 1
        %vm3647 = vcmp.eq.s32.totalorder %v3631, 1
        %vm3648 = vcmp.eq.s32.totalorder %v3632, 1
        %vm3649 = vcmp.eq.s32.totalorder %v3633, 1
        %v3650 = vsel %vm3634, %v3136, -10000.0
        %v3651 = vsel %vm3635, %v3139, -10000.0
        %v3652 = vsel %vm3636, %v3144, -10000.0
        %v3653 = vsel %vm3637, %v3147, -10000.0
        %v3654 = vsel %vm3638, %v3152, -10000.0
        %v3655 = vsel %vm3639, %v3155, -10000.0
        %v3656 = vsel %vm3640, %v3160, -10000.0
        %v3657 = vsel %vm3641, %v3163, -10000.0
        %v3658 = vsel %vm3642, %v3168, -10000.0
        %v3659 = vsel %vm3643, %v3171, -10000.0
        %v3660 = vsel %vm3644, %v3176, -10000.0
        %v3661 = vsel %vm3645, %v3179, -10000.0
        %v3662 = vsel %vm3646, %v3184, -10000.0
        %v3663 = vsel %vm3647, %v3187, -10000.0
        %v3664 = vsel %vm3648, %v3192, -10000.0
        %v3665 = vsel %vm3649, %v3195, -10000.0
        %v3666 = vsel %vm3634, %v3276, -10000.0
        %v3667 = vsel %vm3635, %v3279, -10000.0
        %v3668 = vsel %vm3636, %v3284, -10000.0
        %v3669 = vsel %vm3637, %v3287, -10000.0
        %v3670 = vsel %vm3638, %v3292, -10000.0
        %v3671 = vsel %vm3639, %v3295, -10000.0
        %v3672 = vsel %vm3640, %v3300, -10000.0
        %v3673 = vsel %vm3641, %v3303, -10000.0
        %v3674 = vsel %vm3642, %v3308, -10000.0
        %v3675 = vsel %vm3643, %v3311, -10000.0
        %v3676 = vsel %vm3644, %v3316, -10000.0
        %v3677 = vsel %vm3645, %v3319, -10000.0
        %v3678 = vsel %vm3646, %v3324, -10000.0
        %v3679 = vsel %vm3647, %v3327, -10000.0
        %v3680 = vsel %vm3648, %v3332, -10000.0
        %v3681 = vsel %vm3649, %v3335, -10000.0
        %v3682 = vsel %vm3634, %v3416, -10000.0
        %v3683 = vsel %vm3635, %v3419, -10000.0
        %v3684 = vsel %vm3636, %v3424, -10000.0
        %v3685 = vsel %vm3637, %v3427, -10000.0
        %v3686 = vsel %vm3638, %v3432, -10000.0
        %v3687 = vsel %vm3639, %v3435, -10000.0
        %v3688 = vsel %vm3640, %v3440, -10000.0
        %v3689 = vsel %vm3641, %v3443, -10000.0
        %v3690 = vsel %vm3642, %v3448, -10000.0
        %v3691 = vsel %vm3643, %v3451, -10000.0
        %v3692 = vsel %vm3644, %v3456, -10000.0
        %v3693 = vsel %vm3645, %v3459, -10000.0
        %v3694 = vsel %vm3646, %v3464, -10000.0
        %v3695 = vsel %vm3647, %v3467, -10000.0
        %v3696 = vsel %vm3648, %v3472, -10000.0
        %v3697 = vsel %vm3649, %v3475, -10000.0
        %v3698 = vsel %vm3634, %v3556, -10000.0
        %v3699 = vsel %vm3635, %v3559, -10000.0
        %v3700 = vsel %vm3636, %v3564, -10000.0
        %v3701 = vsel %vm3637, %v3567, -10000.0
        %v3702 = vsel %vm3638, %v3572, -10000.0
        %v3703 = vsel %vm3639, %v3575, -10000.0
        %v3704 = vsel %vm3640, %v3580, -10000.0
        %v3705 = vsel %vm3641, %v3583, -10000.0
        %v3706 = vsel %vm3642, %v3588, -10000.0
        %v3707 = vsel %vm3643, %v3591, -10000.0
        %v3708 = vsel %vm3644, %v3596, -10000.0
        %v3709 = vsel %vm3645, %v3599, -10000.0
        %v3710 = vsel %vm3646, %v3604, -10000.0
        %v3711 = vsel %vm3647, %v3607, -10000.0
        %v3712 = vsel %vm3648, %v3612, -10000.0
        %v3713 = vsel %vm3649, %v3615, -10000.0
        %v3714 = vmax.f32 %v3650, %v3651
        %v3715 = vmax.f32 %v3714, %v3652
        %v3716 = vmax.f32 %v3715, %v3653
        %v3717 = vmax.f32 %v3716, %v3654
        %v3718 = vmax.f32 %v3717, %v3655
        %v3719 = vmax.f32 %v3718, %v3656
        %v3720 = vmax.f32 %v3719, %v3657
        %v3721 = vmax.f32 %v3720, %v3658
        %v3722 = vmax.f32 %v3721, %v3659
        %v3723 = vmax.f32 %v3722, %v3660
        %v3724 = vmax.f32 %v3723, %v3661
        %v3725 = vmax.f32 %v3724, %v3662
        %v3726 = vmax.f32 %v3725, %v3663
        %v3727 = vmax.f32 %v3726, %v3664
        %v3728 = vmax.f32 %v3727, %v3665
        %v3729 = vrot.slane %v3728, 4
        %v3730 = vmax.f32 %v3728, %v3729
        %v3731 = vrot.slane %v3730, 2
        %v3732 = vmax.f32 %v3730, %v3731
        %v3733 = vrot.slane %v3732, 1
        %v3734 = vmax.f32 %v3732, %v3733
        %v3735 = vmax.f32 %v3666, %v3667
        %v3736 = vmax.f32 %v3735, %v3668
        %v3737 = vmax.f32 %v3736, %v3669
        %v3738 = vmax.f32 %v3737, %v3670
        %v3739 = vmax.f32 %v3738, %v3671
        %v3740 = vmax.f32 %v3739, %v3672
        %v3741 = vmax.f32 %v3740, %v3673
        %v3742 = vmax.f32 %v3741, %v3674
        %v3743 = vmax.f32 %v3742, %v3675
        %v3744 = vmax.f32 %v3743, %v3676
        %v3745 = vmax.f32 %v3744, %v3677
        %v3746 = vmax.f32 %v3745, %v3678
        %v3747 = vmax.f32 %v3746, %v3679
        %v3748 = vmax.f32 %v3747, %v3680
        %v3749 = vmax.f32 %v3748, %v3681
        %v3750 = vrot.slane %v3749, 4
        %v3751 = vmax.f32 %v3749, %v3750
        %v3752 = vrot.slane %v3751, 2
        %v3753 = vmax.f32 %v3751, %v3752
        %v3754 = vrot.slane %v3753, 1
        %v3755 = vmax.f32 %v3753, %v3754
        %v3756 = vmax.f32 %v3682, %v3683
        %v3757 = vmax.f32 %v3756, %v3684
        %v3758 = vmax.f32 %v3757, %v3685
        %v3759 = vmax.f32 %v3758, %v3686
        %v3760 = vmax.f32 %v3759, %v3687
        %v3761 = vmax.f32 %v3760, %v3688
        %v3762 = vmax.f32 %v3761, %v3689
        %v3763 = vmax.f32 %v3762, %v3690
        %v3764 = vmax.f32 %v3763, %v3691
        %v3765 = vmax.f32 %v3764, %v3692
        %v3766 = vmax.f32 %v3765, %v3693
        %v3767 = vmax.f32 %v3766, %v3694
        %v3768 = vmax.f32 %v3767, %v3695
        %v3769 = vmax.f32 %v3768, %v3696
        %v3770 = vmax.f32 %v3769, %v3697
        %v3771 = vrot.slane %v3770, 4
        %v3772 = vmax.f32 %v3770, %v3771
        %v3773 = vrot.slane %v3772, 2
        %v3774 = vmax.f32 %v3772, %v3773
        %v3775 = vrot.slane %v3774, 1
        %v3776 = vmax.f32 %v3774, %v3775
        %v3777 = vmax.f32 %v3698, %v3699
        %v3778 = vmax.f32 %v3777, %v3700
        %v3779 = vmax.f32 %v3778, %v3701
        %v3780 = vmax.f32 %v3779, %v3702
        %v3781 = vmax.f32 %v3780, %v3703
        %v3782 = vmax.f32 %v3781, %v3704
        %v3783 = vmax.f32 %v3782, %v3705
        %v3784 = vmax.f32 %v3783, %v3706
        %v3785 = vmax.f32 %v3784, %v3707
        %v3786 = vmax.f32 %v3785, %v3708
        %v3787 = vmax.f32 %v3786, %v3709
        %v3788 = vmax.f32 %v3787, %v3710
        %v3789 = vmax.f32 %v3788, %v3711
        %v3790 = vmax.f32 %v3789, %v3712
        %v3791 = vmax.f32 %v3790, %v3713
        %v3792 = vrot.slane %v3791, 4
        %v3793 = vmax.f32 %v3791, %v3792
        %v3794 = vrot.slane %v3793, 2
        %v3795 = vmax.f32 %v3793, %v3794
        %v3796 = vrot.slane %v3795, 1
        %v3797 = vmax.f32 %v3795, %v3796
        %v3798 = vmax.f32 %v3734, -1e+30
        %v3799 = vmax.f32 %v3755, -1e+30
        %v3800 = vmax.f32 %v3776, -1e+30
        %v3801 = vmax.f32 %v3797, -1e+30
        %v3802 = vsub.f32 -1e+30, %v3798
        %v3803 = vsub.f32 -1e+30, %v3799
        %v3804 = vsub.f32 -1e+30, %v3800
        %v3805 = vsub.f32 -1e+30, %v3801
        %v3806 = vmul.f32 %v3802, 1.442695
        %v3807 = vpow.pop %v3806
        %v3808 = vmul.f32 %v3803, 1.442695
        %v3809 = vpow.pop %v3808
        %v3810 = vmul.f32 %v3804, 1.442695
        %v3811 = vpow.pop %v3810
        %v3812 = vmul.f32 %v3805, 1.442695
        %v3813 = vpow.pop %v3812
        %v3814 = vsub.f32 %v3650, %v3798
        %v3815 = vsub.f32 %v3651, %v3798
        %v3816 = vsub.f32 %v3652, %v3798
        %v3817 = vsub.f32 %v3653, %v3798
        %v3818 = vsub.f32 %v3654, %v3798
        %v3819 = vsub.f32 %v3655, %v3798
        %v3820 = vsub.f32 %v3656, %v3798
        %v3821 = vsub.f32 %v3657, %v3798
        %v3822 = vsub.f32 %v3658, %v3798
        %v3823 = vsub.f32 %v3659, %v3798
        %v3824 = vsub.f32 %v3660, %v3798
        %v3825 = vsub.f32 %v3661, %v3798
        %v3826 = vsub.f32 %v3662, %v3798
        %v3827 = vsub.f32 %v3663, %v3798
        %v3828 = vsub.f32 %v3664, %v3798
        %v3829 = vsub.f32 %v3665, %v3798
        %v3830 = vsub.f32 %v3666, %v3799
        %v3831 = vsub.f32 %v3667, %v3799
        %v3832 = vsub.f32 %v3668, %v3799
        %v3833 = vsub.f32 %v3669, %v3799
        %v3834 = vsub.f32 %v3670, %v3799
        %v3835 = vsub.f32 %v3671, %v3799
        %v3836 = vsub.f32 %v3672, %v3799
        %v3837 = vsub.f32 %v3673, %v3799
        %v3838 = vsub.f32 %v3674, %v3799
        %v3839 = vsub.f32 %v3675, %v3799
        %v3840 = vsub.f32 %v3676, %v3799
        %v3841 = vsub.f32 %v3677, %v3799
        %v3842 = vsub.f32 %v3678, %v3799
        %v3843 = vsub.f32 %v3679, %v3799
        %v3844 = vsub.f32 %v3680, %v3799
        %v3845 = vsub.f32 %v3681, %v3799
        %v3846 = vsub.f32 %v3682, %v3800
        %v3847 = vsub.f32 %v3683, %v3800
        %v3848 = vsub.f32 %v3684, %v3800
        %v3849 = vsub.f32 %v3685, %v3800
        %v3850 = vsub.f32 %v3686, %v3800
        %v3851 = vsub.f32 %v3687, %v3800
        %v3852 = vsub.f32 %v3688, %v3800
        %v3853 = vsub.f32 %v3689, %v3800
        %v3854 = vsub.f32 %v3690, %v3800
        %v3855 = vsub.f32 %v3691, %v3800
        %v3856 = vsub.f32 %v3692, %v3800
        %v3857 = vsub.f32 %v3693, %v3800
        %v3858 = vsub.f32 %v3694, %v3800
        %v3859 = vsub.f32 %v3695, %v3800
        %v3860 = vsub.f32 %v3696, %v3800
        %v3861 = vsub.f32 %v3697, %v3800
        %v3862 = vsub.f32 %v3698, %v3801
        %v3863 = vsub.f32 %v3699, %v3801
        %v3864 = vsub.f32 %v3700, %v3801
        %v3865 = vsub.f32 %v3701, %v3801
        %v3866 = vsub.f32 %v3702, %v3801
        %v3867 = vsub.f32 %v3703, %v3801
        %v3868 = vsub.f32 %v3704, %v3801
        %v3869 = vsub.f32 %v3705, %v3801
        %v3870 = vsub.f32 %v3706, %v3801
        %v3871 = vsub.f32 %v3707, %v3801
        %v3872 = vsub.f32 %v3708, %v3801
        %v3873 = vsub.f32 %v3709, %v3801
        %v3874 = vsub.f32 %v3710, %v3801
        %v3875 = vsub.f32 %v3711, %v3801
        %v3876 = vsub.f32 %v3712, %v3801
        %v3877 = vsub.f32 %v3713, %v3801
        %v3878 = vpack.c.bf16 %v3815, %v3814
        %v3879 = vpack.c.bf16 %v3817, %v3816
        %v3880 = vpack.c.bf16 %v3819, %v3818
        %v3881 = vpack.c.bf16 %v3821, %v3820
        %v3882 = vpack.c.bf16 %v3823, %v3822
        %v3883 = vpack.c.bf16 %v3825, %v3824
        %v3884 = vpack.c.bf16 %v3827, %v3826
        %v3885 = vpack.c.bf16 %v3829, %v3828
        %v3886 = vpack.c.bf16 %v3831, %v3830
        %v3887 = vpack.c.bf16 %v3833, %v3832
        %v3888 = vpack.c.bf16 %v3835, %v3834
        %v3889 = vpack.c.bf16 %v3837, %v3836
        %v3890 = vpack.c.bf16 %v3839, %v3838
        %v3891 = vpack.c.bf16 %v3841, %v3840
        %v3892 = vpack.c.bf16 %v3843, %v3842
        %v3893 = vpack.c.bf16 %v3845, %v3844
        %v3894 = vpack.c.bf16 %v3847, %v3846
        %v3895 = vpack.c.bf16 %v3849, %v3848
        %v3896 = vpack.c.bf16 %v3851, %v3850
        %v3897 = vpack.c.bf16 %v3853, %v3852
        %v3898 = vpack.c.bf16 %v3855, %v3854
        %v3899 = vpack.c.bf16 %v3857, %v3856
        %v3900 = vpack.c.bf16 %v3859, %v3858
        %v3901 = vpack.c.bf16 %v3861, %v3860
        %v3902 = vpack.c.bf16 %v3863, %v3862
        %v3903 = vpack.c.bf16 %v3865, %v3864
        %v3904 = vpack.c.bf16 %v3867, %v3866
        %v3905 = vpack.c.bf16 %v3869, %v3868
        %v3906 = vpack.c.bf16 %v3871, %v3870
        %v3907 = vpack.c.bf16 %v3873, %v3872
        %v3908 = vpack.c.bf16 %v3875, %v3874
        %v3909 = vpack.c.bf16 %v3877, %v3876
        %v3911 = vmul.bf16 %v3878, 1069105081
        %v3912 = vpow.bf16.pop %v3911
        %v3914 = vmul.bf16 %v3879, 1069105081
        %v3915 = vpow.bf16.pop %v3914
        %v3917 = vmul.bf16 %v3880, 1069105081
        %v3918 = vpow.bf16.pop %v3917
        %v3920 = vmul.bf16 %v3881, 1069105081
        %v3921 = vpow.bf16.pop %v3920
        %v3923 = vmul.bf16 %v3882, 1069105081
        %v3924 = vpow.bf16.pop %v3923
        %v3926 = vmul.bf16 %v3883, 1069105081
        %v3927 = vpow.bf16.pop %v3926
        %v3929 = vmul.bf16 %v3884, 1069105081
        %v3930 = vpow.bf16.pop %v3929
        %v3932 = vmul.bf16 %v3885, 1069105081
        %v3933 = vpow.bf16.pop %v3932
        %v3935 = vmul.bf16 %v3886, 1069105081
        %v3936 = vpow.bf16.pop %v3935
        %v3938 = vmul.bf16 %v3887, 1069105081
        %v3939 = vpow.bf16.pop %v3938
        %v3941 = vmul.bf16 %v3888, 1069105081
        %v3942 = vpow.bf16.pop %v3941
        %v3944 = vmul.bf16 %v3889, 1069105081
        %v3945 = vpow.bf16.pop %v3944
        %v3947 = vmul.bf16 %v3890, 1069105081
        %v3948 = vpow.bf16.pop %v3947
        %v3950 = vmul.bf16 %v3891, 1069105081
        %v3951 = vpow.bf16.pop %v3950
        %v3953 = vmul.bf16 %v3892, 1069105081
        %v3954 = vpow.bf16.pop %v3953
        %v3956 = vmul.bf16 %v3893, 1069105081
        %v3957 = vpow.bf16.pop %v3956
        %v3959 = vmul.bf16 %v3894, 1069105081
        %v3960 = vpow.bf16.pop %v3959
        %v3962 = vmul.bf16 %v3895, 1069105081
        %v3963 = vpow.bf16.pop %v3962
        %v3965 = vmul.bf16 %v3896, 1069105081
        %v3966 = vpow.bf16.pop %v3965
        %v3968 = vmul.bf16 %v3897, 1069105081
        %v3969 = vpow.bf16.pop %v3968
        %v3971 = vmul.bf16 %v3898, 1069105081
        %v3972 = vpow.bf16.pop %v3971
        %v3974 = vmul.bf16 %v3899, 1069105081
        %v3975 = vpow.bf16.pop %v3974
        %v3977 = vmul.bf16 %v3900, 1069105081
        %v3978 = vpow.bf16.pop %v3977
        %v3980 = vmul.bf16 %v3901, 1069105081
        %v3981 = vpow.bf16.pop %v3980
        %v3983 = vmul.bf16 %v3902, 1069105081
        %v3984 = vpow.bf16.pop %v3983
        %v3986 = vmul.bf16 %v3903, 1069105081
        %v3987 = vpow.bf16.pop %v3986
        %v3989 = vmul.bf16 %v3904, 1069105081
        %v3990 = vpow.bf16.pop %v3989
        %v3992 = vmul.bf16 %v3905, 1069105081
        %v3993 = vpow.bf16.pop %v3992
        %v3995 = vmul.bf16 %v3906, 1069105081
        %v3996 = vpow.bf16.pop %v3995
        %v3998 = vmul.bf16 %v3907, 1069105081
        %v3999 = vpow.bf16.pop %v3998
        %v4001 = vmul.bf16 %v3908, 1069105081
        %v4002 = vpow.bf16.pop %v4001
        %v4004 = vmul.bf16 %v3909, 1069105081
        %v4005 = vpow.bf16.pop %v4004
        %v4006 = vmul.f32 %v3807, 0.0
        %v4007 = vmul.f32 %v3809, 0.0
        %v4008 = vmul.f32 %v3811, 0.0
        %v4009 = vmul.f32 %v3813, 0.0
        %v4010 = vunpack.c.l.bf16 %v3912
        %v4011 = vunpack.c.h.bf16 %v3912
        %v4012 = vunpack.c.l.bf16 %v3915
        %v4013 = vunpack.c.h.bf16 %v3915
        %v4014 = vunpack.c.l.bf16 %v3918
        %v4015 = vunpack.c.h.bf16 %v3918
        %v4016 = vunpack.c.l.bf16 %v3921
        %v4017 = vunpack.c.h.bf16 %v3921
        %v4018 = vunpack.c.l.bf16 %v3924
        %v4019 = vunpack.c.h.bf16 %v3924
        %v4020 = vunpack.c.l.bf16 %v3927
        %v4021 = vunpack.c.h.bf16 %v3927
        %v4022 = vunpack.c.l.bf16 %v3930
        %v4023 = vunpack.c.h.bf16 %v3930
        %v4024 = vunpack.c.l.bf16 %v3933
        %v4025 = vunpack.c.h.bf16 %v3933
        %v4026 = vunpack.c.l.bf16 %v3936
        %v4027 = vunpack.c.h.bf16 %v3936
        %v4028 = vunpack.c.l.bf16 %v3939
        %v4029 = vunpack.c.h.bf16 %v3939
        %v4030 = vunpack.c.l.bf16 %v3942
        %v4031 = vunpack.c.h.bf16 %v3942
        %v4032 = vunpack.c.l.bf16 %v3945
        %v4033 = vunpack.c.h.bf16 %v3945
        %v4034 = vunpack.c.l.bf16 %v3948
        %v4035 = vunpack.c.h.bf16 %v3948
        %v4036 = vunpack.c.l.bf16 %v3951
        %v4037 = vunpack.c.h.bf16 %v3951
        %v4038 = vunpack.c.l.bf16 %v3954
        %v4039 = vunpack.c.h.bf16 %v3954
        %v4040 = vunpack.c.l.bf16 %v3957
        %v4041 = vunpack.c.h.bf16 %v3957
        %v4042 = vunpack.c.l.bf16 %v3960
        %v4043 = vunpack.c.h.bf16 %v3960
        %v4044 = vunpack.c.l.bf16 %v3963
        %v4045 = vunpack.c.h.bf16 %v3963
        %v4046 = vunpack.c.l.bf16 %v3966
        %v4047 = vunpack.c.h.bf16 %v3966
        %v4048 = vunpack.c.l.bf16 %v3969
        %v4049 = vunpack.c.h.bf16 %v3969
        %v4050 = vunpack.c.l.bf16 %v3972
        %v4051 = vunpack.c.h.bf16 %v3972
        %v4052 = vunpack.c.l.bf16 %v3975
        %v4053 = vunpack.c.h.bf16 %v3975
        %v4054 = vunpack.c.l.bf16 %v3978
        %v4055 = vunpack.c.h.bf16 %v3978
        %v4056 = vunpack.c.l.bf16 %v3981
        %v4057 = vunpack.c.h.bf16 %v3981
        %v4058 = vunpack.c.l.bf16 %v3984
        %v4059 = vunpack.c.h.bf16 %v3984
        %v4060 = vunpack.c.l.bf16 %v3987
        %v4061 = vunpack.c.h.bf16 %v3987
        %v4062 = vunpack.c.l.bf16 %v3990
        %v4063 = vunpack.c.h.bf16 %v3990
        %v4064 = vunpack.c.l.bf16 %v3993
        %v4065 = vunpack.c.h.bf16 %v3993
        %v4066 = vunpack.c.l.bf16 %v3996
        %v4067 = vunpack.c.h.bf16 %v3996
        %v4068 = vunpack.c.l.bf16 %v3999
        %v4069 = vunpack.c.h.bf16 %v3999
        %v4070 = vunpack.c.l.bf16 %v4002
        %v4071 = vunpack.c.h.bf16 %v4002
        %v4072 = vunpack.c.l.bf16 %v4005
        %v4073 = vunpack.c.h.bf16 %v4005
        %v4074 = vadd.f32 %v4010, %v4011
        %v4075 = vadd.f32 %v4074, %v4012
        %v4076 = vadd.f32 %v4075, %v4013
        %v4077 = vadd.f32 %v4076, %v4014
        %v4078 = vadd.f32 %v4077, %v4015
        %v4079 = vadd.f32 %v4078, %v4016
        %v4080 = vadd.f32 %v4079, %v4017
        %v4081 = vadd.f32 %v4080, %v4018
        %v4082 = vadd.f32 %v4081, %v4019
        %v4083 = vadd.f32 %v4082, %v4020
        %v4084 = vadd.f32 %v4083, %v4021
        %v4085 = vadd.f32 %v4084, %v4022
        %v4086 = vadd.f32 %v4085, %v4023
        %v4087 = vadd.f32 %v4086, %v4024
        %v4088 = vadd.f32 %v4087, %v4025
        %v4089 = vrot.slane %v4088, 4
        %v4090 = vadd.f32 %v4088, %v4089
        %v4091 = vrot.slane %v4090, 2
        %v4092 = vadd.f32 %v4090, %v4091
        %v4093 = vrot.slane %v4092, 1
        %v4094 = vadd.f32 %v4092, %v4093
        %v4095 = vadd.f32 %v4026, %v4027
        %v4096 = vadd.f32 %v4095, %v4028
        %v4097 = vadd.f32 %v4096, %v4029
        %v4098 = vadd.f32 %v4097, %v4030
        %v4099 = vadd.f32 %v4098, %v4031
        %v4100 = vadd.f32 %v4099, %v4032
        %v4101 = vadd.f32 %v4100, %v4033
        %v4102 = vadd.f32 %v4101, %v4034
        %v4103 = vadd.f32 %v4102, %v4035
        %v4104 = vadd.f32 %v4103, %v4036
        %v4105 = vadd.f32 %v4104, %v4037
        %v4106 = vadd.f32 %v4105, %v4038
        %v4107 = vadd.f32 %v4106, %v4039
        %v4108 = vadd.f32 %v4107, %v4040
        %v4109 = vadd.f32 %v4108, %v4041
        %v4110 = vrot.slane %v4109, 4
        %v4111 = vadd.f32 %v4109, %v4110
        %v4112 = vrot.slane %v4111, 2
        %v4113 = vadd.f32 %v4111, %v4112
        %v4114 = vrot.slane %v4113, 1
        %v4115 = vadd.f32 %v4113, %v4114
        %v4116 = vadd.f32 %v4042, %v4043
        %v4117 = vadd.f32 %v4116, %v4044
        %v4118 = vadd.f32 %v4117, %v4045
        %v4119 = vadd.f32 %v4118, %v4046
        %v4120 = vadd.f32 %v4119, %v4047
        %v4121 = vadd.f32 %v4120, %v4048
        %v4122 = vadd.f32 %v4121, %v4049
        %v4123 = vadd.f32 %v4122, %v4050
        %v4124 = vadd.f32 %v4123, %v4051
        %v4125 = vadd.f32 %v4124, %v4052
        %v4126 = vadd.f32 %v4125, %v4053
        %v4127 = vadd.f32 %v4126, %v4054
        %v4128 = vadd.f32 %v4127, %v4055
        %v4129 = vadd.f32 %v4128, %v4056
        %v4130 = vadd.f32 %v4129, %v4057
        %v4131 = vrot.slane %v4130, 4
        %v4132 = vadd.f32 %v4130, %v4131
        %v4133 = vrot.slane %v4132, 2
        %v4134 = vadd.f32 %v4132, %v4133
        %v4135 = vrot.slane %v4134, 1
        %v4136 = vadd.f32 %v4134, %v4135
        %v4137 = vadd.f32 %v4058, %v4059
        %v4138 = vadd.f32 %v4137, %v4060
        %v4139 = vadd.f32 %v4138, %v4061
        %v4140 = vadd.f32 %v4139, %v4062
        %v4141 = vadd.f32 %v4140, %v4063
        %v4142 = vadd.f32 %v4141, %v4064
        %v4143 = vadd.f32 %v4142, %v4065
        %v4144 = vadd.f32 %v4143, %v4066
        %v4145 = vadd.f32 %v4144, %v4067
        %v4146 = vadd.f32 %v4145, %v4068
        %v4147 = vadd.f32 %v4146, %v4069
        %v4148 = vadd.f32 %v4147, %v4070
        %v4149 = vadd.f32 %v4148, %v4071
        %v4150 = vadd.f32 %v4149, %v4072
        %v4151 = vadd.f32 %v4150, %v4073
        %v4152 = vrot.slane %v4151, 4
        %v4153 = vadd.f32 %v4151, %v4152
        %v4154 = vrot.slane %v4153, 2
        %v4155 = vadd.f32 %v4153, %v4154
        %v4156 = vrot.slane %v4155, 1
        %v4157 = vadd.f32 %v4155, %v4156
        %v4158 = vadd.f32 %v4006, %v4094
        %v4159 = vadd.f32 %v4007, %v4115
        %v4160 = vadd.f32 %v4008, %v4136
        %v4161 = vadd.f32 %v4009, %v4157
        %4162 = vmatprep.subr.bf16.mxu0 0
        %4163 = vmatpush1.bf16.msra.mxu0 %v3933
        %4164 = vmatprep.subr.bf16.mxu0 0
        %4165 = vmatpush1.bf16.msra.mxu0 %v3930
        %4166 = vmatprep.subr.bf16.mxu0 0
        %4167 = vmatpush1.bf16.msra.mxu0 %v3927
        %4168 = vmatprep.subr.bf16.mxu0 0
        %4169 = vmatpush1.bf16.msra.mxu0 %v3924
        %4170 = vmatprep.subr.bf16.mxu0 0
        %4171 = vmatpush1.bf16.msra.mxu0 %v3921
        %4172 = vmatprep.subr.bf16.mxu0 0
        %4173 = vmatpush1.bf16.msra.mxu0 %v3918
        %4174 = vmatprep.subr.bf16.mxu0 0
        %4175 = vmatpush1.bf16.msra.mxu0 %v3915
        %4176 = vmatprep.subr.bf16.mxu0 0
        %4177 = vmatpush1.bf16.msra.mxu0 %v3912
        %4178 = vmatprep.subr.bf16.mxu0 0
        %4179 = vmatpush2.bf16.msra.mxu0 0
        %4180 = vmatprep.subr.bf16.mxu0 0
        %4181 = vmatpush2.bf16.msra.mxu0 0
        %4182 = vmatprep.subr.bf16.mxu0 0
        %4183 = vmatpush2.bf16.msra.mxu0 0
        %4184 = vmatprep.subr.bf16.mxu0 0
        %4185 = vmatpush2.bf16.msra.mxu0 0
        %4186 = vmatprep.subr.bf16.mxu0 0
        %4187 = vmatpush2.bf16.msra.mxu0 0
        %4188 = vmatprep.subr.bf16.mxu0 0
        %4189 = vmatpush2.bf16.msra.mxu0 0
        %4190 = vmatprep.subr.bf16.mxu0 0
        %4191 = vmatpush2.bf16.msra.mxu0 0
        %4192 = vmatprep.subr.bf16.mxu0 0
        %4193 = vmatpush2.bf16.msra.mxu0 0
        %4194 = vmatprep.mubr.bf16.mxu0 0
        %4195 = vmatmul.mubr.bf16.gmra.mxu0 %v3054
        %v4196 = vpop.f32.mrf.mxu0
        %v4197 = vadd.f32 0.0, %v4196
        %v4198 = vpop.f32.mrf.mxu0
        %v4199 = vpop.f32.mrf.mxu0
        %v4200 = vpop.f32.mrf.mxu0
        %4201 = vdwg.mxu0
        %4202 = vmatprep.subr.bf16.mxu0 0
        %4203 = vmatpush1.bf16.msra.mxu0 %v3957
        %4204 = vmatprep.subr.bf16.mxu0 0
        %4205 = vmatpush1.bf16.msra.mxu0 %v3954
        %4206 = vmatprep.subr.bf16.mxu0 0
        %4207 = vmatpush1.bf16.msra.mxu0 %v3951
        %4208 = vmatprep.subr.bf16.mxu0 0
        %4209 = vmatpush1.bf16.msra.mxu0 %v3948
        %4210 = vmatprep.subr.bf16.mxu0 0
        %4211 = vmatpush1.bf16.msra.mxu0 %v3945
        %4212 = vmatprep.subr.bf16.mxu0 0
        %4213 = vmatpush1.bf16.msra.mxu0 %v3942
        %4214 = vmatprep.subr.bf16.mxu0 0
        %4215 = vmatpush1.bf16.msra.mxu0 %v3939
        %4216 = vmatprep.subr.bf16.mxu0 0
        %4217 = vmatpush1.bf16.msra.mxu0 %v3936
        %4218 = vmatprep.subr.bf16.mxu0 0
        %4219 = vmatpush2.bf16.msra.mxu0 0
        %4220 = vmatprep.subr.bf16.mxu0 0
        %4221 = vmatpush2.bf16.msra.mxu0 0
        %4222 = vmatprep.subr.bf16.mxu0 0
        %4223 = vmatpush2.bf16.msra.mxu0 0
        %4224 = vmatprep.subr.bf16.mxu0 0
        %4225 = vmatpush2.bf16.msra.mxu0 0
        %4226 = vmatprep.subr.bf16.mxu0 0
        %4227 = vmatpush2.bf16.msra.mxu0 0
        %4228 = vmatprep.subr.bf16.mxu0 0
        %4229 = vmatpush2.bf16.msra.mxu0 0
        %4230 = vmatprep.subr.bf16.mxu0 0
        %4231 = vmatpush2.bf16.msra.mxu0 0
        %4232 = vmatprep.subr.bf16.mxu0 0
        %4233 = vmatpush2.bf16.msra.mxu0 0
        %4234 = vmatprep.mubr.bf16.mxu0 0
        %4235 = vmatmul.mubr.bf16.gmra.mxu0 %v3055
        %v4236 = vpop.f32.mrf.mxu0
        %v4237 = vadd.f32 0.0, %v4236
        %v4238 = vpop.f32.mrf.mxu0
        %v4239 = vpop.f32.mrf.mxu0
        %v4240 = vpop.f32.mrf.mxu0
        %4241 = vdwg.mxu0
        %4242 = vmatprep.subr.bf16.mxu0 0
        %4243 = vmatpush1.bf16.msra.mxu0 %v3981
        %4244 = vmatprep.subr.bf16.mxu0 0
        %4245 = vmatpush1.bf16.msra.mxu0 %v3978
        %4246 = vmatprep.subr.bf16.mxu0 0
        %4247 = vmatpush1.bf16.msra.mxu0 %v3975
        %4248 = vmatprep.subr.bf16.mxu0 0
        %4249 = vmatpush1.bf16.msra.mxu0 %v3972
        %4250 = vmatprep.subr.bf16.mxu0 0
        %4251 = vmatpush1.bf16.msra.mxu0 %v3969
        %4252 = vmatprep.subr.bf16.mxu0 0
        %4253 = vmatpush1.bf16.msra.mxu0 %v3966
        %4254 = vmatprep.subr.bf16.mxu0 0
        %4255 = vmatpush1.bf16.msra.mxu0 %v3963
        %4256 = vmatprep.subr.bf16.mxu0 0
        %4257 = vmatpush1.bf16.msra.mxu0 %v3960
        %4258 = vmatprep.subr.bf16.mxu0 0
        %4259 = vmatpush2.bf16.msra.mxu0 0
        %4260 = vmatprep.subr.bf16.mxu0 0
        %4261 = vmatpush2.bf16.msra.mxu0 0
        %4262 = vmatprep.subr.bf16.mxu0 0
        %4263 = vmatpush2.bf16.msra.mxu0 0
        %4264 = vmatprep.subr.bf16.mxu0 0
        %4265 = vmatpush2.bf16.msra.mxu0 0
        %4266 = vmatprep.subr.bf16.mxu0 0
        %4267 = vmatpush2.bf16.msra.mxu0 0
        %4268 = vmatprep.subr.bf16.mxu0 0
        %4269 = vmatpush2.bf16.msra.mxu0 0
        %4270 = vmatprep.subr.bf16.mxu0 0
        %4271 = vmatpush2.bf16.msra.mxu0 0
        %4272 = vmatprep.subr.bf16.mxu0 0
        %4273 = vmatpush2.bf16.msra.mxu0 0
        %4274 = vmatprep.mubr.bf16.mxu0 0
        %4275 = vmatmul.mubr.bf16.gmra.mxu0 %v3056
        %v4276 = vpop.f32.mrf.mxu0
        %v4277 = vadd.f32 0.0, %v4276
        %v4278 = vpop.f32.mrf.mxu0
        %v4279 = vpop.f32.mrf.mxu0
        %v4280 = vpop.f32.mrf.mxu0
        %4281 = vdwg.mxu0
        %4282 = vmatprep.subr.bf16.mxu0 0
        %4283 = vmatpush1.bf16.msra.mxu0 %v4005
        %4284 = vmatprep.subr.bf16.mxu0 0
        %4285 = vmatpush1.bf16.msra.mxu0 %v4002
        %4286 = vmatprep.subr.bf16.mxu0 0
        %4287 = vmatpush1.bf16.msra.mxu0 %v3999
        %4288 = vmatprep.subr.bf16.mxu0 0
        %4289 = vmatpush1.bf16.msra.mxu0 %v3996
        %4290 = vmatprep.subr.bf16.mxu0 0
        %4291 = vmatpush1.bf16.msra.mxu0 %v3993
        %4292 = vmatprep.subr.bf16.mxu0 0
        %4293 = vmatpush1.bf16.msra.mxu0 %v3990
        %4294 = vmatprep.subr.bf16.mxu0 0
        %4295 = vmatpush1.bf16.msra.mxu0 %v3987
        %4296 = vmatprep.subr.bf16.mxu0 0
        %4297 = vmatpush1.bf16.msra.mxu0 %v3984
        %4298 = vmatprep.subr.bf16.mxu0 0
        %4299 = vmatpush2.bf16.msra.mxu0 0
        %4300 = vmatprep.subr.bf16.mxu0 0
        %4301 = vmatpush2.bf16.msra.mxu0 0
        %4302 = vmatprep.subr.bf16.mxu0 0
        %4303 = vmatpush2.bf16.msra.mxu0 0
        %4304 = vmatprep.subr.bf16.mxu0 0
        %4305 = vmatpush2.bf16.msra.mxu0 0
        %4306 = vmatprep.subr.bf16.mxu0 0
        %4307 = vmatpush2.bf16.msra.mxu0 0
        %4308 = vmatprep.subr.bf16.mxu0 0
        %4309 = vmatpush2.bf16.msra.mxu0 0
        %4310 = vmatprep.subr.bf16.mxu0 0
        %4311 = vmatpush2.bf16.msra.mxu0 0
        %4312 = vmatprep.subr.bf16.mxu0 0
        %4313 = vmatpush2.bf16.msra.mxu0 0
        %4314 = vmatprep.mubr.bf16.mxu0 0
        %4315 = vmatmul.mubr.bf16.gmra.mxu0 %v3057
        %v4316 = vpop.f32.mrf.mxu0
        %v4317 = vadd.f32 0.0, %v4316
        %v4318 = vpop.f32.mrf.mxu0
        %v4319 = vpop.f32.mrf.mxu0
        %v4320 = vpop.f32.mrf.mxu0
        %4321 = vdwg.mxu0
        %v4322 = vadd.f32 %v4006, %v4197
        %v4323 = vadd.f32 %v4007, %v4237
        %v4324 = vadd.f32 %v4008, %v4277
        %v4325 = vadd.f32 %v4009, %v4317
        %v4326 = vrcp.pop %v4158
        %v4327 = vrcp.pop %v4159
        %v4328 = vrcp.pop %v4160
        %v4329 = vrcp.pop %v4161
        %v4330 = vmul.f32 %v4322, %v4326
        %v4331 = vmul.f32 %v4323, %v4327
        %v4332 = vmul.f32 %v4324, %v4328
        %v4333 = vmul.f32 %v4325, %v4329
        %v4334 = vpack.c.bf16 %v4331, %v4330
        %v4335 = vpack.c.bf16 %v4333, %v4332
        %4337 = vset.pattern.permute.xlu0 0
        %4338 = vperm.xlu0 %4337, %v529
        %v4339 = vpop.permute.xlu0 %4338
        %4342 = vset.pattern.permute.xlu0 0
        %4343 = vperm.xlu0 %4342, %v530
        %v4344 = vpop.permute.xlu0 %4343
        %4347 = vset.pattern.permute.xlu0 0
        %4348 = vperm.xlu0 %4347, %v531
        %v4349 = vpop.permute.xlu0 %4348
        %4352 = vset.pattern.permute.xlu0 0
        %4353 = vperm.xlu0 %4352, %v532
        %v4354 = vpop.permute.xlu0 %4353
        %v4360 = vunpack.c.l.b16 %v2816
        %v4361 = vunpack.c.l.b16 %v2817
        %v4362 = vunpack.c.l.b16 %v2818
        %v4363 = vunpack.c.l.b16 %v2819
        %v4364 = vpack.c.b16 %v4361, %v4360
        %v4365 = vpack.c.b16 %v4363, %v4362
        %v4367 = vsel %vm765, %v4364, 0
        %v4370 = vsel %vm765, %v4365, 0
        %4372 = vmatprep.subr.bf16.mxu0 0
        %4373 = vmatpush1.bf16.msra.mxu0 0
        %4374 = vmatprep.subr.bf16.mxu0 0
        %4375 = vmatpush1.bf16.msra.mxu0 0
        %4376 = vmatprep.subr.bf16.mxu0 0
        %4377 = vmatpush1.bf16.msra.mxu0 0
        %4378 = vmatprep.subr.bf16.mxu0 0
        %4379 = vmatpush1.bf16.msra.mxu0 0
        %4380 = vmatprep.subr.bf16.mxu0 0
        %4381 = vmatpush1.bf16.msra.mxu0 0
        %4382 = vmatprep.subr.bf16.mxu0 0
        %4383 = vmatpush1.bf16.msra.mxu0 0
        %4384 = vmatprep.subr.bf16.mxu0 0
        %4385 = vmatpush1.bf16.msra.mxu0 %v4335
        %4386 = vmatprep.subr.bf16.mxu0 0
        %4387 = vmatpush1.bf16.msra.mxu0 %v4334
        %4388 = vmatprep.subr.bf16.mxu0 0
        %4389 = vmatpush2.bf16.msra.mxu0 0
        %4390 = vmatprep.subr.bf16.mxu0 0
        %4391 = vmatpush2.bf16.msra.mxu0 0
        %4392 = vmatprep.subr.bf16.mxu0 0
        %4393 = vmatpush2.bf16.msra.mxu0 0
        %4394 = vmatprep.subr.bf16.mxu0 0
        %4395 = vmatpush2.bf16.msra.mxu0 0
        %4396 = vmatprep.subr.bf16.mxu0 0
        %4397 = vmatpush2.bf16.msra.mxu0 0
        %4398 = vmatprep.subr.bf16.mxu0 0
        %4399 = vmatpush2.bf16.msra.mxu0 0
        %4400 = vmatprep.subr.bf16.mxu0 0
        %4401 = vmatpush2.bf16.msra.mxu0 0
        %4402 = vmatprep.subr.bf16.mxu0 0
        %4403 = vmatpush2.bf16.msra.mxu0 0
        %4404 = vmatprep.mubr.bf16.mxu0 0
        %4405 = vmatmul.mubr.bf16.gmra.mxu0 %v4367
        %v4406 = vpop.f32.mrf.mxu0
        %v4407 = vadd.f32 %v4339, %v4406
        %v4408 = vpop.f32.mrf.mxu0
        %v4409 = vpop.f32.mrf.mxu0
        %v4410 = vadd.f32 %v4344, %v4409
        %v4411 = vpop.f32.mrf.mxu0
        %4412 = vmatprep.mubr.bf16.mxu0 0
        %4413 = vmatmul.mubr.bf16.gmra.mxu0 %v4370
        %v4414 = vpop.f32.mrf.mxu0
        %v4415 = vadd.f32 %v4349, %v4414
        %v4416 = vpop.f32.mrf.mxu0
        %v4417 = vpop.f32.mrf.mxu0
        %v4418 = vadd.f32 %v4354, %v4417
        %v4419 = vpop.f32.mrf.mxu0
        %4420 = vdwg.mxu0
        %v4421 = vadd.f32 %v4407, %v2718
        %v4422 = vadd.f32 %v4410, %v2719
        %v4423 = vadd.f32 %v4415, %v2720
        %v4424 = vadd.f32 %v4418, %v2721
        %v4425 = vadd.f32 %v4421, %v4422
        %v4426 = vadd.f32 %v4425, %v4423
        %v4427 = vadd.f32 %v4426, %v4424
        %v4428 = vrot.slane %v4427, 4
        %v4429 = vadd.f32 %v4427, %v4428
        %v4430 = vrot.slane %v4429, 2
        %v4431 = vadd.f32 %v4429, %v4430
        %v4432 = vrot.slane %v4431, 1
        %v4433 = vadd.f32 %v4431, %v4432
        %v4434 = vmul.f32 %v4433, %v1032
        %v4435 = vsub.f32 %v4421, %v4434
        %v4436 = vsub.f32 %v4422, %v4434
        %v4437 = vsub.f32 %v4423, %v4434
        %v4438 = vsub.f32 %v4424, %v4434
        %v4439 = vmul.f32 %v4435, %v4435
        %v4440 = vmul.f32 %v4436, %v4436
        %v4441 = vmul.f32 %v4437, %v4437
        %v4442 = vmul.f32 %v4438, %v4438
        %v4443 = vadd.f32 %v4439, %v4440
        %v4444 = vadd.f32 %v4443, %v4441
        %v4445 = vadd.f32 %v4444, %v4442
        %v4446 = vrot.slane %v4445, 4
        %v4447 = vadd.f32 %v4445, %v4446
        %v4448 = vrot.slane %v4447, 2
        %v4449 = vadd.f32 %v4447, %v4448
        %v4450 = vrot.slane %v4449, 1
        %v4451 = vadd.f32 %v4449, %v4450
        %v4452 = vmul.f32 %v4451, %v1032
        %v4453 = vadd.f32 %v4452, 1e-06
        %v4454 = vrsqrt.pop %v4453
        %v4455 = vmul.f32 %v4435, %v4454
        %v4456 = vmul.f32 %v4436, %v4454
        %v4457 = vmul.f32 %v4437, %v4454
        %v4458 = vmul.f32 %v4438, %v4454
        %v4459 = vadd.f32 %v985, 1.0
        %v4460 = vadd.f32 %v990, 1.0
        %v4461 = vadd.f32 %v995, 1.0
        %v4462 = vadd.f32 %v1000, 1.0
        %4464 = vset.pattern.permute.xlu0 0
        %4465 = vperm.xlu0 %4464, %v4459
        %v4466 = vpop.permute.xlu0 %4465
        %4469 = vset.pattern.permute.xlu0 0
        %4470 = vperm.xlu0 %4469, %v4460
        %v4471 = vpop.permute.xlu0 %4470
        %4474 = vset.pattern.permute.xlu0 0
        %4475 = vperm.xlu0 %4474, %v4461
        %v4476 = vpop.permute.xlu0 %4475
        %4479 = vset.pattern.permute.xlu0 0
        %4480 = vperm.xlu0 %4479, %v4462
        %v4481 = vpop.permute.xlu0 %4480
        %v4483 = vmul.f32 %v4455, %v4466
        %v4484 = vmul.f32 %v4456, %v4471
        %v4485 = vmul.f32 %v4457, %v4476
        %v4486 = vmul.f32 %v4458, %v4481
        %4488 = vset.pattern.permute.xlu0 0
        %4489 = vperm.xlu0 %4488, %v965
        %v4490 = vpop.permute.xlu0 %4489
        %4493 = vset.pattern.permute.xlu0 0
        %4494 = vperm.xlu0 %4493, %v970
        %v4495 = vpop.permute.xlu0 %4494
        %4498 = vset.pattern.permute.xlu0 0
        %4499 = vperm.xlu0 %4498, %v975
        %v4500 = vpop.permute.xlu0 %4499
        %4503 = vset.pattern.permute.xlu0 0
        %4504 = vperm.xlu0 %4503, %v980
        %v4505 = vpop.permute.xlu0 %4504
        %v4507 = vadd.f32 %v4483, %v4490
        %v4508 = vadd.f32 %v4484, %v4495
        %v4509 = vadd.f32 %v4485, %v4500
        %v4510 = vadd.f32 %v4486, %v4505
        %v4511 = vmul.f32 %v4507, %v552
        %v4512 = vmul.f32 %v4508, %v552
        %v4513 = vmul.f32 %v4509, %v552
        %v4514 = vmul.f32 %v4510, %v552
        %4515 = vrot.lane.b32.xlu0 %v4511, 1
        %v4516 = vpop.permute.xlu0 %4515
        %4517 = vrot.lane.b32.xlu0 %v4512, 1
        %v4518 = vpop.permute.xlu0 %4517
        %4519 = vrot.lane.b32.xlu0 %v4513, 1
        %v4520 = vpop.permute.xlu0 %4519
        %4521 = vrot.lane.b32.xlu0 %v4514, 1
        %v4522 = vpop.permute.xlu0 %4521
        %v4523 = vmul.f32 %v4516, %v555
        %v4524 = vmul.f32 %v4518, %v555
        %v4525 = vmul.f32 %v4520, %v555
        %v4526 = vmul.f32 %v4522, %v555
        %4527 = vrot.lane.b32.xlu0 %v4511, 127
        %v4528 = vpop.permute.xlu0 %4527
        %4529 = vrot.lane.b32.xlu0 %v4512, 127
        %v4530 = vpop.permute.xlu0 %4529
        %4531 = vrot.lane.b32.xlu0 %v4513, 127
        %v4532 = vpop.permute.xlu0 %4531
        %4533 = vrot.lane.b32.xlu0 %v4514, 127
        %v4534 = vpop.permute.xlu0 %4533
        %v4535 = vmul.f32 %v4528, %v558
        %v4536 = vmul.f32 %v4530, %v558
        %v4537 = vmul.f32 %v4532, %v558
        %v4538 = vmul.f32 %v4534, %v558
        %v4539 = vld [vmem:[%s11] sm:$0xf]
        %v4540 = vld [vmem:[%s11 + $0x4] sm:$0xf]
        %v4541 = vld [vmem:[%s11 + $0x8] sm:$0xf]
        %v4542 = vld [vmem:[%s11 + $0xc] sm:$0xf]
        %v4543 = vld [vmem:[%s11 + $0x10] sm:$0xf]
        %v4544 = vld [vmem:[%s11 + $0x14] sm:$0xf]
        %v4545 = vld [vmem:[%s11 + $0x18] sm:$0xf]
        %v4546 = vld [vmem:[%s11 + $0x1c] sm:$0xf]
        %v4547 = vpack.c.bf16 %v4524, %v4523
        %v4548 = vpack.c.bf16 %v4526, %v4525
        %v4549 = vpack.c.bf16 %v4512, %v4511
        %v4550 = vpack.c.bf16 %v4514, %v4513
        %v4551 = vpack.c.bf16 %v4536, %v4535
        %v4552 = vpack.c.bf16 %v4538, %v4537
        %4554 = vset.pattern.permute.xlu0 0
        %4555 = vperm.xlu0 %4554, %v533
        %v4556 = vpop.permute.xlu0 %4555
        %4559 = vset.pattern.permute.xlu0 0
        %4560 = vperm.xlu0 %4559, %v534
        %v4561 = vpop.permute.xlu0 %4560
        %4564 = vset.pattern.permute.xlu0 0
        %4565 = vperm.xlu0 %4564, %v535
        %v4566 = vpop.permute.xlu0 %4565
        %4569 = vset.pattern.permute.xlu0 0
        %4570 = vperm.xlu0 %4569, %v536
        %v4571 = vpop.permute.xlu0 %4570
        %4574 = vset.pattern.permute.xlu0 0
        %4575 = vperm.xlu0 %4574, %v537
        %v4576 = vpop.permute.xlu0 %4575
        %4579 = vset.pattern.permute.xlu0 0
        %4580 = vperm.xlu0 %4579, %v538
        %v4581 = vpop.permute.xlu0 %4580
        %4584 = vset.pattern.permute.xlu0 0
        %4585 = vperm.xlu0 %4584, %v539
        %v4586 = vpop.permute.xlu0 %4585
        %4589 = vset.pattern.permute.xlu0 0
        %4590 = vperm.xlu0 %4589, %v540
        %v4591 = vpop.permute.xlu0 %4590
        %v4601 = vunpack.c.l.b16 %v4539
        %v4602 = vunpack.c.l.b16 %v4540
        %v4603 = vunpack.c.l.b16 %v4541
        %v4604 = vunpack.c.l.b16 %v4542
        %v4605 = vunpack.c.l.b16 %v4543
        %v4606 = vunpack.c.l.b16 %v4544
        %v4607 = vunpack.c.l.b16 %v4545
        %v4608 = vunpack.c.l.b16 %v4546
        %v4609 = vpack.c.b16 %v4602, %v4601
        %v4610 = vpack.c.b16 %v4604, %v4603
        %v4611 = vpack.c.b16 %v4606, %v4605
        %v4612 = vpack.c.b16 %v4608, %v4607
        %vm4613 = vcmask 785408
        %v4615 = vsel %vm4613, %v4609, 0
        %v4618 = vsel %vm4613, %v4610, 0
        %v4621 = vsel %vm4613, %v4611, 0
        %v4624 = vsel %vm4613, %v4612, 0
        %4626 = vmatprep.subr.bf16.mxu0 0
        %4627 = vmatpush1.bf16.msra.mxu0 0
        %4628 = vmatprep.subr.bf16.mxu0 0
        %4629 = vmatpush1.bf16.msra.mxu0 0
        %4630 = vmatprep.subr.bf16.mxu0 0
        %4631 = vmatpush1.bf16.msra.mxu0 %v4552
        %4632 = vmatprep.subr.bf16.mxu0 0
        %4633 = vmatpush1.bf16.msra.mxu0 %v4551
        %4634 = vmatprep.subr.bf16.mxu0 0
        %4635 = vmatpush1.bf16.msra.mxu0 %v4550
        %4636 = vmatprep.subr.bf16.mxu0 0
        %4637 = vmatpush1.bf16.msra.mxu0 %v4549
        %4638 = vmatprep.subr.bf16.mxu0 0
        %4639 = vmatpush1.bf16.msra.mxu0 %v4548
        %4640 = vmatprep.subr.bf16.mxu0 0
        %4641 = vmatpush1.bf16.msra.mxu0 %v4547
        %4642 = vmatprep.subr.bf16.mxu0 0
        %4643 = vmatpush2.bf16.msra.mxu0 0
        %4644 = vmatprep.subr.bf16.mxu0 0
        %4645 = vmatpush2.bf16.msra.mxu0 0
        %4646 = vmatprep.subr.bf16.mxu0 0
        %4647 = vmatpush2.bf16.msra.mxu0 0
        %4648 = vmatprep.subr.bf16.mxu0 0
        %4649 = vmatpush2.bf16.msra.mxu0 0
        %4650 = vmatprep.subr.bf16.mxu0 0
        %4651 = vmatpush2.bf16.msra.mxu0 0
        %4652 = vmatprep.subr.bf16.mxu0 0
        %4653 = vmatpush2.bf16.msra.mxu0 0
        %4654 = vmatprep.subr.bf16.mxu0 0
        %4655 = vmatpush2.bf16.msra.mxu0 0
        %4656 = vmatprep.subr.bf16.mxu0 0
        %4657 = vmatpush2.bf16.msra.mxu0 0
        %4658 = vmatprep.mubr.bf16.mxu0 0
        %4659 = vmatmul.mubr.bf16.gmra.mxu0 %v4615
        %v4660 = vpop.f32.mrf.mxu0
        %v4661 = vadd.f32 %v4556, %v4660
        %v4662 = vpop.f32.mrf.mxu0
        %v4663 = vpop.f32.mrf.mxu0
        %v4664 = vadd.f32 %v4561, %v4663
        %v4665 = vpop.f32.mrf.mxu0
        %4666 = vmatprep.mubr.bf16.mxu0 0
        %4667 = vmatmul.mubr.bf16.gmra.mxu0 %v4618
        %v4668 = vpop.f32.mrf.mxu0
        %v4669 = vadd.f32 %v4566, %v4668
        %v4670 = vpop.f32.mrf.mxu0
        %v4671 = vpop.f32.mrf.mxu0
        %v4672 = vadd.f32 %v4571, %v4671
        %v4673 = vpop.f32.mrf.mxu0
        %4674 = vmatprep.mubr.bf16.mxu0 0
        %4675 = vmatmul.mubr.bf16.gmra.mxu0 %v4621
        %v4676 = vpop.f32.mrf.mxu0
        %v4677 = vadd.f32 %v4576, %v4676
        %v4678 = vpop.f32.mrf.mxu0
        %v4679 = vpop.f32.mrf.mxu0
        %v4680 = vadd.f32 %v4581, %v4679
        %v4681 = vpop.f32.mrf.mxu0
        %4682 = vmatprep.mubr.bf16.mxu0 0
        %4683 = vmatmul.mubr.bf16.gmra.mxu0 %v4624
        %v4684 = vpop.f32.mrf.mxu0
        %v4685 = vadd.f32 %v4586, %v4684
        %v4686 = vpop.f32.mrf.mxu0
        %v4687 = vpop.f32.mrf.mxu0
        %v4688 = vadd.f32 %v4591, %v4687
        %v4689 = vpop.f32.mrf.mxu0
        %4690 = vdwg.mxu0
        %v4691 = vmax.f32 %v4661, 0.0
        %v4692 = vmax.f32 %v4664, 0.0
        %v4693 = vmax.f32 %v4669, 0.0
        %v4694 = vmax.f32 %v4672, 0.0
        %v4695 = vmax.f32 %v4677, 0.0
        %v4696 = vmax.f32 %v4680, 0.0
        %v4697 = vmax.f32 %v4685, 0.0
        %v4698 = vmax.f32 %v4688, 0.0
        %v4699 = vmul.f32 %v4691, %v552
        %v4700 = vmul.f32 %v4692, %v552
        %v4701 = vmul.f32 %v4693, %v552
        %v4702 = vmul.f32 %v4694, %v552
        %v4703 = vmul.f32 %v4695, %v552
        %v4704 = vmul.f32 %v4696, %v552
        %v4705 = vmul.f32 %v4697, %v552
        %v4706 = vmul.f32 %v4698, %v552
        %4707 = vrot.lane.b32.xlu0 %v4699, 1
        %v4708 = vpop.permute.xlu0 %4707
        %4709 = vrot.lane.b32.xlu0 %v4700, 1
        %v4710 = vpop.permute.xlu0 %4709
        %4711 = vrot.lane.b32.xlu0 %v4701, 1
        %v4712 = vpop.permute.xlu0 %4711
        %4713 = vrot.lane.b32.xlu0 %v4702, 1
        %v4714 = vpop.permute.xlu0 %4713
        %4715 = vrot.lane.b32.xlu0 %v4703, 1
        %v4716 = vpop.permute.xlu0 %4715
        %4717 = vrot.lane.b32.xlu0 %v4704, 1
        %v4718 = vpop.permute.xlu0 %4717
        %4719 = vrot.lane.b32.xlu0 %v4705, 1
        %v4720 = vpop.permute.xlu0 %4719
        %4721 = vrot.lane.b32.xlu0 %v4706, 1
        %v4722 = vpop.permute.xlu0 %4721
        %v4723 = vmul.f32 %v4708, %v555
        %v4724 = vmul.f32 %v4710, %v555
        %v4725 = vmul.f32 %v4712, %v555
        %v4726 = vmul.f32 %v4714, %v555
        %v4727 = vmul.f32 %v4716, %v555
        %v4728 = vmul.f32 %v4718, %v555
        %v4729 = vmul.f32 %v4720, %v555
        %v4730 = vmul.f32 %v4722, %v555
        %4731 = vrot.lane.b32.xlu0 %v4699, 127
        %v4732 = vpop.permute.xlu0 %4731
        %4733 = vrot.lane.b32.xlu0 %v4700, 127
        %v4734 = vpop.permute.xlu0 %4733
        %4735 = vrot.lane.b32.xlu0 %v4701, 127
        %v4736 = vpop.permute.xlu0 %4735
        %4737 = vrot.lane.b32.xlu0 %v4702, 127
        %v4738 = vpop.permute.xlu0 %4737
        %4739 = vrot.lane.b32.xlu0 %v4703, 127
        %v4740 = vpop.permute.xlu0 %4739
        %4741 = vrot.lane.b32.xlu0 %v4704, 127
        %v4742 = vpop.permute.xlu0 %4741
        %4743 = vrot.lane.b32.xlu0 %v4705, 127
        %v4744 = vpop.permute.xlu0 %4743
        %4745 = vrot.lane.b32.xlu0 %v4706, 127
        %v4746 = vpop.permute.xlu0 %4745
        %v4747 = vmul.f32 %v4732, %v558
        %v4748 = vmul.f32 %v4734, %v558
        %v4749 = vmul.f32 %v4736, %v558
        %v4750 = vmul.f32 %v4738, %v558
        %v4751 = vmul.f32 %v4740, %v558
        %v4752 = vmul.f32 %v4742, %v558
        %v4753 = vmul.f32 %v4744, %v558
        %v4754 = vmul.f32 %v4746, %v558
        %v4755 = vld [vmem:[%s12] sm:$0xff]
        %v4756 = vld [vmem:[%s12 + $0x8] sm:$0xff]
        %v4757 = vld [vmem:[%s12 + $0x10] sm:$0xff]
        %v4758 = vld [vmem:[%s12 + $0x18] sm:$0xff]
        %v4759 = vpack.c.bf16 %v4724, %v4723
        %v4760 = vpack.c.bf16 %v4726, %v4725
        %v4761 = vpack.c.bf16 %v4728, %v4727
        %v4762 = vpack.c.bf16 %v4730, %v4729
        %v4763 = vpack.c.bf16 %v4700, %v4699
        %v4764 = vpack.c.bf16 %v4702, %v4701
        %v4765 = vpack.c.bf16 %v4704, %v4703
        %v4766 = vpack.c.bf16 %v4706, %v4705
        %v4767 = vpack.c.bf16 %v4748, %v4747
        %v4768 = vpack.c.bf16 %v4750, %v4749
        %v4769 = vpack.c.bf16 %v4752, %v4751
        %v4770 = vpack.c.bf16 %v4754, %v4753
        %4772 = vset.pattern.permute.xlu0 0
        %4773 = vperm.xlu0 %4772, %v541
        %v4774 = vpop.permute.xlu0 %4773
        %4777 = vset.pattern.permute.xlu0 0
        %4778 = vperm.xlu0 %4777, %v542
        %v4779 = vpop.permute.xlu0 %4778
        %4782 = vset.pattern.permute.xlu0 0
        %4783 = vperm.xlu0 %4782, %v543
        %v4784 = vpop.permute.xlu0 %4783
        %4787 = vset.pattern.permute.xlu0 0
        %4788 = vperm.xlu0 %4787, %v544
        %v4789 = vpop.permute.xlu0 %4788
        %v4795 = vunpack.c.l.b16 %v4755
        %v4796 = vunpack.c.h.b16 %v4755
        %v4797 = vunpack.c.l.b16 %v4756
        %v4798 = vunpack.c.h.b16 %v4756
        %v4799 = vunpack.c.l.b16 %v4757
        %v4800 = vunpack.c.h.b16 %v4757
        %v4801 = vunpack.c.l.b16 %v4758
        %v4802 = vunpack.c.h.b16 %v4758
        %v4803 = vpack.c.b16 %v4797, %v4795
        %v4804 = vpack.c.b16 %v4798, %v4796
        %v4805 = vpack.c.b16 %v4801, %v4799
        %v4806 = vpack.c.b16 %v4802, %v4800
        %vm4809 = vcmask 523264
        %v4811 = vsel %vm4809, %v4804, 0
        %v4814 = vsel %vm4809, %v4806, 0
        %4816 = vmatprep.subr.bf16.mxu0 0
        %4817 = vmatpush1.bf16.msra.mxu0 %v4766
        %4818 = vmatprep.subr.bf16.mxu0 0
        %4819 = vmatpush1.bf16.msra.mxu0 %v4765
        %4820 = vmatprep.subr.bf16.mxu0 0
        %4821 = vmatpush1.bf16.msra.mxu0 %v4764
        %4822 = vmatprep.subr.bf16.mxu0 0
        %4823 = vmatpush1.bf16.msra.mxu0 %v4763
        %4824 = vmatprep.subr.bf16.mxu0 0
        %4825 = vmatpush1.bf16.msra.mxu0 %v4762
        %4826 = vmatprep.subr.bf16.mxu0 0
        %4827 = vmatpush1.bf16.msra.mxu0 %v4761
        %4828 = vmatprep.subr.bf16.mxu0 0
        %4829 = vmatpush1.bf16.msra.mxu0 %v4760
        %4830 = vmatprep.subr.bf16.mxu0 0
        %4831 = vmatpush1.bf16.msra.mxu0 %v4759
        %4832 = vmatprep.subr.bf16.mxu0 0
        %4833 = vmatpush2.bf16.msra.mxu0 0
        %4834 = vmatprep.subr.bf16.mxu0 0
        %4835 = vmatpush2.bf16.msra.mxu0 0
        %4836 = vmatprep.subr.bf16.mxu0 0
        %4837 = vmatpush2.bf16.msra.mxu0 0
        %4838 = vmatprep.subr.bf16.mxu0 0
        %4839 = vmatpush2.bf16.msra.mxu0 0
        %4840 = vmatprep.subr.bf16.mxu0 0
        %4841 = vmatpush2.bf16.msra.mxu0 %v4770
        %4842 = vmatprep.subr.bf16.mxu0 0
        %4843 = vmatpush2.bf16.msra.mxu0 %v4769
        %4844 = vmatprep.subr.bf16.mxu0 0
        %4845 = vmatpush2.bf16.msra.mxu0 %v4768
        %4846 = vmatprep.subr.bf16.mxu0 0
        %4847 = vmatpush2.bf16.msra.mxu0 %v4767
        %4848 = vmatprep.mubr.bf16.mxu0 %v4811
        %4849 = vmatmul.mubr.bf16.gmra.mxu0 %v4803
        %v4850 = vpop.f32.mrf.mxu0
        %v4851 = vadd.f32 %v4774, %v4850
        %v4852 = vpop.f32.mrf.mxu0
        %v4853 = vpop.f32.mrf.mxu0
        %v4854 = vadd.f32 %v4779, %v4853
        %v4855 = vpop.f32.mrf.mxu0
        %4856 = vmatprep.mubr.bf16.mxu0 %v4814
        %4857 = vmatmul.mubr.bf16.gmra.mxu0 %v4805
        %v4858 = vpop.f32.mrf.mxu0
        %v4859 = vadd.f32 %v4784, %v4858
        %v4860 = vpop.f32.mrf.mxu0
        %v4861 = vpop.f32.mrf.mxu0
        %v4862 = vadd.f32 %v4789, %v4861
        %v4863 = vpop.f32.mrf.mxu0
        %4864 = vdwg.mxu0
        %v4865 = vmul.f32 %v4851, %v552
        %v4866 = vmul.f32 %v4854, %v552
        %v4867 = vmul.f32 %v4859, %v552
        %v4868 = vmul.f32 %v4862, %v552
        %4870 = vset.pattern.permute.xlu0 0
        %4871 = vperm.xlu0 %4870, %v1005
        %v4872 = vpop.permute.xlu0 %4871
        %4875 = vset.pattern.permute.xlu0 0
        %4876 = vperm.xlu0 %4875, %v1010
        %v4877 = vpop.permute.xlu0 %4876
        %4880 = vset.pattern.permute.xlu0 0
        %4881 = vperm.xlu0 %4880, %v1015
        %v4882 = vpop.permute.xlu0 %4881
        %4885 = vset.pattern.permute.xlu0 0
        %4886 = vperm.xlu0 %4885, %v1020
        %v4887 = vpop.permute.xlu0 %4886
        %v4889 = vmul.f32 %v4872, %v4865
        %v4890 = vmul.f32 %v4877, %v4866
        %v4891 = vmul.f32 %v4882, %v4867
        %v4892 = vmul.f32 %v4887, %v4868
        %v4893 = vadd.f32 %v4889, %v4421
        %v4894 = vadd.f32 %v4890, %v4422
        %v4895 = vadd.f32 %v4891, %v4423
        %v4896 = vadd.f32 %v4892, %v4424
        %v4897 = vmul.f32 %v4893, %v552
        %v4898 = vmul.f32 %v4894, %v552
        %v4899 = vmul.f32 %v4895, %v552
        %v4900 = vmul.f32 %v4896, %v552
        %4901 = vst [vmem:[%s448] sm:$0xff] %v4897
        %4902 = vst [vmem:[%s448 + $0x8] sm:$0xff] %v4898
        %4903 = vst [vmem:[%s448 + $0x10] sm:$0xff] %v4899
        %4904 = vst [vmem:[%s448 + $0x18] sm:$0xff] %v4900
        %s4905 = sand.u32 %s313, 1
        %s4906 = scalar_lea.sflag [#allocation6], %s4905
        %s4907 = sand.u32 %s313, 1
        %s4908 = smul.addr %s4907, 32
        %s4909 = scalar_lea.vmem [#allocation5], %s4908
        // Predicated region
        $region69: #{tpu_custom_call.1} parent=67 // pred_check
          %p4910 = pneg %p323
        $region70: #{tpu_custom_call.1} parent=67 // pred_check_branch
          %4912 = sbr.rel (%p4910) target = $region72
        $region71: #{tpu_custom_call.1} parent=67 // pred_region
          %s4914 = ssub.s32 512, 512
          %4915 = vsyncadd %s4906, %s4914
          %s4916 = smul.addr %s38, 4
          %s4917 = smul.addr %s4916, 128
          %s4918 = scalar_lea.hbm %s14, %s4917
          %s4919 = sshll.u32 %s4909, 4
          %s4920 = int_to_ptr.vmem [resolvable:$true] %s4919
          %4925 = dma.vmem_to_hbm [thread:$0]  %s4920, 512, %s4918, %s4906, 128, 128, 8
        $region72: #{tpu_custom_call.1} parent=67 // pred_fallthru
          _
      $region68: #{tpu_custom_call.1} parent=5 // pred_fallthru
        _
      %p4926 = scmp.le.s32.totalorder 2, %s33
      // Predicated region
      $region73: #{tpu_custom_call.1} parent=5 // pred_check
        %p4927 = pneg %p4926
      $region74: #{tpu_custom_call.1} parent=5 // pred_check_branch
        %4929 = sbr.rel (%p4927) target = $region76
      $region75: #{tpu_custom_call.1} parent=5 // pred_region
        %s4930 = ssub.s32 %s33, 2
        // Predicated region
        $region77: #{tpu_custom_call.1} parent=75 // pred_check
          %p4931 = pneg %p329
        $region78: #{tpu_custom_call.1} parent=75 // pred_check_branch
          %4933 = sbr.rel (%p4931) target = $region80
        $region79: #{tpu_custom_call.1} parent=75 // pred_region
          %s4934 = sand.u32 %s314, 1
          %s4935 = scalar_lea.sflag [#allocation6], %s4934
          %s4936 = sand.u32 %s314, 1
          %s4937 = smul.addr %s4936, 32
          %s4938 = scalar_lea.vmem [#allocation5], %s4937
          %4939 = dma.done %s4935, 512
        $region80: #{tpu_custom_call.1} parent=75 // pred_fallthru
          _
      $region76: #{tpu_custom_call.1} parent=5 // pred_fallthru
        _
    $region6: #{tpu_custom_call.1} parent=1 // loop_footer
      %s37 = sadd.s32 1, %s33
    $region7: #{tpu_custom_call.1} parent=1 // loop_footer_branch
      %32 = sbr.rel target = $region3
    $region8: #{tpu_custom_call.1} parent=1 // loop_exit
      _
    %4940 = vsyncpa [#allocation6], 1
    %s4941 = scalar_lea.sflag [#allocation6], 1
    %4942 = vsyncpa %s4941, 1

// kernel: tpu_custom_call.1
$region0: #{tpu_custom_call.1}
  #allocation0 [shape = 'u32[]', space=smem, size = 0x4, offset = 0x4, fixed_abs, tag = 'smem constant byte address 0x4 - core index']
  #allocation1 [shape = 'u32[144,128]{1,0:T(1,128)}', space=vmem, size = 0x12000, scoped, tag = 'internal scratch']
  #allocation2 [shape = 's32[1]{0}', space=sflag, size = 0x4, scoped, tag = 'scoped memory for tpu_custom_call.1']
  #allocation3 [shape = 'u8[512]{0}', space=smem, size = 0x200, scoped, tag = 'prefetched SMEM operand 0']
  #allocation4 [shape = 'u8[512]{0}', space=smem, size = 0x200, scoped, tag = 'prefetched SMEM operand 1']
  %s0 = inlined_call_operand.vmem [shape: s32[2], index: 0, kind: input, shape index: {}]
  %s1 = inlined_call_operand.vmem [shape: s32[2], index: 1, kind: input, shape index: {}]
  %s2 = inlined_call_operand.vmem [shape: f32[2,32,128], index: 2, kind: input, shape index: {}]
  %s3 = inlined_call_operand.vmem [shape: f32[2,32,128], index: 3, kind: input, shape index: {}]
  %s4 = inlined_call_operand.vmem [shape: f32[2,16,1], index: 4, kind: input, shape index: {}]
  %s5 = inlined_call_operand.vmem [shape: f32[32,16], index: 5, kind: input, shape index: {}]
  %s6 = inlined_call_operand.vmem [shape: f32[192,32], index: 6, kind: input, shape index: {}]
  %s7 = inlined_call_operand.vmem [shape: bf16[96,32], index: 7, kind: input, shape index: {}]
  %s8 = inlined_call_operand.vmem [shape: bf16[32,32], index: 8, kind: input, shape index: {}]
  %s9 = inlined_call_operand.vmem [shape: bf16[96,32], index: 9, kind: input, shape index: {}]
  %s10 = inlined_call_operand.vmem [shape: bf16[32,32], index: 10, kind: input, shape index: {}]
  %s11 = inlined_call_operand.vmem [shape: bf16[64,96], index: 11, kind: input, shape index: {}]
  %s12 = inlined_call_operand.vmem [shape: bf16[32,192], index: 12, kind: input, shape index: {}]
  %s13 = inlined_call_operand.vmem [shape: f32[640,1], index: 13, kind: input, shape index: {}]
  %s14 = inlined_call_operand.hbm [shape: f32[2,32,128], index: 14, kind: output, shape index: {}]
  %s15 = sld [smem:[#allocation0]]
  $region81: #{tpu_custom_call.1} parent=0
    _
  %s17 = ssub.s32 1, %s15
  %s18 = scalar_select 0, %s17, %s15
  %s19 = sshll.u32 %s0, 4
  %s20 = int_to_ptr.vmem [resolvable:$true] %s19
  %22 = dma.vmem_to_smem %s20, 16, [#allocation3], [#allocation2]
  %s23 = sshll.u32 %s1, 4
  %s24 = int_to_ptr.vmem [resolvable:$true] %s23
  %26 = dma.vmem_to_smem %s24, 16, [#allocation4], [#allocation2]
  %27 = dma.done [#allocation2], 32
  %28 = sfence
  $region1: #{tpu_custom_call.1} parent=0
    #allocation5 [shape = 'u8[32768]{0}', space=vmem, size = 0x8000, scoped, tag = 'output window, operand 0']
    #allocation6 [shape = 's32[2]{0}', space=sflag, size = 0x8, scoped, tag = 'scoped memory for tpu_custom_call.1']
    %29 = vsyncpa [#allocation6], 0
    %s30 = scalar_lea.sflag [#allocation6], 1
    %31 = vsyncpa %s30, 0
    loop: start=0, step=1, limit=4
    $region2: #{tpu_custom_call.1} parent=1 // loop_pre_header
      _
    $region3: #{tpu_custom_call.1} parent=1 // loop_header
      %s33 = sphi 0, %s37
      %p34 = scmp.ge.s32.totalorder %s33, 4
      %s43 = sphi 0, %s45
      %s46 = sphi 0, %s43
      %s47 = sphi 0, %s46
      %s63 = sphi 0, %s47
      %s69 = sphi 0, %s71
      %s72 = sphi 0, %s69
      %s73 = sphi 0, %s72
      %s89 = sphi 0, %s73
      %s95 = sphi 0, %s97
      %s98 = sphi 0, %s95
      %s99 = sphi 0, %s98
      %s115 = sphi 0, %s99
      %s119 = sphi 0, %s119
      %s121 = sphi 0, %s119
      %s122 = sphi 0, %s121
      %s136 = sphi 0, %s122
      %s140 = sphi 0, %s140
      %s142 = sphi 0, %s140
      %s143 = sphi 0, %s142
      %s157 = sphi 0, %s143
      %s161 = sphi 0, %s161
      %s163 = sphi 0, %s161
      %s164 = sphi 0, %s163
      %s178 = sphi 0, %s164
      %s182 = sphi 0, %s182
      %s184 = sphi 0, %s182
      %s185 = sphi 0, %s184
      %s199 = sphi 0, %s185
      %s203 = sphi 0, %s203
      %s205 = sphi 0, %s203
      %s206 = sphi 0, %s205
      %s220 = sphi 0, %s206
      %s224 = sphi 0, %s224
      %s226 = sphi 0, %s224
      %s227 = sphi 0, %s226
      %s241 = sphi 0, %s227
      %s245 = sphi 0, %s245
      %s247 = sphi 0, %s245
      %s248 = sphi 0, %s247
      %s262 = sphi 0, %s248
      %s266 = sphi 0, %s266
      %s268 = sphi 0, %s266
      %s269 = sphi 0, %s268
      %s283 = sphi 0, %s269
      %s287 = sphi 0, %s287
      %s289 = sphi 0, %s287
      %s290 = sphi 0, %s289
      %s304 = sphi 0, %s290
      %s310 = sphi 0, %s312
      %s313 = sphi 0, %s310
      %s314 = sphi 0, %s313
      %s330 = sphi 0, %s314
    $region4: #{tpu_custom_call.1} parent=1 // loop_header_branch
      %36 = sbr.rel (%p34) target = $region8
    $region5: #{tpu_custom_call.1} parent=1 // loop_body
      %s38 = ssub.s32 %s33, 1
      %s39 = ssub.s32 %s33, 2
      %s40 = sadd.s32 %s33, 1
      %s41 = ssub.s32 %s33, %s40
      %p42 = scmp.eq.s32.totalorder %s41, 0
      %s44 = sadd.s32 %s43, 1
      %s45 = scalar_select %p42, %s43, %s44
      %p48 = pneg %p42
      %p49 = scmp.eq.s32.totalorder %s33, 1
      %p50 = por %p48, %p49
      %p51 = scmp.ne.s32.totalorder %s43, %s46
      %p52 = scmp.eq.s32.totalorder %s33, 0
      %p53 = por %p51, %p52
      %p54 = scmp.ne.s32.totalorder %s43, %s46
      %p55 = scmp.eq.s32.totalorder %s38, 1
      %p56 = por %p54, %p55
      %p57 = scmp.ne.s32.totalorder %s46, %s47
      %p58 = scmp.eq.s32.totalorder %s38, 0
      %p59 = por %p57, %p58
      %p60 = scmp.ne.s32.totalorder %s46, %s47
      %p61 = scmp.eq.s32.totalorder %s39, 1
      %p62 = por %p60, %p61
      %p64 = scmp.ne.s32.totalorder %s47, %s63
      %p65 = scmp.eq.s32.totalorder %s39, 0
      %p66 = por %p64, %p65
      %s67 = ssub.s32 %s33, %s40
      %p68 = scmp.eq.s32.totalorder %s67, 0
      %s70 = sadd.s32 %s69, 1
      %s71 = scalar_select %p68, %s69, %s70
      %p74 = pneg %p68
      %p75 = scmp.eq.s32.totalorder %s33, 1
      %p76 = por %p74, %p75
      %p77 = scmp.ne.s32.totalorder %s69, %s72
      %p78 = scmp.eq.s32.totalorder %s33, 0
      %p79 = por %p77, %p78
      %p80 = scmp.ne.s32.totalorder %s69, %s72
      %p81 = scmp.eq.s32.totalorder %s38, 1
      %p82 = por %p80, %p81
      %p83 = scmp.ne.s32.totalorder %s72, %s73
      %p84 = scmp.eq.s32.totalorder %s38, 0
      %p85 = por %p83, %p84
      %p86 = scmp.ne.s32.totalorder %s72, %s73
      %p87 = scmp.eq.s32.totalorder %s39, 1
      %p88 = por %p86, %p87
      %p90 = scmp.ne.s32.totalorder %s73, %s89
      %p91 = scmp.eq.s32.totalorder %s39, 0
      %p92 = por %p90, %p91
      %s93 = ssub.s32 %s33, %s40
      %p94 = scmp.eq.s32.totalorder %s93, 0
      %s96 = sadd.s32 %s95, 1
      %s97 = scalar_select %p94, %s95, %s96
      %p100 = pneg %p94
      %p101 = scmp.eq.s32.totalorder %s33, 1
      %p102 = por %p100, %p101
      %p103 = scmp.ne.s32.totalorder %s95, %s98
      %p104 = scmp.eq.s32.totalorder %s33, 0
      %p105 = por %p103, %p104
      %p106 = scmp.ne.s32.totalorder %s95, %s98
      %p107 = scmp.eq.s32.totalorder %s38, 1
      %p108 = por %p106, %p107
      %p109 = scmp.ne.s32.totalorder %s98, %s99
      %p110 = scmp.eq.s32.totalorder %s38, 0
      %p111 = por %p109, %p110
      %p112 = scmp.ne.s32.totalorder %s98, %s99
      %p113 = scmp.eq.s32.totalorder %s39, 1
      %p114 = por %p112, %p113
      %p116 = scmp.ne.s32.totalorder %s99, %s115
      %p117 = scmp.eq.s32.totalorder %s39, 0
      %p118 = por %p116, %p117
      %s120 = sadd.s32 %s119, 1
      %p123 = scmp.eq.s32.totalorder %s33, 1
      %p124 = scmp.ne.s32.totalorder %s119, %s121
      %p125 = scmp.eq.s32.totalorder %s33, 0
      %p126 = por %p124, %p125
      %p127 = scmp.ne.s32.totalorder %s119, %s121
      %p128 = scmp.eq.s32.totalorder %s38, 1
      %p129 = por %p127, %p128
      %p130 = scmp.ne.s32.totalorder %s121, %s122
      %p131 = scmp.eq.s32.totalorder %s38, 0
      %p132 = por %p130, %p131
      %p133 = scmp.ne.s32.totalorder %s121, %s122
      %p134 = scmp.eq.s32.totalorder %s39, 1
      %p135 = por %p133, %p134
      %p137 = scmp.ne.s32.totalorder %s122, %s136
      %p138 = scmp.eq.s32.totalorder %s39, 0
      %p139 = por %p137, %p138
      %s141 = sadd.s32 %s140, 1
      %p144 = scmp.eq.s32.totalorder %s33, 1
      %p145 = scmp.ne.s32.totalorder %s140, %s142
      %p146 = scmp.eq.s32.totalorder %s33, 0
      %p147 = por %p145, %p146
      %p148 = scmp.ne.s32.totalorder %s140, %s142
      %p149 = scmp.eq.s32.totalorder %s38, 1
      %p150 = por %p148, %p149
      %p151 = scmp.ne.s32.totalorder %s142, %s143
      %p152 = scmp.eq.s32.totalorder %s38, 0
      %p153 = por %p151, %p152
      %p154 = scmp.ne.s32.totalorder %s142, %s143
      %p155 = scmp.eq.s32.totalorder %s39, 1
      %p156 = por %p154, %p155
      %p158 = scmp.ne.s32.totalorder %s143, %s157
      %p159 = scmp.eq.s32.totalorder %s39, 0
      %p160 = por %p158, %p159
      %s162 = sadd.s32 %s161, 1
      %p165 = scmp.eq.s32.totalorder %s33, 1
      %p166 = scmp.ne.s32.totalorder %s161, %s163
      %p167 = scmp.eq.s32.totalorder %s33, 0
      %p168 = por %p166, %p167
      %p169 = scmp.ne.s32.totalorder %s161, %s163
      %p170 = scmp.eq.s32.totalorder %s38, 1
      %p171 = por %p169, %p170
      %p172 = scmp.ne.s32.totalorder %s163, %s164
      %p173 = scmp.eq.s32.totalorder %s38, 0
      %p174 = por %p172, %p173
      %p175 = scmp.ne.s32.totalorder %s163, %s164
      %p176 = scmp.eq.s32.totalorder %s39, 1
      %p177 = por %p175, %p176
      %p179 = scmp.ne.s32.totalorder %s164, %s178
      %p180 = scmp.eq.s32.totalorder %s39, 0
      %p181 = por %p179, %p180
      %s183 = sadd.s32 %s182, 1
      %p186 = scmp.eq.s32.totalorder %s33, 1
      %p187 = scmp.ne.s32.totalorder %s182, %s184
      %p188 = scmp.eq.s32.totalorder %s33, 0
      %p189 = por %p187, %p188
      %p190 = scmp.ne.s32.totalorder %s182, %s184
      %p191 = scmp.eq.s32.totalorder %s38, 1
      %p192 = por %p190, %p191
      %p193 = scmp.ne.s32.totalorder %s184, %s185
      %p194 = scmp.eq.s32.totalorder %s38, 0
      %p195 = por %p193, %p194
      %p196 = scmp.ne.s32.totalorder %s184, %s185
      %p197 = scmp.eq.s32.totalorder %s39, 1
      %p198 = por %p196, %p197
      %p200 = scmp.ne.s32.totalorder %s185, %s199
      %p201 = scmp.eq.s32.totalorder %s39, 0
      %p202 = por %p200, %p201
      %s204 = sadd.s32 %s203, 1
      %p207 = scmp.eq.s32.totalorder %s33, 1
      %p208 = scmp.ne.s32.totalorder %s203, %s205
      %p209 = scmp.eq.s32.totalorder %s33, 0
      %p210 = por %p208, %p209
      %p211 = scmp.ne.s32.totalorder %s203, %s205
      %p212 = scmp.eq.s32.totalorder %s38, 1
      %p213 = por %p211, %p212
      %p214 = scmp.ne.s32.totalorder %s205, %s206
      %p215 = scmp.eq.s32.totalorder %s38, 0
      %p216 = por %p214, %p215
      %p217 = scmp.ne.s32.totalorder %s205, %s206
      %p218 = scmp.eq.s32.totalorder %s39, 1
      %p219 = por %p217, %p218
      %p221 = scmp.ne.s32.totalorder %s206, %s220
      %p222 = scmp.eq.s32.totalorder %s39, 0
      %p223 = por %p221, %p222
      %s225 = sadd.s32 %s224, 1
      %p228 = scmp.eq.s32.totalorder %s33, 1
      %p229 = scmp.ne.s32.totalorder %s224, %s226
      %p230 = scmp.eq.s32.totalorder %s33, 0
      %p231 = por %p229, %p230
      %p232 = scmp.ne.s32.totalorder %s224, %s226
      %p233 = scmp.eq.s32.totalorder %s38, 1
      %p234 = por %p232, %p233
      %p235 = scmp.ne.s32.totalorder %s226, %s227
      %p236 = scmp.eq.s32.totalorder %s38, 0
      %p237 = por %p235, %p236
      %p238 = scmp.ne.s32.totalorder %s226, %s227
      %p239 = scmp.eq.s32.totalorder %s39, 1
      %p240 = por %p238, %p239
      %p242 = scmp.ne.s32.totalorder %s227, %s241
      %p243 = scmp.eq.s32.totalorder %s39, 0
      %p244 = por %p242, %p243
      %s246 = sadd.s32 %s245, 1
      %p249 = scmp.eq.s32.totalorder %s33, 1
      %p250 = scmp.ne.s32.totalorder %s245, %s247
      %p251 = scmp.eq.s32.totalorder %s33, 0
      %p252 = por %p250, %p251
      %p253 = scmp.ne.s32.totalorder %s245, %s247
      %p254 = scmp.eq.s32.totalorder %s38, 1
      %p255 = por %p253, %p254
      %p256 = scmp.ne.s32.totalorder %s247, %s248
      %p257 = scmp.eq.s32.totalorder %s38, 0
      %p258 = por %p256, %p257
      %p259 = scmp.ne.s32.totalorder %s247, %s248
      %p260 = scmp.eq.s32.totalorder %s39, 1
      %p261 = por %p259, %p260
      %p263 = scmp.ne.s32.totalorder %s248, %s262
      %p264 = scmp.eq.s32.totalorder %s39, 0
      %p265 = por %p263, %p264
      %s267 = sadd.s32 %s266, 1
      %p270 = scmp.eq.s32.totalorder %s33, 1
      %p271 = scmp.ne.s32.totalorder %s266, %s268
      %p272 = scmp.eq.s32.totalorder %s33, 0
      %p273 = por %p271, %p272
      %p274 = scmp.ne.s32.totalorder %s266, %s268
      %p275 = scmp.eq.s32.totalorder %s38, 1
      %p276 = por %p274, %p275
      %p277 = scmp.ne.s32.totalorder %s268, %s269
      %p278 = scmp.eq.s32.totalorder %s38, 0
      %p279 = por %p277, %p278
      %p280 = scmp.ne.s32.totalorder %s268, %s269
      %p281 = scmp.eq.s32.totalorder %s39, 1
      %p282 = por %p280, %p281
      %p284 = scmp.ne.s32.totalorder %s269, %s283
      %p285 = scmp.eq.s32.totalorder %s39, 0
      %p286 = por %p284, %p285
      %s288 = sadd.s32 %s287, 1
      %p291 = scmp.eq.s32.totalorder %s33, 1
      %p292 = scmp.ne.s32.totalorder %s287, %s289
      %p293 = scmp.eq.s32.totalorder %s33, 0
      %p294 = por %p292, %p293
      %p295 = scmp.ne.s32.totalorder %s287, %s289
      %p296 = scmp.eq.s32.totalorder %s38, 1
      %p297 = por %p295, %p296
      %p298 = scmp.ne.s32.totalorder %s289, %s290
      %p299 = scmp.eq.s32.totalorder %s38, 0
      %p300 = por %p298, %p299
      %p301 = scmp.ne.s32.totalorder %s289, %s290
      %p302 = scmp.eq.s32.totalorder %s39, 1
      %p303 = por %p301, %p302
      %p305 = scmp.ne.s32.totalorder %s290, %s304
      %p306 = scmp.eq.s32.totalorder %s39, 0
      %p307 = por %p305, %p306
      %s308 = ssub.s32 %s33, %s40
      %p309 = scmp.eq.s32.totalorder %s308, 0
      %s311 = sadd.s32 %s310, 1
      %s312 = scalar_select %p309, %s310, %s311
      %p315 = pneg %p309
      %p316 = scmp.eq.s32.totalorder %s33, 1
      %p317 = por %p315, %p316
      %p318 = scmp.ne.s32.totalorder %s310, %s313
      %p319 = scmp.eq.s32.totalorder %s33, 0
      %p320 = por %p318, %p319
      %p321 = scmp.ne.s32.totalorder %s310, %s313
      %p322 = scmp.eq.s32.totalorder %s38, 1
      %p323 = por %p321, %p322
      %p324 = scmp.ne.s32.totalorder %s313, %s314
      %p325 = scmp.eq.s32.totalorder %s38, 0
      %p326 = por %p324, %p325
      %p327 = scmp.ne.s32.totalorder %s313, %s314
      %p328 = scmp.eq.s32.totalorder %s39, 1
      %p329 = por %p327, %p328
      %p331 = scmp.ne.s32.totalorder %s314, %s330
      %p332 = scmp.eq.s32.totalorder %s39, 0
      %p333 = por %p331, %p332
      %p334 = scmp.le.s32.totalorder 1, %s33
      %p335 = scmp.lt.s32.totalorder %s33, 3
      %p336 = pnand %p334, %p335
      %p337 = pneg %p336
      // Predicated region
      $region9: #{tpu_custom_call.1} parent=5 // pred_check
        _
      $region10: #{tpu_custom_call.1} parent=5 // pred_check_branch
        %339 = sbr.rel (%p336) target = $region12
      $region11: #{tpu_custom_call.1} parent=5 // pred_region
        %s340 = ssub.s32 %s33, 1
        // Predicated region
        $region13: #{tpu_custom_call.1} parent=11 // pred_check
          %p341 = pneg %p132
        $region14: #{tpu_custom_call.1} parent=11 // pred_check_branch
          %343 = sbr.rel (%p341) target = $region16
        $region15: #{tpu_custom_call.1} parent=11 // pred_region
          _
        $region16: #{tpu_custom_call.1} parent=11 // pred_fallthru
          _
        // Predicated region
        $region17: #{tpu_custom_call.1} parent=11 // pred_check
          %p344 = pneg %p153
        $region18: #{tpu_custom_call.1} parent=11 // pred_check_branch
          %346 = sbr.rel (%p344) target = $region20
        $region19: #{tpu_custom_call.1} parent=11 // pred_region
          _
        $region20: #{tpu_custom_call.1} parent=11 // pred_fallthru
          _
        // Predicated region
        $region21: #{tpu_custom_call.1} parent=11 // pred_check
          %p347 = pneg %p174
        $region22: #{tpu_custom_call.1} parent=11 // pred_check_branch
          %349 = sbr.rel (%p347) target = $region24
        $region23: #{tpu_custom_call.1} parent=11 // pred_region
          _
        $region24: #{tpu_custom_call.1} parent=11 // pred_fallthru
          _
        // Predicated region
        $region25: #{tpu_custom_call.1} parent=11 // pred_check
          %p350 = pneg %p195
        $region26: #{tpu_custom_call.1} parent=11 // pred_check_branch
          %352 = sbr.rel (%p350) target = $region28
        $region27: #{tpu_custom_call.1} parent=11 // pred_region
          _
        $region28: #{tpu_custom_call.1} parent=11 // pred_fallthru
          _
        // Predicated region
        $region29: #{tpu_custom_call.1} parent=11 // pred_check
          %p353 = pneg %p216
        $region30: #{tpu_custom_call.1} parent=11 // pred_check_branch
          %355 = sbr.rel (%p353) target = $region32
        $region31: #{tpu_custom_call.1} parent=11 // pred_region
          _
        $region32: #{tpu_custom_call.1} parent=11 // pred_fallthru
          _
        // Predicated region
        $region33: #{tpu_custom_call.1} parent=11 // pred_check
          %p356 = pneg %p237
        $region34: #{tpu_custom_call.1} parent=11 // pred_check_branch
          %358 = sbr.rel (%p356) target = $region36
        $region35: #{tpu_custom_call.1} parent=11 // pred_region
          _
        $region36: #{tpu_custom_call.1} parent=11 // pred_fallthru
          _
        // Predicated region
        $region37: #{tpu_custom_call.1} parent=11 // pred_check
          %p359 = pneg %p258
        $region38: #{tpu_custom_call.1} parent=11 // pred_check_branch
          %361 = sbr.rel (%p359) target = $region40
        $region39: #{tpu_custom_call.1} parent=11 // pred_region
          _
        $region40: #{tpu_custom_call.1} parent=11 // pred_fallthru
          _
        // Predicated region
        $region41: #{tpu_custom_call.1} parent=11 // pred_check
          %p362 = pneg %p279
        $region42: #{tpu_custom_call.1} parent=11 // pred_check_branch
          %364 = sbr.rel (%p362) target = $region44
        $region43: #{tpu_custom_call.1} parent=11 // pred_region
          _
        $region44: #{tpu_custom_call.1} parent=11 // pred_fallthru
          _
        // Predicated region
        $region45: #{tpu_custom_call.1} parent=11 // pred_check
          %p365 = pneg %p300
        $region46: #{tpu_custom_call.1} parent=11 // pred_check_branch
          %367 = sbr.rel (%p365) target = $region48
        $region47: #{tpu_custom_call.1} parent=11 // pred_region
          _
        $region48: #{tpu_custom_call.1} parent=11 // pred_fallthru
          _
      $region12: #{tpu_custom_call.1} parent=5 // pred_fallthru
        _
      %p368 = scmp.lt.s32.totalorder %s33, 2
      // Predicated region
      $region49: #{tpu_custom_call.1} parent=5 // pred_check
        %p369 = pneg %p368
      $region50: #{tpu_custom_call.1} parent=5 // pred_check_branch
        %371 = sbr.rel (%p369) target = $region52
      $region51: #{tpu_custom_call.1} parent=5 // pred_region
        // Predicated region
        $region53: #{tpu_custom_call.1} parent=51 // pred_check
          %p372 = pneg %p53
        $region54: #{tpu_custom_call.1} parent=51 // pred_check_branch
          %374 = sbr.rel (%p372) target = $region56
        $region55: #{tpu_custom_call.1} parent=51 // pred_region
          %p375 = scmp.lt.s32.totalorder %s33, 1
          %s376 = scalar_select %p375, %s33, 1
          %s377 = smul.addr %s376, 4
          %s378 = smul.addr %s377, 8
          %s379 = scalar_lea.vmem %s2, %s378
        $region56: #{tpu_custom_call.1} parent=51 // pred_fallthru
          _
        // Predicated region
        $region57: #{tpu_custom_call.1} parent=51 // pred_check
          %p380 = pneg %p79
        $region58: #{tpu_custom_call.1} parent=51 // pred_check_branch
          %382 = sbr.rel (%p380) target = $region60
        $region59: #{tpu_custom_call.1} parent=51 // pred_region
          %p383 = scmp.lt.s32.totalorder %s33, 1
          %s384 = scalar_select %p383, %s33, 1
          %s385 = smul.addr %s384, 4
          %s386 = smul.addr %s385, 8
          %s387 = scalar_lea.vmem %s3, %s386
        $region60: #{tpu_custom_call.1} parent=51 // pred_fallthru
          _
        // Predicated region
        $region61: #{tpu_custom_call.1} parent=51 // pred_check
          %p388 = pneg %p105
        $region62: #{tpu_custom_call.1} parent=51 // pred_check_branch
          %390 = sbr.rel (%p388) target = $region64
        $region63: #{tpu_custom_call.1} parent=51 // pred_region
          %p391 = scmp.lt.s32.totalorder %s33, 1
          %s392 = scalar_select %p391, %s33, 1
          %s393 = smul.addr %s392, 2
          %s394 = smul.addr %s393, 8
          %s395 = scalar_lea.vmem %s4, %s394
        $region64: #{tpu_custom_call.1} parent=51 // pred_fallthru
          _
      $region52: #{tpu_custom_call.1} parent=5 // pred_fallthru
        _
      %p396 = scmp.le.s32.totalorder 1, %s33
      %p397 = scmp.lt.s32.totalorder %s33, 3
      %p398 = pnand %p396, %p397
      %p399 = pneg %p398
      // Predicated region
      $region65: #{tpu_custom_call.1} parent=5 // pred_check
        _
      $region66: #{tpu_custom_call.1} parent=5 // pred_check_branch
        %401 = sbr.rel (%p398) target = $region68
      $region67: #{tpu_custom_call.1} parent=5 // pred_region
        %s402 = ssub.s32 %s33, 1
        %p403 = scmp.lt.s32.totalorder %s38, 1
        %s404 = scalar_select %p403, %s38, 1
        %s405 = smul.addr %s404, 4
        %s406 = smul.addr %s405, 8
        %s407 = scalar_lea.vmem %s2, %s406
        %p408 = pneg %p59
        %p409 = pneg %p56
        %p410 = scmp.lt.s32.totalorder %s38, 1
        %s411 = scalar_select %p410, %s38, 1
        %s412 = smul.addr %s411, 4
        %s413 = smul.addr %s412, 8
        %s414 = scalar_lea.vmem %s3, %s413
        %p415 = pneg %p85
        %p416 = pneg %p82
        %p417 = scmp.lt.s32.totalorder %s38, 1
        %s418 = scalar_select %p417, %s38, 1
        %s419 = smul.addr %s418, 2
        %s420 = smul.addr %s419, 8
        %s421 = scalar_lea.vmem %s4, %s420
        %p422 = pneg %p111
        %p423 = pneg %p108
        %p424 = pneg %p132
        %p425 = pneg %p129
        %p426 = pneg %p153
        %p427 = pneg %p150
        %p428 = pneg %p174
        %p429 = pneg %p171
        %p430 = pneg %p195
        %p431 = pneg %p192
        %p432 = pneg %p216
        %p433 = pneg %p213
        %p434 = pneg %p237
        %p435 = pneg %p234
        %p436 = pneg %p258
        %p437 = pneg %p255
        %p438 = pneg %p279
        %p439 = pneg %p276
        %p440 = pneg %p300
        %p441 = pneg %p297
        %p442 = pneg %p326
        %p443 = pneg %p323
        %s444 = sand.u32 %s313, 1
        %s445 = scalar_lea.sflag [#allocation6], %s444
        %s446 = sand.u32 %s313, 1
        %s447 = smul.addr %s446, 32
        %s448 = scalar_lea.vmem [#allocation5], %s447
        %p449 = scmp.lt.s32.totalorder %s38, 1
        %s450 = scalar_select %p449, %s38, 1
        %s451 = smul.addr %s450, 4
        %s452 = smul.addr %s451, 8
        %s453 = scalar_lea.vmem %s2, %s452
        %p454 = scmp.lt.s32.totalorder %s38, 1
        %s455 = scalar_select %p454, %s38, 1
        %s456 = smul.addr %s455, 4
        %s457 = smul.addr %s456, 8
        %s458 = scalar_lea.vmem %s3, %s457
        %p459 = scmp.lt.s32.totalorder %s38, 1
        %s460 = scalar_select %p459, %s38, 1
        %s461 = smul.addr %s460, 2
        %s462 = smul.addr %s461, 8
        %s463 = scalar_lea.vmem %s4, %s462
        %v465 = vld [vmem:[%s13] sm:$0xff]
        %v466 = vld [vmem:[%s13 + $0x8] sm:$0xff]
        %v467 = vld [vmem:[%s13 + $0x10] sm:$0xff]
        %v468 = vld [vmem:[%s13 + $0x18] sm:$0xff]
        %v469 = vld [vmem:[%s13 + $0x20] sm:$0xff]
        %v470 = vld [vmem:[%s13 + $0x28] sm:$0xff]
        %v471 = vld [vmem:[%s13 + $0x30] sm:$0xff]
        %v472 = vld [vmem:[%s13 + $0x38] sm:$0xff]
        %v473 = vld [vmem:[%s13 + $0x40] sm:$0xff]
        %v474 = vld [vmem:[%s13 + $0x48] sm:$0xff]
        %v475 = vld [vmem:[%s13 + $0x50] sm:$0xff]
        %v476 = vld [vmem:[%s13 + $0x58] sm:$0xff]
        %v477 = vld [vmem:[%s13 + $0x60] sm:$0xff]
        %v478 = vld [vmem:[%s13 + $0x68] sm:$0xff]
        %v479 = vld [vmem:[%s13 + $0x70] sm:$0xff]
        %v480 = vld [vmem:[%s13 + $0x78] sm:$0xff]
        %v481 = vld [vmem:[%s13 + $0x80] sm:$0xff]
        %v482 = vld [vmem:[%s13 + $0x88] sm:$0xff]
        %v483 = vld [vmem:[%s13 + $0x90] sm:$0xff]
        %v484 = vld [vmem:[%s13 + $0x98] sm:$0xff]
        %v485 = vld [vmem:[%s13 + $0xa0] sm:$0xff]
        %v486 = vld [vmem:[%s13 + $0xa8] sm:$0xff]
        %v487 = vld [vmem:[%s13 + $0xb0] sm:$0xff]
        %v488 = vld [vmem:[%s13 + $0xb8] sm:$0xff]
        %v489 = vld [vmem:[%s13 + $0xc0] sm:$0xff]
        %v490 = vld [vmem:[%s13 + $0xc8] sm:$0xff]
        %v491 = vld [vmem:[%s13 + $0xd0] sm:$0xff]
        %v492 = vld [vmem:[%s13 + $0xd8] sm:$0xff]
        %v493 = vld [vmem:[%s13 + $0xe0] sm:$0xff]
        %v494 = vld [vmem:[%s13 + $0xe8] sm:$0xff]
        %v495 = vld [vmem:[%s13 + $0xf0] sm:$0xff]
        %v496 = vld [vmem:[%s13 + $0xf8] sm:$0xff]
        %v497 = vld [vmem:[%s13 + $0x100] sm:$0xff]
        %v498 = vld [vmem:[%s13 + $0x108] sm:$0xff]
        %v499 = vld [vmem:[%s13 + $0x110] sm:$0xff]
        %v500 = vld [vmem:[%s13 + $0x118] sm:$0xff]
        %v501 = vld [vmem:[%s13 + $0x120] sm:$0xff]
        %v502 = vld [vmem:[%s13 + $0x128] sm:$0xff]
        %v503 = vld [vmem:[%s13 + $0x130] sm:$0xff]
        %v504 = vld [vmem:[%s13 + $0x138] sm:$0xff]
        %v505 = vld [vmem:[%s13 + $0x140] sm:$0xff]
        %v506 = vld [vmem:[%s13 + $0x148] sm:$0xff]
        %v507 = vld [vmem:[%s13 + $0x150] sm:$0xff]
        %v508 = vld [vmem:[%s13 + $0x158] sm:$0xff]
        %v509 = vld [vmem:[%s13 + $0x160] sm:$0xff]
        %v510 = vld [vmem:[%s13 + $0x168] sm:$0xff]
        %v511 = vld [vmem:[%s13 + $0x170] sm:$0xff]
        %v512 = vld [vmem:[%s13 + $0x178] sm:$0xff]
        %v513 = vld [vmem:[%s13 + $0x180] sm:$0xff]
        %v514 = vld [vmem:[%s13 + $0x188] sm:$0xff]
        %v515 = vld [vmem:[%s13 + $0x190] sm:$0xff]
        %v516 = vld [vmem:[%s13 + $0x198] sm:$0xff]
        %v517 = vld [vmem:[%s13 + $0x1a0] sm:$0xff]
        %v518 = vld [vmem:[%s13 + $0x1a8] sm:$0xff]
        %v519 = vld [vmem:[%s13 + $0x1b0] sm:$0xff]
        %v520 = vld [vmem:[%s13 + $0x1b8] sm:$0xff]
        %v521 = vld [vmem:[%s13 + $0x1c0] sm:$0xff]
        %v522 = vld [vmem:[%s13 + $0x1c8] sm:$0xff]
        %v523 = vld [vmem:[%s13 + $0x1d0] sm:$0xff]
        %v524 = vld [vmem:[%s13 + $0x1d8] sm:$0xff]
        %v525 = vld [vmem:[%s13 + $0x1e0] sm:$0xff]
        %v526 = vld [vmem:[%s13 + $0x1e8] sm:$0xff]
        %v527 = vld [vmem:[%s13 + $0x1f0] sm:$0xff]
        %v528 = vld [vmem:[%s13 + $0x1f8] sm:$0xff]
        %v529 = vld [vmem:[%s13 + $0x200] sm:$0xff]
        %v530 = vld [vmem:[%s13 + $0x208] sm:$0xff]
        %v531 = vld [vmem:[%s13 + $0x210] sm:$0xff]
        %v532 = vld [vmem:[%s13 + $0x218] sm:$0xff]
        %v533 = vld [vmem:[%s13 + $0x220] sm:$0xff]
        %v534 = vld [vmem:[%s13 + $0x228] sm:$0xff]
        %v535 = vld [vmem:[%s13 + $0x230] sm:$0xff]
        %v536 = vld [vmem:[%s13 + $0x238] sm:$0xff]
        %v537 = vld [vmem:[%s13 + $0x240] sm:$0xff]
        %v538 = vld [vmem:[%s13 + $0x248] sm:$0xff]
        %v539 = vld [vmem:[%s13 + $0x250] sm:$0xff]
        %v540 = vld [vmem:[%s13 + $0x258] sm:$0xff]
        %v541 = vld [vmem:[%s13 + $0x260] sm:$0xff]
        %v542 = vld [vmem:[%s13 + $0x268] sm:$0xff]
        %v543 = vld [vmem:[%s13 + $0x270] sm:$0xff]
        %v544 = vld [vmem:[%s13 + $0x278] sm:$0xff]
        %s545 = sld [smem:[#allocation3 + %s38]]
        %s546 = sld [smem:[#allocation4 + %s38]]
        %v547 = vlaneseq
        %v548 = vand.u32 %v547, 127
        %v549 = vstv %s545
        %vm550 = vcmp.lt.s32.totalorder %v548, %v549
        %v551 = vsel %vm550, 1, 0
        %v552 = vcvt.s32.f32 %v551
        %vm553 = vcmp.gt.s32.totalorder %v548, 0
        %v554 = vsel %vm553, 1, 0
        %v555 = vcvt.s32.f32 %v554
        %vm556 = vcmp.lt.s32.totalorder %v548, 127
        %v557 = vsel %vm556, 1, 0
        %v558 = vcvt.s32.f32 %v557
        %v559 = vlaneseq
        %v560 = vshrl.u32 %v559, 7
        %v561 = vadd.s32 %v560, 8
        %v562 = vadd.s32 %v560, 16
        %v563 = vadd.s32 %v560, 24
        %v564 = vadd.s32 %v560, 32
        %v565 = vadd.s32 %v560, 40
        %v566 = vadd.s32 %v560, 48
        %v567 = vadd.s32 %v560, 56
        %v568 = vadd.s32 %v560, 64
        %v569 = vadd.s32 %v560, 72
        %v570 = vadd.s32 %v560, 80
        %v571 = vadd.s32 %v560, 88
        %v572 = vadd.s32 %v560, 96
        %v573 = vadd.s32 %v560, 104
        %v574 = vadd.s32 %v560, 112
        %v575 = vadd.s32 %v560, 120
        %vm576 = vcmp.lt.s32.totalorder %v560, %v549
        %vm577 = vcmp.lt.s32.totalorder %v561, %v549
        %vm578 = vcmp.lt.s32.totalorder %v562, %v549
        %vm579 = vcmp.lt.s32.totalorder %v563, %v549
        %vm580 = vcmp.lt.s32.totalorder %v564, %v549
        %vm581 = vcmp.lt.s32.totalorder %v565, %v549
        %vm582 = vcmp.lt.s32.totalorder %v566, %v549
        %vm583 = vcmp.lt.s32.totalorder %v567, %v549
        %vm584 = vcmp.lt.s32.totalorder %v568, %v549
        %vm585 = vcmp.lt.s32.totalorder %v569, %v549
        %vm586 = vcmp.lt.s32.totalorder %v570, %v549
        %vm587 = vcmp.lt.s32.totalorder %v571, %v549
        %vm588 = vcmp.lt.s32.totalorder %v572, %v549
        %vm589 = vcmp.lt.s32.totalorder %v573, %v549
        %vm590 = vcmp.lt.s32.totalorder %v574, %v549
        %vm591 = vcmp.lt.s32.totalorder %v575, %v549
        %v592 = vstv %s546
        %vm593 = vcmp.lt.s32.totalorder %v560, %v592
        %vm594 = vcmp.lt.s32.totalorder %v561, %v592
        %vm595 = vcmp.lt.s32.totalorder %v562, %v592
        %vm596 = vcmp.lt.s32.totalorder %v563, %v592
        %vm597 = vcmp.lt.s32.totalorder %v564, %v592
        %vm598 = vcmp.lt.s32.totalorder %v565, %v592
        %vm599 = vcmp.lt.s32.totalorder %v566, %v592
        %vm600 = vcmp.lt.s32.totalorder %v567, %v592
        %vm601 = vcmp.lt.s32.totalorder %v568, %v592
        %vm602 = vcmp.lt.s32.totalorder %v569, %v592
        %vm603 = vcmp.lt.s32.totalorder %v570, %v592
        %vm604 = vcmp.lt.s32.totalorder %v571, %v592
        %vm605 = vcmp.lt.s32.totalorder %v572, %v592
        %vm606 = vcmp.lt.s32.totalorder %v573, %v592
        %vm607 = vcmp.lt.s32.totalorder %v574, %v592
        %vm608 = vcmp.lt.s32.totalorder %v575, %v592
        %v609 = vld [vmem:[%s453] sm:$0xff]
        %v610 = vld [vmem:[%s453 + $0x8] sm:$0xff]
        %v611 = vld [vmem:[%s453 + $0x10] sm:$0xff]
        %v612 = vld [vmem:[%s453 + $0x18] sm:$0xff]
        %v613 = vld [vmem:[%s458] sm:$0xff]
        %v614 = vld [vmem:[%s458 + $0x8] sm:$0xff]
        %v615 = vld [vmem:[%s458 + $0x10] sm:$0xff]
        %v616 = vld [vmem:[%s458 + $0x18] sm:$0xff]
        %v617 = vld [vmem:[%s463] sm:$0xff]
        %v618 = vld [vmem:[%s463 + $0x8] sm:$0xff]
        %v619 = vld [vmem:[%s5] sm:$0xff]
        %v620 = vld [vmem:[%s5 + $0x8] sm:$0xff]
        %v621 = vld [vmem:[%s5 + $0x10] sm:$0xff]
        %v622 = vld [vmem:[%s5 + $0x18] sm:$0xff]
        %vm623 = vcmask 130048
        %v625 = vsel %vm623, %v619, 0
        %v628 = vsel %vm623, %v620, 0
        %v631 = vsel %vm623, %v621, 0
        %v634 = vsel %vm623, %v622, 0
        %636 = vmatprep.subr.mxu0 0.0
        %637 = vmatpush1.msra.mxu0 0.0
        %638 = vmatprep.subr.mxu0 0.0
        %639 = vmatpush1.msra.mxu0 0.0
        %640 = vmatprep.subr.mxu0 0.0
        %641 = vmatpush1.msra.mxu0 0.0
        %642 = vmatprep.subr.mxu0 0.0
        %643 = vmatpush1.msra.mxu0 0.0
        %644 = vmatprep.subr.mxu0 0.0
        %645 = vmatpush1.msra.mxu0 0.0
        %646 = vmatprep.subr.mxu0 0.0
        %647 = vmatpush1.msra.mxu0 0.0
        %648 = vmatprep.subr.mxu0 0.0
        %649 = vmatpush1.msra.mxu0 0.0
        %650 = vmatprep.subr.mxu0 0.0
        %651 = vmatpush1.msra.mxu0 0.0
        %652 = vmatprep.subr.mxu0 0.0
        %653 = vmatpush1.msra.mxu0 0.0
        %654 = vmatprep.subr.mxu0 0.0
        %655 = vmatpush1.msra.mxu0 0.0
        %656 = vmatprep.subr.mxu0 0.0
        %657 = vmatpush1.msra.mxu0 0.0
        %658 = vmatprep.subr.mxu0 0.0
        %659 = vmatpush1.msra.mxu0 0.0
        %660 = vmatprep.subr.mxu0 0.0
        %661 = vmatpush1.msra.mxu0 0.0
        %662 = vmatprep.subr.mxu0 0.0
        %663 = vmatpush1.msra.mxu0 0.0
        %664 = vmatprep.subr.mxu0 0.0
        %665 = vmatpush1.msra.mxu0 %v618
        %666 = vmatprep.subr.mxu0 0.0
        %667 = vmatpush1.msra.mxu0 %v617
        %668 = vmatprep.subr.mxu0 0.0
        %669 = vmatpush2.msra.mxu0 0.0
        %670 = vmatprep.subr.mxu0 0.0
        %671 = vmatpush2.msra.mxu0 0.0
        %672 = vmatprep.subr.mxu0 0.0
        %673 = vmatpush2.msra.mxu0 0.0
        %674 = vmatprep.subr.mxu0 0.0
        %675 = vmatpush2.msra.mxu0 0.0
        %676 = vmatprep.subr.mxu0 0.0
        %677 = vmatpush2.msra.mxu0 0.0
        %678 = vmatprep.subr.mxu0 0.0
        %679 = vmatpush2.msra.mxu0 0.0
        %680 = vmatprep.subr.mxu0 0.0
        %681 = vmatpush2.msra.mxu0 0.0
        %682 = vmatprep.subr.mxu0 0.0
        %683 = vmatpush2.msra.mxu0 0.0
        %684 = vmatprep.subr.mxu0 0.0
        %685 = vmatpush2.msra.mxu0 0.0
        %686 = vmatprep.subr.mxu0 0.0
        %687 = vmatpush2.msra.mxu0 0.0
        %688 = vmatprep.subr.mxu0 0.0
        %689 = vmatpush2.msra.mxu0 0.0
        %690 = vmatprep.subr.mxu0 0.0
        %691 = vmatpush2.msra.mxu0 0.0
        %692 = vmatprep.subr.mxu0 0.0
        %693 = vmatpush2.msra.mxu0 0.0
        %694 = vmatprep.subr.mxu0 0.0
        %695 = vmatpush2.msra.mxu0 0.0
        %696 = vmatprep.subr.mxu0 0.0
        %697 = vmatpush2.msra.mxu0 0.0
        %698 = vmatprep.subr.mxu0 0.0
        %699 = vmatpush2.msra.mxu0 0.0
        %700 = vmatprep.mubr.f32.mxu0 0.0
        %701 = vmatmul.mubr.f32.gmra.mxu0 %v625
        %v702 = vpop.f32.mrf.mxu0
        %v703 = vadd.f32 %v465, %v702
        %v704 = vpop.f32.mrf.mxu0
        %705 = vmatprep.mubr.f32.mxu0 0.0
        %706 = vmatmul.mubr.f32.gmra.mxu0 %v628
        %v707 = vpop.f32.mrf.mxu0
        %v708 = vadd.f32 %v466, %v707
        %v709 = vpop.f32.mrf.mxu0
        %710 = vmatprep.mubr.f32.mxu0 0.0
        %711 = vmatmul.mubr.f32.gmra.mxu0 %v631
        %v712 = vpop.f32.mrf.mxu0
        %v713 = vadd.f32 %v467, %v712
        %v714 = vpop.f32.mrf.mxu0
        %715 = vmatprep.mubr.f32.mxu0 0.0
        %716 = vmatmul.mubr.f32.gmra.mxu0 %v634
        %v717 = vpop.f32.mrf.mxu0
        %v718 = vadd.f32 %v468, %v717
        %v719 = vpop.f32.mrf.mxu0
        %720 = vdwg.mxu0
        %v721 = vmul.f32 %v703, 0.5
        %v722 = vmul.f32 %v708, 0.5
        %v723 = vmul.f32 %v713, 0.5
        %v724 = vmul.f32 %v718, 0.5
        %v725 = vtanh.pop %v721
        %v726 = vtanh.pop %v722
        %v727 = vtanh.pop %v723
        %v728 = vtanh.pop %v724
        %v729 = vadd.f32 %v725, 1.0
        %v730 = vadd.f32 %v726, 1.0
        %v731 = vadd.f32 %v727, 1.0
        %v732 = vadd.f32 %v728, 1.0
        %v733 = vmul.f32 %v729, 0.5
        %v734 = vmul.f32 %v730, 0.5
        %v735 = vmul.f32 %v731, 0.5
        %v736 = vmul.f32 %v732, 0.5
        %v737 = vmul.f32 %v703, %v733
        %v738 = vmul.f32 %v708, %v734
        %v739 = vmul.f32 %v713, %v735
        %v740 = vmul.f32 %v718, %v736
        %v741 = vld [vmem:[%s6] sm:$0xff]
        %v742 = vld [vmem:[%s6 + $0x8] sm:$0xff]
        %v743 = vld [vmem:[%s6 + $0x10] sm:$0xff]
        %v744 = vld [vmem:[%s6 + $0x18] sm:$0xff]
        %v745 = vld [vmem:[%s6 + $0x20] sm:$0xff]
        %v746 = vld [vmem:[%s6 + $0x28] sm:$0xff]
        %v747 = vld [vmem:[%s6 + $0x30] sm:$0xff]
        %v748 = vld [vmem:[%s6 + $0x38] sm:$0xff]
        %v749 = vld [vmem:[%s6 + $0x40] sm:$0xff]
        %v750 = vld [vmem:[%s6 + $0x48] sm:$0xff]
        %v751 = vld [vmem:[%s6 + $0x50] sm:$0xff]
        %v752 = vld [vmem:[%s6 + $0x58] sm:$0xff]
        %v753 = vld [vmem:[%s6 + $0x60] sm:$0xff]
        %v754 = vld [vmem:[%s6 + $0x68] sm:$0xff]
        %v755 = vld [vmem:[%s6 + $0x70] sm:$0xff]
        %v756 = vld [vmem:[%s6 + $0x78] sm:$0xff]
        %v757 = vld [vmem:[%s6 + $0x80] sm:$0xff]
        %v758 = vld [vmem:[%s6 + $0x88] sm:$0xff]
        %v759 = vld [vmem:[%s6 + $0x90] sm:$0xff]
        %v760 = vld [vmem:[%s6 + $0x98] sm:$0xff]
        %v761 = vld [vmem:[%s6 + $0xa0] sm:$0xff]
        %v762 = vld [vmem:[%s6 + $0xa8] sm:$0xff]
        %v763 = vld [vmem:[%s6 + $0xb0] sm:$0xff]
        %v764 = vld [vmem:[%s6 + $0xb8] sm:$0xff]
        %vm765 = vcmask 261120
        %v767 = vsel %vm765, %v741, 0
        %v770 = vsel %vm765, %v742, 0
        %v773 = vsel %vm765, %v743, 0
        %v776 = vsel %vm765, %v744, 0
        %v779 = vsel %vm765, %v745, 0
        %v782 = vsel %vm765, %v746, 0
        %v785 = vsel %vm765, %v747, 0
        %v788 = vsel %vm765, %v748, 0
        %v791 = vsel %vm765, %v749, 0
        %v794 = vsel %vm765, %v750, 0
        %v797 = vsel %vm765, %v751, 0
        %v800 = vsel %vm765, %v752, 0
        %v803 = vsel %vm765, %v753, 0
        %v806 = vsel %vm765, %v754, 0
        %v809 = vsel %vm765, %v755, 0
        %v812 = vsel %vm765, %v756, 0
        %v815 = vsel %vm765, %v757, 0
        %v818 = vsel %vm765, %v758, 0
        %v821 = vsel %vm765, %v759, 0
        %v824 = vsel %vm765, %v760, 0
        %v827 = vsel %vm765, %v761, 0
        %v830 = vsel %vm765, %v762, 0
        %v833 = vsel %vm765, %v763, 0
        %v836 = vsel %vm765, %v764, 0
        %838 = vmatprep.subr.mxu0 0.0
        %839 = vmatpush1.msra.mxu0 0.0
        %840 = vmatprep.subr.mxu0 0.0
        %841 = vmatpush1.msra.mxu0 0.0
        %842 = vmatprep.subr.mxu0 0.0
        %843 = vmatpush1.msra.mxu0 0.0
        %844 = vmatprep.subr.mxu0 0.0
        %845 = vmatpush1.msra.mxu0 0.0
        %846 = vmatprep.subr.mxu0 0.0
        %847 = vmatpush1.msra.mxu0 0.0
        %848 = vmatprep.subr.mxu0 0.0
        %849 = vmatpush1.msra.mxu0 0.0
        %850 = vmatprep.subr.mxu0 0.0
        %851 = vmatpush1.msra.mxu0 0.0
        %852 = vmatprep.subr.mxu0 0.0
        %853 = vmatpush1.msra.mxu0 0.0
        %854 = vmatprep.subr.mxu0 0.0
        %855 = vmatpush1.msra.mxu0 0.0
        %856 = vmatprep.subr.mxu0 0.0
        %857 = vmatpush1.msra.mxu0 0.0
        %858 = vmatprep.subr.mxu0 0.0
        %859 = vmatpush1.msra.mxu0 0.0
        %860 = vmatprep.subr.mxu0 0.0
        %861 = vmatpush1.msra.mxu0 0.0
        %862 = vmatprep.subr.mxu0 0.0
        %863 = vmatpush1.msra.mxu0 %v740
        %864 = vmatprep.subr.mxu0 0.0
        %865 = vmatpush1.msra.mxu0 %v739
        %866 = vmatprep.subr.mxu0 0.0
        %867 = vmatpush1.msra.mxu0 %v738
        %868 = vmatprep.subr.mxu0 0.0
        %869 = vmatpush1.msra.mxu0 %v737
        %870 = vmatprep.subr.mxu0 0.0
        %871 = vmatpush2.msra.mxu0 0.0
        %872 = vmatprep.subr.mxu0 0.0
        %873 = vmatpush2.msra.mxu0 0.0
        %874 = vmatprep.subr.mxu0 0.0
        %875 = vmatpush2.msra.mxu0 0.0
        %876 = vmatprep.subr.mxu0 0.0
        %877 = vmatpush2.msra.mxu0 0.0
        %878 = vmatprep.subr.mxu0 0.0
        %879 = vmatpush2.msra.mxu0 0.0
        %880 = vmatprep.subr.mxu0 0.0
        %881 = vmatpush2.msra.mxu0 0.0
        %882 = vmatprep.subr.mxu0 0.0
        %883 = vmatpush2.msra.mxu0 0.0
        %884 = vmatprep.subr.mxu0 0.0
        %885 = vmatpush2.msra.mxu0 0.0
        %886 = vmatprep.subr.mxu0 0.0
        %887 = vmatpush2.msra.mxu0 0.0
        %888 = vmatprep.subr.mxu0 0.0
        %889 = vmatpush2.msra.mxu0 0.0
        %890 = vmatprep.subr.mxu0 0.0
        %891 = vmatpush2.msra.mxu0 0.0
        %892 = vmatprep.subr.mxu0 0.0
        %893 = vmatpush2.msra.mxu0 0.0
        %894 = vmatprep.subr.mxu0 0.0
        %895 = vmatpush2.msra.mxu0 0.0
        %896 = vmatprep.subr.mxu0 0.0
        %897 = vmatpush2.msra.mxu0 0.0
        %898 = vmatprep.subr.mxu0 0.0
        %899 = vmatpush2.msra.mxu0 0.0
        %900 = vmatprep.subr.mxu0 0.0
        %901 = vmatpush2.msra.mxu0 0.0
        %902 = vmatprep.mubr.f32.mxu0 0.0
        %903 = vmatmul.mubr.f32.gmra.mxu0 %v767
        %v904 = vpop.f32.mrf.mxu0
        %v905 = vadd.f32 %v469, %v904
        %v906 = vpop.f32.mrf.mxu0
        %907 = vmatprep.mubr.f32.mxu0 0.0
        %908 = vmatmul.mubr.f32.gmra.mxu0 %v770
        %v909 = vpop.f32.mrf.mxu0
        %v910 = vadd.f32 %v470, %v909
        %v911 = vpop.f32.mrf.mxu0
        %912 = vmatprep.mubr.f32.mxu0 0.0
        %913 = vmatmul.mubr.f32.gmra.mxu0 %v773
        %v914 = vpop.f32.mrf.mxu0
        %v915 = vadd.f32 %v471, %v914
        %v916 = vpop.f32.mrf.mxu0
        %917 = vmatprep.mubr.f32.mxu0 0.0
        %918 = vmatmul.mubr.f32.gmra.mxu0 %v776
        %v919 = vpop.f32.mrf.mxu0
        %v920 = vadd.f32 %v472, %v919
        %v921 = vpop.f32.mrf.mxu0
        %922 = vmatprep.mubr.f32.mxu0 0.0
        %923 = vmatmul.mubr.f32.gmra.mxu0 %v779
        %v924 = vpop.f32.mrf.mxu0
        %v925 = vadd.f32 %v473, %v924
        %v926 = vpop.f32.mrf.mxu0
        %927 = vmatprep.mubr.f32.mxu0 0.0
        %928 = vmatmul.mubr.f32.gmra.mxu0 %v782
        %v929 = vpop.f32.mrf.mxu0
        %v930 = vadd.f32 %v474, %v929
        %v931 = vpop.f32.mrf.mxu0
        %932 = vmatprep.mubr.f32.mxu0 0.0
        %933 = vmatmul.mubr.f32.gmra.mxu0 %v785
        %v934 = vpop.f32.mrf.mxu0
        %v935 = vadd.f32 %v475, %v934
        %v936 = vpop.f32.mrf.mxu0
        %937 = vmatprep.mubr.f32.mxu0 0.0
        %938 = vmatmul.mubr.f32.gmra.mxu0 %v788
        %v939 = vpop.f32.mrf.mxu0
        %v940 = vadd.f32 %v476, %v939
        %v941 = vpop.f32.mrf.mxu0
        %942 = vmatprep.mubr.f32.mxu0 0.0
        %943 = vmatmul.mubr.f32.gmra.mxu0 %v791
        %v944 = vpop.f32.mrf.mxu0
        %v945 = vadd.f32 %v477, %v944
        %v946 = vpop.f32.mrf.mxu0
        %947 = vmatprep.mubr.f32.mxu0 0.0
        %948 = vmatmul.mubr.f32.gmra.mxu0 %v794
        %v949 = vpop.f32.mrf.mxu0
        %v950 = vadd.f32 %v478, %v949
        %v951 = vpop.f32.mrf.mxu0
        %952 = vmatprep.mubr.f32.mxu0 0.0
        %953 = vmatmul.mubr.f32.gmra.mxu0 %v797
        %v954 = vpop.f32.mrf.mxu0
        %v955 = vadd.f32 %v479, %v954
        %v956 = vpop.f32.mrf.mxu0
        %957 = vmatprep.mubr.f32.mxu0 0.0
        %958 = vmatmul.mubr.f32.gmra.mxu0 %v800
        %v959 = vpop.f32.mrf.mxu0
        %v960 = vadd.f32 %v480, %v959
        %v961 = vpop.f32.mrf.mxu0
        %962 = vmatprep.mubr.f32.mxu0 0.0
        %963 = vmatmul.mubr.f32.gmra.mxu0 %v803
        %v964 = vpop.f32.mrf.mxu0
        %v965 = vadd.f32 %v481, %v964
        %v966 = vpop.f32.mrf.mxu0
        %967 = vmatprep.mubr.f32.mxu0 0.0
        %968 = vmatmul.mubr.f32.gmra.mxu0 %v806
        %v969 = vpop.f32.mrf.mxu0
        %v970 = vadd.f32 %v482, %v969
        %v971 = vpop.f32.mrf.mxu0
        %972 = vmatprep.mubr.f32.mxu0 0.0
        %973 = vmatmul.mubr.f32.gmra.mxu0 %v809
        %v974 = vpop.f32.mrf.mxu0
        %v975 = vadd.f32 %v483, %v974
        %v976 = vpop.f32.mrf.mxu0
        %977 = vmatprep.mubr.f32.mxu0 0.0
        %978 = vmatmul.mubr.f32.gmra.mxu0 %v812
        %v979 = vpop.f32.mrf.mxu0
        %v980 = vadd.f32 %v484, %v979
        %v981 = vpop.f32.mrf.mxu0
        %982 = vmatprep.mubr.f32.mxu0 0.0
        %983 = vmatmul.mubr.f32.gmra.mxu0 %v815
        %v984 = vpop.f32.mrf.mxu0
        %v985 = vadd.f32 %v485, %v984
        %v986 = vpop.f32.mrf.mxu0
        %987 = vmatprep.mubr.f32.mxu0 0.0
        %988 = vmatmul.mubr.f32.gmra.mxu0 %v818
        %v989 = vpop.f32.mrf.mxu0
        %v990 = vadd.f32 %v486, %v989
        %v991 = vpop.f32.mrf.mxu0
        %992 = vmatprep.mubr.f32.mxu0 0.0
        %993 = vmatmul.mubr.f32.gmra.mxu0 %v821
        %v994 = vpop.f32.mrf.mxu0
        %v995 = vadd.f32 %v487, %v994
        %v996 = vpop.f32.mrf.mxu0
        %997 = vmatprep.mubr.f32.mxu0 0.0
        %998 = vmatmul.mubr.f32.gmra.mxu0 %v824
        %v999 = vpop.f32.mrf.mxu0
        %v1000 = vadd.f32 %v488, %v999
        %v1001 = vpop.f32.mrf.mxu0
        %1002 = vmatprep.mubr.f32.mxu0 0.0
        %1003 = vmatmul.mubr.f32.gmra.mxu0 %v827
        %v1004 = vpop.f32.mrf.mxu0
        %v1005 = vadd.f32 %v489, %v1004
        %v1006 = vpop.f32.mrf.mxu0
        %1007 = vmatprep.mubr.f32.mxu0 0.0
        %1008 = vmatmul.mubr.f32.gmra.mxu0 %v830
        %v1009 = vpop.f32.mrf.mxu0
        %v1010 = vadd.f32 %v490, %v1009
        %v1011 = vpop.f32.mrf.mxu0
        %1012 = vmatprep.mubr.f32.mxu0 0.0
        %1013 = vmatmul.mubr.f32.gmra.mxu0 %v833
        %v1014 = vpop.f32.mrf.mxu0
        %v1015 = vadd.f32 %v491, %v1014
        %v1016 = vpop.f32.mrf.mxu0
        %1017 = vmatprep.mubr.f32.mxu0 0.0
        %1018 = vmatmul.mubr.f32.gmra.mxu0 %v836
        %v1019 = vpop.f32.mrf.mxu0
        %v1020 = vadd.f32 %v492, %v1019
        %v1021 = vpop.f32.mrf.mxu0
        %1022 = vdwg.mxu0
        %v1023 = vadd.f32 %v609, %v610
        %v1024 = vadd.f32 %v1023, %v611
        %v1025 = vadd.f32 %v1024, %v612
        %v1026 = vrot.slane %v1025, 4
        %v1027 = vadd.f32 %v1025, %v1026
        %v1028 = vrot.slane %v1027, 2
        %v1029 = vadd.f32 %v1027, %v1028
        %v1030 = vrot.slane %v1029, 1
        %v1031 = vadd.f32 %v1029, %v1030
        %v1032 = vrcp.pop 32.0
        %v1033 = vmul.f32 %v1031, %v1032
        %v1034 = vsub.f32 %v609, %v1033
        %v1035 = vsub.f32 %v610, %v1033
        %v1036 = vsub.f32 %v611, %v1033
        %v1037 = vsub.f32 %v612, %v1033
        %v1038 = vmul.f32 %v1034, %v1034
        %v1039 = vmul.f32 %v1035, %v1035
        %v1040 = vmul.f32 %v1036, %v1036
        %v1041 = vmul.f32 %v1037, %v1037
        %v1042 = vadd.f32 %v1038, %v1039
        %v1043 = vadd.f32 %v1042, %v1040
        %v1044 = vadd.f32 %v1043, %v1041
        %v1045 = vrot.slane %v1044, 4
        %v1046 = vadd.f32 %v1044, %v1045
        %v1047 = vrot.slane %v1046, 2
        %v1048 = vadd.f32 %v1046, %v1047
        %v1049 = vrot.slane %v1048, 1
        %v1050 = vadd.f32 %v1048, %v1049
        %v1051 = vmul.f32 %v1050, %v1032
        %v1052 = vadd.f32 %v1051, 1e-06
        %v1053 = vrsqrt.pop %v1052
        %v1054 = vmul.f32 %v1034, %v1053
        %v1055 = vmul.f32 %v1035, %v1053
        %v1056 = vmul.f32 %v1036, %v1053
        %v1057 = vmul.f32 %v1037, %v1053
        %v1058 = vadd.f32 %v925, 1.0
        %v1059 = vadd.f32 %v930, 1.0
        %v1060 = vadd.f32 %v935, 1.0
        %v1061 = vadd.f32 %v940, 1.0
        %1063 = vset.pattern.permute.xlu0 0
        %1064 = vperm.xlu0 %1063, %v1058
        %v1065 = vpop.permute.xlu0 %1064
        %1068 = vset.pattern.permute.xlu0 0
        %1069 = vperm.xlu0 %1068, %v1059
        %v1070 = vpop.permute.xlu0 %1069
        %1073 = vset.pattern.permute.xlu0 0
        %1074 = vperm.xlu0 %1073, %v1060
        %v1075 = vpop.permute.xlu0 %1074
        %1078 = vset.pattern.permute.xlu0 0
        %1079 = vperm.xlu0 %1078, %v1061
        %v1080 = vpop.permute.xlu0 %1079
        %v1082 = vmul.f32 %v1054, %v1065
        %v1083 = vmul.f32 %v1055, %v1070
        %v1084 = vmul.f32 %v1056, %v1075
        %v1085 = vmul.f32 %v1057, %v1080
        %1087 = vset.pattern.permute.xlu0 0
        %1088 = vperm.xlu0 %1087, %v905
        %v1089 = vpop.permute.xlu0 %1088
        %1092 = vset.pattern.permute.xlu0 0
        %1093 = vperm.xlu0 %1092, %v910
        %v1094 = vpop.permute.xlu0 %1093
        %1097 = vset.pattern.permute.xlu0 0
        %1098 = vperm.xlu0 %1097, %v915
        %v1099 = vpop.permute.xlu0 %1098
        %1102 = vset.pattern.permute.xlu0 0
        %1103 = vperm.xlu0 %1102, %v920
        %v1104 = vpop.permute.xlu0 %1103
        %v1106 = vadd.f32 %v1082, %v1089
        %v1107 = vadd.f32 %v1083, %v1094
        %v1108 = vadd.f32 %v1084, %v1099
        %v1109 = vadd.f32 %v1085, %v1104
        %v1110 = vld [vmem:[%s7] sm:$0xf]
        %v1111 = vld [vmem:[%s7 + $0x4] sm:$0xf]
        %v1112 = vld [vmem:[%s7 + $0x8] sm:$0xf]
        %v1113 = vld [vmem:[%s7 + $0xc] sm:$0xf]
        %v1114 = vld [vmem:[%s7 + $0x10] sm:$0xf]
        %v1115 = vld [vmem:[%s7 + $0x14] sm:$0xf]
        %v1116 = vld [vmem:[%s7 + $0x18] sm:$0xf]
        %v1117 = vld [vmem:[%s7 + $0x1c] sm:$0xf]
        %v1118 = vld [vmem:[%s7 + $0x20] sm:$0xf]
        %v1119 = vld [vmem:[%s7 + $0x24] sm:$0xf]
        %v1120 = vld [vmem:[%s7 + $0x28] sm:$0xf]
        %v1121 = vld [vmem:[%s7 + $0x2c] sm:$0xf]
        %v1122 = vld [vmem:[%s8] sm:$0xf]
        %v1123 = vld [vmem:[%s8 + $0x4] sm:$0xf]
        %v1124 = vld [vmem:[%s8 + $0x8] sm:$0xf]
        %v1125 = vld [vmem:[%s8 + $0xc] sm:$0xf]
        %v1126 = vpack.c.bf16 %v1107, %v1106
        %v1127 = vpack.c.bf16 %v1109, %v1108
        %1129 = vset.pattern.permute.xlu0 0
        %1130 = vperm.xlu0 %1129, %v493
        %v1131 = vpop.permute.xlu0 %1130
        %1134 = vset.pattern.permute.xlu0 0
        %1135 = vperm.xlu0 %1134, %v494
        %v1136 = vpop.permute.xlu0 %1135
        %1139 = vset.pattern.permute.xlu0 0
        %1140 = vperm.xlu0 %1139, %v495
        %v1141 = vpop.permute.xlu0 %1140
        %1144 = vset.pattern.permute.xlu0 0
        %1145 = vperm.xlu0 %1144, %v496
        %v1146 = vpop.permute.xlu0 %1145
        %1149 = vset.pattern.permute.xlu0 0
        %1150 = vperm.xlu0 %1149, %v497
        %v1151 = vpop.permute.xlu0 %1150
        %1154 = vset.pattern.permute.xlu0 0
        %1155 = vperm.xlu0 %1154, %v498
        %v1156 = vpop.permute.xlu0 %1155
        %1159 = vset.pattern.permute.xlu0 0
        %1160 = vperm.xlu0 %1159, %v499
        %v1161 = vpop.permute.xlu0 %1160
        %1164 = vset.pattern.permute.xlu0 0
        %1165 = vperm.xlu0 %1164, %v500
        %v1166 = vpop.permute.xlu0 %1165
        %1169 = vset.pattern.permute.xlu0 0
        %1170 = vperm.xlu0 %1169, %v501
        %v1171 = vpop.permute.xlu0 %1170
        %1174 = vset.pattern.permute.xlu0 0
        %1175 = vperm.xlu0 %1174, %v502
        %v1176 = vpop.permute.xlu0 %1175
        %1179 = vset.pattern.permute.xlu0 0
        %1180 = vperm.xlu0 %1179, %v503
        %v1181 = vpop.permute.xlu0 %1180
        %1184 = vset.pattern.permute.xlu0 0
        %1185 = vperm.xlu0 %1184, %v504
        %v1186 = vpop.permute.xlu0 %1185
        %v1200 = vunpack.c.l.b16 %v1110
        %v1201 = vunpack.c.l.b16 %v1111
        %v1202 = vunpack.c.l.b16 %v1112
        %v1203 = vunpack.c.l.b16 %v1113
        %v1204 = vunpack.c.l.b16 %v1114
        %v1205 = vunpack.c.l.b16 %v1115
        %v1206 = vunpack.c.l.b16 %v1116
        %v1207 = vunpack.c.l.b16 %v1117
        %v1208 = vunpack.c.l.b16 %v1118
        %v1209 = vunpack.c.l.b16 %v1119
        %v1210 = vunpack.c.l.b16 %v1120
        %v1211 = vunpack.c.l.b16 %v1121
        %v1212 = vpack.c.b16 %v1201, %v1200
        %v1213 = vpack.c.b16 %v1203, %v1202
        %v1214 = vpack.c.b16 %v1205, %v1204
        %v1215 = vpack.c.b16 %v1207, %v1206
        %v1216 = vpack.c.b16 %v1209, %v1208
        %v1217 = vpack.c.b16 %v1211, %v1210
        %v1219 = vsel %vm765, %v1212, 0
        %v1222 = vsel %vm765, %v1213, 0
        %v1225 = vsel %vm765, %v1214, 0
        %v1228 = vsel %vm765, %v1215, 0
        %v1231 = vsel %vm765, %v1216, 0
        %v1234 = vsel %vm765, %v1217, 0
        %1236 = vmatprep.subr.bf16.mxu0 0
        %1237 = vmatpush1.bf16.msra.mxu0 0
        %1238 = vmatprep.subr.bf16.mxu0 0
        %1239 = vmatpush1.bf16.msra.mxu0 0
        %1240 = vmatprep.subr.bf16.mxu0 0
        %1241 = vmatpush1.bf16.msra.mxu0 0
        %1242 = vmatprep.subr.bf16.mxu0 0
        %1243 = vmatpush1.bf16.msra.mxu0 0
        %1244 = vmatprep.subr.bf16.mxu0 0
        %1245 = vmatpush1.bf16.msra.mxu0 0
        %1246 = vmatprep.subr.bf16.mxu0 0
        %1247 = vmatpush1.bf16.msra.mxu0 0
        %1248 = vmatprep.subr.bf16.mxu0 0
        %1249 = vmatpush1.bf16.msra.mxu0 %v1127
        %1250 = vmatprep.subr.bf16.mxu0 0
        %1251 = vmatpush1.bf16.msra.mxu0 %v1126
        %1252 = vmatprep.subr.bf16.mxu0 0
        %1253 = vmatpush2.bf16.msra.mxu0 0
        %1254 = vmatprep.subr.bf16.mxu0 0
        %1255 = vmatpush2.bf16.msra.mxu0 0
        %1256 = vmatprep.subr.bf16.mxu0 0
        %1257 = vmatpush2.bf16.msra.mxu0 0
        %1258 = vmatprep.subr.bf16.mxu0 0
        %1259 = vmatpush2.bf16.msra.mxu0 0
        %1260 = vmatprep.subr.bf16.mxu0 0
        %1261 = vmatpush2.bf16.msra.mxu0 0
        %1262 = vmatprep.subr.bf16.mxu0 0
        %1263 = vmatpush2.bf16.msra.mxu0 0
        %1264 = vmatprep.subr.bf16.mxu0 0
        %1265 = vmatpush2.bf16.msra.mxu0 0
        %1266 = vmatprep.subr.bf16.mxu0 0
        %1267 = vmatpush2.bf16.msra.mxu0 0
        %1268 = vmatprep.mubr.bf16.mxu0 0
        %1269 = vmatmul.mubr.bf16.gmra.mxu0 %v1219
        %v1270 = vpop.f32.mrf.mxu0
        %v1271 = vadd.f32 %v1131, %v1270
        %v1272 = vpop.f32.mrf.mxu0
        %v1273 = vpop.f32.mrf.mxu0
        %v1274 = vadd.f32 %v1136, %v1273
        %v1275 = vpop.f32.mrf.mxu0
        %1276 = vmatprep.mubr.bf16.mxu0 0
        %1277 = vmatmul.mubr.bf16.gmra.mxu0 %v1222
        %v1278 = vpop.f32.mrf.mxu0
        %v1279 = vadd.f32 %v1141, %v1278
        %v1280 = vpop.f32.mrf.mxu0
        %v1281 = vpop.f32.mrf.mxu0
        %v1282 = vadd.f32 %v1146, %v1281
        %v1283 = vpop.f32.mrf.mxu0
        %1284 = vmatprep.mubr.bf16.mxu0 0
        %1285 = vmatmul.mubr.bf16.gmra.mxu0 %v1225
        %v1286 = vpop.f32.mrf.mxu0
        %v1287 = vadd.f32 %v1151, %v1286
        %v1288 = vpop.f32.mrf.mxu0
        %v1289 = vpop.f32.mrf.mxu0
        %v1290 = vadd.f32 %v1156, %v1289
        %v1291 = vpop.f32.mrf.mxu0
        %1292 = vmatprep.mubr.bf16.mxu0 0
        %1293 = vmatmul.mubr.bf16.gmra.mxu0 %v1228
        %v1294 = vpop.f32.mrf.mxu0
        %v1295 = vadd.f32 %v1161, %v1294
        %v1296 = vpop.f32.mrf.mxu0
        %v1297 = vpop.f32.mrf.mxu0
        %v1298 = vadd.f32 %v1166, %v1297
        %v1299 = vpop.f32.mrf.mxu0
        %1300 = vmatprep.mubr.bf16.mxu0 0
        %1301 = vmatmul.mubr.bf16.gmra.mxu0 %v1231
        %v1302 = vpop.f32.mrf.mxu0
        %v1303 = vadd.f32 %v1171, %v1302
        %v1304 = vpop.f32.mrf.mxu0
        %v1305 = vpop.f32.mrf.mxu0
        %v1306 = vadd.f32 %v1176, %v1305
        %v1307 = vpop.f32.mrf.mxu0
        %1308 = vmatprep.mubr.bf16.mxu0 0
        %1309 = vmatmul.mubr.bf16.gmra.mxu0 %v1234
        %v1310 = vpop.f32.mrf.mxu0
        %v1311 = vadd.f32 %v1181, %v1310
        %v1312 = vpop.f32.mrf.mxu0
        %v1313 = vpop.f32.mrf.mxu0
        %v1314 = vadd.f32 %v1186, %v1313
        %v1315 = vpop.f32.mrf.mxu0
        %1316 = vdwg.mxu0
        %v1317 = vpack.c.bf16 %v1271, %v1271
        %v1318 = vpack.c.bf16 %v1274, %v1274
        %v1319 = vpack.c.bf16 %v1279, %v1279
        %v1320 = vpack.c.bf16 %v1282, %v1282
        %v1321 = vpack.c.bf16 %v1287, %v1287
        %v1322 = vpack.c.bf16 %v1290, %v1290
        %v1323 = vpack.c.bf16 %v1295, %v1295
        %v1324 = vpack.c.bf16 %v1298, %v1298
        %v1325 = vpack.c.bf16 %v1303, %v1303
        %v1326 = vpack.c.bf16 %v1306, %v1306
        %v1327 = vpack.c.bf16 %v1311, %v1311
        %v1328 = vpack.c.bf16 %v1314, %v1314
        %1329 = vxpose.xlu0.c.b16.start [1/8] %v1321, 128
        %1330 = vxpose.xlu0.c.b16.cont [2/8] 0, 128
        %1331 = vxpose.xlu0.c.b16.cont [3/8] 0, 128
        %1332 = vxpose.xlu0.c.b16.cont [4/8] 0, 128
        %1333 = vxpose.xlu0.c.b16.cont [5/8] 0, 128
        %1334 = vxpose.xlu0.c.b16.cont [6/8] 0, 128
        %1335 = vxpose.xlu0.c.b16.cont [7/8] 0, 128
        %1336 = vxpose.xlu0.c.b16.end [8/8] 0, 128
        %v1337 = vpop.trf.xlu0
        %v1338 = vpop.trf.xlu0
        %v1339 = vpop.trf.xlu0
        %v1340 = vpop.trf.xlu0
        %v1341 = vpop.trf.xlu0
        %v1342 = vpop.trf.xlu0
        %v1343 = vpop.trf.xlu0
        %v1344 = vpop.trf.xlu0
        %vm1345 = vcmask 64512
        %v1347 = vsel %vm1345, %v1337, 0
        %v1350 = vsel %vm1345, %v1338, 0
        %v1353 = vsel %vm1345, %v1339, 0
        %v1356 = vsel %vm1345, %v1340, 0
        %v1359 = vsel %vm1345, %v1341, 0
        %v1362 = vsel %vm1345, %v1342, 0
        %v1365 = vsel %vm1345, %v1343, 0
        %v1368 = vsel %vm1345, %v1344, 0
        %vm1370 = vcmask 1043456
        %v1372 = vsel %vm1370, %v1317, 0
        %1374 = vmatprep.subr.bf16.mxu0 0
        %1375 = vmatpush1.bf16.msra.mxu0 0
        %1376 = vmatprep.subr.bf16.mxu0 0
        %1377 = vmatpush1.bf16.msra.mxu0 0
        %1378 = vmatprep.subr.bf16.mxu0 0
        %1379 = vmatpush1.bf16.msra.mxu0 0
        %1380 = vmatprep.subr.bf16.mxu0 0
        %1381 = vmatpush1.bf16.msra.mxu0 0
        %1382 = vmatprep.subr.bf16.mxu0 0
        %1383 = vmatpush1.bf16.msra.mxu0 0
        %1384 = vmatprep.subr.bf16.mxu0 0
        %1385 = vmatpush1.bf16.msra.mxu0 0
        %1386 = vmatprep.subr.bf16.mxu0 0
        %1387 = vmatpush1.bf16.msra.mxu0 0
        %1388 = vmatprep.subr.bf16.mxu0 0
        %1389 = vmatpush1.bf16.msra.mxu0 %v1372
        %1390 = vmatprep.subr.bf16.mxu0 0
        %1391 = vmatpush2.bf16.msra.mxu0 0
        %1392 = vmatprep.subr.bf16.mxu0 0
        %1393 = vmatpush2.bf16.msra.mxu0 0
        %1394 = vmatprep.subr.bf16.mxu0 0
        %1395 = vmatpush2.bf16.msra.mxu0 0
        %1396 = vmatprep.subr.bf16.mxu0 0
        %1397 = vmatpush2.bf16.msra.mxu0 0
        %1398 = vmatprep.subr.bf16.mxu0 0
        %1399 = vmatpush2.bf16.msra.mxu0 0
        %1400 = vmatprep.subr.bf16.mxu0 0
        %1401 = vmatpush2.bf16.msra.mxu0 0
        %1402 = vmatprep.subr.bf16.mxu0 0
        %1403 = vmatpush2.bf16.msra.mxu0 0
        %1404 = vmatprep.subr.bf16.mxu0 0
        %1405 = vmatpush2.bf16.msra.mxu0 0
        %1406 = vmatprep.mubr.bf16.mxu0 0
        %1407 = vmatmul.mubr.bf16.gmra.mxu0 %v1347
        %v1408 = vpop.f32.mrf.mxu0
        %v1409 = vadd.f32 0.0, %v1408
        %v1410 = vpop.f32.mrf.mxu0
        %v1411 = vpop.f32.mrf.mxu0
        %v1412 = vadd.f32 0.0, %v1411
        %v1413 = vpop.f32.mrf.mxu0
        %1414 = vmatprep.mubr.bf16.mxu0 0
        %1415 = vmatmul.mubr.bf16.gmra.mxu0 %v1350
        %v1416 = vpop.f32.mrf.mxu0
        %v1417 = vadd.f32 0.0, %v1416
        %v1418 = vpop.f32.mrf.mxu0
        %v1419 = vpop.f32.mrf.mxu0
        %v1420 = vadd.f32 0.0, %v1419
        %v1421 = vpop.f32.mrf.mxu0
        %1422 = vmatprep.mubr.bf16.mxu0 0
        %1423 = vmatmul.mubr.bf16.gmra.mxu0 %v1353
        %v1424 = vpop.f32.mrf.mxu0
        %v1425 = vadd.f32 0.0, %v1424
        %v1426 = vpop.f32.mrf.mxu0
        %v1427 = vpop.f32.mrf.mxu0
        %v1428 = vadd.f32 0.0, %v1427
        %v1429 = vpop.f32.mrf.mxu0
        %1430 = vmatprep.mubr.bf16.mxu0 0
        %1431 = vmatmul.mubr.bf16.gmra.mxu0 %v1356
        %v1432 = vpop.f32.mrf.mxu0
        %v1433 = vadd.f32 0.0, %v1432
        %v1434 = vpop.f32.mrf.mxu0
        %v1435 = vpop.f32.mrf.mxu0
        %v1436 = vadd.f32 0.0, %v1435
        %v1437 = vpop.f32.mrf.mxu0
        %1438 = vmatprep.mubr.bf16.mxu0 0
        %1439 = vmatmul.mubr.bf16.gmra.mxu0 %v1359
        %v1440 = vpop.f32.mrf.mxu0
        %v1441 = vadd.f32 0.0, %v1440
        %v1442 = vpop.f32.mrf.mxu0
        %v1443 = vpop.f32.mrf.mxu0
        %v1444 = vadd.f32 0.0, %v1443
        %v1445 = vpop.f32.mrf.mxu0
        %1446 = vmatprep.mubr.bf16.mxu0 0
        %1447 = vmatmul.mubr.bf16.gmra.mxu0 %v1362
        %v1448 = vpop.f32.mrf.mxu0
        %v1449 = vadd.f32 0.0, %v1448
        %v1450 = vpop.f32.mrf.mxu0
        %v1451 = vpop.f32.mrf.mxu0
        %v1452 = vadd.f32 0.0, %v1451
        %v1453 = vpop.f32.mrf.mxu0
        %1454 = vmatprep.mubr.bf16.mxu0 0
        %1455 = vmatmul.mubr.bf16.gmra.mxu0 %v1365
        %v1456 = vpop.f32.mrf.mxu0
        %v1457 = vadd.f32 0.0, %v1456
        %v1458 = vpop.f32.mrf.mxu0
        %v1459 = vpop.f32.mrf.mxu0
        %v1460 = vadd.f32 0.0, %v1459
        %v1461 = vpop.f32.mrf.mxu0
        %1462 = vmatprep.mubr.bf16.mxu0 0
        %1463 = vmatmul.mubr.bf16.gmra.mxu0 %v1368
        %v1464 = vpop.f32.mrf.mxu0
        %v1465 = vadd.f32 0.0, %v1464
        %v1466 = vpop.f32.mrf.mxu0
        %v1467 = vpop.f32.mrf.mxu0
        %v1468 = vadd.f32 0.0, %v1467
        %v1469 = vpop.f32.mrf.mxu0
        %1470 = vdwg.mxu0
        %1471 = vxpose.xlu0.c.b16.start [1/8] %v1322, 128
        %1472 = vxpose.xlu0.c.b16.cont [2/8] 0, 128
        %1473 = vxpose.xlu0.c.b16.cont [3/8] 0, 128
        %1474 = vxpose.xlu0.c.b16.cont [4/8] 0, 128
        %1475 = vxpose.xlu0.c.b16.cont [5/8] 0, 128
        %1476 = vxpose.xlu0.c.b16.cont [6/8] 0, 128
        %1477 = vxpose.xlu0.c.b16.cont [7/8] 0, 128
        %1478 = vxpose.xlu0.c.b16.end [8/8] 0, 128
        %v1479 = vpop.trf.xlu0
        %v1480 = vpop.trf.xlu0
        %v1481 = vpop.trf.xlu0
        %v1482 = vpop.trf.xlu0
        %v1483 = vpop.trf.xlu0
        %v1484 = vpop.trf.xlu0
        %v1485 = vpop.trf.xlu0
        %v1486 = vpop.trf.xlu0
        %v1488 = vsel %vm1345, %v1479, 0
        %v1491 = vsel %vm1345, %v1480, 0
        %v1494 = vsel %vm1345, %v1481, 0
        %v1497 = vsel %vm1345, %v1482, 0
        %v1500 = vsel %vm1345, %v1483, 0
        %v1503 = vsel %vm1345, %v1484, 0
        %v1506 = vsel %vm1345, %v1485, 0
        %v1509 = vsel %vm1345, %v1486, 0
        %v1512 = vsel %vm1370, %v1318, 0
        %1514 = vmatprep.subr.bf16.mxu0 0
        %1515 = vmatpush1.bf16.msra.mxu0 0
        %1516 = vmatprep.subr.bf16.mxu0 0
        %1517 = vmatpush1.bf16.msra.mxu0 0
        %1518 = vmatprep.subr.bf16.mxu0 0
        %1519 = vmatpush1.bf16.msra.mxu0 0
        %1520 = vmatprep.subr.bf16.mxu0 0
        %1521 = vmatpush1.bf16.msra.mxu0 0
        %1522 = vmatprep.subr.bf16.mxu0 0
        %1523 = vmatpush1.bf16.msra.mxu0 0
        %1524 = vmatprep.subr.bf16.mxu0 0
        %1525 = vmatpush1.bf16.msra.mxu0 0
        %1526 = vmatprep.subr.bf16.mxu0 0
        %1527 = vmatpush1.bf16.msra.mxu0 0
        %1528 = vmatprep.subr.bf16.mxu0 0
        %1529 = vmatpush1.bf16.msra.mxu0 %v1512
        %1530 = vmatprep.subr.bf16.mxu0 0
        %1531 = vmatpush2.bf16.msra.mxu0 0
        %1532 = vmatprep.subr.bf16.mxu0 0
        %1533 = vmatpush2.bf16.msra.mxu0 0
        %1534 = vmatprep.subr.bf16.mxu0 0
        %1535 = vmatpush2.bf16.msra.mxu0 0
        %1536 = vmatprep.subr.bf16.mxu0 0
        %1537 = vmatpush2.bf16.msra.mxu0 0
        %1538 = vmatprep.subr.bf16.mxu0 0
        %1539 = vmatpush2.bf16.msra.mxu0 0
        %1540 = vmatprep.subr.bf16.mxu0 0
        %1541 = vmatpush2.bf16.msra.mxu0 0
        %1542 = vmatprep.subr.bf16.mxu0 0
        %1543 = vmatpush2.bf16.msra.mxu0 0
        %1544 = vmatprep.subr.bf16.mxu0 0
        %1545 = vmatpush2.bf16.msra.mxu0 0
        %1546 = vmatprep.mubr.bf16.mxu0 0
        %1547 = vmatmul.mubr.bf16.gmra.mxu0 %v1488
        %v1548 = vpop.f32.mrf.mxu0
        %v1549 = vadd.f32 0.0, %v1548
        %v1550 = vpop.f32.mrf.mxu0
        %v1551 = vpop.f32.mrf.mxu0
        %v1552 = vadd.f32 0.0, %v1551
        %v1553 = vpop.f32.mrf.mxu0
        %1554 = vmatprep.mubr.bf16.mxu0 0
        %1555 = vmatmul.mubr.bf16.gmra.mxu0 %v1491
        %v1556 = vpop.f32.mrf.mxu0
        %v1557 = vadd.f32 0.0, %v1556
        %v1558 = vpop.f32.mrf.mxu0
        %v1559 = vpop.f32.mrf.mxu0
        %v1560 = vadd.f32 0.0, %v1559
        %v1561 = vpop.f32.mrf.mxu0
        %1562 = vmatprep.mubr.bf16.mxu0 0
        %1563 = vmatmul.mubr.bf16.gmra.mxu0 %v1494
        %v1564 = vpop.f32.mrf.mxu0
        %v1565 = vadd.f32 0.0, %v1564
        %v1566 = vpop.f32.mrf.mxu0
        %v1567 = vpop.f32.mrf.mxu0
        %v1568 = vadd.f32 0.0, %v1567
        %v1569 = vpop.f32.mrf.mxu0
        %1570 = vmatprep.mubr.bf16.mxu0 0
        %1571 = vmatmul.mubr.bf16.gmra.mxu0 %v1497
        %v1572 = vpop.f32.mrf.mxu0
        %v1573 = vadd.f32 0.0, %v1572
        %v1574 = vpop.f32.mrf.mxu0
        %v1575 = vpop.f32.mrf.mxu0
        %v1576 = vadd.f32 0.0, %v1575
        %v1577 = vpop.f32.mrf.mxu0
        %1578 = vmatprep.mubr.bf16.mxu0 0
        %1579 = vmatmul.mubr.bf16.gmra.mxu0 %v1500
        %v1580 = vpop.f32.mrf.mxu0
        %v1581 = vadd.f32 0.0, %v1580
        %v1582 = vpop.f32.mrf.mxu0
        %v1583 = vpop.f32.mrf.mxu0
        %v1584 = vadd.f32 0.0, %v1583
        %v1585 = vpop.f32.mrf.mxu0
        %1586 = vmatprep.mubr.bf16.mxu0 0
        %1587 = vmatmul.mubr.bf16.gmra.mxu0 %v1503
        %v1588 = vpop.f32.mrf.mxu0
        %v1589 = vadd.f32 0.0, %v1588
        %v1590 = vpop.f32.mrf.mxu0
        %v1591 = vpop.f32.mrf.mxu0
        %v1592 = vadd.f32 0.0, %v1591
        %v1593 = vpop.f32.mrf.mxu0
        %1594 = vmatprep.mubr.bf16.mxu0 0
        %1595 = vmatmul.mubr.bf16.gmra.mxu0 %v1506
        %v1596 = vpop.f32.mrf.mxu0
        %v1597 = vadd.f32 0.0, %v1596
        %v1598 = vpop.f32.mrf.mxu0
        %v1599 = vpop.f32.mrf.mxu0
        %v1600 = vadd.f32 0.0, %v1599
        %v1601 = vpop.f32.mrf.mxu0
        %1602 = vmatprep.mubr.bf16.mxu0 0
        %1603 = vmatmul.mubr.bf16.gmra.mxu0 %v1509
        %v1604 = vpop.f32.mrf.mxu0
        %v1605 = vadd.f32 0.0, %v1604
        %v1606 = vpop.f32.mrf.mxu0
        %v1607 = vpop.f32.mrf.mxu0
        %v1608 = vadd.f32 0.0, %v1607
        %v1609 = vpop.f32.mrf.mxu0
        %1610 = vdwg.mxu0
        %1611 = vxpose.xlu0.c.b16.start [1/8] %v1323, 128
        %1612 = vxpose.xlu0.c.b16.cont [2/8] 0, 128
        %1613 = vxpose.xlu0.c.b16.cont [3/8] 0, 128
        %1614 = vxpose.xlu0.c.b16.cont [4/8] 0, 128
        %1615 = vxpose.xlu0.c.b16.cont [5/8] 0, 128
        %1616 = vxpose.xlu0.c.b16.cont [6/8] 0, 128
        %1617 = vxpose.xlu0.c.b16.cont [7/8] 0, 128
        %1618 = vxpose.xlu0.c.b16.end [8/8] 0, 128
        %v1619 = vpop.trf.xlu0
        %v1620 = vpop.trf.xlu0
        %v1621 = vpop.trf.xlu0
        %v1622 = vpop.trf.xlu0
        %v1623 = vpop.trf.xlu0
        %v1624 = vpop.trf.xlu0
        %v1625 = vpop.trf.xlu0
        %v1626 = vpop.trf.xlu0
        %v1628 = vsel %vm1345, %v1619, 0
        %v1631 = vsel %vm1345, %v1620, 0
        %v1634 = vsel %vm1345, %v1621, 0
        %v1637 = vsel %vm1345, %v1622, 0
        %v1640 = vsel %vm1345, %v1623, 0
        %v1643 = vsel %vm1345, %v1624, 0
        %v1646 = vsel %vm1345, %v1625, 0
        %v1649 = vsel %vm1345, %v1626, 0
        %v1652 = vsel %vm1370, %v1319, 0
        %1654 = vmatprep.subr.bf16.mxu0 0
        %1655 = vmatpush1.bf16.msra.mxu0 0
        %1656 = vmatprep.subr.bf16.mxu0 0
        %1657 = vmatpush1.bf16.msra.mxu0 0
        %1658 = vmatprep.subr.bf16.mxu0 0
        %1659 = vmatpush1.bf16.msra.mxu0 0
        %1660 = vmatprep.subr.bf16.mxu0 0
        %1661 = vmatpush1.bf16.msra.mxu0 0
        %1662 = vmatprep.subr.bf16.mxu0 0
        %1663 = vmatpush1.bf16.msra.mxu0 0
        %1664 = vmatprep.subr.bf16.mxu0 0
        %1665 = vmatpush1.bf16.msra.mxu0 0
        %1666 = vmatprep.subr.bf16.mxu0 0
        %1667 = vmatpush1.bf16.msra.mxu0 0
        %1668 = vmatprep.subr.bf16.mxu0 0
        %1669 = vmatpush1.bf16.msra.mxu0 %v1652
        %1670 = vmatprep.subr.bf16.mxu0 0
        %1671 = vmatpush2.bf16.msra.mxu0 0
        %1672 = vmatprep.subr.bf16.mxu0 0
        %1673 = vmatpush2.bf16.msra.mxu0 0
        %1674 = vmatprep.subr.bf16.mxu0 0
        %1675 = vmatpush2.bf16.msra.mxu0 0
        %1676 = vmatprep.subr.bf16.mxu0 0
        %1677 = vmatpush2.bf16.msra.mxu0 0
        %1678 = vmatprep.subr.bf16.mxu0 0
        %1679 = vmatpush2.bf16.msra.mxu0 0
        %1680 = vmatprep.subr.bf16.mxu0 0
        %1681 = vmatpush2.bf16.msra.mxu0 0
        %1682 = vmatprep.subr.bf16.mxu0 0
        %1683 = vmatpush2.bf16.msra.mxu0 0
        %1684 = vmatprep.subr.bf16.mxu0 0
        %1685 = vmatpush2.bf16.msra.mxu0 0
        %1686 = vmatprep.mubr.bf16.mxu0 0
        %1687 = vmatmul.mubr.bf16.gmra.mxu0 %v1628
        %v1688 = vpop.f32.mrf.mxu0
        %v1689 = vadd.f32 0.0, %v1688
        %v1690 = vpop.f32.mrf.mxu0
        %v1691 = vpop.f32.mrf.mxu0
        %v1692 = vadd.f32 0.0, %v1691
        %v1693 = vpop.f32.mrf.mxu0
        %1694 = vmatprep.mubr.bf16.mxu0 0
        %1695 = vmatmul.mubr.bf16.gmra.mxu0 %v1631
        %v1696 = vpop.f32.mrf.mxu0
        %v1697 = vadd.f32 0.0, %v1696
        %v1698 = vpop.f32.mrf.mxu0
        %v1699 = vpop.f32.mrf.mxu0
        %v1700 = vadd.f32 0.0, %v1699
        %v1701 = vpop.f32.mrf.mxu0
        %1702 = vmatprep.mubr.bf16.mxu0 0
        %1703 = vmatmul.mubr.bf16.gmra.mxu0 %v1634
        %v1704 = vpop.f32.mrf.mxu0
        %v1705 = vadd.f32 0.0, %v1704
        %v1706 = vpop.f32.mrf.mxu0
        %v1707 = vpop.f32.mrf.mxu0
        %v1708 = vadd.f32 0.0, %v1707
        %v1709 = vpop.f32.mrf.mxu0
        %1710 = vmatprep.mubr.bf16.mxu0 0
        %1711 = vmatmul.mubr.bf16.gmra.mxu0 %v1637
        %v1712 = vpop.f32.mrf.mxu0
        %v1713 = vadd.f32 0.0, %v1712
        %v1714 = vpop.f32.mrf.mxu0
        %v1715 = vpop.f32.mrf.mxu0
        %v1716 = vadd.f32 0.0, %v1715
        %v1717 = vpop.f32.mrf.mxu0
        %1718 = vmatprep.mubr.bf16.mxu0 0
        %1719 = vmatmul.mubr.bf16.gmra.mxu0 %v1640
        %v1720 = vpop.f32.mrf.mxu0
        %v1721 = vadd.f32 0.0, %v1720
        %v1722 = vpop.f32.mrf.mxu0
        %v1723 = vpop.f32.mrf.mxu0
        %v1724 = vadd.f32 0.0, %v1723
        %v1725 = vpop.f32.mrf.mxu0
        %1726 = vmatprep.mubr.bf16.mxu0 0
        %1727 = vmatmul.mubr.bf16.gmra.mxu0 %v1643
        %v1728 = vpop.f32.mrf.mxu0
        %v1729 = vadd.f32 0.0, %v1728
        %v1730 = vpop.f32.mrf.mxu0
        %v1731 = vpop.f32.mrf.mxu0
        %v1732 = vadd.f32 0.0, %v1731
        %v1733 = vpop.f32.mrf.mxu0
        %1734 = vmatprep.mubr.bf16.mxu0 0
        %1735 = vmatmul.mubr.bf16.gmra.mxu0 %v1646
        %v1736 = vpop.f32.mrf.mxu0
        %v1737 = vadd.f32 0.0, %v1736
        %v1738 = vpop.f32.mrf.mxu0
        %v1739 = vpop.f32.mrf.mxu0
        %v1740 = vadd.f32 0.0, %v1739
        %v1741 = vpop.f32.mrf.mxu0
        %1742 = vmatprep.mubr.bf16.mxu0 0
        %1743 = vmatmul.mubr.bf16.gmra.mxu0 %v1649
        %v1744 = vpop.f32.mrf.mxu0
        %v1745 = vadd.f32 0.0, %v1744
        %v1746 = vpop.f32.mrf.mxu0
        %v1747 = vpop.f32.mrf.mxu0
        %v1748 = vadd.f32 0.0, %v1747
        %v1749 = vpop.f32.mrf.mxu0
        %1750 = vdwg.mxu0
        %1751 = vxpose.xlu0.c.b16.start [1/8] %v1324, 128
        %1752 = vxpose.xlu0.c.b16.cont [2/8] 0, 128
        %1753 = vxpose.xlu0.c.b16.cont [3/8] 0, 128
        %1754 = vxpose.xlu0.c.b16.cont [4/8] 0, 128
        %1755 = vxpose.xlu0.c.b16.cont [5/8] 0, 128
        %1756 = vxpose.xlu0.c.b16.cont [6/8] 0, 128
        %1757 = vxpose.xlu0.c.b16.cont [7/8] 0, 128
        %1758 = vxpose.xlu0.c.b16.end [8/8] 0, 128
        %v1759 = vpop.trf.xlu0
        %v1760 = vpop.trf.xlu0
        %v1761 = vpop.trf.xlu0
        %v1762 = vpop.trf.xlu0
        %v1763 = vpop.trf.xlu0
        %v1764 = vpop.trf.xlu0
        %v1765 = vpop.trf.xlu0
        %v1766 = vpop.trf.xlu0
        %v1768 = vsel %vm1345, %v1759, 0
        %v1771 = vsel %vm1345, %v1760, 0
        %v1774 = vsel %vm1345, %v1761, 0
        %v1777 = vsel %vm1345, %v1762, 0
        %v1780 = vsel %vm1345, %v1763, 0
        %v1783 = vsel %vm1345, %v1764, 0
        %v1786 = vsel %vm1345, %v1765, 0
        %v1789 = vsel %vm1345, %v1766, 0
        %v1792 = vsel %vm1370, %v1320, 0
        %1794 = vmatprep.subr.bf16.mxu0 0
        %1795 = vmatpush1.bf16.msra.mxu0 0
        %1796 = vmatprep.subr.bf16.mxu0 0
        %1797 = vmatpush1.bf16.msra.mxu0 0
        %1798 = vmatprep.subr.bf16.mxu0 0
        %1799 = vmatpush1.bf16.msra.mxu0 0
        %1800 = vmatprep.subr.bf16.mxu0 0
        %1801 = vmatpush1.bf16.msra.mxu0 0
        %1802 = vmatprep.subr.bf16.mxu0 0
        %1803 = vmatpush1.bf16.msra.mxu0 0
        %1804 = vmatprep.subr.bf16.mxu0 0
        %1805 = vmatpush1.bf16.msra.mxu0 0
        %1806 = vmatprep.subr.bf16.mxu0 0
        %1807 = vmatpush1.bf16.msra.mxu0 0
        %1808 = vmatprep.subr.bf16.mxu0 0
        %1809 = vmatpush1.bf16.msra.mxu0 %v1792
        %1810 = vmatprep.subr.bf16.mxu0 0
        %1811 = vmatpush2.bf16.msra.mxu0 0
        %1812 = vmatprep.subr.bf16.mxu0 0
        %1813 = vmatpush2.bf16.msra.mxu0 0
        %1814 = vmatprep.subr.bf16.mxu0 0
        %1815 = vmatpush2.bf16.msra.mxu0 0
        %1816 = vmatprep.subr.bf16.mxu0 0
        %1817 = vmatpush2.bf16.msra.mxu0 0
        %1818 = vmatprep.subr.bf16.mxu0 0
        %1819 = vmatpush2.bf16.msra.mxu0 0
        %1820 = vmatprep.subr.bf16.mxu0 0
        %1821 = vmatpush2.bf16.msra.mxu0 0
        %1822 = vmatprep.subr.bf16.mxu0 0
        %1823 = vmatpush2.bf16.msra.mxu0 0
        %1824 = vmatprep.subr.bf16.mxu0 0
        %1825 = vmatpush2.bf16.msra.mxu0 0
        %1826 = vmatprep.mubr.bf16.mxu0 0
        %1827 = vmatmul.mubr.bf16.gmra.mxu0 %v1768
        %v1828 = vpop.f32.mrf.mxu0
        %v1829 = vadd.f32 0.0, %v1828
        %v1830 = vpop.f32.mrf.mxu0
        %v1831 = vpop.f32.mrf.mxu0
        %v1832 = vadd.f32 0.0, %v1831
        %v1833 = vpop.f32.mrf.mxu0
        %1834 = vmatprep.mubr.bf16.mxu0 0
        %1835 = vmatmul.mubr.bf16.gmra.mxu0 %v1771
        %v1836 = vpop.f32.mrf.mxu0
        %v1837 = vadd.f32 0.0, %v1836
        %v1838 = vpop.f32.mrf.mxu0
        %v1839 = vpop.f32.mrf.mxu0
        %v1840 = vadd.f32 0.0, %v1839
        %v1841 = vpop.f32.mrf.mxu0
        %1842 = vmatprep.mubr.bf16.mxu0 0
        %1843 = vmatmul.mubr.bf16.gmra.mxu0 %v1774
        %v1844 = vpop.f32.mrf.mxu0
        %v1845 = vadd.f32 0.0, %v1844
        %v1846 = vpop.f32.mrf.mxu0
        %v1847 = vpop.f32.mrf.mxu0
        %v1848 = vadd.f32 0.0, %v1847
        %v1849 = vpop.f32.mrf.mxu0
        %1850 = vmatprep.mubr.bf16.mxu0 0
        %1851 = vmatmul.mubr.bf16.gmra.mxu0 %v1777
        %v1852 = vpop.f32.mrf.mxu0
        %v1853 = vadd.f32 0.0, %v1852
        %v1854 = vpop.f32.mrf.mxu0
        %v1855 = vpop.f32.mrf.mxu0
        %v1856 = vadd.f32 0.0, %v1855
        %v1857 = vpop.f32.mrf.mxu0
        %1858 = vmatprep.mubr.bf16.mxu0 0
        %1859 = vmatmul.mubr.bf16.gmra.mxu0 %v1780
        %v1860 = vpop.f32.mrf.mxu0
        %v1861 = vadd.f32 0.0, %v1860
        %v1862 = vpop.f32.mrf.mxu0
        %v1863 = vpop.f32.mrf.mxu0
        %v1864 = vadd.f32 0.0, %v1863
        %v1865 = vpop.f32.mrf.mxu0
        %1866 = vmatprep.mubr.bf16.mxu0 0
        %1867 = vmatmul.mubr.bf16.gmra.mxu0 %v1783
        %v1868 = vpop.f32.mrf.mxu0
        %v1869 = vadd.f32 0.0, %v1868
        %v1870 = vpop.f32.mrf.mxu0
        %v1871 = vpop.f32.mrf.mxu0
        %v1872 = vadd.f32 0.0, %v1871
        %v1873 = vpop.f32.mrf.mxu0
        %1874 = vmatprep.mubr.bf16.mxu0 0
        %1875 = vmatmul.mubr.bf16.gmra.mxu0 %v1786
        %v1876 = vpop.f32.mrf.mxu0
        %v1877 = vadd.f32 0.0, %v1876
        %v1878 = vpop.f32.mrf.mxu0
        %v1879 = vpop.f32.mrf.mxu0
        %v1880 = vadd.f32 0.0, %v1879
        %v1881 = vpop.f32.mrf.mxu0
        %1882 = vmatprep.mubr.bf16.mxu0 0
        %1883 = vmatmul.mubr.bf16.gmra.mxu0 %v1789
        %v1884 = vpop.f32.mrf.mxu0
        %v1885 = vadd.f32 0.0, %v1884
        %v1886 = vpop.f32.mrf.mxu0
        %v1887 = vpop.f32.mrf.mxu0
        %v1888 = vadd.f32 0.0, %v1887
        %v1889 = vpop.f32.mrf.mxu0
        %1890 = vdwg.mxu0
        %v1891 = vsel %vm576, 1, 0
        %v1892 = vsel %vm577, 1, 0
        %v1893 = vsel %vm578, 1, 0
        %v1894 = vsel %vm579, 1, 0
        %v1895 = vsel %vm580, 1, 0
        %v1896 = vsel %vm581, 1, 0
        %v1897 = vsel %vm582, 1, 0
        %v1898 = vsel %vm583, 1, 0
        %v1899 = vsel %vm584, 1, 0
        %v1900 = vsel %vm585, 1, 0
        %v1901 = vsel %vm586, 1, 0
        %v1902 = vsel %vm587, 1, 0
        %v1903 = vsel %vm588, 1, 0
        %v1904 = vsel %vm589, 1, 0
        %v1905 = vsel %vm590, 1, 0
        %v1906 = vsel %vm591, 1, 0
        %vm1907 = vcmp.eq.s32.totalorder %v1891, 1
        %vm1908 = vcmp.eq.s32.totalorder %v1892, 1
        %vm1909 = vcmp.eq.s32.totalorder %v1893, 1
        %vm1910 = vcmp.eq.s32.totalorder %v1894, 1
        %vm1911 = vcmp.eq.s32.totalorder %v1895, 1
        %vm1912 = vcmp.eq.s32.totalorder %v1896, 1
        %vm1913 = vcmp.eq.s32.totalorder %v1897, 1
        %vm1914 = vcmp.eq.s32.totalorder %v1898, 1
        %vm1915 = vcmp.eq.s32.totalorder %v1899, 1
        %vm1916 = vcmp.eq.s32.totalorder %v1900, 1
        %vm1917 = vcmp.eq.s32.totalorder %v1901, 1
        %vm1918 = vcmp.eq.s32.totalorder %v1902, 1
        %vm1919 = vcmp.eq.s32.totalorder %v1903, 1
        %vm1920 = vcmp.eq.s32.totalorder %v1904, 1
        %vm1921 = vcmp.eq.s32.totalorder %v1905, 1
        %vm1922 = vcmp.eq.s32.totalorder %v1906, 1
        %v1923 = vsel %vm1907, %v1409, -10000.0
        %v1924 = vsel %vm1908, %v1412, -10000.0
        %v1925 = vsel %vm1909, %v1417, -10000.0
        %v1926 = vsel %vm1910, %v1420, -10000.0
        %v1927 = vsel %vm1911, %v1425, -10000.0
        %v1928 = vsel %vm1912, %v1428, -10000.0
        %v1929 = vsel %vm1913, %v1433, -10000.0
        %v1930 = vsel %vm1914, %v1436, -10000.0
        %v1931 = vsel %vm1915, %v1441, -10000.0
        %v1932 = vsel %vm1916, %v1444, -10000.0
        %v1933 = vsel %vm1917, %v1449, -10000.0
        %v1934 = vsel %vm1918, %v1452, -10000.0
        %v1935 = vsel %vm1919, %v1457, -10000.0
        %v1936 = vsel %vm1920, %v1460, -10000.0
        %v1937 = vsel %vm1921, %v1465, -10000.0
        %v1938 = vsel %vm1922, %v1468, -10000.0
        %v1939 = vsel %vm1907, %v1549, -10000.0
        %v1940 = vsel %vm1908, %v1552, -10000.0
        %v1941 = vsel %vm1909, %v1557, -10000.0
        %v1942 = vsel %vm1910, %v1560, -10000.0
        %v1943 = vsel %vm1911, %v1565, -10000.0
        %v1944 = vsel %vm1912, %v1568, -10000.0
        %v1945 = vsel %vm1913, %v1573, -10000.0
        %v1946 = vsel %vm1914, %v1576, -10000.0
        %v1947 = vsel %vm1915, %v1581, -10000.0
        %v1948 = vsel %vm1916, %v1584, -10000.0
        %v1949 = vsel %vm1917, %v1589, -10000.0
        %v1950 = vsel %vm1918, %v1592, -10000.0
        %v1951 = vsel %vm1919, %v1597, -10000.0
        %v1952 = vsel %vm1920, %v1600, -10000.0
        %v1953 = vsel %vm1921, %v1605, -10000.0
        %v1954 = vsel %vm1922, %v1608, -10000.0
        %v1955 = vsel %vm1907, %v1689, -10000.0
        %v1956 = vsel %vm1908, %v1692, -10000.0
        %v1957 = vsel %vm1909, %v1697, -10000.0
        %v1958 = vsel %vm1910, %v1700, -10000.0
        %v1959 = vsel %vm1911, %v1705, -10000.0
        %v1960 = vsel %vm1912, %v1708, -10000.0
        %v1961 = vsel %vm1913, %v1713, -10000.0
        %v1962 = vsel %vm1914, %v1716, -10000.0
        %v1963 = vsel %vm1915, %v1721, -10000.0
        %v1964 = vsel %vm1916, %v1724, -10000.0
        %v1965 = vsel %vm1917, %v1729, -10000.0
        %v1966 = vsel %vm1918, %v1732, -10000.0
        %v1967 = vsel %vm1919, %v1737, -10000.0
        %v1968 = vsel %vm1920, %v1740, -10000.0
        %v1969 = vsel %vm1921, %v1745, -10000.0
        %v1970 = vsel %vm1922, %v1748, -10000.0
        %v1971 = vsel %vm1907, %v1829, -10000.0
        %v1972 = vsel %vm1908, %v1832, -10000.0
        %v1973 = vsel %vm1909, %v1837, -10000.0
        %v1974 = vsel %vm1910, %v1840, -10000.0
        %v1975 = vsel %vm1911, %v1845, -10000.0
        %v1976 = vsel %vm1912, %v1848, -10000.0
        %v1977 = vsel %vm1913, %v1853, -10000.0
        %v1978 = vsel %vm1914, %v1856, -10000.0
        %v1979 = vsel %vm1915, %v1861, -10000.0
        %v1980 = vsel %vm1916, %v1864, -10000.0
        %v1981 = vsel %vm1917, %v1869, -10000.0
        %v1982 = vsel %vm1918, %v1872, -10000.0
        %v1983 = vsel %vm1919, %v1877, -10000.0
        %v1984 = vsel %vm1920, %v1880, -10000.0
        %v1985 = vsel %vm1921, %v1885, -10000.0
        %v1986 = vsel %vm1922, %v1888, -10000.0
        %v1987 = vmax.f32 %v1923, %v1924
        %v1988 = vmax.f32 %v1987, %v1925
        %v1989 = vmax.f32 %v1988, %v1926
        %v1990 = vmax.f32 %v1989, %v1927
        %v1991 = vmax.f32 %v1990, %v1928
        %v1992 = vmax.f32 %v1991, %v1929
        %v1993 = vmax.f32 %v1992, %v1930
        %v1994 = vmax.f32 %v1993, %v1931
        %v1995 = vmax.f32 %v1994, %v1932
        %v1996 = vmax.f32 %v1995, %v1933
        %v1997 = vmax.f32 %v1996, %v1934
        %v1998 = vmax.f32 %v1997, %v1935
        %v1999 = vmax.f32 %v1998, %v1936
        %v2000 = vmax.f32 %v1999, %v1937
        %v2001 = vmax.f32 %v2000, %v1938
        %v2002 = vrot.slane %v2001, 4
        %v2003 = vmax.f32 %v2001, %v2002
        %v2004 = vrot.slane %v2003, 2
        %v2005 = vmax.f32 %v2003, %v2004
        %v2006 = vrot.slane %v2005, 1
        %v2007 = vmax.f32 %v2005, %v2006
        %v2008 = vmax.f32 %v1939, %v1940
        %v2009 = vmax.f32 %v2008, %v1941
        %v2010 = vmax.f32 %v2009, %v1942
        %v2011 = vmax.f32 %v2010, %v1943
        %v2012 = vmax.f32 %v2011, %v1944
        %v2013 = vmax.f32 %v2012, %v1945
        %v2014 = vmax.f32 %v2013, %v1946
        %v2015 = vmax.f32 %v2014, %v1947
        %v2016 = vmax.f32 %v2015, %v1948
        %v2017 = vmax.f32 %v2016, %v1949
        %v2018 = vmax.f32 %v2017, %v1950
        %v2019 = vmax.f32 %v2018, %v1951
        %v2020 = vmax.f32 %v2019, %v1952
        %v2021 = vmax.f32 %v2020, %v1953
        %v2022 = vmax.f32 %v2021, %v1954
        %v2023 = vrot.slane %v2022, 4
        %v2024 = vmax.f32 %v2022, %v2023
        %v2025 = vrot.slane %v2024, 2
        %v2026 = vmax.f32 %v2024, %v2025
        %v2027 = vrot.slane %v2026, 1
        %v2028 = vmax.f32 %v2026, %v2027
        %v2029 = vmax.f32 %v1955, %v1956
        %v2030 = vmax.f32 %v2029, %v1957
        %v2031 = vmax.f32 %v2030, %v1958
        %v2032 = vmax.f32 %v2031, %v1959
        %v2033 = vmax.f32 %v2032, %v1960
        %v2034 = vmax.f32 %v2033, %v1961
        %v2035 = vmax.f32 %v2034, %v1962
        %v2036 = vmax.f32 %v2035, %v1963
        %v2037 = vmax.f32 %v2036, %v1964
        %v2038 = vmax.f32 %v2037, %v1965
        %v2039 = vmax.f32 %v2038, %v1966
        %v2040 = vmax.f32 %v2039, %v1967
        %v2041 = vmax.f32 %v2040, %v1968
        %v2042 = vmax.f32 %v2041, %v1969
        %v2043 = vmax.f32 %v2042, %v1970
        %v2044 = vrot.slane %v2043, 4
        %v2045 = vmax.f32 %v2043, %v2044
        %v2046 = vrot.slane %v2045, 2
        %v2047 = vmax.f32 %v2045, %v2046
        %v2048 = vrot.slane %v2047, 1
        %v2049 = vmax.f32 %v2047, %v2048
        %v2050 = vmax.f32 %v1971, %v1972
        %v2051 = vmax.f32 %v2050, %v1973
        %v2052 = vmax.f32 %v2051, %v1974
        %v2053 = vmax.f32 %v2052, %v1975
        %v2054 = vmax.f32 %v2053, %v1976
        %v2055 = vmax.f32 %v2054, %v1977
        %v2056 = vmax.f32 %v2055, %v1978
        %v2057 = vmax.f32 %v2056, %v1979
        %v2058 = vmax.f32 %v2057, %v1980
        %v2059 = vmax.f32 %v2058, %v1981
        %v2060 = vmax.f32 %v2059, %v1982
        %v2061 = vmax.f32 %v2060, %v1983
        %v2062 = vmax.f32 %v2061, %v1984
        %v2063 = vmax.f32 %v2062, %v1985
        %v2064 = vmax.f32 %v2063, %v1986
        %v2065 = vrot.slane %v2064, 4
        %v2066 = vmax.f32 %v2064, %v2065
        %v2067 = vrot.slane %v2066, 2
        %v2068 = vmax.f32 %v2066, %v2067
        %v2069 = vrot.slane %v2068, 1
        %v2070 = vmax.f32 %v2068, %v2069
        %v2071 = vmax.f32 %v2007, -1e+30
        %v2072 = vmax.f32 %v2028, -1e+30
        %v2073 = vmax.f32 %v2049, -1e+30
        %v2074 = vmax.f32 %v2070, -1e+30
        %v2075 = vsub.f32 -1e+30, %v2071
        %v2076 = vsub.f32 -1e+30, %v2072
        %v2077 = vsub.f32 -1e+30, %v2073
        %v2078 = vsub.f32 -1e+30, %v2074
        %v2079 = vmul.f32 %v2075, 1.442695
        %v2080 = vpow.pop %v2079
        %v2081 = vmul.f32 %v2076, 1.442695
        %v2082 = vpow.pop %v2081
        %v2083 = vmul.f32 %v2077, 1.442695
        %v2084 = vpow.pop %v2083
        %v2085 = vmul.f32 %v2078, 1.442695
        %v2086 = vpow.pop %v2085
        %v2087 = vsub.f32 %v1923, %v2071
        %v2088 = vsub.f32 %v1924, %v2071
        %v2089 = vsub.f32 %v1925, %v2071
        %v2090 = vsub.f32 %v1926, %v2071
        %v2091 = vsub.f32 %v1927, %v2071
        %v2092 = vsub.f32 %v1928, %v2071
        %v2093 = vsub.f32 %v1929, %v2071
        %v2094 = vsub.f32 %v1930, %v2071
        %v2095 = vsub.f32 %v1931, %v2071
        %v2096 = vsub.f32 %v1932, %v2071
        %v2097 = vsub.f32 %v1933, %v2071
        %v2098 = vsub.f32 %v1934, %v2071
        %v2099 = vsub.f32 %v1935, %v2071
        %v2100 = vsub.f32 %v1936, %v2071
        %v2101 = vsub.f32 %v1937, %v2071
        %v2102 = vsub.f32 %v1938, %v2071
        %v2103 = vsub.f32 %v1939, %v2072
        %v2104 = vsub.f32 %v1940, %v2072
        %v2105 = vsub.f32 %v1941, %v2072
        %v2106 = vsub.f32 %v1942, %v2072
        %v2107 = vsub.f32 %v1943, %v2072
        %v2108 = vsub.f32 %v1944, %v2072
        %v2109 = vsub.f32 %v1945, %v2072
        %v2110 = vsub.f32 %v1946, %v2072
        %v2111 = vsub.f32 %v1947, %v2072
        %v2112 = vsub.f32 %v1948, %v2072
        %v2113 = vsub.f32 %v1949, %v2072
        %v2114 = vsub.f32 %v1950, %v2072
        %v2115 = vsub.f32 %v1951, %v2072
        %v2116 = vsub.f32 %v1952, %v2072
        %v2117 = vsub.f32 %v1953, %v2072
        %v2118 = vsub.f32 %v1954, %v2072
        %v2119 = vsub.f32 %v1955, %v2073
        %v2120 = vsub.f32 %v1956, %v2073
        %v2121 = vsub.f32 %v1957, %v2073
        %v2122 = vsub.f32 %v1958, %v2073
        %v2123 = vsub.f32 %v1959, %v2073
        %v2124 = vsub.f32 %v1960, %v2073
        %v2125 = vsub.f32 %v1961, %v2073
        %v2126 = vsub.f32 %v1962, %v2073
        %v2127 = vsub.f32 %v1963, %v2073
        %v2128 = vsub.f32 %v1964, %v2073
        %v2129 = vsub.f32 %v1965, %v2073
        %v2130 = vsub.f32 %v1966, %v2073
        %v2131 = vsub.f32 %v1967, %v2073
        %v2132 = vsub.f32 %v1968, %v2073
        %v2133 = vsub.f32 %v1969, %v2073
        %v2134 = vsub.f32 %v1970, %v2073
        %v2135 = vsub.f32 %v1971, %v2074
        %v2136 = vsub.f32 %v1972, %v2074
        %v2137 = vsub.f32 %v1973, %v2074
        %v2138 = vsub.f32 %v1974, %v2074
        %v2139 = vsub.f32 %v1975, %v2074
        %v2140 = vsub.f32 %v1976, %v2074
        %v2141 = vsub.f32 %v1977, %v2074
        %v2142 = vsub.f32 %v1978, %v2074
        %v2143 = vsub.f32 %v1979, %v2074
        %v2144 = vsub.f32 %v1980, %v2074
        %v2145 = vsub.f32 %v1981, %v2074
        %v2146 = vsub.f32 %v1982, %v2074
        %v2147 = vsub.f32 %v1983, %v2074
        %v2148 = vsub.f32 %v1984, %v2074
        %v2149 = vsub.f32 %v1985, %v2074
        %v2150 = vsub.f32 %v1986, %v2074
        %v2151 = vpack.c.bf16 %v2088, %v2087
        %v2152 = vpack.c.bf16 %v2090, %v2089
        %v2153 = vpack.c.bf16 %v2092, %v2091
        %v2154 = vpack.c.bf16 %v2094, %v2093
        %v2155 = vpack.c.bf16 %v2096, %v2095
        %v2156 = vpack.c.bf16 %v2098, %v2097
        %v2157 = vpack.c.bf16 %v2100, %v2099
        %v2158 = vpack.c.bf16 %v2102, %v2101
        %v2159 = vpack.c.bf16 %v2104, %v2103
        %v2160 = vpack.c.bf16 %v2106, %v2105
        %v2161 = vpack.c.bf16 %v2108, %v2107
        %v2162 = vpack.c.bf16 %v2110, %v2109
        %v2163 = vpack.c.bf16 %v2112, %v2111
        %v2164 = vpack.c.bf16 %v2114, %v2113
        %v2165 = vpack.c.bf16 %v2116, %v2115
        %v2166 = vpack.c.bf16 %v2118, %v2117
        %v2167 = vpack.c.bf16 %v2120, %v2119
        %v2168 = vpack.c.bf16 %v2122, %v2121
        %v2169 = vpack.c.bf16 %v2124, %v2123
        %v2170 = vpack.c.bf16 %v2126, %v2125
        %v2171 = vpack.c.bf16 %v2128, %v2127
        %v2172 = vpack.c.bf16 %v2130, %v2129
        %v2173 = vpack.c.bf16 %v2132, %v2131
        %v2174 = vpack.c.bf16 %v2134, %v2133
        %v2175 = vpack.c.bf16 %v2136, %v2135
        %v2176 = vpack.c.bf16 %v2138, %v2137
        %v2177 = vpack.c.bf16 %v2140, %v2139
        %v2178 = vpack.c.bf16 %v2142, %v2141
        %v2179 = vpack.c.bf16 %v2144, %v2143
        %v2180 = vpack.c.bf16 %v2146, %v2145
        %v2181 = vpack.c.bf16 %v2148, %v2147
        %v2182 = vpack.c.bf16 %v2150, %v2149
        %v2184 = vmul.bf16 %v2151, 1069105081
        %v2185 = vpow.bf16.pop %v2184
        %v2187 = vmul.bf16 %v2152, 1069105081
        %v2188 = vpow.bf16.pop %v2187
        %v2190 = vmul.bf16 %v2153, 1069105081
        %v2191 = vpow.bf16.pop %v2190
        %v2193 = vmul.bf16 %v2154, 1069105081
        %v2194 = vpow.bf16.pop %v2193
        %v2196 = vmul.bf16 %v2155, 1069105081
        %v2197 = vpow.bf16.pop %v2196
        %v2199 = vmul.bf16 %v2156, 1069105081
        %v2200 = vpow.bf16.pop %v2199
        %v2202 = vmul.bf16 %v2157, 1069105081
        %v2203 = vpow.bf16.pop %v2202
        %v2205 = vmul.bf16 %v2158, 1069105081
        %v2206 = vpow.bf16.pop %v2205
        %v2208 = vmul.bf16 %v2159, 1069105081
        %v2209 = vpow.bf16.pop %v2208
        %v2211 = vmul.bf16 %v2160, 1069105081
        %v2212 = vpow.bf16.pop %v2211
        %v2214 = vmul.bf16 %v2161, 1069105081
        %v2215 = vpow.bf16.pop %v2214
        %v2217 = vmul.bf16 %v2162, 1069105081
        %v2218 = vpow.bf16.pop %v2217
        %v2220 = vmul.bf16 %v2163, 1069105081
        %v2221 = vpow.bf16.pop %v2220
        %v2223 = vmul.bf16 %v2164, 1069105081
        %v2224 = vpow.bf16.pop %v2223
        %v2226 = vmul.bf16 %v2165, 1069105081
        %v2227 = vpow.bf16.pop %v2226
        %v2229 = vmul.bf16 %v2166, 1069105081
        %v2230 = vpow.bf16.pop %v2229
        %v2232 = vmul.bf16 %v2167, 1069105081
        %v2233 = vpow.bf16.pop %v2232
        %v2235 = vmul.bf16 %v2168, 1069105081
        %v2236 = vpow.bf16.pop %v2235
        %v2238 = vmul.bf16 %v2169, 1069105081
        %v2239 = vpow.bf16.pop %v2238
        %v2241 = vmul.bf16 %v2170, 1069105081
        %v2242 = vpow.bf16.pop %v2241
        %v2244 = vmul.bf16 %v2171, 1069105081
        %v2245 = vpow.bf16.pop %v2244
        %v2247 = vmul.bf16 %v2172, 1069105081
        %v2248 = vpow.bf16.pop %v2247
        %v2250 = vmul.bf16 %v2173, 1069105081
        %v2251 = vpow.bf16.pop %v2250
        %v2253 = vmul.bf16 %v2174, 1069105081
        %v2254 = vpow.bf16.pop %v2253
        %v2256 = vmul.bf16 %v2175, 1069105081
        %v2257 = vpow.bf16.pop %v2256
        %v2259 = vmul.bf16 %v2176, 1069105081
        %v2260 = vpow.bf16.pop %v2259
        %v2262 = vmul.bf16 %v2177, 1069105081
        %v2263 = vpow.bf16.pop %v2262
        %v2265 = vmul.bf16 %v2178, 1069105081
        %v2266 = vpow.bf16.pop %v2265
        %v2268 = vmul.bf16 %v2179, 1069105081
        %v2269 = vpow.bf16.pop %v2268
        %v2271 = vmul.bf16 %v2180, 1069105081
        %v2272 = vpow.bf16.pop %v2271
        %v2274 = vmul.bf16 %v2181, 1069105081
        %v2275 = vpow.bf16.pop %v2274
        %v2277 = vmul.bf16 %v2182, 1069105081
        %v2278 = vpow.bf16.pop %v2277
        %v2279 = vmul.f32 %v2080, 0.0
        %v2280 = vmul.f32 %v2082, 0.0
        %v2281 = vmul.f32 %v2084, 0.0
        %v2282 = vmul.f32 %v2086, 0.0
        %v2283 = vunpack.c.l.bf16 %v2185
        %v2284 = vunpack.c.h.bf16 %v2185
        %v2285 = vunpack.c.l.bf16 %v2188
        %v2286 = vunpack.c.h.bf16 %v2188
        %v2287 = vunpack.c.l.bf16 %v2191
        %v2288 = vunpack.c.h.bf16 %v2191
        %v2289 = vunpack.c.l.bf16 %v2194
        %v2290 = vunpack.c.h.bf16 %v2194
        %v2291 = vunpack.c.l.bf16 %v2197
        %v2292 = vunpack.c.h.bf16 %v2197
        %v2293 = vunpack.c.l.bf16 %v2200
        %v2294 = vunpack.c.h.bf16 %v2200
        %v2295 = vunpack.c.l.bf16 %v2203
        %v2296 = vunpack.c.h.bf16 %v2203
        %v2297 = vunpack.c.l.bf16 %v2206
        %v2298 = vunpack.c.h.bf16 %v2206
        %v2299 = vunpack.c.l.bf16 %v2209
        %v2300 = vunpack.c.h.bf16 %v2209
        %v2301 = vunpack.c.l.bf16 %v2212
        %v2302 = vunpack.c.h.bf16 %v2212
        %v2303 = vunpack.c.l.bf16 %v2215
        %v2304 = vunpack.c.h.bf16 %v2215
        %v2305 = vunpack.c.l.bf16 %v2218
        %v2306 = vunpack.c.h.bf16 %v2218
        %v2307 = vunpack.c.l.bf16 %v2221
        %v2308 = vunpack.c.h.bf16 %v2221
        %v2309 = vunpack.c.l.bf16 %v2224
        %v2310 = vunpack.c.h.bf16 %v2224
        %v2311 = vunpack.c.l.bf16 %v2227
        %v2312 = vunpack.c.h.bf16 %v2227
        %v2313 = vunpack.c.l.bf16 %v2230
        %v2314 = vunpack.c.h.bf16 %v2230
        %v2315 = vunpack.c.l.bf16 %v2233
        %v2316 = vunpack.c.h.bf16 %v2233
        %v2317 = vunpack.c.l.bf16 %v2236
        %v2318 = vunpack.c.h.bf16 %v2236
        %v2319 = vunpack.c.l.bf16 %v2239
        %v2320 = vunpack.c.h.bf16 %v2239
        %v2321 = vunpack.c.l.bf16 %v2242
        %v2322 = vunpack.c.h.bf16 %v2242
        %v2323 = vunpack.c.l.bf16 %v2245
        %v2324 = vunpack.c.h.bf16 %v2245
        %v2325 = vunpack.c.l.bf16 %v2248
        %v2326 = vunpack.c.h.bf16 %v2248
        %v2327 = vunpack.c.l.bf16 %v2251
        %v2328 = vunpack.c.h.bf16 %v2251
        %v2329 = vunpack.c.l.bf16 %v2254
        %v2330 = vunpack.c.h.bf16 %v2254
        %v2331 = vunpack.c.l.bf16 %v2257
        %v2332 = vunpack.c.h.bf16 %v2257
        %v2333 = vunpack.c.l.bf16 %v2260
        %v2334 = vunpack.c.h.bf16 %v2260
        %v2335 = vunpack.c.l.bf16 %v2263
        %v2336 = vunpack.c.h.bf16 %v2263
        %v2337 = vunpack.c.l.bf16 %v2266
        %v2338 = vunpack.c.h.bf16 %v2266
        %v2339 = vunpack.c.l.bf16 %v2269
        %v2340 = vunpack.c.h.bf16 %v2269
        %v2341 = vunpack.c.l.bf16 %v2272
        %v2342 = vunpack.c.h.bf16 %v2272
        %v2343 = vunpack.c.l.bf16 %v2275
        %v2344 = vunpack.c.h.bf16 %v2275
        %v2345 = vunpack.c.l.bf16 %v2278
        %v2346 = vunpack.c.h.bf16 %v2278
        %v2347 = vadd.f32 %v2283, %v2284
        %v2348 = vadd.f32 %v2347, %v2285
        %v2349 = vadd.f32 %v2348, %v2286
        %v2350 = vadd.f32 %v2349, %v2287
        %v2351 = vadd.f32 %v2350, %v2288
        %v2352 = vadd.f32 %v2351, %v2289
        %v2353 = vadd.f32 %v2352, %v2290
        %v2354 = vadd.f32 %v2353, %v2291
        %v2355 = vadd.f32 %v2354, %v2292
        %v2356 = vadd.f32 %v2355, %v2293
        %v2357 = vadd.f32 %v2356, %v2294
        %v2358 = vadd.f32 %v2357, %v2295
        %v2359 = vadd.f32 %v2358, %v2296
        %v2360 = vadd.f32 %v2359, %v2297
        %v2361 = vadd.f32 %v2360, %v2298
        %v2362 = vrot.slane %v2361, 4
        %v2363 = vadd.f32 %v2361, %v2362
        %v2364 = vrot.slane %v2363, 2
        %v2365 = vadd.f32 %v2363, %v2364
        %v2366 = vrot.slane %v2365, 1
        %v2367 = vadd.f32 %v2365, %v2366
        %v2368 = vadd.f32 %v2299, %v2300
        %v2369 = vadd.f32 %v2368, %v2301
        %v2370 = vadd.f32 %v2369, %v2302
        %v2371 = vadd.f32 %v2370, %v2303
        %v2372 = vadd.f32 %v2371, %v2304
        %v2373 = vadd.f32 %v2372, %v2305
        %v2374 = vadd.f32 %v2373, %v2306
        %v2375 = vadd.f32 %v2374, %v2307
        %v2376 = vadd.f32 %v2375, %v2308
        %v2377 = vadd.f32 %v2376, %v2309
        %v2378 = vadd.f32 %v2377, %v2310
        %v2379 = vadd.f32 %v2378, %v2311
        %v2380 = vadd.f32 %v2379, %v2312
        %v2381 = vadd.f32 %v2380, %v2313
        %v2382 = vadd.f32 %v2381, %v2314
        %v2383 = vrot.slane %v2382, 4
        %v2384 = vadd.f32 %v2382, %v2383
        %v2385 = vrot.slane %v2384, 2
        %v2386 = vadd.f32 %v2384, %v2385
        %v2387 = vrot.slane %v2386, 1
        %v2388 = vadd.f32 %v2386, %v2387
        %v2389 = vadd.f32 %v2315, %v2316
        %v2390 = vadd.f32 %v2389, %v2317
        %v2391 = vadd.f32 %v2390, %v2318
        %v2392 = vadd.f32 %v2391, %v2319
        %v2393 = vadd.f32 %v2392, %v2320
        %v2394 = vadd.f32 %v2393, %v2321
        %v2395 = vadd.f32 %v2394, %v2322
        %v2396 = vadd.f32 %v2395, %v2323
        %v2397 = vadd.f32 %v2396, %v2324
        %v2398 = vadd.f32 %v2397, %v2325
        %v2399 = vadd.f32 %v2398, %v2326
        %v2400 = vadd.f32 %v2399, %v2327
        %v2401 = vadd.f32 %v2400, %v2328
        %v2402 = vadd.f32 %v2401, %v2329
        %v2403 = vadd.f32 %v2402, %v2330
        %v2404 = vrot.slane %v2403, 4
        %v2405 = vadd.f32 %v2403, %v2404
        %v2406 = vrot.slane %v2405, 2
        %v2407 = vadd.f32 %v2405, %v2406
        %v2408 = vrot.slane %v2407, 1
        %v2409 = vadd.f32 %v2407, %v2408
        %v2410 = vadd.f32 %v2331, %v2332
        %v2411 = vadd.f32 %v2410, %v2333
        %v2412 = vadd.f32 %v2411, %v2334
        %v2413 = vadd.f32 %v2412, %v2335
        %v2414 = vadd.f32 %v2413, %v2336
        %v2415 = vadd.f32 %v2414, %v2337
        %v2416 = vadd.f32 %v2415, %v2338
        %v2417 = vadd.f32 %v2416, %v2339
        %v2418 = vadd.f32 %v2417, %v2340
        %v2419 = vadd.f32 %v2418, %v2341
        %v2420 = vadd.f32 %v2419, %v2342
        %v2421 = vadd.f32 %v2420, %v2343
        %v2422 = vadd.f32 %v2421, %v2344
        %v2423 = vadd.f32 %v2422, %v2345
        %v2424 = vadd.f32 %v2423, %v2346
        %v2425 = vrot.slane %v2424, 4
        %v2426 = vadd.f32 %v2424, %v2425
        %v2427 = vrot.slane %v2426, 2
        %v2428 = vadd.f32 %v2426, %v2427
        %v2429 = vrot.slane %v2428, 1
        %v2430 = vadd.f32 %v2428, %v2429
        %v2431 = vadd.f32 %v2279, %v2367
        %v2432 = vadd.f32 %v2280, %v2388
        %v2433 = vadd.f32 %v2281, %v2409
        %v2434 = vadd.f32 %v2282, %v2430
        %2435 = vmatprep.subr.bf16.mxu0 0
        %2436 = vmatpush1.bf16.msra.mxu0 %v2206
        %2437 = vmatprep.subr.bf16.mxu0 0
        %2438 = vmatpush1.bf16.msra.mxu0 %v2203
        %2439 = vmatprep.subr.bf16.mxu0 0
        %2440 = vmatpush1.bf16.msra.mxu0 %v2200
        %2441 = vmatprep.subr.bf16.mxu0 0
        %2442 = vmatpush1.bf16.msra.mxu0 %v2197
        %2443 = vmatprep.subr.bf16.mxu0 0
        %2444 = vmatpush1.bf16.msra.mxu0 %v2194
        %2445 = vmatprep.subr.bf16.mxu0 0
        %2446 = vmatpush1.bf16.msra.mxu0 %v2191
        %2447 = vmatprep.subr.bf16.mxu0 0
        %2448 = vmatpush1.bf16.msra.mxu0 %v2188
        %2449 = vmatprep.subr.bf16.mxu0 0
        %2450 = vmatpush1.bf16.msra.mxu0 %v2185
        %2451 = vmatprep.subr.bf16.mxu0 0
        %2452 = vmatpush2.bf16.msra.mxu0 0
        %2453 = vmatprep.subr.bf16.mxu0 0
        %2454 = vmatpush2.bf16.msra.mxu0 0
        %2455 = vmatprep.subr.bf16.mxu0 0
        %2456 = vmatpush2.bf16.msra.mxu0 0
        %2457 = vmatprep.subr.bf16.mxu0 0
        %2458 = vmatpush2.bf16.msra.mxu0 0
        %2459 = vmatprep.subr.bf16.mxu0 0
        %2460 = vmatpush2.bf16.msra.mxu0 0
        %2461 = vmatprep.subr.bf16.mxu0 0
        %2462 = vmatpush2.bf16.msra.mxu0 0
        %2463 = vmatprep.subr.bf16.mxu0 0
        %2464 = vmatpush2.bf16.msra.mxu0 0
        %2465 = vmatprep.subr.bf16.mxu0 0
        %2466 = vmatpush2.bf16.msra.mxu0 0
        %2467 = vmatprep.mubr.bf16.mxu0 0
        %2468 = vmatmul.mubr.bf16.gmra.mxu0 %v1325
        %v2469 = vpop.f32.mrf.mxu0
        %v2470 = vadd.f32 0.0, %v2469
        %v2471 = vpop.f32.mrf.mxu0
        %v2472 = vpop.f32.mrf.mxu0
        %v2473 = vpop.f32.mrf.mxu0
        %2474 = vdwg.mxu0
        %2475 = vmatprep.subr.bf16.mxu0 0
        %2476 = vmatpush1.bf16.msra.mxu0 %v2230
        %2477 = vmatprep.subr.bf16.mxu0 0
        %2478 = vmatpush1.bf16.msra.mxu0 %v2227
        %2479 = vmatprep.subr.bf16.mxu0 0
        %2480 = vmatpush1.bf16.msra.mxu0 %v2224
        %2481 = vmatprep.subr.bf16.mxu0 0
        %2482 = vmatpush1.bf16.msra.mxu0 %v2221
        %2483 = vmatprep.subr.bf16.mxu0 0
        %2484 = vmatpush1.bf16.msra.mxu0 %v2218
        %2485 = vmatprep.subr.bf16.mxu0 0
        %2486 = vmatpush1.bf16.msra.mxu0 %v2215
        %2487 = vmatprep.subr.bf16.mxu0 0
        %2488 = vmatpush1.bf16.msra.mxu0 %v2212
        %2489 = vmatprep.subr.bf16.mxu0 0
        %2490 = vmatpush1.bf16.msra.mxu0 %v2209
        %2491 = vmatprep.subr.bf16.mxu0 0
        %2492 = vmatpush2.bf16.msra.mxu0 0
        %2493 = vmatprep.subr.bf16.mxu0 0
        %2494 = vmatpush2.bf16.msra.mxu0 0
        %2495 = vmatprep.subr.bf16.mxu0 0
        %2496 = vmatpush2.bf16.msra.mxu0 0
        %2497 = vmatprep.subr.bf16.mxu0 0
        %2498 = vmatpush2.bf16.msra.mxu0 0
        %2499 = vmatprep.subr.bf16.mxu0 0
        %2500 = vmatpush2.bf16.msra.mxu0 0
        %2501 = vmatprep.subr.bf16.mxu0 0
        %2502 = vmatpush2.bf16.msra.mxu0 0
        %2503 = vmatprep.subr.bf16.mxu0 0
        %2504 = vmatpush2.bf16.msra.mxu0 0
        %2505 = vmatprep.subr.bf16.mxu0 0
        %2506 = vmatpush2.bf16.msra.mxu0 0
        %2507 = vmatprep.mubr.bf16.mxu0 0
        %2508 = vmatmul.mubr.bf16.gmra.mxu0 %v1326
        %v2509 = vpop.f32.mrf.mxu0
        %v2510 = vadd.f32 0.0, %v2509
        %v2511 = vpop.f32.mrf.mxu0
        %v2512 = vpop.f32.mrf.mxu0
        %v2513 = vpop.f32.mrf.mxu0
        %2514 = vdwg.mxu0
        %2515 = vmatprep.subr.bf16.mxu0 0
        %2516 = vmatpush1.bf16.msra.mxu0 %v2254
        %2517 = vmatprep.subr.bf16.mxu0 0
        %2518 = vmatpush1.bf16.msra.mxu0 %v2251
        %2519 = vmatprep.subr.bf16.mxu0 0
        %2520 = vmatpush1.bf16.msra.mxu0 %v2248
        %2521 = vmatprep.subr.bf16.mxu0 0
        %2522 = vmatpush1.bf16.msra.mxu0 %v2245
        %2523 = vmatprep.subr.bf16.mxu0 0
        %2524 = vmatpush1.bf16.msra.mxu0 %v2242
        %2525 = vmatprep.subr.bf16.mxu0 0
        %2526 = vmatpush1.bf16.msra.mxu0 %v2239
        %2527 = vmatprep.subr.bf16.mxu0 0
        %2528 = vmatpush1.bf16.msra.mxu0 %v2236
        %2529 = vmatprep.subr.bf16.mxu0 0
        %2530 = vmatpush1.bf16.msra.mxu0 %v2233
        %2531 = vmatprep.subr.bf16.mxu0 0
        %2532 = vmatpush2.bf16.msra.mxu0 0
        %2533 = vmatprep.subr.bf16.mxu0 0
        %2534 = vmatpush2.bf16.msra.mxu0 0
        %2535 = vmatprep.subr.bf16.mxu0 0
        %2536 = vmatpush2.bf16.msra.mxu0 0
        %2537 = vmatprep.subr.bf16.mxu0 0
        %2538 = vmatpush2.bf16.msra.mxu0 0
        %2539 = vmatprep.subr.bf16.mxu0 0
        %2540 = vmatpush2.bf16.msra.mxu0 0
        %2541 = vmatprep.subr.bf16.mxu0 0
        %2542 = vmatpush2.bf16.msra.mxu0 0
        %2543 = vmatprep.subr.bf16.mxu0 0
        %2544 = vmatpush2.bf16.msra.mxu0 0
        %2545 = vmatprep.subr.bf16.mxu0 0
        %2546 = vmatpush2.bf16.msra.mxu0 0
        %2547 = vmatprep.mubr.bf16.mxu0 0
        %2548 = vmatmul.mubr.bf16.gmra.mxu0 %v1327
        %v2549 = vpop.f32.mrf.mxu0
        %v2550 = vadd.f32 0.0, %v2549
        %v2551 = vpop.f32.mrf.mxu0
        %v2552 = vpop.f32.mrf.mxu0
        %v2553 = vpop.f32.mrf.mxu0
        %2554 = vdwg.mxu0
        %2555 = vmatprep.subr.bf16.mxu0 0
        %2556 = vmatpush1.bf16.msra.mxu0 %v2278
        %2557 = vmatprep.subr.bf16.mxu0 0
        %2558 = vmatpush1.bf16.msra.mxu0 %v2275
        %2559 = vmatprep.subr.bf16.mxu0 0
        %2560 = vmatpush1.bf16.msra.mxu0 %v2272
        %2561 = vmatprep.subr.bf16.mxu0 0
        %2562 = vmatpush1.bf16.msra.mxu0 %v2269
        %2563 = vmatprep.subr.bf16.mxu0 0
        %2564 = vmatpush1.bf16.msra.mxu0 %v2266
        %2565 = vmatprep.subr.bf16.mxu0 0
        %2566 = vmatpush1.bf16.msra.mxu0 %v2263
        %2567 = vmatprep.subr.bf16.mxu0 0
        %2568 = vmatpush1.bf16.msra.mxu0 %v2260
        %2569 = vmatprep.subr.bf16.mxu0 0
        %2570 = vmatpush1.bf16.msra.mxu0 %v2257
        %2571 = vmatprep.subr.bf16.mxu0 0
        %2572 = vmatpush2.bf16.msra.mxu0 0
        %2573 = vmatprep.subr.bf16.mxu0 0
        %2574 = vmatpush2.bf16.msra.mxu0 0
        %2575 = vmatprep.subr.bf16.mxu0 0
        %2576 = vmatpush2.bf16.msra.mxu0 0
        %2577 = vmatprep.subr.bf16.mxu0 0
        %2578 = vmatpush2.bf16.msra.mxu0 0
        %2579 = vmatprep.subr.bf16.mxu0 0
        %2580 = vmatpush2.bf16.msra.mxu0 0
        %2581 = vmatprep.subr.bf16.mxu0 0
        %2582 = vmatpush2.bf16.msra.mxu0 0
        %2583 = vmatprep.subr.bf16.mxu0 0
        %2584 = vmatpush2.bf16.msra.mxu0 0
        %2585 = vmatprep.subr.bf16.mxu0 0
        %2586 = vmatpush2.bf16.msra.mxu0 0
        %2587 = vmatprep.mubr.bf16.mxu0 0
        %2588 = vmatmul.mubr.bf16.gmra.mxu0 %v1328
        %v2589 = vpop.f32.mrf.mxu0
        %v2590 = vadd.f32 0.0, %v2589
        %v2591 = vpop.f32.mrf.mxu0
        %v2592 = vpop.f32.mrf.mxu0
        %v2593 = vpop.f32.mrf.mxu0
        %2594 = vdwg.mxu0
        %v2595 = vadd.f32 %v2279, %v2470
        %v2596 = vadd.f32 %v2280, %v2510
        %v2597 = vadd.f32 %v2281, %v2550
        %v2598 = vadd.f32 %v2282, %v2590
        %v2599 = vrcp.pop %v2431
        %v2600 = vrcp.pop %v2432
        %v2601 = vrcp.pop %v2433
        %v2602 = vrcp.pop %v2434
        %v2603 = vmul.f32 %v2595, %v2599
        %v2604 = vmul.f32 %v2596, %v2600
        %v2605 = vmul.f32 %v2597, %v2601
        %v2606 = vmul.f32 %v2598, %v2602
        %v2607 = vpack.c.bf16 %v2604, %v2603
        %v2608 = vpack.c.bf16 %v2606, %v2605
        %2610 = vset.pattern.permute.xlu0 0
        %2611 = vperm.xlu0 %2610, %v505
        %v2612 = vpop.permute.xlu0 %2611
        %2615 = vset.pattern.permute.xlu0 0
        %2616 = vperm.xlu0 %2615, %v506
        %v2617 = vpop.permute.xlu0 %2616
        %2620 = vset.pattern.permute.xlu0 0
        %2621 = vperm.xlu0 %2620, %v507
        %v2622 = vpop.permute.xlu0 %2621
        %2625 = vset.pattern.permute.xlu0 0
        %2626 = vperm.xlu0 %2625, %v508
        %v2627 = vpop.permute.xlu0 %2626
        %v2633 = vunpack.c.l.b16 %v1122
        %v2634 = vunpack.c.l.b16 %v1123
        %v2635 = vunpack.c.l.b16 %v1124
        %v2636 = vunpack.c.l.b16 %v1125
        %v2637 = vpack.c.b16 %v2634, %v2633
        %v2638 = vpack.c.b16 %v2636, %v2635
        %v2640 = vsel %vm765, %v2637, 0
        %v2643 = vsel %vm765, %v2638, 0
        %2645 = vmatprep.subr.bf16.mxu0 0
        %2646 = vmatpush1.bf16.msra.mxu0 0
        %2647 = vmatprep.subr.bf16.mxu0 0
        %2648 = vmatpush1.bf16.msra.mxu0 0
        %2649 = vmatprep.subr.bf16.mxu0 0
        %2650 = vmatpush1.bf16.msra.mxu0 0
        %2651 = vmatprep.subr.bf16.mxu0 0
        %2652 = vmatpush1.bf16.msra.mxu0 0
        %2653 = vmatprep.subr.bf16.mxu0 0
        %2654 = vmatpush1.bf16.msra.mxu0 0
        %2655 = vmatprep.subr.bf16.mxu0 0
        %2656 = vmatpush1.bf16.msra.mxu0 0
        %2657 = vmatprep.subr.bf16.mxu0 0
        %2658 = vmatpush1.bf16.msra.mxu0 %v2608
        %2659 = vmatprep.subr.bf16.mxu0 0
        %2660 = vmatpush1.bf16.msra.mxu0 %v2607
        %2661 = vmatprep.subr.bf16.mxu0 0
        %2662 = vmatpush2.bf16.msra.mxu0 0
        %2663 = vmatprep.subr.bf16.mxu0 0
        %2664 = vmatpush2.bf16.msra.mxu0 0
        %2665 = vmatprep.subr.bf16.mxu0 0
        %2666 = vmatpush2.bf16.msra.mxu0 0
        %2667 = vmatprep.subr.bf16.mxu0 0
        %2668 = vmatpush2.bf16.msra.mxu0 0
        %2669 = vmatprep.subr.bf16.mxu0 0
        %2670 = vmatpush2.bf16.msra.mxu0 0
        %2671 = vmatprep.subr.bf16.mxu0 0
        %2672 = vmatpush2.bf16.msra.mxu0 0
        %2673 = vmatprep.subr.bf16.mxu0 0
        %2674 = vmatpush2.bf16.msra.mxu0 0
        %2675 = vmatprep.subr.bf16.mxu0 0
        %2676 = vmatpush2.bf16.msra.mxu0 0
        %2677 = vmatprep.mubr.bf16.mxu0 0
        %2678 = vmatmul.mubr.bf16.gmra.mxu0 %v2640
        %v2679 = vpop.f32.mrf.mxu0
        %v2680 = vadd.f32 %v2612, %v2679
        %v2681 = vpop.f32.mrf.mxu0
        %v2682 = vpop.f32.mrf.mxu0
        %v2683 = vadd.f32 %v2617, %v2682
        %v2684 = vpop.f32.mrf.mxu0
        %2685 = vmatprep.mubr.bf16.mxu0 0
        %2686 = vmatmul.mubr.bf16.gmra.mxu0 %v2643
        %v2687 = vpop.f32.mrf.mxu0
        %v2688 = vadd.f32 %v2622, %v2687
        %v2689 = vpop.f32.mrf.mxu0
        %v2690 = vpop.f32.mrf.mxu0
        %v2691 = vadd.f32 %v2627, %v2690
        %v2692 = vpop.f32.mrf.mxu0
        %2693 = vdwg.mxu0
        %2695 = vset.pattern.permute.xlu0 0
        %2696 = vperm.xlu0 %2695, %v945
        %v2697 = vpop.permute.xlu0 %2696
        %2700 = vset.pattern.permute.xlu0 0
        %2701 = vperm.xlu0 %2700, %v950
        %v2702 = vpop.permute.xlu0 %2701
        %2705 = vset.pattern.permute.xlu0 0
        %2706 = vperm.xlu0 %2705, %v955
        %v2707 = vpop.permute.xlu0 %2706
        %2710 = vset.pattern.permute.xlu0 0
        %2711 = vperm.xlu0 %2710, %v960
        %v2712 = vpop.permute.xlu0 %2711
        %v2714 = vmul.f32 %v2697, %v2680
        %v2715 = vmul.f32 %v2702, %v2683
        %v2716 = vmul.f32 %v2707, %v2688
        %v2717 = vmul.f32 %v2712, %v2691
        %v2718 = vadd.f32 %v2714, %v609
        %v2719 = vadd.f32 %v2715, %v610
        %v2720 = vadd.f32 %v2716, %v611
        %v2721 = vadd.f32 %v2717, %v612
        %v2722 = vadd.f32 %v2718, %v2719
        %v2723 = vadd.f32 %v2722, %v2720
        %v2724 = vadd.f32 %v2723, %v2721
        %v2725 = vrot.slane %v2724, 4
        %v2726 = vadd.f32 %v2724, %v2725
        %v2727 = vrot.slane %v2726, 2
        %v2728 = vadd.f32 %v2726, %v2727
        %v2729 = vrot.slane %v2728, 1
        %v2730 = vadd.f32 %v2728, %v2729
        %v2731 = vmul.f32 %v2730, %v1032
        %v2732 = vsub.f32 %v2718, %v2731
        %v2733 = vsub.f32 %v2719, %v2731
        %v2734 = vsub.f32 %v2720, %v2731
        %v2735 = vsub.f32 %v2721, %v2731
        %v2736 = vmul.f32 %v2732, %v2732
        %v2737 = vmul.f32 %v2733, %v2733
        %v2738 = vmul.f32 %v2734, %v2734
        %v2739 = vmul.f32 %v2735, %v2735
        %v2740 = vadd.f32 %v2736, %v2737
        %v2741 = vadd.f32 %v2740, %v2738
        %v2742 = vadd.f32 %v2741, %v2739
        %v2743 = vrot.slane %v2742, 4
        %v2744 = vadd.f32 %v2742, %v2743
        %v2745 = vrot.slane %v2744, 2
        %v2746 = vadd.f32 %v2744, %v2745
        %v2747 = vrot.slane %v2746, 1
        %v2748 = vadd.f32 %v2746, %v2747
        %v2749 = vmul.f32 %v2748, %v1032
        %v2750 = vadd.f32 %v2749, 1e-05
        %v2751 = vrsqrt.pop %v2750
        %v2752 = vmul.f32 %v2732, %v2751
        %v2753 = vmul.f32 %v2733, %v2751
        %v2754 = vmul.f32 %v2734, %v2751
        %v2755 = vmul.f32 %v2735, %v2751
        %2757 = vset.pattern.permute.xlu0 0
        %2758 = vperm.xlu0 %2757, %v509
        %v2759 = vpop.permute.xlu0 %2758
        %2762 = vset.pattern.permute.xlu0 0
        %2763 = vperm.xlu0 %2762, %v510
        %v2764 = vpop.permute.xlu0 %2763
        %2767 = vset.pattern.permute.xlu0 0
        %2768 = vperm.xlu0 %2767, %v511
        %v2769 = vpop.permute.xlu0 %2768
        %2772 = vset.pattern.permute.xlu0 0
        %2773 = vperm.xlu0 %2772, %v512
        %v2774 = vpop.permute.xlu0 %2773
        %v2776 = vmul.f32 %v2752, %v2759
        %v2777 = vmul.f32 %v2753, %v2764
        %v2778 = vmul.f32 %v2754, %v2769
        %v2779 = vmul.f32 %v2755, %v2774
        %2781 = vset.pattern.permute.xlu0 0
        %2782 = vperm.xlu0 %2781, %v513
        %v2783 = vpop.permute.xlu0 %2782
        %2786 = vset.pattern.permute.xlu0 0
        %2787 = vperm.xlu0 %2786, %v514
        %v2788 = vpop.permute.xlu0 %2787
        %2791 = vset.pattern.permute.xlu0 0
        %2792 = vperm.xlu0 %2791, %v515
        %v2793 = vpop.permute.xlu0 %2792
        %2796 = vset.pattern.permute.xlu0 0
        %2797 = vperm.xlu0 %2796, %v516
        %v2798 = vpop.permute.xlu0 %2797
        %v2800 = vadd.f32 %v2776, %v2783
        %v2801 = vadd.f32 %v2777, %v2788
        %v2802 = vadd.f32 %v2778, %v2793
        %v2803 = vadd.f32 %v2779, %v2798
        %v2804 = vld [vmem:[%s9] sm:$0xf]
        %v2805 = vld [vmem:[%s9 + $0x4] sm:$0xf]
        %v2806 = vld [vmem:[%s9 + $0x8] sm:$0xf]
        %v2807 = vld [vmem:[%s9 + $0xc] sm:$0xf]
        %v2808 = vld [vmem:[%s9 + $0x10] sm:$0xf]
        %v2809 = vld [vmem:[%s9 + $0x14] sm:$0xf]
        %v2810 = vld [vmem:[%s9 + $0x18] sm:$0xf]
        %v2811 = vld [vmem:[%s9 + $0x1c] sm:$0xf]
        %v2812 = vld [vmem:[%s9 + $0x20] sm:$0xf]
        %v2813 = vld [vmem:[%s9 + $0x24] sm:$0xf]
        %v2814 = vld [vmem:[%s9 + $0x28] sm:$0xf]
        %v2815 = vld [vmem:[%s9 + $0x2c] sm:$0xf]
        %v2816 = vld [vmem:[%s10] sm:$0xf]
        %v2817 = vld [vmem:[%s10 + $0x4] sm:$0xf]
        %v2818 = vld [vmem:[%s10 + $0x8] sm:$0xf]
        %v2819 = vld [vmem:[%s10 + $0xc] sm:$0xf]
        %v2820 = vpack.c.bf16 %v2801, %v2800
        %v2821 = vpack.c.bf16 %v2803, %v2802
        %2823 = vset.pattern.permute.xlu0 0
        %2824 = vperm.xlu0 %2823, %v517
        %v2825 = vpop.permute.xlu0 %2824
        %2828 = vset.pattern.permute.xlu0 0
        %2829 = vperm.xlu0 %2828, %v518
        %v2830 = vpop.permute.xlu0 %2829
        %2833 = vset.pattern.permute.xlu0 0
        %2834 = vperm.xlu0 %2833, %v519
        %v2835 = vpop.permute.xlu0 %2834
        %2838 = vset.pattern.permute.xlu0 0
        %2839 = vperm.xlu0 %2838, %v520
        %v2840 = vpop.permute.xlu0 %2839
        %v2846 = vunpack.c.l.b16 %v2804
        %v2847 = vunpack.c.l.b16 %v2805
        %v2848 = vunpack.c.l.b16 %v2806
        %v2849 = vunpack.c.l.b16 %v2807
        %v2850 = vpack.c.b16 %v2847, %v2846
        %v2851 = vpack.c.b16 %v2849, %v2848
        %v2853 = vsel %vm765, %v2850, 0
        %v2856 = vsel %vm765, %v2851, 0
        %2858 = vmatprep.subr.bf16.mxu0 0
        %2859 = vmatpush1.bf16.msra.mxu0 0
        %2860 = vmatprep.subr.bf16.mxu0 0
        %2861 = vmatpush1.bf16.msra.mxu0 0
        %2862 = vmatprep.subr.bf16.mxu0 0
        %2863 = vmatpush1.bf16.msra.mxu0 0
        %2864 = vmatprep.subr.bf16.mxu0 0
        %2865 = vmatpush1.bf16.msra.mxu0 0
        %2866 = vmatprep.subr.bf16.mxu0 0
        %2867 = vmatpush1.bf16.msra.mxu0 0
        %2868 = vmatprep.subr.bf16.mxu0 0
        %2869 = vmatpush1.bf16.msra.mxu0 0
        %2870 = vmatprep.subr.bf16.mxu0 0
        %2871 = vmatpush1.bf16.msra.mxu0 %v2821
        %2872 = vmatprep.subr.bf16.mxu0 0
        %2873 = vmatpush1.bf16.msra.mxu0 %v2820
        %2874 = vmatprep.subr.bf16.mxu0 0
        %2875 = vmatpush2.bf16.msra.mxu0 0
        %2876 = vmatprep.subr.bf16.mxu0 0
        %2877 = vmatpush2.bf16.msra.mxu0 0
        %2878 = vmatprep.subr.bf16.mxu0 0
        %2879 = vmatpush2.bf16.msra.mxu0 0
        %2880 = vmatprep.subr.bf16.mxu0 0
        %2881 = vmatpush2.bf16.msra.mxu0 0
        %2882 = vmatprep.subr.bf16.mxu0 0
        %2883 = vmatpush2.bf16.msra.mxu0 0
        %2884 = vmatprep.subr.bf16.mxu0 0
        %2885 = vmatpush2.bf16.msra.mxu0 0
        %2886 = vmatprep.subr.bf16.mxu0 0
        %2887 = vmatpush2.bf16.msra.mxu0 0
        %2888 = vmatprep.subr.bf16.mxu0 0
        %2889 = vmatpush2.bf16.msra.mxu0 0
        %2890 = vmatprep.mubr.bf16.mxu0 0
        %2891 = vmatmul.mubr.bf16.gmra.mxu0 %v2853
        %v2892 = vpop.f32.mrf.mxu0
        %v2893 = vadd.f32 %v2825, %v2892
        %v2894 = vpop.f32.mrf.mxu0
        %v2895 = vpop.f32.mrf.mxu0
        %v2896 = vadd.f32 %v2830, %v2895
        %v2897 = vpop.f32.mrf.mxu0
        %2898 = vmatprep.mubr.bf16.mxu0 0
        %2899 = vmatmul.mubr.bf16.gmra.mxu0 %v2856
        %v2900 = vpop.f32.mrf.mxu0
        %v2901 = vadd.f32 %v2835, %v2900
        %v2902 = vpop.f32.mrf.mxu0
        %v2903 = vpop.f32.mrf.mxu0
        %v2904 = vadd.f32 %v2840, %v2903
        %v2905 = vpop.f32.mrf.mxu0
        %2906 = vdwg.mxu0
        %v2907 = vpack.c.bf16 %v614, %v613
        %v2908 = vpack.c.bf16 %v616, %v615
        %2910 = vset.pattern.permute.xlu0 0
        %2911 = vperm.xlu0 %2910, %v521
        %v2912 = vpop.permute.xlu0 %2911
        %2915 = vset.pattern.permute.xlu0 0
        %2916 = vperm.xlu0 %2915, %v522
        %v2917 = vpop.permute.xlu0 %2916
        %2920 = vset.pattern.permute.xlu0 0
        %2921 = vperm.xlu0 %2920, %v523
        %v2922 = vpop.permute.xlu0 %2921
        %2925 = vset.pattern.permute.xlu0 0
        %2926 = vperm.xlu0 %2925, %v524
        %v2927 = vpop.permute.xlu0 %2926
        %2930 = vset.pattern.permute.xlu0 0
        %2931 = vperm.xlu0 %2930, %v525
        %v2932 = vpop.permute.xlu0 %2931
        %2935 = vset.pattern.permute.xlu0 0
        %2936 = vperm.xlu0 %2935, %v526
        %v2937 = vpop.permute.xlu0 %2936
        %2940 = vset.pattern.permute.xlu0 0
        %2941 = vperm.xlu0 %2940, %v527
        %v2942 = vpop.permute.xlu0 %2941
        %2945 = vset.pattern.permute.xlu0 0
        %2946 = vperm.xlu0 %2945, %v528
        %v2947 = vpop.permute.xlu0 %2946
        %v2957 = vunpack.c.l.b16 %v2808
        %v2958 = vunpack.c.l.b16 %v2809
        %v2959 = vunpack.c.l.b16 %v2810
        %v2960 = vunpack.c.l.b16 %v2811
        %v2961 = vunpack.c.l.b16 %v2812
        %v2962 = vunpack.c.l.b16 %v2813
        %v2963 = vunpack.c.l.b16 %v2814
        %v2964 = vunpack.c.l.b16 %v2815
        %v2965 = vpack.c.b16 %v2958, %v2957
        %v2966 = vpack.c.b16 %v2960, %v2959
        %v2967 = vpack.c.b16 %v2962, %v2961
        %v2968 = vpack.c.b16 %v2964, %v2963
        %v2970 = vsel %vm765, %v2965, 0
        %v2973 = vsel %vm765, %v2966, 0
        %v2976 = vsel %vm765, %v2967, 0
        %v2979 = vsel %vm765, %v2968, 0
        %2981 = vmatprep.subr.bf16.mxu0 0
        %2982 = vmatpush1.bf16.msra.mxu0 0
        %2983 = vmatprep.subr.bf16.mxu0 0
        %2984 = vmatpush1.bf16.msra.mxu0 0
        %2985 = vmatprep.subr.bf16.mxu0 0
        %2986 = vmatpush1.bf16.msra.mxu0 0
        %2987 = vmatprep.subr.bf16.mxu0 0
        %2988 = vmatpush1.bf16.msra.mxu0 0
        %2989 = vmatprep.subr.bf16.mxu0 0
        %2990 = vmatpush1.bf16.msra.mxu0 0
        %2991 = vmatprep.subr.bf16.mxu0 0
        %2992 = vmatpush1.bf16.msra.mxu0 0
        %2993 = vmatprep.subr.bf16.mxu0 0
        %2994 = vmatpush1.bf16.msra.mxu0 %v2908
        %2995 = vmatprep.subr.bf16.mxu0 0
        %2996 = vmatpush1.bf16.msra.mxu0 %v2907
        %2997 = vmatprep.subr.bf16.mxu0 0
        %2998 = vmatpush2.bf16.msra.mxu0 0
        %2999 = vmatprep.subr.bf16.mxu0 0
        %3000 = vmatpush2.bf16.msra.mxu0 0
        %3001 = vmatprep.subr.bf16.mxu0 0
        %3002 = vmatpush2.bf16.msra.mxu0 0
        %3003 = vmatprep.subr.bf16.mxu0 0
        %3004 = vmatpush2.bf16.msra.mxu0 0
        %3005 = vmatprep.subr.bf16.mxu0 0
        %3006 = vmatpush2.bf16.msra.mxu0 0
        %3007 = vmatprep.subr.bf16.mxu0 0
        %3008 = vmatpush2.bf16.msra.mxu0 0
        %3009 = vmatprep.subr.bf16.mxu0 0
        %3010 = vmatpush2.bf16.msra.mxu0 0
        %3011 = vmatprep.subr.bf16.mxu0 0
        %3012 = vmatpush2.bf16.msra.mxu0 0
        %3013 = vmatprep.mubr.bf16.mxu0 0
        %3014 = vmatmul.mubr.bf16.gmra.mxu0 %v2970
        %v3015 = vpop.f32.mrf.mxu0
        %v3016 = vadd.f32 %v2912, %v3015
        %v3017 = vpop.f32.mrf.mxu0
        %v3018 = vpop.f32.mrf.mxu0
        %v3019 = vadd.f32 %v2917, %v3018
        %v3020 = vpop.f32.mrf.mxu0
        %3021 = vmatprep.mubr.bf16.mxu0 0
        %3022 = vmatmul.mubr.bf16.gmra.mxu0 %v2973
        %v3023 = vpop.f32.mrf.mxu0
        %v3024 = vadd.f32 %v2922, %v3023
        %v3025 = vpop.f32.mrf.mxu0
        %v3026 = vpop.f32.mrf.mxu0
        %v3027 = vadd.f32 %v2927, %v3026
        %v3028 = vpop.f32.mrf.mxu0
        %3029 = vmatprep.mubr.bf16.mxu0 0
        %3030 = vmatmul.mubr.bf16.gmra.mxu0 %v2976
        %v3031 = vpop.f32.mrf.mxu0
        %v3032 = vadd.f32 %v2932, %v3031
        %v3033 = vpop.f32.mrf.mxu0
        %v3034 = vpop.f32.mrf.mxu0
        %v3035 = vadd.f32 %v2937, %v3034
        %v3036 = vpop.f32.mrf.mxu0
        %3037 = vmatprep.mubr.bf16.mxu0 0
        %3038 = vmatmul.mubr.bf16.gmra.mxu0 %v2979
        %v3039 = vpop.f32.mrf.mxu0
        %v3040 = vadd.f32 %v2942, %v3039
        %v3041 = vpop.f32.mrf.mxu0
        %v3042 = vpop.f32.mrf.mxu0
        %v3043 = vadd.f32 %v2947, %v3042
        %v3044 = vpop.f32.mrf.mxu0
        %3045 = vdwg.mxu0
        %v3046 = vpack.c.bf16 %v2893, %v2893
        %v3047 = vpack.c.bf16 %v2896, %v2896
        %v3048 = vpack.c.bf16 %v2901, %v2901
        %v3049 = vpack.c.bf16 %v2904, %v2904
        %v3050 = vpack.c.bf16 %v3016, %v3016
        %v3051 = vpack.c.bf16 %v3019, %v3019
        %v3052 = vpack.c.bf16 %v3024, %v3024
        %v3053 = vpack.c.bf16 %v3027, %v3027
        %v3054 = vpack.c.bf16 %v3032, %v3032
        %v3055 = vpack.c.bf16 %v3035, %v3035
        %v3056 = vpack.c.bf16 %v3040, %v3040
        %v3057 = vpack.c.bf16 %v3043, %v3043
        %3058 = vxpose.xlu0.c.b16.start [1/8] %v3050, 128
        %3059 = vxpose.xlu0.c.b16.cont [2/8] 0, 128
        %3060 = vxpose.xlu0.c.b16.cont [3/8] 0, 128
        %3061 = vxpose.xlu0.c.b16.cont [4/8] 0, 128
        %3062 = vxpose.xlu0.c.b16.cont [5/8] 0, 128
        %3063 = vxpose.xlu0.c.b16.cont [6/8] 0, 128
        %3064 = vxpose.xlu0.c.b16.cont [7/8] 0, 128
        %3065 = vxpose.xlu0.c.b16.end [8/8] 0, 128
        %v3066 = vpop.trf.xlu0
        %v3067 = vpop.trf.xlu0
        %v3068 = vpop.trf.xlu0
        %v3069 = vpop.trf.xlu0
        %v3070 = vpop.trf.xlu0
        %v3071 = vpop.trf.xlu0
        %v3072 = vpop.trf.xlu0
        %v3073 = vpop.trf.xlu0
        %v3075 = vsel %vm1345, %v3066, 0
        %v3078 = vsel %vm1345, %v3067, 0
        %v3081 = vsel %vm1345, %v3068, 0
        %v3084 = vsel %vm1345, %v3069, 0
        %v3087 = vsel %vm1345, %v3070, 0
        %v3090 = vsel %vm1345, %v3071, 0
        %v3093 = vsel %vm1345, %v3072, 0
        %v3096 = vsel %vm1345, %v3073, 0
        %v3099 = vsel %vm1370, %v3046, 0
        %3101 = vmatprep.subr.bf16.mxu0 0
        %3102 = vmatpush1.bf16.msra.mxu0 0
        %3103 = vmatprep.subr.bf16.mxu0 0
        %3104 = vmatpush1.bf16.msra.mxu0 0
        %3105 = vmatprep.subr.bf16.mxu0 0
        %3106 = vmatpush1.bf16.msra.mxu0 0
        %3107 = vmatprep.subr.bf16.mxu0 0
        %3108 = vmatpush1.bf16.msra.mxu0 0
        %3109 = vmatprep.subr.bf16.mxu0 0
        %3110 = vmatpush1.bf16.msra.mxu0 0
        %3111 = vmatprep.subr.bf16.mxu0 0
        %3112 = vmatpush1.bf16.msra.mxu0 0
        %3113 = vmatprep.subr.bf16.mxu0 0
        %3114 = vmatpush1.bf16.msra.mxu0 0
        %3115 = vmatprep.subr.bf16.mxu0 0
        %3116 = vmatpush1.bf16.msra.mxu0 %v3099
        %3117 = vmatprep.subr.bf16.mxu0 0
        %3118 = vmatpush2.bf16.msra.mxu0 0
        %3119 = vmatprep.subr.bf16.mxu0 0
        %3120 = vmatpush2.bf16.msra.mxu0 0
        %3121 = vmatprep.subr.bf16.mxu0 0
        %3122 = vmatpush2.bf16.msra.mxu0 0
        %3123 = vmatprep.subr.bf16.mxu0 0
        %3124 = vmatpush2.bf16.msra.mxu0 0
        %3125 = vmatprep.subr.bf16.mxu0 0
        %3126 = vmatpush2.bf16.msra.mxu0 0
        %3127 = vmatprep.subr.bf16.mxu0 0
        %3128 = vmatpush2.bf16.msra.mxu0 0
        %3129 = vmatprep.subr.bf16.mxu0 0
        %3130 = vmatpush2.bf16.msra.mxu0 0
        %3131 = vmatprep.subr.bf16.mxu0 0
        %3132 = vmatpush2.bf16.msra.mxu0 0
        %3133 = vmatprep.mubr.bf16.mxu0 0
        %3134 = vmatmul.mubr.bf16.gmra.mxu0 %v3075
        %v3135 = vpop.f32.mrf.mxu0
        %v3136 = vadd.f32 0.0, %v3135
        %v3137 = vpop.f32.mrf.mxu0
        %v3138 = vpop.f32.mrf.mxu0
        %v3139 = vadd.f32 0.0, %v3138
        %v3140 = vpop.f32.mrf.mxu0
        %3141 = vmatprep.mubr.bf16.mxu0 0
        %3142 = vmatmul.mubr.bf16.gmra.mxu0 %v3078
        %v3143 = vpop.f32.mrf.mxu0
        %v3144 = vadd.f32 0.0, %v3143
        %v3145 = vpop.f32.mrf.mxu0
        %v3146 = vpop.f32.mrf.mxu0
        %v3147 = vadd.f32 0.0, %v3146
        %v3148 = vpop.f32.mrf.mxu0
        %3149 = vmatprep.mubr.bf16.mxu0 0
        %3150 = vmatmul.mubr.bf16.gmra.mxu0 %v3081
        %v3151 = vpop.f32.mrf.mxu0
        %v3152 = vadd.f32 0.0, %v3151
        %v3153 = vpop.f32.mrf.mxu0
        %v3154 = vpop.f32.mrf.mxu0
        %v3155 = vadd.f32 0.0, %v3154
        %v3156 = vpop.f32.mrf.mxu0
        %3157 = vmatprep.mubr.bf16.mxu0 0
        %3158 = vmatmul.mubr.bf16.gmra.mxu0 %v3084
        %v3159 = vpop.f32.mrf.mxu0
        %v3160 = vadd.f32 0.0, %v3159
        %v3161 = vpop.f32.mrf.mxu0
        %v3162 = vpop.f32.mrf.mxu0
        %v3163 = vadd.f32 0.0, %v3162
        %v3164 = vpop.f32.mrf.mxu0
        %3165 = vmatprep.mubr.bf16.mxu0 0
        %3166 = vmatmul.mubr.bf16.gmra.mxu0 %v3087
        %v3167 = vpop.f32.mrf.mxu0
        %v3168 = vadd.f32 0.0, %v3167
        %v3169 = vpop.f32.mrf.mxu0
        %v3170 = vpop.f32.mrf.mxu0
        %v3171 = vadd.f32 0.0, %v3170
        %v3172 = vpop.f32.mrf.mxu0
        %3173 = vmatprep.mubr.bf16.mxu0 0
        %3174 = vmatmul.mubr.bf16.gmra.mxu0 %v3090
        %v3175 = vpop.f32.mrf.mxu0
        %v3176 = vadd.f32 0.0, %v3175
        %v3177 = vpop.f32.mrf.mxu0
        %v3178 = vpop.f32.mrf.mxu0
        %v3179 = vadd.f32 0.0, %v3178
        %v3180 = vpop.f32.mrf.mxu0
        %3181 = vmatprep.mubr.bf16.mxu0 0
        %3182 = vmatmul.mubr.bf16.gmra.mxu0 %v3093
        %v3183 = vpop.f32.mrf.mxu0
        %v3184 = vadd.f32 0.0, %v3183
        %v3185 = vpop.f32.mrf.mxu0
        %v3186 = vpop.f32.mrf.mxu0
        %v3187 = vadd.f32 0.0, %v3186
        %v3188 = vpop.f32.mrf.mxu0
        %3189 = vmatprep.mubr.bf16.mxu0 0
        %3190 = vmatmul.mubr.bf16.gmra.mxu0 %v3096
        %v3191 = vpop.f32.mrf.mxu0
        %v3192 = vadd.f32 0.0, %v3191
        %v3193 = vpop.f32.mrf.mxu0
        %v3194 = vpop.f32.mrf.mxu0
        %v3195 = vadd.f32 0.0, %v3194
        %v3196 = vpop.f32.mrf.mxu0
        %3197 = vdwg.mxu0
        %3198 = vxpose.xlu0.c.b16.start [1/8] %v3051, 128
        %3199 = vxpose.xlu0.c.b16.cont [2/8] 0, 128
        %3200 = vxpose.xlu0.c.b16.cont [3/8] 0, 128
        %3201 = vxpose.xlu0.c.b16.cont [4/8] 0, 128
        %3202 = vxpose.xlu0.c.b16.cont [5/8] 0, 128
        %3203 = vxpose.xlu0.c.b16.cont [6/8] 0, 128
        %3204 = vxpose.xlu0.c.b16.cont [7/8] 0, 128
        %3205 = vxpose.xlu0.c.b16.end [8/8] 0, 128
        %v3206 = vpop.trf.xlu0
        %v3207 = vpop.trf.xlu0
        %v3208 = vpop.trf.xlu0
        %v3209 = vpop.trf.xlu0
        %v3210 = vpop.trf.xlu0
        %v3211 = vpop.trf.xlu0
        %v3212 = vpop.trf.xlu0
        %v3213 = vpop.trf.xlu0
        %v3215 = vsel %vm1345, %v3206, 0
        %v3218 = vsel %vm1345, %v3207, 0
        %v3221 = vsel %vm1345, %v3208, 0
        %v3224 = vsel %vm1345, %v3209, 0
        %v3227 = vsel %vm1345, %v3210, 0
        %v3230 = vsel %vm1345, %v3211, 0
        %v3233 = vsel %vm1345, %v3212, 0
        %v3236 = vsel %vm1345, %v3213, 0
        %v3239 = vsel %vm1370, %v3047, 0
        %3241 = vmatprep.subr.bf16.mxu0 0
        %3242 = vmatpush1.bf16.msra.mxu0 0
        %3243 = vmatprep.subr.bf16.mxu0 0
        %3244 = vmatpush1.bf16.msra.mxu0 0
        %3245 = vmatprep.subr.bf16.mxu0 0
        %3246 = vmatpush1.bf16.msra.mxu0 0
        %3247 = vmatprep.subr.bf16.mxu0 0
        %3248 = vmatpush1.bf16.msra.mxu0 0
        %3249 = vmatprep.subr.bf16.mxu0 0
        %3250 = vmatpush1.bf16.msra.mxu0 0
        %3251 = vmatprep.subr.bf16.mxu0 0
        %3252 = vmatpush1.bf16.msra.mxu0 0
        %3253 = vmatprep.subr.bf16.mxu0 0
        %3254 = vmatpush1.bf16.msra.mxu0 0
        %3255 = vmatprep.subr.bf16.mxu0 0
        %3256 = vmatpush1.bf16.msra.mxu0 %v3239
        %3257 = vmatprep.subr.bf16.mxu0 0
        %3258 = vmatpush2.bf16.msra.mxu0 0
        %3259 = vmatprep.subr.bf16.mxu0 0
        %3260 = vmatpush2.bf16.msra.mxu0 0
        %3261 = vmatprep.subr.bf16.mxu0 0
        %3262 = vmatpush2.bf16.msra.mxu0 0
        %3263 = vmatprep.subr.bf16.mxu0 0
        %3264 = vmatpush2.bf16.msra.mxu0 0
        %3265 = vmatprep.subr.bf16.mxu0 0
        %3266 = vmatpush2.bf16.msra.mxu0 0
        %3267 = vmatprep.subr.bf16.mxu0 0
        %3268 = vmatpush2.bf16.msra.mxu0 0
        %3269 = vmatprep.subr.bf16.mxu0 0
        %3270 = vmatpush2.bf16.msra.mxu0 0
        %3271 = vmatprep.subr.bf16.mxu0 0
        %3272 = vmatpush2.bf16.msra.mxu0 0
        %3273 = vmatprep.mubr.bf16.mxu0 0
        %3274 = vmatmul.mubr.bf16.gmra.mxu0 %v3215
        %v3275 = vpop.f32.mrf.mxu0
        %v3276 = vadd.f32 0.0, %v3275
        %v3277 = vpop.f32.mrf.mxu0
        %v3278 = vpop.f32.mrf.mxu0
        %v3279 = vadd.f32 0.0, %v3278
        %v3280 = vpop.f32.mrf.mxu0
        %3281 = vmatprep.mubr.bf16.mxu0 0
        %3282 = vmatmul.mubr.bf16.gmra.mxu0 %v3218
        %v3283 = vpop.f32.mrf.mxu0
        %v3284 = vadd.f32 0.0, %v3283
        %v3285 = vpop.f32.mrf.mxu0
        %v3286 = vpop.f32.mrf.mxu0
        %v3287 = vadd.f32 0.0, %v3286
        %v3288 = vpop.f32.mrf.mxu0
        %3289 = vmatprep.mubr.bf16.mxu0 0
        %3290 = vmatmul.mubr.bf16.gmra.mxu0 %v3221
        %v3291 = vpop.f32.mrf.mxu0
        %v3292 = vadd.f32 0.0, %v3291
        %v3293 = vpop.f32.mrf.mxu0
        %v3294 = vpop.f32.mrf.mxu0
        %v3295 = vadd.f32 0.0, %v3294
        %v3296 = vpop.f32.mrf.mxu0
        %3297 = vmatprep.mubr.bf16.mxu0 0
        %3298 = vmatmul.mubr.bf16.gmra.mxu0 %v3224
        %v3299 = vpop.f32.mrf.mxu0
        %v3300 = vadd.f32 0.0, %v3299
        %v3301 = vpop.f32.mrf.mxu0
        %v3302 = vpop.f32.mrf.mxu0
        %v3303 = vadd.f32 0.0, %v3302
        %v3304 = vpop.f32.mrf.mxu0
        %3305 = vmatprep.mubr.bf16.mxu0 0
        %3306 = vmatmul.mubr.bf16.gmra.mxu0 %v3227
        %v3307 = vpop.f32.mrf.mxu0
        %v3308 = vadd.f32 0.0, %v3307
        %v3309 = vpop.f32.mrf.mxu0
        %v3310 = vpop.f32.mrf.mxu0
        %v3311 = vadd.f32 0.0, %v3310
        %v3312 = vpop.f32.mrf.mxu0
        %3313 = vmatprep.mubr.bf16.mxu0 0
        %3314 = vmatmul.mubr.bf16.gmra.mxu0 %v3230
        %v3315 = vpop.f32.mrf.mxu0
        %v3316 = vadd.f32 0.0, %v3315
        %v3317 = vpop.f32.mrf.mxu0
        %v3318 = vpop.f32.mrf.mxu0
        %v3319 = vadd.f32 0.0, %v3318
        %v3320 = vpop.f32.mrf.mxu0
        %3321 = vmatprep.mubr.bf16.mxu0 0
        %3322 = vmatmul.mubr.bf16.gmra.mxu0 %v3233
        %v3323 = vpop.f32.mrf.mxu0
        %v3324 = vadd.f32 0.0, %v3323
        %v3325 = vpop.f32.mrf.mxu0
        %v3326 = vpop.f32.mrf.mxu0
        %v3327 = vadd.f32 0.0, %v3326
        %v3328 = vpop.f32.mrf.mxu0
        %3329 = vmatprep.mubr.bf16.mxu0 0
        %3330 = vmatmul.mubr.bf16.gmra.mxu0 %v3236
        %v3331 = vpop.f32.mrf.mxu0
        %v3332 = vadd.f32 0.0, %v3331
        %v3333 = vpop.f32.mrf.mxu0
        %v3334 = vpop.f32.mrf.mxu0
        %v3335 = vadd.f32 0.0, %v3334
        %v3336 = vpop.f32.mrf.mxu0
        %3337 = vdwg.mxu0
        %3338 = vxpose.xlu0.c.b16.start [1/8] %v3052, 128
        %3339 = vxpose.xlu0.c.b16.cont [2/8] 0, 128
        %3340 = vxpose.xlu0.c.b16.cont [3/8] 0, 128
        %3341 = vxpose.xlu0.c.b16.cont [4/8] 0, 128
        %3342 = vxpose.xlu0.c.b16.cont [5/8] 0, 128
        %3343 = vxpose.xlu0.c.b16.cont [6/8] 0, 128
        %3344 = vxpose.xlu0.c.b16.cont [7/8] 0, 128
        %3345 = vxpose.xlu0.c.b16.end [8/8] 0, 128
        %v3346 = vpop.trf.xlu0
        %v3347 = vpop.trf.xlu0
        %v3348 = vpop.trf.xlu0
        %v3349 = vpop.trf.xlu0
        %v3350 = vpop.trf.xlu0
        %v3351 = vpop.trf.xlu0
        %v3352 = vpop.trf.xlu0
        %v3353 = vpop.trf.xlu0
        %v3355 = vsel %vm1345, %v3346, 0
        %v3358 = vsel %vm1345, %v3347, 0
        %v3361 = vsel %vm1345, %v3348, 0
        %v3364 = vsel %vm1345, %v3349, 0
        %v3367 = vsel %vm1345, %v3350, 0
        %v3370 = vsel %vm1345, %v3351, 0
        %v3373 = vsel %vm1345, %v3352, 0
        %v3376 = vsel %vm1345, %v3353, 0
        %v3379 = vsel %vm1370, %v3048, 0
        %3381 = vmatprep.subr.bf16.mxu0 0
        %3382 = vmatpush1.bf16.msra.mxu0 0
        %3383 = vmatprep.subr.bf16.mxu0 0
        %3384 = vmatpush1.bf16.msra.mxu0 0
        %3385 = vmatprep.subr.bf16.mxu0 0
        %3386 = vmatpush1.bf16.msra.mxu0 0
        %3387 = vmatprep.subr.bf16.mxu0 0
        %3388 = vmatpush1.bf16.msra.mxu0 0
        %3389 = vmatprep.subr.bf16.mxu0 0
        %3390 = vmatpush1.bf16.msra.mxu0 0
        %3391 = vmatprep.subr.bf16.mxu0 0
        %3392 = vmatpush1.bf16.msra.mxu0 0
        %3393 = vmatprep.subr.bf16.mxu0 0
        %3394 = vmatpush1.bf16.msra.mxu0 0
        %3395 = vmatprep.subr.bf16.mxu0 0
        %3396 = vmatpush1.bf16.msra.mxu0 %v3379
        %3397 = vmatprep.subr.bf16.mxu0 0
        %3398 = vmatpush2.bf16.msra.mxu0 0
        %3399 = vmatprep.subr.bf16.mxu0 0
        %3400 = vmatpush2.bf16.msra.mxu0 0
        %3401 = vmatprep.subr.bf16.mxu0 0
        %3402 = vmatpush2.bf16.msra.mxu0 0
        %3403 = vmatprep.subr.bf16.mxu0 0
        %3404 = vmatpush2.bf16.msra.mxu0 0
        %3405 = vmatprep.subr.bf16.mxu0 0
        %3406 = vmatpush2.bf16.msra.mxu0 0
        %3407 = vmatprep.subr.bf16.mxu0 0
        %3408 = vmatpush2.bf16.msra.mxu0 0
        %3409 = vmatprep.subr.bf16.mxu0 0
        %3410 = vmatpush2.bf16.msra.mxu0 0
        %3411 = vmatprep.subr.bf16.mxu0 0
        %3412 = vmatpush2.bf16.msra.mxu0 0
        %3413 = vmatprep.mubr.bf16.mxu0 0
        %3414 = vmatmul.mubr.bf16.gmra.mxu0 %v3355
        %v3415 = vpop.f32.mrf.mxu0
        %v3416 = vadd.f32 0.0, %v3415
        %v3417 = vpop.f32.mrf.mxu0
        %v3418 = vpop.f32.mrf.mxu0
        %v3419 = vadd.f32 0.0, %v3418
        %v3420 = vpop.f32.mrf.mxu0
        %3421 = vmatprep.mubr.bf16.mxu0 0
        %3422 = vmatmul.mubr.bf16.gmra.mxu0 %v3358
        %v3423 = vpop.f32.mrf.mxu0
        %v3424 = vadd.f32 0.0, %v3423
        %v3425 = vpop.f32.mrf.mxu0
        %v3426 = vpop.f32.mrf.mxu0
        %v3427 = vadd.f32 0.0, %v3426
        %v3428 = vpop.f32.mrf.mxu0
        %3429 = vmatprep.mubr.bf16.mxu0 0
        %3430 = vmatmul.mubr.bf16.gmra.mxu0 %v3361
        %v3431 = vpop.f32.mrf.mxu0
        %v3432 = vadd.f32 0.0, %v3431
        %v3433 = vpop.f32.mrf.mxu0
        %v3434 = vpop.f32.mrf.mxu0
        %v3435 = vadd.f32 0.0, %v3434
        %v3436 = vpop.f32.mrf.mxu0
        %3437 = vmatprep.mubr.bf16.mxu0 0
        %3438 = vmatmul.mubr.bf16.gmra.mxu0 %v3364
        %v3439 = vpop.f32.mrf.mxu0
        %v3440 = vadd.f32 0.0, %v3439
        %v3441 = vpop.f32.mrf.mxu0
        %v3442 = vpop.f32.mrf.mxu0
        %v3443 = vadd.f32 0.0, %v3442
        %v3444 = vpop.f32.mrf.mxu0
        %3445 = vmatprep.mubr.bf16.mxu0 0
        %3446 = vmatmul.mubr.bf16.gmra.mxu0 %v3367
        %v3447 = vpop.f32.mrf.mxu0
        %v3448 = vadd.f32 0.0, %v3447
        %v3449 = vpop.f32.mrf.mxu0
        %v3450 = vpop.f32.mrf.mxu0
        %v3451 = vadd.f32 0.0, %v3450
        %v3452 = vpop.f32.mrf.mxu0
        %3453 = vmatprep.mubr.bf16.mxu0 0
        %3454 = vmatmul.mubr.bf16.gmra.mxu0 %v3370
        %v3455 = vpop.f32.mrf.mxu0
        %v3456 = vadd.f32 0.0, %v3455
        %v3457 = vpop.f32.mrf.mxu0
        %v3458 = vpop.f32.mrf.mxu0
        %v3459 = vadd.f32 0.0, %v3458
        %v3460 = vpop.f32.mrf.mxu0
        %3461 = vmatprep.mubr.bf16.mxu0 0
        %3462 = vmatmul.mubr.bf16.gmra.mxu0 %v3373
        %v3463 = vpop.f32.mrf.mxu0
        %v3464 = vadd.f32 0.0, %v3463
        %v3465 = vpop.f32.mrf.mxu0
        %v3466 = vpop.f32.mrf.mxu0
        %v3467 = vadd.f32 0.0, %v3466
        %v3468 = vpop.f32.mrf.mxu0
        %3469 = vmatprep.mubr.bf16.mxu0 0
        %3470 = vmatmul.mubr.bf16.gmra.mxu0 %v3376
        %v3471 = vpop.f32.mrf.mxu0
        %v3472 = vadd.f32 0.0, %v3471
        %v3473 = vpop.f32.mrf.mxu0
        %v3474 = vpop.f32.mrf.mxu0
        %v3475 = vadd.f32 0.0, %v3474
        %v3476 = vpop.f32.mrf.mxu0
        %3477 = vdwg.mxu0
        %3478 = vxpose.xlu0.c.b16.start [1/8] %v3053, 128
        %3479 = vxpose.xlu0.c.b16.cont [2/8] 0, 128
        %3480 = vxpose.xlu0.c.b16.cont [3/8] 0, 128
        %3481 = vxpose.xlu0.c.b16.cont [4/8] 0, 128
        %3482 = vxpose.xlu0.c.b16.cont [5/8] 0, 128
        %3483 = vxpose.xlu0.c.b16.cont [6/8] 0, 128
        %3484 = vxpose.xlu0.c.b16.cont [7/8] 0, 128
        %3485 = vxpose.xlu0.c.b16.end [8/8] 0, 128
        %v3486 = vpop.trf.xlu0
        %v3487 = vpop.trf.xlu0
        %v3488 = vpop.trf.xlu0
        %v3489 = vpop.trf.xlu0
        %v3490 = vpop.trf.xlu0
        %v3491 = vpop.trf.xlu0
        %v3492 = vpop.trf.xlu0
        %v3493 = vpop.trf.xlu0
        %v3495 = vsel %vm1345, %v3486, 0
        %v3498 = vsel %vm1345, %v3487, 0
        %v3501 = vsel %vm1345, %v3488, 0
        %v3504 = vsel %vm1345, %v3489, 0
        %v3507 = vsel %vm1345, %v3490, 0
        %v3510 = vsel %vm1345, %v3491, 0
        %v3513 = vsel %vm1345, %v3492, 0
        %v3516 = vsel %vm1345, %v3493, 0
        %v3519 = vsel %vm1370, %v3049, 0
        %3521 = vmatprep.subr.bf16.mxu0 0
        %3522 = vmatpush1.bf16.msra.mxu0 0
        %3523 = vmatprep.subr.bf16.mxu0 0
        %3524 = vmatpush1.bf16.msra.mxu0 0
        %3525 = vmatprep.subr.bf16.mxu0 0
        %3526 = vmatpush1.bf16.msra.mxu0 0
        %3527 = vmatprep.subr.bf16.mxu0 0
        %3528 = vmatpush1.bf16.msra.mxu0 0
        %3529 = vmatprep.subr.bf16.mxu0 0
        %3530 = vmatpush1.bf16.msra.mxu0 0
        %3531 = vmatprep.subr.bf16.mxu0 0
        %3532 = vmatpush1.bf16.msra.mxu0 0
        %3533 = vmatprep.subr.bf16.mxu0 0
        %3534 = vmatpush1.bf16.msra.mxu0 0
        %3535 = vmatprep.subr.bf16.mxu0 0
        %3536 = vmatpush1.bf16.msra.mxu0 %v3519
        %3537 = vmatprep.subr.bf16.mxu0 0
        %3538 = vmatpush2.bf16.msra.mxu0 0
        %3539 = vmatprep.subr.bf16.mxu0 0
        %3540 = vmatpush2.bf16.msra.mxu0 0
        %3541 = vmatprep.subr.bf16.mxu0 0
        %3542 = vmatpush2.bf16.msra.mxu0 0
        %3543 = vmatprep.subr.bf16.mxu0 0
        %3544 = vmatpush2.bf16.msra.mxu0 0
        %3545 = vmatprep.subr.bf16.mxu0 0
        %3546 = vmatpush2.bf16.msra.mxu0 0
        %3547 = vmatprep.subr.bf16.mxu0 0
        %3548 = vmatpush2.bf16.msra.mxu0 0
        %3549 = vmatprep.subr.bf16.mxu0 0
        %3550 = vmatpush2.bf16.msra.mxu0 0
        %3551 = vmatprep.subr.bf16.mxu0 0
        %3552 = vmatpush2.bf16.msra.mxu0 0
        %3553 = vmatprep.mubr.bf16.mxu0 0
        %3554 = vmatmul.mubr.bf16.gmra.mxu0 %v3495
        %v3555 = vpop.f32.mrf.mxu0
        %v3556 = vadd.f32 0.0, %v3555
        %v3557 = vpop.f32.mrf.mxu0
        %v3558 = vpop.f32.mrf.mxu0
        %v3559 = vadd.f32 0.0, %v3558
        %v3560 = vpop.f32.mrf.mxu0
        %3561 = vmatprep.mubr.bf16.mxu0 0
        %3562 = vmatmul.mubr.bf16.gmra.mxu0 %v3498
        %v3563 = vpop.f32.mrf.mxu0
        %v3564 = vadd.f32 0.0, %v3563
        %v3565 = vpop.f32.mrf.mxu0
        %v3566 = vpop.f32.mrf.mxu0
        %v3567 = vadd.f32 0.0, %v3566
        %v3568 = vpop.f32.mrf.mxu0
        %3569 = vmatprep.mubr.bf16.mxu0 0
        %3570 = vmatmul.mubr.bf16.gmra.mxu0 %v3501
        %v3571 = vpop.f32.mrf.mxu0
        %v3572 = vadd.f32 0.0, %v3571
        %v3573 = vpop.f32.mrf.mxu0
        %v3574 = vpop.f32.mrf.mxu0
        %v3575 = vadd.f32 0.0, %v3574
        %v3576 = vpop.f32.mrf.mxu0
        %3577 = vmatprep.mubr.bf16.mxu0 0
        %3578 = vmatmul.mubr.bf16.gmra.mxu0 %v3504
        %v3579 = vpop.f32.mrf.mxu0
        %v3580 = vadd.f32 0.0, %v3579
        %v3581 = vpop.f32.mrf.mxu0
        %v3582 = vpop.f32.mrf.mxu0
        %v3583 = vadd.f32 0.0, %v3582
        %v3584 = vpop.f32.mrf.mxu0
        %3585 = vmatprep.mubr.bf16.mxu0 0
        %3586 = vmatmul.mubr.bf16.gmra.mxu0 %v3507
        %v3587 = vpop.f32.mrf.mxu0
        %v3588 = vadd.f32 0.0, %v3587
        %v3589 = vpop.f32.mrf.mxu0
        %v3590 = vpop.f32.mrf.mxu0
        %v3591 = vadd.f32 0.0, %v3590
        %v3592 = vpop.f32.mrf.mxu0
        %3593 = vmatprep.mubr.bf16.mxu0 0
        %3594 = vmatmul.mubr.bf16.gmra.mxu0 %v3510
        %v3595 = vpop.f32.mrf.mxu0
        %v3596 = vadd.f32 0.0, %v3595
        %v3597 = vpop.f32.mrf.mxu0
        %v3598 = vpop.f32.mrf.mxu0
        %v3599 = vadd.f32 0.0, %v3598
        %v3600 = vpop.f32.mrf.mxu0
        %3601 = vmatprep.mubr.bf16.mxu0 0
        %3602 = vmatmul.mubr.bf16.gmra.mxu0 %v3513
        %v3603 = vpop.f32.mrf.mxu0
        %v3604 = vadd.f32 0.0, %v3603
        %v3605 = vpop.f32.mrf.mxu0
        %v3606 = vpop.f32.mrf.mxu0
        %v3607 = vadd.f32 0.0, %v3606
        %v3608 = vpop.f32.mrf.mxu0
        %3609 = vmatprep.mubr.bf16.mxu0 0
        %3610 = vmatmul.mubr.bf16.gmra.mxu0 %v3516
        %v3611 = vpop.f32.mrf.mxu0
        %v3612 = vadd.f32 0.0, %v3611
        %v3613 = vpop.f32.mrf.mxu0
        %v3614 = vpop.f32.mrf.mxu0
        %v3615 = vadd.f32 0.0, %v3614
        %v3616 = vpop.f32.mrf.mxu0
        %3617 = vdwg.mxu0
        %v3618 = vsel %vm593, 1, 0
        %v3619 = vsel %vm594, 1, 0
        %v3620 = vsel %vm595, 1, 0
        %v3621 = vsel %vm596, 1, 0
        %v3622 = vsel %vm597, 1, 0
        %v3623 = vsel %vm598, 1, 0
        %v3624 = vsel %vm599, 1, 0
        %v3625 = vsel %vm600, 1, 0
        %v3626 = vsel %vm601, 1, 0
        %v3627 = vsel %vm602, 1, 0
        %v3628 = vsel %vm603, 1, 0
        %v3629 = vsel %vm604, 1, 0
        %v3630 = vsel %vm605, 1, 0
        %v3631 = vsel %vm606, 1, 0
        %v3632 = vsel %vm607, 1, 0
        %v3633 = vsel %vm608, 1, 0
        %vm3634 = vcmp.eq.s32.totalorder %v3618, 1
        %vm3635 = vcmp.eq.s32.totalorder %v3619, 1
        %vm3636 = vcmp.eq.s32.totalorder %v3620, 1
        %vm3637 = vcmp.eq.s32.totalorder %v3621, 1
        %vm3638 = vcmp.eq.s32.totalorder %v3622, 1
        %vm3639 = vcmp.eq.s32.totalorder %v3623, 1
        %vm3640 = vcmp.eq.s32.totalorder %v3624, 1
        %vm3641 = vcmp.eq.s32.totalorder %v3625, 1
        %vm3642 = vcmp.eq.s32.totalorder %v3626, 1
        %vm3643 = vcmp.eq.s32.totalorder %v3627, 1
        %vm3644 = vcmp.eq.s32.totalorder %v3628, 1
        %vm3645 = vcmp.eq.s32.totalorder %v3629, 1
        %vm3646 = vcmp.eq.s32.totalorder %v3630, 1
        %vm3647 = vcmp.eq.s32.totalorder %v3631, 1
        %vm3648 = vcmp.eq.s32.totalorder %v3632, 1
        %vm3649 = vcmp.eq.s32.totalorder %v3633, 1
        %v3650 = vsel %vm3634, %v3136, -10000.0
        %v3651 = vsel %vm3635, %v3139, -10000.0
        %v3652 = vsel %vm3636, %v3144, -10000.0
        %v3653 = vsel %vm3637, %v3147, -10000.0
        %v3654 = vsel %vm3638, %v3152, -10000.0
        %v3655 = vsel %vm3639, %v3155, -10000.0
        %v3656 = vsel %vm3640, %v3160, -10000.0
        %v3657 = vsel %vm3641, %v3163, -10000.0
        %v3658 = vsel %vm3642, %v3168, -10000.0
        %v3659 = vsel %vm3643, %v3171, -10000.0
        %v3660 = vsel %vm3644, %v3176, -10000.0
        %v3661 = vsel %vm3645, %v3179, -10000.0
        %v3662 = vsel %vm3646, %v3184, -10000.0
        %v3663 = vsel %vm3647, %v3187, -10000.0
        %v3664 = vsel %vm3648, %v3192, -10000.0
        %v3665 = vsel %vm3649, %v3195, -10000.0
        %v3666 = vsel %vm3634, %v3276, -10000.0
        %v3667 = vsel %vm3635, %v3279, -10000.0
        %v3668 = vsel %vm3636, %v3284, -10000.0
        %v3669 = vsel %vm3637, %v3287, -10000.0
        %v3670 = vsel %vm3638, %v3292, -10000.0
        %v3671 = vsel %vm3639, %v3295, -10000.0
        %v3672 = vsel %vm3640, %v3300, -10000.0
        %v3673 = vsel %vm3641, %v3303, -10000.0
        %v3674 = vsel %vm3642, %v3308, -10000.0
        %v3675 = vsel %vm3643, %v3311, -10000.0
        %v3676 = vsel %vm3644, %v3316, -10000.0
        %v3677 = vsel %vm3645, %v3319, -10000.0
        %v3678 = vsel %vm3646, %v3324, -10000.0
        %v3679 = vsel %vm3647, %v3327, -10000.0
        %v3680 = vsel %vm3648, %v3332, -10000.0
        %v3681 = vsel %vm3649, %v3335, -10000.0
        %v3682 = vsel %vm3634, %v3416, -10000.0
        %v3683 = vsel %vm3635, %v3419, -10000.0
        %v3684 = vsel %vm3636, %v3424, -10000.0
        %v3685 = vsel %vm3637, %v3427, -10000.0
        %v3686 = vsel %vm3638, %v3432, -10000.0
        %v3687 = vsel %vm3639, %v3435, -10000.0
        %v3688 = vsel %vm3640, %v3440, -10000.0
        %v3689 = vsel %vm3641, %v3443, -10000.0
        %v3690 = vsel %vm3642, %v3448, -10000.0
        %v3691 = vsel %vm3643, %v3451, -10000.0
        %v3692 = vsel %vm3644, %v3456, -10000.0
        %v3693 = vsel %vm3645, %v3459, -10000.0
        %v3694 = vsel %vm3646, %v3464, -10000.0
        %v3695 = vsel %vm3647, %v3467, -10000.0
        %v3696 = vsel %vm3648, %v3472, -10000.0
        %v3697 = vsel %vm3649, %v3475, -10000.0
        %v3698 = vsel %vm3634, %v3556, -10000.0
        %v3699 = vsel %vm3635, %v3559, -10000.0
        %v3700 = vsel %vm3636, %v3564, -10000.0
        %v3701 = vsel %vm3637, %v3567, -10000.0
        %v3702 = vsel %vm3638, %v3572, -10000.0
        %v3703 = vsel %vm3639, %v3575, -10000.0
        %v3704 = vsel %vm3640, %v3580, -10000.0
        %v3705 = vsel %vm3641, %v3583, -10000.0
        %v3706 = vsel %vm3642, %v3588, -10000.0
        %v3707 = vsel %vm3643, %v3591, -10000.0
        %v3708 = vsel %vm3644, %v3596, -10000.0
        %v3709 = vsel %vm3645, %v3599, -10000.0
        %v3710 = vsel %vm3646, %v3604, -10000.0
        %v3711 = vsel %vm3647, %v3607, -10000.0
        %v3712 = vsel %vm3648, %v3612, -10000.0
        %v3713 = vsel %vm3649, %v3615, -10000.0
        %v3714 = vmax.f32 %v3650, %v3651
        %v3715 = vmax.f32 %v3714, %v3652
        %v3716 = vmax.f32 %v3715, %v3653
        %v3717 = vmax.f32 %v3716, %v3654
        %v3718 = vmax.f32 %v3717, %v3655
        %v3719 = vmax.f32 %v3718, %v3656
        %v3720 = vmax.f32 %v3719, %v3657
        %v3721 = vmax.f32 %v3720, %v3658
        %v3722 = vmax.f32 %v3721, %v3659
        %v3723 = vmax.f32 %v3722, %v3660
        %v3724 = vmax.f32 %v3723, %v3661
        %v3725 = vmax.f32 %v3724, %v3662
        %v3726 = vmax.f32 %v3725, %v3663
        %v3727 = vmax.f32 %v3726, %v3664
        %v3728 = vmax.f32 %v3727, %v3665
        %v3729 = vrot.slane %v3728, 4
        %v3730 = vmax.f32 %v3728, %v3729
        %v3731 = vrot.slane %v3730, 2
        %v3732 = vmax.f32 %v3730, %v3731
        %v3733 = vrot.slane %v3732, 1
        %v3734 = vmax.f32 %v3732, %v3733
        %v3735 = vmax.f32 %v3666, %v3667
        %v3736 = vmax.f32 %v3735, %v3668
        %v3737 = vmax.f32 %v3736, %v3669
        %v3738 = vmax.f32 %v3737, %v3670
        %v3739 = vmax.f32 %v3738, %v3671
        %v3740 = vmax.f32 %v3739, %v3672
        %v3741 = vmax.f32 %v3740, %v3673
        %v3742 = vmax.f32 %v3741, %v3674
        %v3743 = vmax.f32 %v3742, %v3675
        %v3744 = vmax.f32 %v3743, %v3676
        %v3745 = vmax.f32 %v3744, %v3677
        %v3746 = vmax.f32 %v3745, %v3678
        %v3747 = vmax.f32 %v3746, %v3679
        %v3748 = vmax.f32 %v3747, %v3680
        %v3749 = vmax.f32 %v3748, %v3681
        %v3750 = vrot.slane %v3749, 4
        %v3751 = vmax.f32 %v3749, %v3750
        %v3752 = vrot.slane %v3751, 2
        %v3753 = vmax.f32 %v3751, %v3752
        %v3754 = vrot.slane %v3753, 1
        %v3755 = vmax.f32 %v3753, %v3754
        %v3756 = vmax.f32 %v3682, %v3683
        %v3757 = vmax.f32 %v3756, %v3684
        %v3758 = vmax.f32 %v3757, %v3685
        %v3759 = vmax.f32 %v3758, %v3686
        %v3760 = vmax.f32 %v3759, %v3687
        %v3761 = vmax.f32 %v3760, %v3688
        %v3762 = vmax.f32 %v3761, %v3689
        %v3763 = vmax.f32 %v3762, %v3690
        %v3764 = vmax.f32 %v3763, %v3691
        %v3765 = vmax.f32 %v3764, %v3692
        %v3766 = vmax.f32 %v3765, %v3693
        %v3767 = vmax.f32 %v3766, %v3694
        %v3768 = vmax.f32 %v3767, %v3695
        %v3769 = vmax.f32 %v3768, %v3696
        %v3770 = vmax.f32 %v3769, %v3697
        %v3771 = vrot.slane %v3770, 4
        %v3772 = vmax.f32 %v3770, %v3771
        %v3773 = vrot.slane %v3772, 2
        %v3774 = vmax.f32 %v3772, %v3773
        %v3775 = vrot.slane %v3774, 1
        %v3776 = vmax.f32 %v3774, %v3775
        %v3777 = vmax.f32 %v3698, %v3699
        %v3778 = vmax.f32 %v3777, %v3700
        %v3779 = vmax.f32 %v3778, %v3701
        %v3780 = vmax.f32 %v3779, %v3702
        %v3781 = vmax.f32 %v3780, %v3703
        %v3782 = vmax.f32 %v3781, %v3704
        %v3783 = vmax.f32 %v3782, %v3705
        %v3784 = vmax.f32 %v3783, %v3706
        %v3785 = vmax.f32 %v3784, %v3707
        %v3786 = vmax.f32 %v3785, %v3708
        %v3787 = vmax.f32 %v3786, %v3709
        %v3788 = vmax.f32 %v3787, %v3710
        %v3789 = vmax.f32 %v3788, %v3711
        %v3790 = vmax.f32 %v3789, %v3712
        %v3791 = vmax.f32 %v3790, %v3713
        %v3792 = vrot.slane %v3791, 4
        %v3793 = vmax.f32 %v3791, %v3792
        %v3794 = vrot.slane %v3793, 2
        %v3795 = vmax.f32 %v3793, %v3794
        %v3796 = vrot.slane %v3795, 1
        %v3797 = vmax.f32 %v3795, %v3796
        %v3798 = vmax.f32 %v3734, -1e+30
        %v3799 = vmax.f32 %v3755, -1e+30
        %v3800 = vmax.f32 %v3776, -1e+30
        %v3801 = vmax.f32 %v3797, -1e+30
        %v3802 = vsub.f32 -1e+30, %v3798
        %v3803 = vsub.f32 -1e+30, %v3799
        %v3804 = vsub.f32 -1e+30, %v3800
        %v3805 = vsub.f32 -1e+30, %v3801
        %v3806 = vmul.f32 %v3802, 1.442695
        %v3807 = vpow.pop %v3806
        %v3808 = vmul.f32 %v3803, 1.442695
        %v3809 = vpow.pop %v3808
        %v3810 = vmul.f32 %v3804, 1.442695
        %v3811 = vpow.pop %v3810
        %v3812 = vmul.f32 %v3805, 1.442695
        %v3813 = vpow.pop %v3812
        %v3814 = vsub.f32 %v3650, %v3798
        %v3815 = vsub.f32 %v3651, %v3798
        %v3816 = vsub.f32 %v3652, %v3798
        %v3817 = vsub.f32 %v3653, %v3798
        %v3818 = vsub.f32 %v3654, %v3798
        %v3819 = vsub.f32 %v3655, %v3798
        %v3820 = vsub.f32 %v3656, %v3798
        %v3821 = vsub.f32 %v3657, %v3798
        %v3822 = vsub.f32 %v3658, %v3798
        %v3823 = vsub.f32 %v3659, %v3798
        %v3824 = vsub.f32 %v3660, %v3798
        %v3825 = vsub.f32 %v3661, %v3798
        %v3826 = vsub.f32 %v3662, %v3798
        %v3827 = vsub.f32 %v3663, %v3798
        %v3828 = vsub.f32 %v3664, %v3798
        %v3829 = vsub.f32 %v3665, %v3798
        %v3830 = vsub.f32 %v3666, %v3799
        %v3831 = vsub.f32 %v3667, %v3799
        %v3832 = vsub.f32 %v3668, %v3799
        %v3833 = vsub.f32 %v3669, %v3799
        %v3834 = vsub.f32 %v3670, %v3799
        %v3835 = vsub.f32 %v3671, %v3799
        %v3836 = vsub.f32 %v3672, %v3799
        %v3837 = vsub.f32 %v3673, %v3799
        %v3838 = vsub.f32 %v3674, %v3799
        %v3839 = vsub.f32 %v3675, %v3799
        %v3840 = vsub.f32 %v3676, %v3799
        %v3841 = vsub.f32 %v3677, %v3799
        %v3842 = vsub.f32 %v3678, %v3799
        %v3843 = vsub.f32 %v3679, %v3799
        %v3844 = vsub.f32 %v3680, %v3799
        %v3845 = vsub.f32 %v3681, %v3799
        %v3846 = vsub.f32 %v3682, %v3800
        %v3847 = vsub.f32 %v3683, %v3800
        %v3848 = vsub.f32 %v3684, %v3800
        %v3849 = vsub.f32 %v3685, %v3800
        %v3850 = vsub.f32 %v3686, %v3800
        %v3851 = vsub.f32 %v3687, %v3800
        %v3852 = vsub.f32 %v3688, %v3800
        %v3853 = vsub.f32 %v3689, %v3800
        %v3854 = vsub.f32 %v3690, %v3800
        %v3855 = vsub.f32 %v3691, %v3800
        %v3856 = vsub.f32 %v3692, %v3800
        %v3857 = vsub.f32 %v3693, %v3800
        %v3858 = vsub.f32 %v3694, %v3800
        %v3859 = vsub.f32 %v3695, %v3800
        %v3860 = vsub.f32 %v3696, %v3800
        %v3861 = vsub.f32 %v3697, %v3800
        %v3862 = vsub.f32 %v3698, %v3801
        %v3863 = vsub.f32 %v3699, %v3801
        %v3864 = vsub.f32 %v3700, %v3801
        %v3865 = vsub.f32 %v3701, %v3801
        %v3866 = vsub.f32 %v3702, %v3801
        %v3867 = vsub.f32 %v3703, %v3801
        %v3868 = vsub.f32 %v3704, %v3801
        %v3869 = vsub.f32 %v3705, %v3801
        %v3870 = vsub.f32 %v3706, %v3801
        %v3871 = vsub.f32 %v3707, %v3801
        %v3872 = vsub.f32 %v3708, %v3801
        %v3873 = vsub.f32 %v3709, %v3801
        %v3874 = vsub.f32 %v3710, %v3801
        %v3875 = vsub.f32 %v3711, %v3801
        %v3876 = vsub.f32 %v3712, %v3801
        %v3877 = vsub.f32 %v3713, %v3801
        %v3878 = vpack.c.bf16 %v3815, %v3814
        %v3879 = vpack.c.bf16 %v3817, %v3816
        %v3880 = vpack.c.bf16 %v3819, %v3818
        %v3881 = vpack.c.bf16 %v3821, %v3820
        %v3882 = vpack.c.bf16 %v3823, %v3822
        %v3883 = vpack.c.bf16 %v3825, %v3824
        %v3884 = vpack.c.bf16 %v3827, %v3826
        %v3885 = vpack.c.bf16 %v3829, %v3828
        %v3886 = vpack.c.bf16 %v3831, %v3830
        %v3887 = vpack.c.bf16 %v3833, %v3832
        %v3888 = vpack.c.bf16 %v3835, %v3834
        %v3889 = vpack.c.bf16 %v3837, %v3836
        %v3890 = vpack.c.bf16 %v3839, %v3838
        %v3891 = vpack.c.bf16 %v3841, %v3840
        %v3892 = vpack.c.bf16 %v3843, %v3842
        %v3893 = vpack.c.bf16 %v3845, %v3844
        %v3894 = vpack.c.bf16 %v3847, %v3846
        %v3895 = vpack.c.bf16 %v3849, %v3848
        %v3896 = vpack.c.bf16 %v3851, %v3850
        %v3897 = vpack.c.bf16 %v3853, %v3852
        %v3898 = vpack.c.bf16 %v3855, %v3854
        %v3899 = vpack.c.bf16 %v3857, %v3856
        %v3900 = vpack.c.bf16 %v3859, %v3858
        %v3901 = vpack.c.bf16 %v3861, %v3860
        %v3902 = vpack.c.bf16 %v3863, %v3862
        %v3903 = vpack.c.bf16 %v3865, %v3864
        %v3904 = vpack.c.bf16 %v3867, %v3866
        %v3905 = vpack.c.bf16 %v3869, %v3868
        %v3906 = vpack.c.bf16 %v3871, %v3870
        %v3907 = vpack.c.bf16 %v3873, %v3872
        %v3908 = vpack.c.bf16 %v3875, %v3874
        %v3909 = vpack.c.bf16 %v3877, %v3876
        %v3911 = vmul.bf16 %v3878, 1069105081
        %v3912 = vpow.bf16.pop %v3911
        %v3914 = vmul.bf16 %v3879, 1069105081
        %v3915 = vpow.bf16.pop %v3914
        %v3917 = vmul.bf16 %v3880, 1069105081
        %v3918 = vpow.bf16.pop %v3917
        %v3920 = vmul.bf16 %v3881, 1069105081
        %v3921 = vpow.bf16.pop %v3920
        %v3923 = vmul.bf16 %v3882, 1069105081
        %v3924 = vpow.bf16.pop %v3923
        %v3926 = vmul.bf16 %v3883, 1069105081
        %v3927 = vpow.bf16.pop %v3926
        %v3929 = vmul.bf16 %v3884, 1069105081
        %v3930 = vpow.bf16.pop %v3929
        %v3932 = vmul.bf16 %v3885, 1069105081
        %v3933 = vpow.bf16.pop %v3932
        %v3935 = vmul.bf16 %v3886, 1069105081
        %v3936 = vpow.bf16.pop %v3935
        %v3938 = vmul.bf16 %v3887, 1069105081
        %v3939 = vpow.bf16.pop %v3938
        %v3941 = vmul.bf16 %v3888, 1069105081
        %v3942 = vpow.bf16.pop %v3941
        %v3944 = vmul.bf16 %v3889, 1069105081
        %v3945 = vpow.bf16.pop %v3944
        %v3947 = vmul.bf16 %v3890, 1069105081
        %v3948 = vpow.bf16.pop %v3947
        %v3950 = vmul.bf16 %v3891, 1069105081
        %v3951 = vpow.bf16.pop %v3950
        %v3953 = vmul.bf16 %v3892, 1069105081
        %v3954 = vpow.bf16.pop %v3953
        %v3956 = vmul.bf16 %v3893, 1069105081
        %v3957 = vpow.bf16.pop %v3956
        %v3959 = vmul.bf16 %v3894, 1069105081
        %v3960 = vpow.bf16.pop %v3959
        %v3962 = vmul.bf16 %v3895, 1069105081
        %v3963 = vpow.bf16.pop %v3962
        %v3965 = vmul.bf16 %v3896, 1069105081
        %v3966 = vpow.bf16.pop %v3965
        %v3968 = vmul.bf16 %v3897, 1069105081
        %v3969 = vpow.bf16.pop %v3968
        %v3971 = vmul.bf16 %v3898, 1069105081
        %v3972 = vpow.bf16.pop %v3971
        %v3974 = vmul.bf16 %v3899, 1069105081
        %v3975 = vpow.bf16.pop %v3974
        %v3977 = vmul.bf16 %v3900, 1069105081
        %v3978 = vpow.bf16.pop %v3977
        %v3980 = vmul.bf16 %v3901, 1069105081
        %v3981 = vpow.bf16.pop %v3980
        %v3983 = vmul.bf16 %v3902, 1069105081
        %v3984 = vpow.bf16.pop %v3983
        %v3986 = vmul.bf16 %v3903, 1069105081
        %v3987 = vpow.bf16.pop %v3986
        %v3989 = vmul.bf16 %v3904, 1069105081
        %v3990 = vpow.bf16.pop %v3989
        %v3992 = vmul.bf16 %v3905, 1069105081
        %v3993 = vpow.bf16.pop %v3992
        %v3995 = vmul.bf16 %v3906, 1069105081
        %v3996 = vpow.bf16.pop %v3995
        %v3998 = vmul.bf16 %v3907, 1069105081
        %v3999 = vpow.bf16.pop %v3998
        %v4001 = vmul.bf16 %v3908, 1069105081
        %v4002 = vpow.bf16.pop %v4001
        %v4004 = vmul.bf16 %v3909, 1069105081
        %v4005 = vpow.bf16.pop %v4004
        %v4006 = vmul.f32 %v3807, 0.0
        %v4007 = vmul.f32 %v3809, 0.0
        %v4008 = vmul.f32 %v3811, 0.0
        %v4009 = vmul.f32 %v3813, 0.0
        %v4010 = vunpack.c.l.bf16 %v3912
        %v4011 = vunpack.c.h.bf16 %v3912
        %v4012 = vunpack.c.l.bf16 %v3915
        %v4013 = vunpack.c.h.bf16 %v3915
        %v4014 = vunpack.c.l.bf16 %v3918
        %v4015 = vunpack.c.h.bf16 %v3918
        %v4016 = vunpack.c.l.bf16 %v3921
        %v4017 = vunpack.c.h.bf16 %v3921
        %v4018 = vunpack.c.l.bf16 %v3924
        %v4019 = vunpack.c.h.bf16 %v3924
        %v4020 = vunpack.c.l.bf16 %v3927
        %v4021 = vunpack.c.h.bf16 %v3927
        %v4022 = vunpack.c.l.bf16 %v3930
        %v4023 = vunpack.c.h.bf16 %v3930
        %v4024 = vunpack.c.l.bf16 %v3933
        %v4025 = vunpack.c.h.bf16 %v3933
        %v4026 = vunpack.c.l.bf16 %v3936
        %v4027 = vunpack.c.h.bf16 %v3936
        %v4028 = vunpack.c.l.bf16 %v3939
        %v4029 = vunpack.c.h.bf16 %v3939
        %v4030 = vunpack.c.l.bf16 %v3942
        %v4031 = vunpack.c.h.bf16 %v3942
        %v4032 = vunpack.c.l.bf16 %v3945
        %v4033 = vunpack.c.h.bf16 %v3945
        %v4034 = vunpack.c.l.bf16 %v3948
        %v4035 = vunpack.c.h.bf16 %v3948
        %v4036 = vunpack.c.l.bf16 %v3951
        %v4037 = vunpack.c.h.bf16 %v3951
        %v4038 = vunpack.c.l.bf16 %v3954
        %v4039 = vunpack.c.h.bf16 %v3954
        %v4040 = vunpack.c.l.bf16 %v3957
        %v4041 = vunpack.c.h.bf16 %v3957
        %v4042 = vunpack.c.l.bf16 %v3960
        %v4043 = vunpack.c.h.bf16 %v3960
        %v4044 = vunpack.c.l.bf16 %v3963
        %v4045 = vunpack.c.h.bf16 %v3963
        %v4046 = vunpack.c.l.bf16 %v3966
        %v4047 = vunpack.c.h.bf16 %v3966
        %v4048 = vunpack.c.l.bf16 %v3969
        %v4049 = vunpack.c.h.bf16 %v3969
        %v4050 = vunpack.c.l.bf16 %v3972
        %v4051 = vunpack.c.h.bf16 %v3972
        %v4052 = vunpack.c.l.bf16 %v3975
        %v4053 = vunpack.c.h.bf16 %v3975
        %v4054 = vunpack.c.l.bf16 %v3978
        %v4055 = vunpack.c.h.bf16 %v3978
        %v4056 = vunpack.c.l.bf16 %v3981
        %v4057 = vunpack.c.h.bf16 %v3981
        %v4058 = vunpack.c.l.bf16 %v3984
        %v4059 = vunpack.c.h.bf16 %v3984
        %v4060 = vunpack.c.l.bf16 %v3987
        %v4061 = vunpack.c.h.bf16 %v3987
        %v4062 = vunpack.c.l.bf16 %v3990
        %v4063 = vunpack.c.h.bf16 %v3990
        %v4064 = vunpack.c.l.bf16 %v3993
        %v4065 = vunpack.c.h.bf16 %v3993
        %v4066 = vunpack.c.l.bf16 %v3996
        %v4067 = vunpack.c.h.bf16 %v3996
        %v4068 = vunpack.c.l.bf16 %v3999
        %v4069 = vunpack.c.h.bf16 %v3999
        %v4070 = vunpack.c.l.bf16 %v4002
        %v4071 = vunpack.c.h.bf16 %v4002
        %v4072 = vunpack.c.l.bf16 %v4005
        %v4073 = vunpack.c.h.bf16 %v4005
        %v4074 = vadd.f32 %v4010, %v4011
        %v4075 = vadd.f32 %v4074, %v4012
        %v4076 = vadd.f32 %v4075, %v4013
        %v4077 = vadd.f32 %v4076, %v4014
        %v4078 = vadd.f32 %v4077, %v4015
        %v4079 = vadd.f32 %v4078, %v4016
        %v4080 = vadd.f32 %v4079, %v4017
        %v4081 = vadd.f32 %v4080, %v4018
        %v4082 = vadd.f32 %v4081, %v4019
        %v4083 = vadd.f32 %v4082, %v4020
        %v4084 = vadd.f32 %v4083, %v4021
        %v4085 = vadd.f32 %v4084, %v4022
        %v4086 = vadd.f32 %v4085, %v4023
        %v4087 = vadd.f32 %v4086, %v4024
        %v4088 = vadd.f32 %v4087, %v4025
        %v4089 = vrot.slane %v4088, 4
        %v4090 = vadd.f32 %v4088, %v4089
        %v4091 = vrot.slane %v4090, 2
        %v4092 = vadd.f32 %v4090, %v4091
        %v4093 = vrot.slane %v4092, 1
        %v4094 = vadd.f32 %v4092, %v4093
        %v4095 = vadd.f32 %v4026, %v4027
        %v4096 = vadd.f32 %v4095, %v4028
        %v4097 = vadd.f32 %v4096, %v4029
        %v4098 = vadd.f32 %v4097, %v4030
        %v4099 = vadd.f32 %v4098, %v4031
        %v4100 = vadd.f32 %v4099, %v4032
        %v4101 = vadd.f32 %v4100, %v4033
        %v4102 = vadd.f32 %v4101, %v4034
        %v4103 = vadd.f32 %v4102, %v4035
        %v4104 = vadd.f32 %v4103, %v4036
        %v4105 = vadd.f32 %v4104, %v4037
        %v4106 = vadd.f32 %v4105, %v4038
        %v4107 = vadd.f32 %v4106, %v4039
        %v4108 = vadd.f32 %v4107, %v4040
        %v4109 = vadd.f32 %v4108, %v4041
        %v4110 = vrot.slane %v4109, 4
        %v4111 = vadd.f32 %v4109, %v4110
        %v4112 = vrot.slane %v4111, 2
        %v4113 = vadd.f32 %v4111, %v4112
        %v4114 = vrot.slane %v4113, 1
        %v4115 = vadd.f32 %v4113, %v4114
        %v4116 = vadd.f32 %v4042, %v4043
        %v4117 = vadd.f32 %v4116, %v4044
        %v4118 = vadd.f32 %v4117, %v4045
        %v4119 = vadd.f32 %v4118, %v4046
        %v4120 = vadd.f32 %v4119, %v4047
        %v4121 = vadd.f32 %v4120, %v4048
        %v4122 = vadd.f32 %v4121, %v4049
        %v4123 = vadd.f32 %v4122, %v4050
        %v4124 = vadd.f32 %v4123, %v4051
        %v4125 = vadd.f32 %v4124, %v4052
        %v4126 = vadd.f32 %v4125, %v4053
        %v4127 = vadd.f32 %v4126, %v4054
        %v4128 = vadd.f32 %v4127, %v4055
        %v4129 = vadd.f32 %v4128, %v4056
        %v4130 = vadd.f32 %v4129, %v4057
        %v4131 = vrot.slane %v4130, 4
        %v4132 = vadd.f32 %v4130, %v4131
        %v4133 = vrot.slane %v4132, 2
        %v4134 = vadd.f32 %v4132, %v4133
        %v4135 = vrot.slane %v4134, 1
        %v4136 = vadd.f32 %v4134, %v4135
        %v4137 = vadd.f32 %v4058, %v4059
        %v4138 = vadd.f32 %v4137, %v4060
        %v4139 = vadd.f32 %v4138, %v4061
        %v4140 = vadd.f32 %v4139, %v4062
        %v4141 = vadd.f32 %v4140, %v4063
        %v4142 = vadd.f32 %v4141, %v4064
        %v4143 = vadd.f32 %v4142, %v4065
        %v4144 = vadd.f32 %v4143, %v4066
        %v4145 = vadd.f32 %v4144, %v4067
        %v4146 = vadd.f32 %v4145, %v4068
        %v4147 = vadd.f32 %v4146, %v4069
        %v4148 = vadd.f32 %v4147, %v4070
        %v4149 = vadd.f32 %v4148, %v4071
        %v4150 = vadd.f32 %v4149, %v4072
        %v4151 = vadd.f32 %v4150, %v4073
        %v4152 = vrot.slane %v4151, 4
        %v4153 = vadd.f32 %v4151, %v4152
        %v4154 = vrot.slane %v4153, 2
        %v4155 = vadd.f32 %v4153, %v4154
        %v4156 = vrot.slane %v4155, 1
        %v4157 = vadd.f32 %v4155, %v4156
        %v4158 = vadd.f32 %v4006, %v4094
        %v4159 = vadd.f32 %v4007, %v4115
        %v4160 = vadd.f32 %v4008, %v4136
        %v4161 = vadd.f32 %v4009, %v4157
        %4162 = vmatprep.subr.bf16.mxu0 0
        %4163 = vmatpush1.bf16.msra.mxu0 %v3933
        %4164 = vmatprep.subr.bf16.mxu0 0
        %4165 = vmatpush1.bf16.msra.mxu0 %v3930
        %4166 = vmatprep.subr.bf16.mxu0 0
        %4167 = vmatpush1.bf16.msra.mxu0 %v3927
        %4168 = vmatprep.subr.bf16.mxu0 0
        %4169 = vmatpush1.bf16.msra.mxu0 %v3924
        %4170 = vmatprep.subr.bf16.mxu0 0
        %4171 = vmatpush1.bf16.msra.mxu0 %v3921
        %4172 = vmatprep.subr.bf16.mxu0 0
        %4173 = vmatpush1.bf16.msra.mxu0 %v3918
        %4174 = vmatprep.subr.bf16.mxu0 0
        %4175 = vmatpush1.bf16.msra.mxu0 %v3915
        %4176 = vmatprep.subr.bf16.mxu0 0
        %4177 = vmatpush1.bf16.msra.mxu0 %v3912
        %4178 = vmatprep.subr.bf16.mxu0 0
        %4179 = vmatpush2.bf16.msra.mxu0 0
        %4180 = vmatprep.subr.bf16.mxu0 0
        %4181 = vmatpush2.bf16.msra.mxu0 0
        %4182 = vmatprep.subr.bf16.mxu0 0
        %4183 = vmatpush2.bf16.msra.mxu0 0
        %4184 = vmatprep.subr.bf16.mxu0 0
        %4185 = vmatpush2.bf16.msra.mxu0 0
        %4186 = vmatprep.subr.bf16.mxu0 0
        %4187 = vmatpush2.bf16.msra.mxu0 0
        %4188 = vmatprep.subr.bf16.mxu0 0
        %4189 = vmatpush2.bf16.msra.mxu0 0
        %4190 = vmatprep.subr.bf16.mxu0 0
        %4191 = vmatpush2.bf16.msra.mxu0 0
        %4192 = vmatprep.subr.bf16.mxu0 0
        %4193 = vmatpush2.bf16.msra.mxu0 0
        %4194 = vmatprep.mubr.bf16.mxu0 0
        %4195 = vmatmul.mubr.bf16.gmra.mxu0 %v3054
        %v4196 = vpop.f32.mrf.mxu0
        %v4197 = vadd.f32 0.0, %v4196
        %v4198 = vpop.f32.mrf.mxu0
        %v4199 = vpop.f32.mrf.mxu0
        %v4200 = vpop.f32.mrf.mxu0
        %4201 = vdwg.mxu0
        %4202 = vmatprep.subr.bf16.mxu0 0
        %4203 = vmatpush1.bf16.msra.mxu0 %v3957
        %4204 = vmatprep.subr.bf16.mxu0 0
        %4205 = vmatpush1.bf16.msra.mxu0 %v3954
        %4206 = vmatprep.subr.bf16.mxu0 0
        %4207 = vmatpush1.bf16.msra.mxu0 %v3951
        %4208 = vmatprep.subr.bf16.mxu0 0
        %4209 = vmatpush1.bf16.msra.mxu0 %v3948
        %4210 = vmatprep.subr.bf16.mxu0 0
        %4211 = vmatpush1.bf16.msra.mxu0 %v3945
        %4212 = vmatprep.subr.bf16.mxu0 0
        %4213 = vmatpush1.bf16.msra.mxu0 %v3942
        %4214 = vmatprep.subr.bf16.mxu0 0
        %4215 = vmatpush1.bf16.msra.mxu0 %v3939
        %4216 = vmatprep.subr.bf16.mxu0 0
        %4217 = vmatpush1.bf16.msra.mxu0 %v3936
        %4218 = vmatprep.subr.bf16.mxu0 0
        %4219 = vmatpush2.bf16.msra.mxu0 0
        %4220 = vmatprep.subr.bf16.mxu0 0
        %4221 = vmatpush2.bf16.msra.mxu0 0
        %4222 = vmatprep.subr.bf16.mxu0 0
        %4223 = vmatpush2.bf16.msra.mxu0 0
        %4224 = vmatprep.subr.bf16.mxu0 0
        %4225 = vmatpush2.bf16.msra.mxu0 0
        %4226 = vmatprep.subr.bf16.mxu0 0
        %4227 = vmatpush2.bf16.msra.mxu0 0
        %4228 = vmatprep.subr.bf16.mxu0 0
        %4229 = vmatpush2.bf16.msra.mxu0 0
        %4230 = vmatprep.subr.bf16.mxu0 0
        %4231 = vmatpush2.bf16.msra.mxu0 0
        %4232 = vmatprep.subr.bf16.mxu0 0
        %4233 = vmatpush2.bf16.msra.mxu0 0
        %4234 = vmatprep.mubr.bf16.mxu0 0
        %4235 = vmatmul.mubr.bf16.gmra.mxu0 %v3055
        %v4236 = vpop.f32.mrf.mxu0
        %v4237 = vadd.f32 0.0, %v4236
        %v4238 = vpop.f32.mrf.mxu0
        %v4239 = vpop.f32.mrf.mxu0
        %v4240 = vpop.f32.mrf.mxu0
        %4241 = vdwg.mxu0
        %4242 = vmatprep.subr.bf16.mxu0 0
        %4243 = vmatpush1.bf16.msra.mxu0 %v3981
        %4244 = vmatprep.subr.bf16.mxu0 0
        %4245 = vmatpush1.bf16.msra.mxu0 %v3978
        %4246 = vmatprep.subr.bf16.mxu0 0
        %4247 = vmatpush1.bf16.msra.mxu0 %v3975
        %4248 = vmatprep.subr.bf16.mxu0 0
        %4249 = vmatpush1.bf16.msra.mxu0 %v3972
        %4250 = vmatprep.subr.bf16.mxu0 0
        %4251 = vmatpush1.bf16.msra.mxu0 %v3969
        %4252 = vmatprep.subr.bf16.mxu0 0
        %4253 = vmatpush1.bf16.msra.mxu0 %v3966
        %4254 = vmatprep.subr.bf16.mxu0 0
        %4255 = vmatpush1.bf16.msra.mxu0 %v3963
        %4256 = vmatprep.subr.bf16.mxu0 0
        %4257 = vmatpush1.bf16.msra.mxu0 %v3960
        %4258 = vmatprep.subr.bf16.mxu0 0
        %4259 = vmatpush2.bf16.msra.mxu0 0
        %4260 = vmatprep.subr.bf16.mxu0 0
        %4261 = vmatpush2.bf16.msra.mxu0 0
        %4262 = vmatprep.subr.bf16.mxu0 0
        %4263 = vmatpush2.bf16.msra.mxu0 0
        %4264 = vmatprep.subr.bf16.mxu0 0
        %4265 = vmatpush2.bf16.msra.mxu0 0
        %4266 = vmatprep.subr.bf16.mxu0 0
        %4267 = vmatpush2.bf16.msra.mxu0 0
        %4268 = vmatprep.subr.bf16.mxu0 0
        %4269 = vmatpush2.bf16.msra.mxu0 0
        %4270 = vmatprep.subr.bf16.mxu0 0
        %4271 = vmatpush2.bf16.msra.mxu0 0
        %4272 = vmatprep.subr.bf16.mxu0 0
        %4273 = vmatpush2.bf16.msra.mxu0 0
        %4274 = vmatprep.mubr.bf16.mxu0 0
        %4275 = vmatmul.mubr.bf16.gmra.mxu0 %v3056
        %v4276 = vpop.f32.mrf.mxu0
        %v4277 = vadd.f32 0.0, %v4276
        %v4278 = vpop.f32.mrf.mxu0
        %v4279 = vpop.f32.mrf.mxu0
        %v4280 = vpop.f32.mrf.mxu0
        %4281 = vdwg.mxu0
        %4282 = vmatprep.subr.bf16.mxu0 0
        %4283 = vmatpush1.bf16.msra.mxu0 %v4005
        %4284 = vmatprep.subr.bf16.mxu0 0
        %4285 = vmatpush1.bf16.msra.mxu0 %v4002
        %4286 = vmatprep.subr.bf16.mxu0 0
        %4287 = vmatpush1.bf16.msra.mxu0 %v3999
        %4288 = vmatprep.subr.bf16.mxu0 0
        %4289 = vmatpush1.bf16.msra.mxu0 %v3996
        %4290 = vmatprep.subr.bf16.mxu0 0
        %4291 = vmatpush1.bf16.msra.mxu0 %v3993
        %4292 = vmatprep.subr.bf16.mxu0 0
        %4293 = vmatpush1.bf16.msra.mxu0 %v3990
        %4294 = vmatprep.subr.bf16.mxu0 0
        %4295 = vmatpush1.bf16.msra.mxu0 %v3987
        %4296 = vmatprep.subr.bf16.mxu0 0
        %4297 = vmatpush1.bf16.msra.mxu0 %v3984
        %4298 = vmatprep.subr.bf16.mxu0 0
        %4299 = vmatpush2.bf16.msra.mxu0 0
        %4300 = vmatprep.subr.bf16.mxu0 0
        %4301 = vmatpush2.bf16.msra.mxu0 0
        %4302 = vmatprep.subr.bf16.mxu0 0
        %4303 = vmatpush2.bf16.msra.mxu0 0
        %4304 = vmatprep.subr.bf16.mxu0 0
        %4305 = vmatpush2.bf16.msra.mxu0 0
        %4306 = vmatprep.subr.bf16.mxu0 0
        %4307 = vmatpush2.bf16.msra.mxu0 0
        %4308 = vmatprep.subr.bf16.mxu0 0
        %4309 = vmatpush2.bf16.msra.mxu0 0
        %4310 = vmatprep.subr.bf16.mxu0 0
        %4311 = vmatpush2.bf16.msra.mxu0 0
        %4312 = vmatprep.subr.bf16.mxu0 0
        %4313 = vmatpush2.bf16.msra.mxu0 0
        %4314 = vmatprep.mubr.bf16.mxu0 0
        %4315 = vmatmul.mubr.bf16.gmra.mxu0 %v3057
        %v4316 = vpop.f32.mrf.mxu0
        %v4317 = vadd.f32 0.0, %v4316
        %v4318 = vpop.f32.mrf.mxu0
        %v4319 = vpop.f32.mrf.mxu0
        %v4320 = vpop.f32.mrf.mxu0
        %4321 = vdwg.mxu0
        %v4322 = vadd.f32 %v4006, %v4197
        %v4323 = vadd.f32 %v4007, %v4237
        %v4324 = vadd.f32 %v4008, %v4277
        %v4325 = vadd.f32 %v4009, %v4317
        %v4326 = vrcp.pop %v4158
        %v4327 = vrcp.pop %v4159
        %v4328 = vrcp.pop %v4160
        %v4329 = vrcp.pop %v4161
        %v4330 = vmul.f32 %v4322, %v4326
        %v4331 = vmul.f32 %v4323, %v4327
        %v4332 = vmul.f32 %v4324, %v4328
        %v4333 = vmul.f32 %v4325, %v4329
        %v4334 = vpack.c.bf16 %v4331, %v4330
        %v4335 = vpack.c.bf16 %v4333, %v4332
        %4337 = vset.pattern.permute.xlu0 0
        %4338 = vperm.xlu0 %4337, %v529
        %v4339 = vpop.permute.xlu0 %4338
        %4342 = vset.pattern.permute.xlu0 0
        %4343 = vperm.xlu0 %4342, %v530
        %v4344 = vpop.permute.xlu0 %4343
        %4347 = vset.pattern.permute.xlu0 0
        %4348 = vperm.xlu0 %4347, %v531
        %v4349 = vpop.permute.xlu0 %4348
        %4352 = vset.pattern.permute.xlu0 0
        %4353 = vperm.xlu0 %4352, %v532
        %v4354 = vpop.permute.xlu0 %4353
        %v4360 = vunpack.c.l.b16 %v2816
        %v4361 = vunpack.c.l.b16 %v2817
        %v4362 = vunpack.c.l.b16 %v2818
        %v4363 = vunpack.c.l.b16 %v2819
        %v4364 = vpack.c.b16 %v4361, %v4360
        %v4365 = vpack.c.b16 %v4363, %v4362
        %v4367 = vsel %vm765, %v4364, 0
        %v4370 = vsel %vm765, %v4365, 0
        %4372 = vmatprep.subr.bf16.mxu0 0
        %4373 = vmatpush1.bf16.msra.mxu0 0
        %4374 = vmatprep.subr.bf16.mxu0 0
        %4375 = vmatpush1.bf16.msra.mxu0 0
        %4376 = vmatprep.subr.bf16.mxu0 0
        %4377 = vmatpush1.bf16.msra.mxu0 0
        %4378 = vmatprep.subr.bf16.mxu0 0
        %4379 = vmatpush1.bf16.msra.mxu0 0
        %4380 = vmatprep.subr.bf16.mxu0 0
        %4381 = vmatpush1.bf16.msra.mxu0 0
        %4382 = vmatprep.subr.bf16.mxu0 0
        %4383 = vmatpush1.bf16.msra.mxu0 0
        %4384 = vmatprep.subr.bf16.mxu0 0
        %4385 = vmatpush1.bf16.msra.mxu0 %v4335
        %4386 = vmatprep.subr.bf16.mxu0 0
        %4387 = vmatpush1.bf16.msra.mxu0 %v4334
        %4388 = vmatprep.subr.bf16.mxu0 0
        %4389 = vmatpush2.bf16.msra.mxu0 0
        %4390 = vmatprep.subr.bf16.mxu0 0
        %4391 = vmatpush2.bf16.msra.mxu0 0
        %4392 = vmatprep.subr.bf16.mxu0 0
        %4393 = vmatpush2.bf16.msra.mxu0 0
        %4394 = vmatprep.subr.bf16.mxu0 0
        %4395 = vmatpush2.bf16.msra.mxu0 0
        %4396 = vmatprep.subr.bf16.mxu0 0
        %4397 = vmatpush2.bf16.msra.mxu0 0
        %4398 = vmatprep.subr.bf16.mxu0 0
        %4399 = vmatpush2.bf16.msra.mxu0 0
        %4400 = vmatprep.subr.bf16.mxu0 0
        %4401 = vmatpush2.bf16.msra.mxu0 0
        %4402 = vmatprep.subr.bf16.mxu0 0
        %4403 = vmatpush2.bf16.msra.mxu0 0
        %4404 = vmatprep.mubr.bf16.mxu0 0
        %4405 = vmatmul.mubr.bf16.gmra.mxu0 %v4367
        %v4406 = vpop.f32.mrf.mxu0
        %v4407 = vadd.f32 %v4339, %v4406
        %v4408 = vpop.f32.mrf.mxu0
        %v4409 = vpop.f32.mrf.mxu0
        %v4410 = vadd.f32 %v4344, %v4409
        %v4411 = vpop.f32.mrf.mxu0
        %4412 = vmatprep.mubr.bf16.mxu0 0
        %4413 = vmatmul.mubr.bf16.gmra.mxu0 %v4370
        %v4414 = vpop.f32.mrf.mxu0
        %v4415 = vadd.f32 %v4349, %v4414
        %v4416 = vpop.f32.mrf.mxu0
        %v4417 = vpop.f32.mrf.mxu0
        %v4418 = vadd.f32 %v4354, %v4417
        %v4419 = vpop.f32.mrf.mxu0
        %4420 = vdwg.mxu0
        %v4421 = vadd.f32 %v4407, %v2718
        %v4422 = vadd.f32 %v4410, %v2719
        %v4423 = vadd.f32 %v4415, %v2720
        %v4424 = vadd.f32 %v4418, %v2721
        %v4425 = vadd.f32 %v4421, %v4422
        %v4426 = vadd.f32 %v4425, %v4423
        %v4427 = vadd.f32 %v4426, %v4424
        %v4428 = vrot.slane %v4427, 4
        %v4429 = vadd.f32 %v4427, %v4428
        %v4430 = vrot.slane %v4429, 2
        %v4431 = vadd.f32 %v4429, %v4430
        %v4432 = vrot.slane %v4431, 1
        %v4433 = vadd.f32 %v4431, %v4432
        %v4434 = vmul.f32 %v4433, %v1032
        %v4435 = vsub.f32 %v4421, %v4434
        %v4436 = vsub.f32 %v4422, %v4434
        %v4437 = vsub.f32 %v4423, %v4434
        %v4438 = vsub.f32 %v4424, %v4434
        %v4439 = vmul.f32 %v4435, %v4435
        %v4440 = vmul.f32 %v4436, %v4436
        %v4441 = vmul.f32 %v4437, %v4437
        %v4442 = vmul.f32 %v4438, %v4438
        %v4443 = vadd.f32 %v4439, %v4440
        %v4444 = vadd.f32 %v4443, %v4441
        %v4445 = vadd.f32 %v4444, %v4442
        %v4446 = vrot.slane %v4445, 4
        %v4447 = vadd.f32 %v4445, %v4446
        %v4448 = vrot.slane %v4447, 2
        %v4449 = vadd.f32 %v4447, %v4448
        %v4450 = vrot.slane %v4449, 1
        %v4451 = vadd.f32 %v4449, %v4450
        %v4452 = vmul.f32 %v4451, %v1032
        %v4453 = vadd.f32 %v4452, 1e-06
        %v4454 = vrsqrt.pop %v4453
        %v4455 = vmul.f32 %v4435, %v4454
        %v4456 = vmul.f32 %v4436, %v4454
        %v4457 = vmul.f32 %v4437, %v4454
        %v4458 = vmul.f32 %v4438, %v4454
        %v4459 = vadd.f32 %v985, 1.0
        %v4460 = vadd.f32 %v990, 1.0
        %v4461 = vadd.f32 %v995, 1.0
        %v4462 = vadd.f32 %v1000, 1.0
        %4464 = vset.pattern.permute.xlu0 0
        %4465 = vperm.xlu0 %4464, %v4459
        %v4466 = vpop.permute.xlu0 %4465
        %4469 = vset.pattern.permute.xlu0 0
        %4470 = vperm.xlu0 %4469, %v4460
        %v4471 = vpop.permute.xlu0 %4470
        %4474 = vset.pattern.permute.xlu0 0
        %4475 = vperm.xlu0 %4474, %v4461
        %v4476 = vpop.permute.xlu0 %4475
        %4479 = vset.pattern.permute.xlu0 0
        %4480 = vperm.xlu0 %4479, %v4462
        %v4481 = vpop.permute.xlu0 %4480
        %v4483 = vmul.f32 %v4455, %v4466
        %v4484 = vmul.f32 %v4456, %v4471
        %v4485 = vmul.f32 %v4457, %v4476
        %v4486 = vmul.f32 %v4458, %v4481
        %4488 = vset.pattern.permute.xlu0 0
        %4489 = vperm.xlu0 %4488, %v965
        %v4490 = vpop.permute.xlu0 %4489
        %4493 = vset.pattern.permute.xlu0 0
        %4494 = vperm.xlu0 %4493, %v970
        %v4495 = vpop.permute.xlu0 %4494
        %4498 = vset.pattern.permute.xlu0 0
        %4499 = vperm.xlu0 %4498, %v975
        %v4500 = vpop.permute.xlu0 %4499
        %4503 = vset.pattern.permute.xlu0 0
        %4504 = vperm.xlu0 %4503, %v980
        %v4505 = vpop.permute.xlu0 %4504
        %v4507 = vadd.f32 %v4483, %v4490
        %v4508 = vadd.f32 %v4484, %v4495
        %v4509 = vadd.f32 %v4485, %v4500
        %v4510 = vadd.f32 %v4486, %v4505
        %v4511 = vmul.f32 %v4507, %v552
        %v4512 = vmul.f32 %v4508, %v552
        %v4513 = vmul.f32 %v4509, %v552
        %v4514 = vmul.f32 %v4510, %v552
        %4515 = vrot.lane.b32.xlu0 %v4511, 1
        %v4516 = vpop.permute.xlu0 %4515
        %4517 = vrot.lane.b32.xlu0 %v4512, 1
        %v4518 = vpop.permute.xlu0 %4517
        %4519 = vrot.lane.b32.xlu0 %v4513, 1
        %v4520 = vpop.permute.xlu0 %4519
        %4521 = vrot.lane.b32.xlu0 %v4514, 1
        %v4522 = vpop.permute.xlu0 %4521
        %v4523 = vmul.f32 %v4516, %v555
        %v4524 = vmul.f32 %v4518, %v555
        %v4525 = vmul.f32 %v4520, %v555
        %v4526 = vmul.f32 %v4522, %v555
        %4527 = vrot.lane.b32.xlu0 %v4511, 127
        %v4528 = vpop.permute.xlu0 %4527
        %4529 = vrot.lane.b32.xlu0 %v4512, 127
        %v4530 = vpop.permute.xlu0 %4529
        %4531 = vrot.lane.b32.xlu0 %v4513, 127
        %v4532 = vpop.permute.xlu0 %4531
        %4533 = vrot.lane.b32.xlu0 %v4514, 127
        %v4534 = vpop.permute.xlu0 %4533
        %v4535 = vmul.f32 %v4528, %v558
        %v4536 = vmul.f32 %v4530, %v558
        %v4537 = vmul.f32 %v4532, %v558
        %v4538 = vmul.f32 %v4534, %v558
        %v4539 = vld [vmem:[%s11] sm:$0xf]
        %v4540 = vld [vmem:[%s11 + $0x4] sm:$0xf]
        %v4541 = vld [vmem:[%s11 + $0x8] sm:$0xf]
        %v4542 = vld [vmem:[%s11 + $0xc] sm:$0xf]
        %v4543 = vld [vmem:[%s11 + $0x10] sm:$0xf]
        %v4544 = vld [vmem:[%s11 + $0x14] sm:$0xf]
        %v4545 = vld [vmem:[%s11 + $0x18] sm:$0xf]
        %v4546 = vld [vmem:[%s11 + $0x1c] sm:$0xf]
        %v4547 = vpack.c.bf16 %v4524, %v4523
        %v4548 = vpack.c.bf16 %v4526, %v4525
        %v4549 = vpack.c.bf16 %v4512, %v4511
        %v4550 = vpack.c.bf16 %v4514, %v4513
        %v4551 = vpack.c.bf16 %v4536, %v4535
        %v4552 = vpack.c.bf16 %v4538, %v4537
        %4554 = vset.pattern.permute.xlu0 0
        %4555 = vperm.xlu0 %4554, %v533
        %v4556 = vpop.permute.xlu0 %4555
        %4559 = vset.pattern.permute.xlu0 0
        %4560 = vperm.xlu0 %4559, %v534
        %v4561 = vpop.permute.xlu0 %4560
        %4564 = vset.pattern.permute.xlu0 0
        %4565 = vperm.xlu0 %4564, %v535
        %v4566 = vpop.permute.xlu0 %4565
        %4569 = vset.pattern.permute.xlu0 0
        %4570 = vperm.xlu0 %4569, %v536
        %v4571 = vpop.permute.xlu0 %4570
        %4574 = vset.pattern.permute.xlu0 0
        %4575 = vperm.xlu0 %4574, %v537
        %v4576 = vpop.permute.xlu0 %4575
        %4579 = vset.pattern.permute.xlu0 0
        %4580 = vperm.xlu0 %4579, %v538
        %v4581 = vpop.permute.xlu0 %4580
        %4584 = vset.pattern.permute.xlu0 0
        %4585 = vperm.xlu0 %4584, %v539
        %v4586 = vpop.permute.xlu0 %4585
        %4589 = vset.pattern.permute.xlu0 0
        %4590 = vperm.xlu0 %4589, %v540
        %v4591 = vpop.permute.xlu0 %4590
        %v4601 = vunpack.c.l.b16 %v4539
        %v4602 = vunpack.c.l.b16 %v4540
        %v4603 = vunpack.c.l.b16 %v4541
        %v4604 = vunpack.c.l.b16 %v4542
        %v4605 = vunpack.c.l.b16 %v4543
        %v4606 = vunpack.c.l.b16 %v4544
        %v4607 = vunpack.c.l.b16 %v4545
        %v4608 = vunpack.c.l.b16 %v4546
        %v4609 = vpack.c.b16 %v4602, %v4601
        %v4610 = vpack.c.b16 %v4604, %v4603
        %v4611 = vpack.c.b16 %v4606, %v4605
        %v4612 = vpack.c.b16 %v4608, %v4607
        %vm4613 = vcmask 785408
        %v4615 = vsel %vm4613, %v4609, 0
        %v4618 = vsel %vm4613, %v4610, 0
        %v4621 = vsel %vm4613, %v4611, 0
        %v4624 = vsel %vm4613, %v4612, 0
        %4626 = vmatprep.subr.bf16.mxu0 0
        %4627 = vmatpush1.bf16.msra.mxu0 0
        %4628 = vmatprep.subr.bf16.mxu0 0
        %4629 = vmatpush1.bf16.msra.mxu0 0
        %4630 = vmatprep.subr.bf16.mxu0 0
        %4631 = vmatpush1.bf16.msra.mxu0 %v4552
        %4632 = vmatprep.subr.bf16.mxu0 0
        %4633 = vmatpush1.bf16.msra.mxu0 %v4551
        %4634 = vmatprep.subr.bf16.mxu0 0
        %4635 = vmatpush1.bf16.msra.mxu0 %v4550
        %4636 = vmatprep.subr.bf16.mxu0 0
        %4637 = vmatpush1.bf16.msra.mxu0 %v4549
        %4638 = vmatprep.subr.bf16.mxu0 0
        %4639 = vmatpush1.bf16.msra.mxu0 %v4548
        %4640 = vmatprep.subr.bf16.mxu0 0
        %4641 = vmatpush1.bf16.msra.mxu0 %v4547
        %4642 = vmatprep.subr.bf16.mxu0 0
        %4643 = vmatpush2.bf16.msra.mxu0 0
        %4644 = vmatprep.subr.bf16.mxu0 0
        %4645 = vmatpush2.bf16.msra.mxu0 0
        %4646 = vmatprep.subr.bf16.mxu0 0
        %4647 = vmatpush2.bf16.msra.mxu0 0
        %4648 = vmatprep.subr.bf16.mxu0 0
        %4649 = vmatpush2.bf16.msra.mxu0 0
        %4650 = vmatprep.subr.bf16.mxu0 0
        %4651 = vmatpush2.bf16.msra.mxu0 0
        %4652 = vmatprep.subr.bf16.mxu0 0
        %4653 = vmatpush2.bf16.msra.mxu0 0
        %4654 = vmatprep.subr.bf16.mxu0 0
        %4655 = vmatpush2.bf16.msra.mxu0 0
        %4656 = vmatprep.subr.bf16.mxu0 0
        %4657 = vmatpush2.bf16.msra.mxu0 0
        %4658 = vmatprep.mubr.bf16.mxu0 0
        %4659 = vmatmul.mubr.bf16.gmra.mxu0 %v4615
        %v4660 = vpop.f32.mrf.mxu0
        %v4661 = vadd.f32 %v4556, %v4660
        %v4662 = vpop.f32.mrf.mxu0
        %v4663 = vpop.f32.mrf.mxu0
        %v4664 = vadd.f32 %v4561, %v4663
        %v4665 = vpop.f32.mrf.mxu0
        %4666 = vmatprep.mubr.bf16.mxu0 0
        %4667 = vmatmul.mubr.bf16.gmra.mxu0 %v4618
        %v4668 = vpop.f32.mrf.mxu0
        %v4669 = vadd.f32 %v4566, %v4668
        %v4670 = vpop.f32.mrf.mxu0
        %v4671 = vpop.f32.mrf.mxu0
        %v4672 = vadd.f32 %v4571, %v4671
        %v4673 = vpop.f32.mrf.mxu0
        %4674 = vmatprep.mubr.bf16.mxu0 0
        %4675 = vmatmul.mubr.bf16.gmra.mxu0 %v4621
        %v4676 = vpop.f32.mrf.mxu0
        %v4677 = vadd.f32 %v4576, %v4676
        %v4678 = vpop.f32.mrf.mxu0
        %v4679 = vpop.f32.mrf.mxu0
        %v4680 = vadd.f32 %v4581, %v4679
        %v4681 = vpop.f32.mrf.mxu0
        %4682 = vmatprep.mubr.bf16.mxu0 0
        %4683 = vmatmul.mubr.bf16.gmra.mxu0 %v4624
        %v4684 = vpop.f32.mrf.mxu0
        %v4685 = vadd.f32 %v4586, %v4684
        %v4686 = vpop.f32.mrf.mxu0
        %v4687 = vpop.f32.mrf.mxu0
        %v4688 = vadd.f32 %v4591, %v4687
        %v4689 = vpop.f32.mrf.mxu0
        %4690 = vdwg.mxu0
        %v4691 = vmax.f32 %v4661, 0.0
        %v4692 = vmax.f32 %v4664, 0.0
        %v4693 = vmax.f32 %v4669, 0.0
        %v4694 = vmax.f32 %v4672, 0.0
        %v4695 = vmax.f32 %v4677, 0.0
        %v4696 = vmax.f32 %v4680, 0.0
        %v4697 = vmax.f32 %v4685, 0.0
        %v4698 = vmax.f32 %v4688, 0.0
        %v4699 = vmul.f32 %v4691, %v552
        %v4700 = vmul.f32 %v4692, %v552
        %v4701 = vmul.f32 %v4693, %v552
        %v4702 = vmul.f32 %v4694, %v552
        %v4703 = vmul.f32 %v4695, %v552
        %v4704 = vmul.f32 %v4696, %v552
        %v4705 = vmul.f32 %v4697, %v552
        %v4706 = vmul.f32 %v4698, %v552
        %4707 = vrot.lane.b32.xlu0 %v4699, 1
        %v4708 = vpop.permute.xlu0 %4707
        %4709 = vrot.lane.b32.xlu0 %v4700, 1
        %v4710 = vpop.permute.xlu0 %4709
        %4711 = vrot.lane.b32.xlu0 %v4701, 1
        %v4712 = vpop.permute.xlu0 %4711
        %4713 = vrot.lane.b32.xlu0 %v4702, 1
        %v4714 = vpop.permute.xlu0 %4713
        %4715 = vrot.lane.b32.xlu0 %v4703, 1
        %v4716 = vpop.permute.xlu0 %4715
        %4717 = vrot.lane.b32.xlu0 %v4704, 1
        %v4718 = vpop.permute.xlu0 %4717
        %4719 = vrot.lane.b32.xlu0 %v4705, 1
        %v4720 = vpop.permute.xlu0 %4719
        %4721 = vrot.lane.b32.xlu0 %v4706, 1
        %v4722 = vpop.permute.xlu0 %4721
        %v4723 = vmul.f32 %v4708, %v555
        %v4724 = vmul.f32 %v4710, %v555
        %v4725 = vmul.f32 %v4712, %v555
        %v4726 = vmul.f32 %v4714, %v555
        %v4727 = vmul.f32 %v4716, %v555
        %v4728 = vmul.f32 %v4718, %v555
        %v4729 = vmul.f32 %v4720, %v555
        %v4730 = vmul.f32 %v4722, %v555
        %4731 = vrot.lane.b32.xlu0 %v4699, 127
        %v4732 = vpop.permute.xlu0 %4731
        %4733 = vrot.lane.b32.xlu0 %v4700, 127
        %v4734 = vpop.permute.xlu0 %4733
        %4735 = vrot.lane.b32.xlu0 %v4701, 127
        %v4736 = vpop.permute.xlu0 %4735
        %4737 = vrot.lane.b32.xlu0 %v4702, 127
        %v4738 = vpop.permute.xlu0 %4737
        %4739 = vrot.lane.b32.xlu0 %v4703, 127
        %v4740 = vpop.permute.xlu0 %4739
        %4741 = vrot.lane.b32.xlu0 %v4704, 127
        %v4742 = vpop.permute.xlu0 %4741
        %4743 = vrot.lane.b32.xlu0 %v4705, 127
        %v4744 = vpop.permute.xlu0 %4743
        %4745 = vrot.lane.b32.xlu0 %v4706, 127
        %v4746 = vpop.permute.xlu0 %4745
        %v4747 = vmul.f32 %v4732, %v558
        %v4748 = vmul.f32 %v4734, %v558
        %v4749 = vmul.f32 %v4736, %v558
        %v4750 = vmul.f32 %v4738, %v558
        %v4751 = vmul.f32 %v4740, %v558
        %v4752 = vmul.f32 %v4742, %v558
        %v4753 = vmul.f32 %v4744, %v558
        %v4754 = vmul.f32 %v4746, %v558
        %v4755 = vld [vmem:[%s12] sm:$0xff]
        %v4756 = vld [vmem:[%s12 + $0x8] sm:$0xff]
        %v4757 = vld [vmem:[%s12 + $0x10] sm:$0xff]
        %v4758 = vld [vmem:[%s12 + $0x18] sm:$0xff]
        %v4759 = vpack.c.bf16 %v4724, %v4723
        %v4760 = vpack.c.bf16 %v4726, %v4725
        %v4761 = vpack.c.bf16 %v4728, %v4727
        %v4762 = vpack.c.bf16 %v4730, %v4729
        %v4763 = vpack.c.bf16 %v4700, %v4699
        %v4764 = vpack.c.bf16 %v4702, %v4701
        %v4765 = vpack.c.bf16 %v4704, %v4703
        %v4766 = vpack.c.bf16 %v4706, %v4705
        %v4767 = vpack.c.bf16 %v4748, %v4747
        %v4768 = vpack.c.bf16 %v4750, %v4749
        %v4769 = vpack.c.bf16 %v4752, %v4751
        %v4770 = vpack.c.bf16 %v4754, %v4753
        %4772 = vset.pattern.permute.xlu0 0
        %4773 = vperm.xlu0 %4772, %v541
        %v4774 = vpop.permute.xlu0 %4773
        %4777 = vset.pattern.permute.xlu0 0
        %4778 = vperm.xlu0 %4777, %v542
        %v4779 = vpop.permute.xlu0 %4778
        %4782 = vset.pattern.permute.xlu0 0
        %4783 = vperm.xlu0 %4782, %v543
        %v4784 = vpop.permute.xlu0 %4783
        %4787 = vset.pattern.permute.xlu0 0
        %4788 = vperm.xlu0 %4787, %v544
        %v4789 = vpop.permute.xlu0 %4788
        %v4795 = vunpack.c.l.b16 %v4755
        %v4796 = vunpack.c.h.b16 %v4755
        %v4797 = vunpack.c.l.b16 %v4756
        %v4798 = vunpack.c.h.b16 %v4756
        %v4799 = vunpack.c.l.b16 %v4757
        %v4800 = vunpack.c.h.b16 %v4757
        %v4801 = vunpack.c.l.b16 %v4758
        %v4802 = vunpack.c.h.b16 %v4758
        %v4803 = vpack.c.b16 %v4797, %v4795
        %v4804 = vpack.c.b16 %v4798, %v4796
        %v4805 = vpack.c.b16 %v4801, %v4799
        %v4806 = vpack.c.b16 %v4802, %v4800
        %vm4809 = vcmask 523264
        %v4811 = vsel %vm4809, %v4804, 0
        %v4814 = vsel %vm4809, %v4806, 0
        %4816 = vmatprep.subr.bf16.mxu0 0
        %4817 = vmatpush1.bf16.msra.mxu0 %v4766
        %4818 = vmatprep.subr.bf16.mxu0 0
        %4819 = vmatpush1.bf16.msra.mxu0 %v4765
        %4820 = vmatprep.subr.bf16.mxu0 0
        %4821 = vmatpush1.bf16.msra.mxu0 %v4764
        %4822 = vmatprep.subr.bf16.mxu0 0
        %4823 = vmatpush1.bf16.msra.mxu0 %v4763
        %4824 = vmatprep.subr.bf16.mxu0 0
        %4825 = vmatpush1.bf16.msra.mxu0 %v4762
        %4826 = vmatprep.subr.bf16.mxu0 0
        %4827 = vmatpush1.bf16.msra.mxu0 %v4761
        %4828 = vmatprep.subr.bf16.mxu0 0
        %4829 = vmatpush1.bf16.msra.mxu0 %v4760
        %4830 = vmatprep.subr.bf16.mxu0 0
        %4831 = vmatpush1.bf16.msra.mxu0 %v4759
        %4832 = vmatprep.subr.bf16.mxu0 0
        %4833 = vmatpush2.bf16.msra.mxu0 0
        %4834 = vmatprep.subr.bf16.mxu0 0
        %4835 = vmatpush2.bf16.msra.mxu0 0
        %4836 = vmatprep.subr.bf16.mxu0 0
        %4837 = vmatpush2.bf16.msra.mxu0 0
        %4838 = vmatprep.subr.bf16.mxu0 0
        %4839 = vmatpush2.bf16.msra.mxu0 0
        %4840 = vmatprep.subr.bf16.mxu0 0
        %4841 = vmatpush2.bf16.msra.mxu0 %v4770
        %4842 = vmatprep.subr.bf16.mxu0 0
        %4843 = vmatpush2.bf16.msra.mxu0 %v4769
        %4844 = vmatprep.subr.bf16.mxu0 0
        %4845 = vmatpush2.bf16.msra.mxu0 %v4768
        %4846 = vmatprep.subr.bf16.mxu0 0
        %4847 = vmatpush2.bf16.msra.mxu0 %v4767
        %4848 = vmatprep.mubr.bf16.mxu0 %v4811
        %4849 = vmatmul.mubr.bf16.gmra.mxu0 %v4803
        %v4850 = vpop.f32.mrf.mxu0
        %v4851 = vadd.f32 %v4774, %v4850
        %v4852 = vpop.f32.mrf.mxu0
        %v4853 = vpop.f32.mrf.mxu0
        %v4854 = vadd.f32 %v4779, %v4853
        %v4855 = vpop.f32.mrf.mxu0
        %4856 = vmatprep.mubr.bf16.mxu0 %v4814
        %4857 = vmatmul.mubr.bf16.gmra.mxu0 %v4805
        %v4858 = vpop.f32.mrf.mxu0
        %v4859 = vadd.f32 %v4784, %v4858
        %v4860 = vpop.f32.mrf.mxu0
        %v4861 = vpop.f32.mrf.mxu0
        %v4862 = vadd.f32 %v4789, %v4861
        %v4863 = vpop.f32.mrf.mxu0
        %4864 = vdwg.mxu0
        %v4865 = vmul.f32 %v4851, %v552
        %v4866 = vmul.f32 %v4854, %v552
        %v4867 = vmul.f32 %v4859, %v552
        %v4868 = vmul.f32 %v4862, %v552
        %4870 = vset.pattern.permute.xlu0 0
        %4871 = vperm.xlu0 %4870, %v1005
        %v4872 = vpop.permute.xlu0 %4871
        %4875 = vset.pattern.permute.xlu0 0
        %4876 = vperm.xlu0 %4875, %v1010
        %v4877 = vpop.permute.xlu0 %4876
        %4880 = vset.pattern.permute.xlu0 0
        %4881 = vperm.xlu0 %4880, %v1015
        %v4882 = vpop.permute.xlu0 %4881
        %4885 = vset.pattern.permute.xlu0 0
        %4886 = vperm.xlu0 %4885, %v1020
        %v4887 = vpop.permute.xlu0 %4886
        %v4889 = vmul.f32 %v4872, %v4865
        %v4890 = vmul.f32 %v4877, %v4866
        %v4891 = vmul.f32 %v4882, %v4867
        %v4892 = vmul.f32 %v4887, %v4868
        %v4893 = vadd.f32 %v4889, %v4421
        %v4894 = vadd.f32 %v4890, %v4422
        %v4895 = vadd.f32 %v4891, %v4423
        %v4896 = vadd.f32 %v4892, %v4424
        %v4897 = vmul.f32 %v4893, %v552
        %v4898 = vmul.f32 %v4894, %v552
        %v4899 = vmul.f32 %v4895, %v552
        %v4900 = vmul.f32 %v4896, %v552
        %4901 = vst [vmem:[%s448] sm:$0xff] %v4897
        %4902 = vst [vmem:[%s448 + $0x8] sm:$0xff] %v4898
        %4903 = vst [vmem:[%s448 + $0x10] sm:$0xff] %v4899
        %4904 = vst [vmem:[%s448 + $0x18] sm:$0xff] %v4900
        %s4905 = sand.u32 %s313, 1
        %s4906 = scalar_lea.sflag [#allocation6], %s4905
        %s4907 = sand.u32 %s313, 1
        %s4908 = smul.addr %s4907, 32
        %s4909 = scalar_lea.vmem [#allocation5], %s4908
        // Predicated region
        $region69: #{tpu_custom_call.1} parent=67 // pred_check
          %p4910 = pneg %p323
        $region70: #{tpu_custom_call.1} parent=67 // pred_check_branch
          %4912 = sbr.rel (%p4910) target = $region72
        $region71: #{tpu_custom_call.1} parent=67 // pred_region
          %s4914 = ssub.s32 512, 512
          %4915 = vsyncadd %s4906, %s4914
          %s4916 = smul.addr %s38, 4
          %s4917 = smul.addr %s4916, 128
          %s4918 = scalar_lea.hbm %s14, %s4917
          %s4919 = sshll.u32 %s4909, 4
          %s4920 = int_to_ptr.vmem [resolvable:$true] %s4919
          %4925 = dma.vmem_to_hbm [thread:$0]  %s4920, 512, %s4918, %s4906, 128, 128, 8
        $region72: #{tpu_custom_call.1} parent=67 // pred_fallthru
          _
      $region68: #{tpu_custom_call.1} parent=5 // pred_fallthru
        _
      %p4926 = scmp.le.s32.totalorder 2, %s33
      // Predicated region
      $region73: #{tpu_custom_call.1} parent=5 // pred_check
        %p4927 = pneg %p4926
      $region74: #{tpu_custom_call.1} parent=5 // pred_check_branch
        %4929 = sbr.rel (%p4927) target = $region76
      $region75: #{tpu_custom_call.1} parent=5 // pred_region
        %s4930 = ssub.s32 %s33, 2
        // Predicated region
        $region77: #{tpu_custom_call.1} parent=75 // pred_check
          %p4931 = pneg %p329
        $region78: #{tpu_custom_call.1} parent=75 // pred_check_branch
          %4933 = sbr.rel (%p4931) target = $region80
        $region79: #{tpu_custom_call.1} parent=75 // pred_region
          %s4934 = sand.u32 %s314, 1
          %s4935 = scalar_lea.sflag [#allocation6], %s4934
          %s4936 = sand.u32 %s314, 1
          %s4937 = smul.addr %s4936, 32
          %s4938 = scalar_lea.vmem [#allocation5], %s4937
          %4939 = dma.done %s4935, 512
        $region80: #{tpu_custom_call.1} parent=75 // pred_fallthru
          _
      $region76: #{tpu_custom_call.1} parent=5 // pred_fallthru
        _
    $region6: #{tpu_custom_call.1} parent=1 // loop_footer
      %s37 = sadd.s32 1, %s33
    $region7: #{tpu_custom_call.1} parent=1 // loop_footer_branch
      %32 = sbr.rel target = $region3
    $region8: #{tpu_custom_call.1} parent=1 // loop_exit
      _
    %4940 = vsyncpa [#allocation6], 1
    %s4941 = scalar_lea.sflag [#allocation6], 1
    %4942 = vsyncpa %s4941, 1

</llo_original>
